<compile_context>
chip_gen: v7x
topology: tpu7x:2x2x1
jax: 0.10.0
libtpu: 0.0.40
codegen_flags: <defaults>
</compile_context>

<pallas_src>
import functools
import math

import jax
import jax.numpy as jnp
from jax.experimental import pallas as pl
from jax.experimental.pallas import tpu as pltpu

# ----------------------------- configuration (small) -----------------------------
HIDDEN = 32                 # hidden_dim (small stand-in for 192)
HEADS = 4
DK = HIDDEN // HEADS
N_LAYERS = 2
T_DIM = 12
VOTE_E_DIM = 385
LN_EPS = 1e-5               # PyTorch LayerNorm default eps
NEG_BIG = -1e30

NODE_TYPES = ("legislator_term", "bill_version", "committee")
TIME_TYPES = ("bill_version", "legislator_term", "bill")
IN_DIMS = {nt: d for nt, d in zip(NODE_TYPES, [389, 769, 385, 2, 385, 384, 384])}

VOTE_REL = ("legislator_term", "voted_on", "bill_version")
RELATIONS = (
    VOTE_REL,
    ("committee", "reviews", "bill_version"),
    ("bill_version", "assigned_to", "committee"),
)

# ----------------------------- in-kernel helpers -----------------------------


def _gelu(x):
    # TODO(synk): PyTorch nn.GELU() default is the exact erf-GELU; the tanh approximation
    # is used here because erf lowering in Mosaic is not guaranteed (|diff| ~ 1e-3).
    c = math.sqrt(2.0 / math.pi)
    return 0.5 * x * (1.0 + jnp.tanh(c * (x + 0.044715 * x * x * x)))


def _layer_norm(x):
    mu = jnp.mean(x, axis=-1, keepdims=True)
    var = jnp.mean(jnp.square(x - mu), axis=-1, keepdims=True)
    return (x - mu) * jax.lax.rsqrt(var + LN_EPS)


def _bf16_dot(a, b):
    # bf16 MXU inputs, f32 accumulation (v6e/v7x MXU native; also fine on v5e MXU).
    return jnp.dot(a.astype(jnp.bfloat16), b.astype(jnp.bfloat16),
                   preferred_element_type=jnp.float32)


def _f32_dot(a, b):
    # keep one-hot gather / scatter matmuls in f32 so gathers stay bit-exact.
    return jnp.dot(a, b, preferred_element_type=jnp.float32)


def _head_group_mats(d, heads, dk):
    # g[j, h]  = 1 if feature j belongs to head h, else 0   ([d, heads])
    # gt[h, j] = g[j, h]                                    ([heads, d])
    col = jax.lax.broadcasted_iota(jnp.int32, (d, heads), 0)
    hid = jax.lax.broadcasted_iota(jnp.int32, (d, heads), 1)
    g = jnp.logical_and(col >= hid * dk, col < (hid + 1) * dk).astype(jnp.float32)
    colt = jax.lax.broadcasted_iota(jnp.int32, (heads, d), 1)
    hidt = jax.lax.broadcasted_iota(jnp.int32, (heads, d), 0)
    gt = jnp.logical_and(colt >= hidt * dk, colt < (hidt + 1) * dk).astype(jnp.float32)
    return g, gt


# ----------------------------- Pallas kernels -----------------------------


def _projector_kernel(x_ref, g_ref, b_ref, w_ref, o_ref):
    # FeatureProjector per node type: LayerNorm(affine) -> Linear(no bias) -> GELU
    xn = _layer_norm(x_ref[...]) * g_ref[...] + b_ref[...]
    o_ref[...] = _gelu(_bf16_dot(xn, w_ref[...]))


def _rgt_relation_kernel(hdst_ref, hsrc_ref, wq_ref, wkv_ref, rel_ref,
                         dstc_ref, dstr_ref, srcc_ref, wp_ref, o_ref, *, heads, dk):
    # One RGTLayer relation, fully fused:
    #   Q/K/V projection -> edge gather -> per-head logits -> leaky_relu ->
    #   per-segment softmax (per-destination max, +1e-16) -> (1+w) scale ->
    #   weighted values -> scatter_add to destination nodes.
    f32 = jnp.float32
    hd = hdst_ref[...]                      # [Nd, d]
    hs = hsrc_ref[...]                      # [Ns, d]
    nd, d = hd.shape
    ns = hs.shape[0]
    e = dstc_ref.shape[0]

    # dense projections (bf16 MXU inputs, f32 accumulate)
    q_nodes = _bf16_dot(hd, wq_ref[...])                  # [Nd, d]
    kv_nodes = _bf16_dot(hs, wkv_ref[...])                # [Ns, 2d]

    # gather / scatter matrices built in-kernel from int32 edge indices (no HBM one-hots)
    gd = (jax.lax.broadcasted_iota(jnp.int32, (e, nd), 1) == dstc_ref[...]).astype(f32)  # [E,Nd]
    gs = (jax.lax.broadcasted_iota(jnp.int32, (e, ns), 1) == srcc_ref[...]).astype(f32)  # [E,Ns]
    sd = (jax.lax.broadcasted_iota(jnp.int32, (nd, e), 0) == dstr_ref[...]).astype(f32)  # [Nd,E]

    q = _f32_dot(gd, q_nodes)                             # [E, d]  gather dst rows
    kv = _f32_dot(gs, kv_nodes)                           # [E, 2d] gather src rows
    k = kv[:, :d]
    v = kv[:, d:]

    g_mat, gt_mat = _head_group_mats(d, heads, dk)

    prod = q * (k + rel_ref[...])                                       # [E, d]
    logits = _f32_dot(prod, g_mat) * (1.0 / math.sqrt(dk))              # [E, h]
    lr = jnp.where(logits >= 0, logits, 0.01 * logits)                  # leaky_relu

    # segment softmax with PER-SEGMENT max (matches torch_geometric.utils.softmax).
    gd_mask = gd > 0.5
    head_row = jax.lax.broadcasted_iota(jnp.int32, (1, heads), 1)       # [1, h]
    p = jnp.zeros((e, heads), f32)
    for hh in range(heads):                                             # static unroll (h=4)
        lr_h = lr[:, hh:hh + 1]                                         # [E, 1]
        masked = jnp.where(gd_mask, lr_h, NEG_BIG)                      # [E, Nd]
        seg_max_h = jnp.max(masked, axis=0, keepdims=True)              # [1, Nd]
        edge_max_h = jnp.sum(gd * seg_max_h, axis=1, keepdims=True)     # [E, 1] gather back
        p_h = jnp.exp(lr_h - edge_max_h)                                # [E, 1]
        p = p + p_h * (head_row == hh).astype(f32)                      # place into column hh

    seg_sum = _f32_dot(sd, p) + 1e-16                                   # [Nd, h]
    denom = _f32_dot(gd, seg_sum)                                       # [E, h] gather
    a = p * pl.reciprocal(denom, approx=True) * wp_ref[...]             # * (1 + w)
    a_feat = _f32_dot(a, gt_mat)                                        # [E, d]
    o_ref[...] = _f32_dot(sd, a_feat * v)                               # scatter_add [Nd, d]


def _ffn_body(x, g, b, w1, w2):
    # x + ffn(F.layer_norm(x)), ffn = LayerNorm(affine) -> Linear(d,4d) -> GELU -> Linear(4d,d)
    z = _layer_norm(x)                        # functional LN (no affine)
    z = _layer_norm(z) * g + b                # ffn's nn.LayerNorm
    u = _gelu(_bf16_dot(z, w1))
    y = _bf16_dot(u, w2)
    return x + y                              # Dropout = identity


def _ffn_kernel(h_ref, m_ref, g_ref, b_ref, w1_ref, w2_ref, o_ref):
    # residual message add fused in: o = ffn_block(h + msg)
    o_ref[...] = _ffn_body(h_ref[...] + m_ref[...], g_ref[...], b_ref[...],
                           w1_ref[...], w2_ref[...])


def _ffn_final_kernel(h_ref, m_ref, g_ref, b_ref, w1_ref, w2_ref, ng_ref, nb_ref, o_ref):
    # last-layer variant: additionally applies the encoder's final LayerNorm + ReLU
    y = _ffn_body(h_ref[...] + m_ref[...], g_ref[...], b_ref[...], w1_ref[...], w2_ref[...])
    o_ref[...] = jnp.maximum(_layer_norm(y) * ng_ref[...] + nb_ref[...], 0.0)


def _ln_relu_kernel(x_ref, g_ref, b_ref, o_ref):
    o_ref[...] = jnp.maximum(_layer_norm(x_ref[...]) * g_ref[...] + b_ref[...], 0.0)


def _vote_final_kernel(raw_ref, pol_ref, hleg_ref, hbv_ref, srcc_ref, dstr_ref,
                       w1_ref, b1_ref, w2_ref, b2_ref, ng_ref, nb_ref, o_ref):
    # PolarityAwareConv (edge MLP, src gather, polarity scale, scatter_add) fused with the
    # bill_version residual add and the encoder's final LayerNorm + ReLU.
    f32 = jnp.float32
    e = raw_ref.shape[0]
    nl = hleg_ref.shape[0]
    nb = hbv_ref.shape[0]

    hdn = jnp.maximum(_bf16_dot(raw_ref[...], w1_ref[...]) + b1_ref[...], 0.0)
    ef = _bf16_dot(hdn, w2_ref[...]) + b2_ref[...]
    pol = jnp.clip(pol_ref[...], 0.0, 1.0)

    gs = (jax.lax.broadcasted_iota(jnp.int32, (e, nl), 1) == srcc_ref[...]).astype(f32)  # [E,Nl]
    src_emb = _f32_dot(gs, hleg_ref[...])                                                # gather
    m = src_emb * (ef * (pol + 0.01))

    sd = (jax.lax.broadcasted_iota(jnp.int32, (nb, e), 0) == dstr_ref[...]).astype(f32)  # [Nb,E]
    hb = hbv_ref[...] + _f32_dot(sd, m)                                                  # scatter_add + residual
    o_ref[...] = jnp.maximum(_layer_norm(hb) * ng_ref[...] + nb_ref[...], 0.0)


# ----------------------------- pallas_call wrappers -----------------------------


def _vspec(shape):
    nd = len(shape)
    return pl.BlockSpec(shape, lambda i: (0,) * nd)


def _call(kernel, out_shape, *args):
    return pl.pallas_call(
        kernel,
        grid=(1,),
        out_shape=jax.ShapeDtypeStruct(out_shape, jnp.float32),
        in_specs=[_vspec(a.shape) for a in args],
        out_specs=_vspec(out_shape),
        compiler_params=pltpu.CompilerParams(dimension_semantics=("arbitrary",)),
    )(*args)


def projector(x, gamma, beta, w):
    return _call(_projector_kernel, (x.shape[0], w.shape[1]),
                 x, gamma.reshape(1, -1), beta.reshape(1, -1), w)


def rgt_relation(h_dst, h_src, wq, wkv, rel_flat, dst_c, dst_r, src_c, wp):
    kern = functools.partial(_rgt_relation_kernel, heads=HEADS, dk=DK)
    return _call(kern, (h_dst.shape[0], HIDDEN),
                 h_dst, h_src, wq, wkv, rel_flat, dst_c, dst_r, src_c, wp)


def ffn_block(h, msg, gamma, beta, w1, w2):
    return _call(_ffn_kernel, h.shape,
                 h, msg, gamma.reshape(1, -1), beta.reshape(1, -1), w1, w2)


def ffn_final_block(h, msg, gamma, beta, w1, w2, ngamma, nbeta):
    return _call(_ffn_final_kernel, h.shape,
                 h, msg, gamma.reshape(1, -1), beta.reshape(1, -1), w1, w2,
                 ngamma.reshape(1, -1), nbeta.reshape(1, -1))


def ln_relu(x, gamma, beta):
    return _call(_ln_relu_kernel, x.shape, x, gamma.reshape(1, -1), beta.reshape(1, -1))


def vote_final(raw, pol, h_leg, h_bv, src_c, dst_r, w1, b1, w2, b2, ngamma, nbeta):
    return _call(_vote_final_kernel, h_bv.shape,
                 raw, pol, h_leg, h_bv, src_c, dst_r,
                 w1, b1.reshape(1, -1), w2, b2.reshape(1, -1),
                 ngamma.reshape(1, -1), nbeta.reshape(1, -1))


# ----------------------------- parameters -----------------------------


def init_params(key):
    p = {}
    key, k0, k1, k2 = jax.random.split(key, 4)
    p["t2v"] = {"w0": jax.random.normal(k0, ()),
                "w": jax.random.normal(k1, (T_DIM - 1,)),
                "b": jax.random.normal(k2, (T_DIM,))}

    p["proj"] = {}
    for nt in NODE_TYPES:
        d_in = IN_DIMS[nt] + (T_DIM if nt in TIME_TYPES else 0)
        key, kw = jax.random.split(key)
        bound = math.sqrt(6.0 / ((1.0 + 0.01 ** 2) * d_in))   # kaiming_uniform(a=0.01)
        p["proj"][nt] = {
            "gamma": jnp.ones((d_in,), jnp.float32),
            "beta": jnp.zeros((d_in,), jnp.float32),
            "W": jax.random.uniform(kw, (d_in, HIDDEN), jnp.float32, -bound, bound),
        }

    p["rgt"] = []
    bd = 1.0 / math.sqrt(HIDDEN)
    bd4 = 1.0 / math.sqrt(4 * HIDDEN)
    for _ in range(N_LAYERS):
        key, kq, kk, kv, ka, kb = jax.random.split(key, 6)
        lp = {
            "WQ": jax.random.uniform(kq, (HIDDEN, HIDDEN), jnp.float32, -bd, bd),
            "WK": jax.random.uniform(kk, (HIDDEN, HIDDEN), jnp.float32, -bd, bd),
            "WV": jax.random.uniform(kv, (HIDDEN, HIDDEN), jnp.float32, -bd, bd),
            "ffn_gamma": jnp.ones((HIDDEN,), jnp.float32),
            "ffn_beta": jnp.zeros((HIDDEN,), jnp.float32),
            "W1": jax.random.uniform(ka, (HIDDEN, 4 * HIDDEN), jnp.float32, -bd, bd),
            "W2": jax.random.uniform(kb, (4 * HIDDEN, HIDDEN), jnp.float32, -bd4, bd4),
            "rel": {},
        }
        for rel in RELATIONS:               # lazily-created torch.randn(h, dk) per relation
            key, kr = jax.random.split(key)
            lp["rel"]["__".join(rel)] = jax.random.normal(kr, (HEADS, DK), jnp.float32)
        p["rgt"].append(lp)

    key, kw1, kb1, kw2, kb2 = jax.random.split(key, 5)
    e_in = VOTE_E_DIM - 1
    bd1, bd2 = 1.0 / math.sqrt(e_in), 1.0 / math.sqrt(HIDDEN)
    p["vote"] = {
        "W1": jax.random.uniform(kw1, (e_in, HIDDEN), jnp.float32, -bd1, bd1),
        "b1": jax.random.uniform(kb1, (HIDDEN,), jnp.float32, -bd1, bd1),
        "W2": jax.random.uniform(kw2, (HIDDEN, HIDDEN), jnp.float32, -bd2, bd2),
        "b2": jax.random.uniform(kb2, (HIDDEN,), jnp.float32, -bd2, bd2),
    }

    p["norm"] = {nt: {"gamma": jnp.ones((HIDDEN,), jnp.float32),
                      "beta": jnp.zeros((HIDDEN,), jnp.float32)} for nt in NODE_TYPES}
    return p


# ----------------------------- forward pass -----------------------------


def time2vec(tp, t):
    v0 = tp["w0"] * t + tp["b"][0]                                       # [N]
    v = jnp.sin(tp["w"][None, :] * t[:, None] + tp["b"][1:][None, :])    # [N, 11]
    return jnp.concatenate([v0[:, None], v], axis=1)                     # [N, 12]


def legislative_graph_encoder(params, x_dict, ts_dict, edge_index_dict,
                              edge_weight_dict, vote_edge_attr):
    # ---- FeatureProjector (one fused kernel per node type) ----
    h = {}
    for nt in NODE_TYPES:
        xn = x_dict[nt]
        if ts_dict.get(nt) is not None:
            xn = jnp.concatenate([xn, time2vec(params["t2v"], ts_dict[nt])], axis=1)
        pp = params["proj"][nt]
        h[nt] = projector(xn, pp["gamma"], pp["beta"], pp["W"])

    # ---- per-relation constants hoisted out of the layer loop ----
    rel_const = {}
    for rel, (src, dst) in edge_index_dict.items():
        e = src.shape[0]
        w = edge_weight_dict.get(rel)
        wp = (jnp.ones((e, 1), jnp.float32) if w is None
              else (1.0 + w).astype(jnp.float32)[:, None])
        rel_const[rel] = {
            "src_c": src.astype(jnp.int32).reshape(e, 1),
            "dst_c": dst.astype(jnp.int32).reshape(e, 1),
            "dst_r": dst.astype(jnp.int32).reshape(1, e),
            "wp": wp,
        }

    # ---- RGT layers ----
    n_layers = len(params["rgt"])
    for li, lp in enumerate(params["rgt"]):
        is_last = li == n_layers - 1
        wkv = jnp.concatenate([lp["WK"], lp["WV"]], axis=1)       # single [d, 2d] K|V weight
        msg = {nt: jnp.zeros_like(h[nt]) for nt in NODE_TYPES}
        for rel in edge_index_dict:
            src_nt, _, dst_nt = rel
            rc = rel_const[rel]
            rflat = lp["rel"]["__".join(rel)].reshape(1, HIDDEN)
            msg[dst_nt] = msg[dst_nt] + rgt_relation(
                h[dst_nt], h[src_nt], lp["WQ"], wkv, rflat,
                rc["dst_c"], rc["dst_r"], rc["src_c"], rc["wp"])
        nh = {}
        for nt in NODE_TYPES:
            if is_last and nt == "committee":
                # committee is untouched after the last layer -> fuse final LN+ReLU here.
                nr = params["norm"][nt]
                nh[nt] = ffn_final_block(h[nt], msg[nt], lp["ffn_gamma"], lp["ffn_beta"],
                                         lp["W1"], lp["W2"], nr["gamma"], nr["beta"])
            else:
                nh[nt] = ffn_block(h[nt], msg[nt], lp["ffn_gamma"], lp["ffn_beta"],
                                   lp["W1"], lp["W2"])
        h = nh

    out = {"committee": h["committee"]}                           # already LN+ReLU'd

    # ---- PolarityAwareConv on the vote relation, fused with residual + final LN+ReLU ----
    # (uses the PRE-norm legislator_term embeddings, as in the reference)
    vsrc, vdst = edge_index_dict[VOTE_REL]
    e = vsrc.shape[0]
    pol = vote_edge_attr[:, :1]
    raw = vote_edge_attr[:, 1:]
    vp = params["vote"]
    nb = params["norm"]["bill_version"]
    out["bill_version"] = vote_final(
        raw, pol, h["legislator_term"], h["bill_version"],
        vsrc.astype(jnp.int32).reshape(e, 1), vdst.astype(jnp.int32).reshape(1, e),
        vp["W1"], vp["b1"], vp["W2"], vp["b2"], nb["gamma"], nb["beta"])

    # ---- final LayerNorm + ReLU for legislator_term (Dropout = identity) ----
    nl = params["norm"]["legislator_term"]
    out["legislator_term"] = ln_relu(h["legislator_term"], nl["gamma"], nl["beta"])
    return out


# ----------------------------- main -----------------------------

if __name__ == "__main__":
    key = jax.random.PRNGKey(0)
    key, kp = jax.random.split(key)
    params = init_params(kp)

    n_nodes = {"legislator_term": 16, "bill_version": 24, "committee": 8}
    n_edges = {RELATIONS[0]: 48, RELATIONS[1]: 32, RELATIONS[2]: 20}

    x_dict, ts_dict = {}, {}
    for nt in NODE_TYPES:
        key, kx = jax.random.split(key)
        x_dict[nt] = jax.random.normal(kx, (n_nodes[nt], IN_DIMS[nt]), jnp.float32)
        if nt in TIME_TYPES:
            key, kt = jax.random.split(key)
            ts_dict[nt] = jax.random.uniform(kt, (n_nodes[nt],), jnp.float32, 0.0, 10.0)
        else:
            ts_dict[nt] = None

    edge_index_dict, edge_weight_dict = {}, {}
    for rel in RELATIONS:
        src_nt, _, dst_nt = rel
        e = n_edges[rel]
        key, ks, kd = jax.random.split(key, 3)
        src = jax.random.randint(ks, (e,), 0, n_nodes[src_nt], dtype=jnp.int32)
        dst = jax.random.randint(kd, (e,), 0, n_nodes[dst_nt], dtype=jnp.int32)
        edge_index_dict[rel] = (src, dst)
        edge_weight_dict[rel] = None
    key, kw = jax.random.split(key)
    edge_weight_dict[VOTE_REL] = jax.random.uniform(kw, (n_edges[VOTE_REL],), jnp.float32)

    key, ka, kb = jax.random.split(key, 3)
    pol_col = jax.random.uniform(ka, (n_edges[VOTE_REL], 1), jnp.float32, -0.5, 1.5)
    raw_cols = jax.random.normal(kb, (n_edges[VOTE_REL], VOTE_E_DIM - 1), jnp.float32)
    vote_edge_attr = jnp.concatenate([pol_col, raw_cols], axis=1)

    fwd = jax.jit(legislative_graph_encoder)
    out = fwd(params, x_dict, ts_dict, edge_index_dict, edge_weight_dict, vote_edge_attr)
    for nt in NODE_TYPES:
        jax.block_until_ready(out[nt])
        assert out[nt].shape == (n_nodes[nt], HIDDEN)
        assert bool(jnp.all(jnp.isfinite(out[nt])))
    print("KERNEL_OK")
</pallas_src>

<mosaic_0001>
module attributes {stable_mosaic.version = 11 : i64} {
  func.func @_projector_kernel(%arg0: i32, %arg1: memref<24x781xf32, #tpu.memory_space<vmem>>, %arg2: memref<1x781xf32, #tpu.memory_space<vmem>>, %arg3: memref<1x781xf32, #tpu.memory_space<vmem>>, %arg4: memref<781x32xf32, #tpu.memory_space<vmem>>, %arg5: memref<24x32xf32, #tpu.memory_space<vmem>>) attributes {dimension_semantics = [#tpu.dimension_semantics<arbitrary>], iteration_bounds = array<i64: 1>, scalar_prefetch = 0 : i64, scratch_operands = 0 : i64, tpu.core_type = #tpu.core_type<tc>, window_params = [{pipeline_mode = #tpu.pipeline_mode<synchronous>, transform_indices = @transform_0, window_bounds = array<i64: 24, 781>}, {pipeline_mode = #tpu.pipeline_mode<synchronous>, transform_indices = @transform_1, window_bounds = array<i64: 1, 781>}, {pipeline_mode = #tpu.pipeline_mode<synchronous>, transform_indices = @transform_2, window_bounds = array<i64: 1, 781>}, {pipeline_mode = #tpu.pipeline_mode<synchronous>, transform_indices = @transform_3, window_bounds = array<i64: 781, 32>}, {pipeline_mode = #tpu.pipeline_mode<synchronous>, transform_indices = @transform_4, window_bounds = array<i64: 24, 32>}]} {
    %c0 = arith.constant 0 : index
    %c0_0 = arith.constant 0 : index
    %0 = vector.load %arg1[%c0, %c0_0] : memref<24x781xf32, #tpu.memory_space<vmem>>, vector<24x781xf32>
    %cst = arith.constant dense<0.000000e+00> : vector<24xf32>
    %1 = vector.multi_reduction <add>, %0, %cst [1] : vector<24x781xf32> to vector<24xf32>
    %2 = vector.shape_cast %1 : vector<24xf32> to vector<24x1xf32>
    %cst_1 = arith.constant 7.810000e+02 : f32
    %3 = vector.broadcast %cst_1 : f32 to vector<24x1xf32>
    %4 = arith.divf %2, %3 : vector<24x1xf32>
    %5 = vector.broadcast %4 : vector<24x1xf32> to vector<24x781xf32>
    %6 = arith.subf %0, %5 : vector<24x781xf32>
    %7 = arith.mulf %6, %6 : vector<24x781xf32>
    %cst_2 = arith.constant dense<0.000000e+00> : vector<24xf32>
    %8 = vector.multi_reduction <add>, %7, %cst_2 [1] : vector<24x781xf32> to vector<24xf32>
    %9 = vector.shape_cast %8 : vector<24xf32> to vector<24x1xf32>
    %cst_3 = arith.constant 7.810000e+02 : f32
    %10 = vector.broadcast %cst_3 : f32 to vector<24x1xf32>
    %11 = arith.divf %9, %10 : vector<24x1xf32>
    %12 = vector.broadcast %4 : vector<24x1xf32> to vector<24x781xf32>
    %13 = arith.subf %0, %12 : vector<24x781xf32>
    %cst_4 = arith.constant 9.99999974E-6 : f32
    %14 = vector.broadcast %cst_4 : f32 to vector<24x1xf32>
    %15 = arith.addf %11, %14 : vector<24x1xf32>
    %16 = math.rsqrt %15 : vector<24x1xf32>
    %17 = vector.broadcast %16 : vector<24x1xf32> to vector<24x781xf32>
    %18 = arith.mulf %13, %17 : vector<24x781xf32>
    %c0_5 = arith.constant 0 : index
    %c0_6 = arith.constant 0 : index
    %19 = vector.load %arg2[%c0_5, %c0_6] : memref<1x781xf32, #tpu.memory_space<vmem>>, vector<1x781xf32>
    %20 = vector.broadcast %19 : vector<1x781xf32> to vector<24x781xf32>
    %21 = arith.mulf %18, %20 : vector<24x781xf32>
    %c0_7 = arith.constant 0 : index
    %c0_8 = arith.constant 0 : index
    %22 = vector.load %arg3[%c0_7, %c0_8] : memref<1x781xf32, #tpu.memory_space<vmem>>, vector<1x781xf32>
    %23 = vector.broadcast %22 : vector<1x781xf32> to vector<24x781xf32>
    %24 = arith.addf %21, %23 : vector<24x781xf32>
    %c0_9 = arith.constant 0 : index
    %c0_10 = arith.constant 0 : index
    %25 = vector.load %arg4[%c0_9, %c0_10] : memref<781x32xf32, #tpu.memory_space<vmem>>, vector<781x32xf32>
    %26 = arith.truncf %24 : vector<24x781xf32> to vector<24x781xbf16>
    %27 = arith.truncf %25 : vector<781x32xf32> to vector<781x32xbf16>
    %cst_11 = arith.constant dense<0.000000e+00> : vector<24x32xf32>
    %28 = tpu.matmul %26, %27, %cst_11 {dimension_numbers = #tpu.dot_dimension_numbers<[1], [0], [0], [1], [0, 0, 1, 1], [], []>} : vector<24x781xbf16>, vector<781x32xbf16>, vector<24x32xf32> -> vector<24x32xf32>
    %cst_12 = arith.constant 5.000000e-01 : f32
    %29 = vector.broadcast %cst_12 : f32 to vector<24x32xf32>
    %30 = arith.mulf %29, %28 : vector<24x32xf32>
    %cst_13 = arith.constant 4.471500e-02 : f32
    %31 = vector.broadcast %cst_13 : f32 to vector<24x32xf32>
    %32 = arith.mulf %31, %28 : vector<24x32xf32>
    %33 = arith.mulf %32, %28 : vector<24x32xf32>
    %34 = arith.mulf %33, %28 : vector<24x32xf32>
    %35 = arith.addf %28, %34 : vector<24x32xf32>
    %cst_14 = arith.constant 0.797884583 : f32
    %36 = vector.broadcast %cst_14 : f32 to vector<24x32xf32>
    %37 = arith.mulf %36, %35 : vector<24x32xf32>
    %38 = math.tanh %37 : vector<24x32xf32>
    %cst_15 = arith.constant 1.000000e+00 : f32
    %39 = vector.broadcast %cst_15 : f32 to vector<24x32xf32>
    %40 = arith.addf %39, %38 : vector<24x32xf32>
    %41 = arith.mulf %30, %40 : vector<24x32xf32>
    %c0_16 = arith.constant 0 : index
    %c0_17 = arith.constant 0 : index
    %42 = vector.load %arg5[%c0_16, %c0_17] : memref<24x32xf32, #tpu.memory_space<vmem>>, vector<24x32xf32>
    tpu.vector_store %arg5[%c0_16, %c0_17], %41 {strides = array<i32>} : memref<24x32xf32, #tpu.memory_space<vmem>>, vector<24x32xf32>,
    return
  }
  func.func @transform_0(%arg0: i32) -> (i32, i32) {
    %c0_i32 = arith.constant 0 : i32
    %c0_i32_0 = arith.constant 0 : i32
    %c0_i32_1 = arith.constant 0 : i32
    return %c0_i32, %c0_i32_0 : i32, i32
  }
  func.func @transform_1(%arg0: i32) -> (i32, i32) {
    %c0_i32 = arith.constant 0 : i32
    %c0_i32_0 = arith.constant 0 : i32
    %c0_i32_1 = arith.constant 0 : i32
    return %c0_i32, %c0_i32_0 : i32, i32
  }
  func.func @transform_2(%arg0: i32) -> (i32, i32) {
    %c0_i32 = arith.constant 0 : i32
    %c0_i32_0 = arith.constant 0 : i32
    %c0_i32_1 = arith.constant 0 : i32
    return %c0_i32, %c0_i32_0 : i32, i32
  }
  func.func @transform_3(%arg0: i32) -> (i32, i32) {
    %c0_i32 = arith.constant 0 : i32
    %c0_i32_0 = arith.constant 0 : i32
    %c0_i32_1 = arith.constant 0 : i32
    return %c0_i32, %c0_i32_0 : i32, i32
  }
  func.func @transform_4(%arg0: i32) -> (i32, i32) {
    %c0_i32 = arith.constant 0 : i32
    %c0_i32_0 = arith.constant 0 : i32
    %c0_i32_1 = arith.constant 0 : i32
    return %c0_i32, %c0_i32_0 : i32, i32
  }
}

module attributes {stable_mosaic.version = 11 : i64} {
  func.func @_projector_kernel(%arg0: i32, %arg1: memref<16x401xf32, #tpu.memory_space<vmem>>, %arg2: memref<1x401xf32, #tpu.memory_space<vmem>>, %arg3: memref<1x401xf32, #tpu.memory_space<vmem>>, %arg4: memref<401x32xf32, #tpu.memory_space<vmem>>, %arg5: memref<16x32xf32, #tpu.memory_space<vmem>>) attributes {dimension_semantics = [#tpu.dimension_semantics<arbitrary>], iteration_bounds = array<i64: 1>, scalar_prefetch = 0 : i64, scratch_operands = 0 : i64, tpu.core_type = #tpu.core_type<tc>, window_params = [{pipeline_mode = #tpu.pipeline_mode<synchronous>, transform_indices = @transform_0, window_bounds = array<i64: 16, 401>}, {pipeline_mode = #tpu.pipeline_mode<synchronous>, transform_indices = @transform_1, window_bounds = array<i64: 1, 401>}, {pipeline_mode = #tpu.pipeline_mode<synchronous>, transform_indices = @transform_2, window_bounds = array<i64: 1, 401>}, {pipeline_mode = #tpu.pipeline_mode<synchronous>, transform_indices = @transform_3, window_bounds = array<i64: 401, 32>}, {pipeline_mode = #tpu.pipeline_mode<synchronous>, transform_indices = @transform_4, window_bounds = array<i64: 16, 32>}]} {
    %c0 = arith.constant 0 : index
    %c0_0 = arith.constant 0 : index
    %0 = vector.load %arg1[%c0, %c0_0] : memref<16x401xf32, #tpu.memory_space<vmem>>, vector<16x401xf32>
    %cst = arith.constant dense<0.000000e+00> : vector<16xf32>
    %1 = vector.multi_reduction <add>, %0, %cst [1] : vector<16x401xf32> to vector<16xf32>
    %2 = vector.shape_cast %1 : vector<16xf32> to vector<16x1xf32>
    %cst_1 = arith.constant 4.010000e+02 : f32
    %3 = vector.broadcast %cst_1 : f32 to vector<16x1xf32>
    %4 = arith.divf %2, %3 : vector<16x1xf32>
    %5 = vector.broadcast %4 : vector<16x1xf32> to vector<16x401xf32>
    %6 = arith.subf %0, %5 : vector<16x401xf32>
    %7 = arith.mulf %6, %6 : vector<16x401xf32>
    %cst_2 = arith.constant dense<0.000000e+00> : vector<16xf32>
    %8 = vector.multi_reduction <add>, %7, %cst_2 [1] : vector<16x401xf32> to vector<16xf32>
    %9 = vector.shape_cast %8 : vector<16xf32> to vector<16x1xf32>
    %cst_3 = arith.constant 4.010000e+02 : f32
    %10 = vector.broadcast %cst_3 : f32 to vector<16x1xf32>
    %11 = arith.divf %9, %10 : vector<16x1xf32>
    %12 = vector.broadcast %4 : vector<16x1xf32> to vector<16x401xf32>
    %13 = arith.subf %0, %12 : vector<16x401xf32>
    %cst_4 = arith.constant 9.99999974E-6 : f32
    %14 = vector.broadcast %cst_4 : f32 to vector<16x1xf32>
    %15 = arith.addf %11, %14 : vector<16x1xf32>
    %16 = math.rsqrt %15 : vector<16x1xf32>
    %17 = vector.broadcast %16 : vector<16x1xf32> to vector<16x401xf32>
    %18 = arith.mulf %13, %17 : vector<16x401xf32>
    %c0_5 = arith.constant 0 : index
    %c0_6 = arith.constant 0 : index
    %19 = vector.load %arg2[%c0_5, %c0_6] : memref<1x401xf32, #tpu.memory_space<vmem>>, vector<1x401xf32>
    %20 = vector.broadcast %19 : vector<1x401xf32> to vector<16x401xf32>
    %21 = arith.mulf %18, %20 : vector<16x401xf32>
    %c0_7 = arith.constant 0 : index
    %c0_8 = arith.constant 0 : index
    %22 = vector.load %arg3[%c0_7, %c0_8] : memref<1x401xf32, #tpu.memory_space<vmem>>, vector<1x401xf32>
    %23 = vector.broadcast %22 : vector<1x401xf32> to vector<16x401xf32>
    %24 = arith.addf %21, %23 : vector<16x401xf32>
    %c0_9 = arith.constant 0 : index
    %c0_10 = arith.constant 0 : index
    %25 = vector.load %arg4[%c0_9, %c0_10] : memref<401x32xf32, #tpu.memory_space<vmem>>, vector<401x32xf32>
    %26 = arith.truncf %24 : vector<16x401xf32> to vector<16x401xbf16>
    %27 = arith.truncf %25 : vector<401x32xf32> to vector<401x32xbf16>
    %cst_11 = arith.constant dense<0.000000e+00> : vector<16x32xf32>
    %28 = tpu.matmul %26, %27, %cst_11 {dimension_numbers = #tpu.dot_dimension_numbers<[1], [0], [0], [1], [0, 0, 1, 1], [], []>} : vector<16x401xbf16>, vector<401x32xbf16>, vector<16x32xf32> -> vector<16x32xf32>
    %cst_12 = arith.constant 5.000000e-01 : f32
    %29 = vector.broadcast %cst_12 : f32 to vector<16x32xf32>
    %30 = arith.mulf %29, %28 : vector<16x32xf32>
    %cst_13 = arith.constant 4.471500e-02 : f32
    %31 = vector.broadcast %cst_13 : f32 to vector<16x32xf32>
    %32 = arith.mulf %31, %28 : vector<16x32xf32>
    %33 = arith.mulf %32, %28 : vector<16x32xf32>
    %34 = arith.mulf %33, %28 : vector<16x32xf32>
    %35 = arith.addf %28, %34 : vector<16x32xf32>
    %cst_14 = arith.constant 0.797884583 : f32
    %36 = vector.broadcast %cst_14 : f32 to vector<16x32xf32>
    %37 = arith.mulf %36, %35 : vector<16x32xf32>
    %38 = math.tanh %37 : vector<16x32xf32>
    %cst_15 = arith.constant 1.000000e+00 : f32
    %39 = vector.broadcast %cst_15 : f32 to vector<16x32xf32>
    %40 = arith.addf %39, %38 : vector<16x32xf32>
    %41 = arith.mulf %30, %40 : vector<16x32xf32>
    %c0_16 = arith.constant 0 : index
    %c0_17 = arith.constant 0 : index
    %42 = vector.load %arg5[%c0_16, %c0_17] : memref<16x32xf32, #tpu.memory_space<vmem>>, vector<16x32xf32>
    tpu.vector_store %arg5[%c0_16, %c0_17], %41 {strides = array<i32>} : memref<16x32xf32, #tpu.memory_space<vmem>>, vector<16x32xf32>,
    return
  }
  func.func @transform_0(%arg0: i32) -> (i32, i32) {
    %c0_i32 = arith.constant 0 : i32
    %c0_i32_0 = arith.constant 0 : i32
    %c0_i32_1 = arith.constant 0 : i32
    return %c0_i32, %c0_i32_0 : i32, i32
  }
  func.func @transform_1(%arg0: i32) -> (i32, i32) {
    %c0_i32 = arith.constant 0 : i32
    %c0_i32_0 = arith.constant 0 : i32
    %c0_i32_1 = arith.constant 0 : i32
    return %c0_i32, %c0_i32_0 : i32, i32
  }
  func.func @transform_2(%arg0: i32) -> (i32, i32) {
    %c0_i32 = arith.constant 0 : i32
    %c0_i32_0 = arith.constant 0 : i32
    %c0_i32_1 = arith.constant 0 : i32
    return %c0_i32, %c0_i32_0 : i32, i32
  }
  func.func @transform_3(%arg0: i32) -> (i32, i32) {
    %c0_i32 = arith.constant 0 : i32
    %c0_i32_0 = arith.constant 0 : i32
    %c0_i32_1 = arith.constant 0 : i32
    return %c0_i32, %c0_i32_0 : i32, i32
  }
  func.func @transform_4(%arg0: i32) -> (i32, i32) {
    %c0_i32 = arith.constant 0 : i32
    %c0_i32_0 = arith.constant 0 : i32
    %c0_i32_1 = arith.constant 0 : i32
    return %c0_i32, %c0_i32_0 : i32, i32
  }
}

module attributes {stable_mosaic.version = 11 : i64} {
  func.func @_rgt_relation_kernel(%arg0: i32, %arg1: memref<24x32xf32, #tpu.memory_space<vmem>>, %arg2: memref<16x32xf32, #tpu.memory_space<vmem>>, %arg3: memref<32x32xf32, #tpu.memory_space<vmem>>, %arg4: memref<32x64xf32, #tpu.memory_space<vmem>>, %arg5: memref<1x32xf32, #tpu.memory_space<vmem>>, %arg6: memref<48x1xi32, #tpu.memory_space<vmem>>, %arg7: memref<1x48xi32, #tpu.memory_space<vmem>>, %arg8: memref<48x1xi32, #tpu.memory_space<vmem>>, %arg9: memref<48x1xf32, #tpu.memory_space<vmem>>, %arg10: memref<24x32xf32, #tpu.memory_space<vmem>>) attributes {dimension_semantics = [#tpu.dimension_semantics<arbitrary>], iteration_bounds = array<i64: 1>, scalar_prefetch = 0 : i64, scratch_operands = 0 : i64, tpu.core_type = #tpu.core_type<tc>, window_params = [{pipeline_mode = #tpu.pipeline_mode<synchronous>, transform_indices = @transform_0, window_bounds = array<i64: 24, 32>}, {pipeline_mode = #tpu.pipeline_mode<synchronous>, transform_indices = @transform_1, window_bounds = array<i64: 16, 32>}, {pipeline_mode = #tpu.pipeline_mode<synchronous>, transform_indices = @transform_2, window_bounds = array<i64: 32, 32>}, {pipeline_mode = #tpu.pipeline_mode<synchronous>, transform_indices = @transform_3, window_bounds = array<i64: 32, 64>}, {pipeline_mode = #tpu.pipeline_mode<synchronous>, transform_indices = @transform_4, window_bounds = array<i64: 1, 32>}, {pipeline_mode = #tpu.pipeline_mode<synchronous>, transform_indices = @transform_5, window_bounds = array<i64: 48, 1>}, {pipeline_mode = #tpu.pipeline_mode<synchronous>, transform_indices = @transform_6, window_bounds = array<i64: 1, 48>}, {pipeline_mode = #tpu.pipeline_mode<synchronous>, transform_indices = @transform_7, window_bounds = array<i64: 48, 1>}, {pipeline_mode = #tpu.pipeline_mode<synchronous>, transform_indices = @transform_8, window_bounds = array<i64: 48, 1>}, {pipeline_mode = #tpu.pipeline_mode<synchronous>, transform_indices = @transform_9, window_bounds = array<i64: 24, 32>}]} {
    %c0 = arith.constant 0 : index
    %c0_0 = arith.constant 0 : index
    %0 = vector.load %arg1[%c0, %c0_0] : memref<24x32xf32, #tpu.memory_space<vmem>>, vector<24x32xf32>
    %c0_1 = arith.constant 0 : index
    %c0_2 = arith.constant 0 : index
    %1 = vector.load %arg2[%c0_1, %c0_2] : memref<16x32xf32, #tpu.memory_space<vmem>>, vector<16x32xf32>
    %c0_3 = arith.constant 0 : index
    %c0_4 = arith.constant 0 : index
    %2 = vector.load %arg3[%c0_3, %c0_4] : memref<32x32xf32, #tpu.memory_space<vmem>>, vector<32x32xf32>
    %3 = arith.truncf %0 : vector<24x32xf32> to vector<24x32xbf16>
    %4 = arith.truncf %2 : vector<32x32xf32> to vector<32x32xbf16>
    %cst = arith.constant dense<0.000000e+00> : vector<24x32xf32>
    %5 = tpu.matmul %3, %4, %cst {dimension_numbers = #tpu.dot_dimension_numbers<[1], [0], [0], [1], [0, 0, 1, 1], [], []>} : vector<24x32xbf16>, vector<32x32xbf16>, vector<24x32xf32> -> vector<24x32xf32>
    %c0_5 = arith.constant 0 : index
    %c0_6 = arith.constant 0 : index
    %6 = vector.load %arg4[%c0_5, %c0_6] : memref<32x64xf32, #tpu.memory_space<vmem>>, vector<32x64xf32>
    %7 = arith.truncf %1 : vector<16x32xf32> to vector<16x32xbf16>
    %8 = arith.truncf %6 : vector<32x64xf32> to vector<32x64xbf16>
    %cst_7 = arith.constant dense<0.000000e+00> : vector<16x64xf32>
    %9 = tpu.matmul %7, %8, %cst_7 {dimension_numbers = #tpu.dot_dimension_numbers<[1], [0], [0], [1], [0, 0, 1, 1], [], []>} : vector<16x32xbf16>, vector<32x64xbf16>, vector<16x64xf32> -> vector<16x64xf32>
    %10 = tpu.iota {dimensions = array<i32: 1>} : vector<48x24xi32>
    %c0_8 = arith.constant 0 : index
    %c0_9 = arith.constant 0 : index
    %11 = vector.load %arg6[%c0_8, %c0_9] : memref<48x1xi32, #tpu.memory_space<vmem>>, vector<48x1xi32>
    %12 = vector.broadcast %11 : vector<48x1xi32> to vector<48x24xi32>
    %13 = arith.cmpi eq, %10, %12 : vector<48x24xi32>
    %14 = arith.extui %13 : vector<48x24xi1> to vector<48x24xi32>
    %15 = arith.sitofp %14 : vector<48x24xi32> to vector<48x24xf32>
    %16 = tpu.iota {dimensions = array<i32: 1>} : vector<48x16xi32>
    %c0_10 = arith.constant 0 : index
    %c0_11 = arith.constant 0 : index
    %17 = vector.load %arg8[%c0_10, %c0_11] : memref<48x1xi32, #tpu.memory_space<vmem>>, vector<48x1xi32>
    %18 = vector.broadcast %17 : vector<48x1xi32> to vector<48x16xi32>
    %19 = arith.cmpi eq, %16, %18 : vector<48x16xi32>
    %20 = arith.extui %19 : vector<48x16xi1> to vector<48x16xi32>
    %21 = arith.sitofp %20 : vector<48x16xi32> to vector<48x16xf32>
    %22 = tpu.iota {dimensions = array<i32: 0>} : vector<24x48xi32>
    %c0_12 = arith.constant 0 : index
    %c0_13 = arith.constant 0 : index
    %23 = vector.load %arg7[%c0_12, %c0_13] : memref<1x48xi32, #tpu.memory_space<vmem>>, vector<1x48xi32>
    %24 = vector.broadcast %23 : vector<1x48xi32> to vector<24x48xi32>
    %25 = arith.cmpi eq, %22, %24 : vector<24x48xi32>
    %26 = arith.extui %25 : vector<24x48xi1> to vector<24x48xi32>
    %27 = arith.sitofp %26 : vector<24x48xi32> to vector<24x48xf32>
    %cst_14 = arith.constant dense<0.000000e+00> : vector<48x32xf32>
    %28 = tpu.matmul %15, %5, %cst_14 {dimension_numbers = #tpu.dot_dimension_numbers<[1], [0], [0], [1], [0, 0, 1, 1], [], []>} : vector<48x24xf32>, vector<24x32xf32>, vector<48x32xf32> -> vector<48x32xf32>
    %cst_15 = arith.constant dense<0.000000e+00> : vector<48x64xf32>
    %29 = tpu.matmul %21, %9, %cst_15 {dimension_numbers = #tpu.dot_dimension_numbers<[1], [0], [0], [1], [0, 0, 1, 1], [], []>} : vector<48x16xf32>, vector<16x64xf32>, vector<48x64xf32> -> vector<48x64xf32>
    %30 = vector.extract_strided_slice %29 {offsets = [0, 0], sizes = [48, 32], strides = [1, 1]} : vector<48x64xf32> to vector<48x32xf32>
    %31 = vector.extract_strided_slice %29 {offsets = [0, 32], sizes = [48, 32], strides = [1, 1]} : vector<48x64xf32> to vector<48x32xf32>
    %32 = tpu.iota {dimensions = array<i32: 0>} : vector<32x4xi32>
    %33 = tpu.iota {dimensions = array<i32: 1>} : vector<32x4xi32>
    %c8_i32 = arith.constant 8 : i32
    %34 = vector.broadcast %c8_i32 : i32 to vector<32x4xi32>
    %35 = arith.muli %33, %34 : vector<32x4xi32>
    %36 = arith.cmpi sge, %32, %35 : vector<32x4xi32>
    %c1_i32 = arith.constant 1 : i32
    %37 = vector.broadcast %c1_i32 : i32 to vector<32x4xi32>
    %38 = arith.addi %33, %37 : vector<32x4xi32>
    %c8_i32_16 = arith.constant 8 : i32
    %39 = vector.broadcast %c8_i32_16 : i32 to vector<32x4xi32>
    %40 = arith.muli %38, %39 : vector<32x4xi32>
    %41 = arith.cmpi slt, %32, %40 : vector<32x4xi32>
    %42 = arith.andi %36, %41 : vector<32x4xi1>
    %43 = arith.extui %42 : vector<32x4xi1> to vector<32x4xi32>
    %44 = arith.sitofp %43 : vector<32x4xi32> to vector<32x4xf32>
    %45 = tpu.iota {dimensions = array<i32: 1>} : vector<4x32xi32>
    %46 = tpu.iota {dimensions = array<i32: 0>} : vector<4x32xi32>
    %c8_i32_17 = arith.constant 8 : i32
    %47 = vector.broadcast %c8_i32_17 : i32 to vector<4x32xi32>
    %48 = arith.muli %46, %47 : vector<4x32xi32>
    %49 = arith.cmpi sge, %45, %48 : vector<4x32xi32>
    %c1_i32_18 = arith.constant 1 : i32
    %50 = vector.broadcast %c1_i32_18 : i32 to vector<4x32xi32>
    %51 = arith.addi %46, %50 : vector<4x32xi32>
    %c8_i32_19 = arith.constant 8 : i32
    %52 = vector.broadcast %c8_i32_19 : i32 to vector<4x32xi32>
    %53 = arith.muli %51, %52 : vector<4x32xi32>
    %54 = arith.cmpi slt, %45, %53 : vector<4x32xi32>
    %55 = arith.andi %49, %54 : vector<4x32xi1>
    %56 = arith.extui %55 : vector<4x32xi1> to vector<4x32xi32>
    %57 = arith.sitofp %56 : vector<4x32xi32> to vector<4x32xf32>
    %c0_20 = arith.constant 0 : index
    %c0_21 = arith.constant 0 : index
    %58 = vector.load %arg5[%c0_20, %c0_21] : memref<1x32xf32, #tpu.memory_space<vmem>>, vector<1x32xf32>
    %59 = vector.broadcast %58 : vector<1x32xf32> to vector<48x32xf32>
    %60 = arith.addf %30, %59 : vector<48x32xf32>
    %61 = arith.mulf %28, %60 : vector<48x32xf32>
    %cst_22 = arith.constant dense<0.000000e+00> : vector<48x4xf32>
    %62 = tpu.matmul %61, %44, %cst_22 {dimension_numbers = #tpu.dot_dimension_numbers<[1], [0], [0], [1], [0, 0, 1, 1], [], []>} : vector<48x32xf32>, vector<32x4xf32>, vector<48x4xf32> -> vector<48x4xf32>
    %cst_23 = arith.constant 0.353553385 : f32
    %63 = vector.broadcast %cst_23 : f32 to vector<48x4xf32>
    %64 = arith.mulf %62, %63 : vector<48x4xf32>
    %cst_24 = arith.constant 0.000000e+00 : f32
    %65 = vector.broadcast %cst_24 : f32 to vector<48x4xf32>
    %66 = arith.cmpf oge, %64, %65 : vector<48x4xf32>
    %cst_25 = arith.constant 0.00999999977 : f32
    %67 = vector.broadcast %cst_25 : f32 to vector<48x4xf32>
    %68 = arith.mulf %67, %64 : vector<48x4xf32>
    %69 = arith.select %66, %64, %68 : vector<48x4xi1>, vector<48x4xf32>
    %cst_26 = arith.constant 5.000000e-01 : f32
    %70 = vector.broadcast %cst_26 : f32 to vector<48x24xf32>
    %71 = arith.cmpf ogt, %15, %70 : vector<48x24xf32>
    %72 = tpu.iota {dimensions = array<i32: 1>} : vector<1x4xi32>
    %cst_27 = arith.constant 0.000000e+00 : f32
    %73 = vector.broadcast %cst_27 : f32 to vector<48x4xf32>
    %74 = vector.extract_strided_slice %69 {offsets = [0, 0], sizes = [48, 1], strides = [1, 1]} : vector<48x4xf32> to vector<48x1xf32>
    %cst_28 = arith.constant -1.000000e+30 : f32
    %75 = vector.shape_cast %74 : vector<48x1xf32> to vector<48x1xf32>
    %76 = vector.broadcast %75 : vector<48x1xf32> to vector<48x24xf32>
    %77 = vector.broadcast %cst_28 : f32 to vector<48x24xf32>
    %78 = arith.select %71, %76, %77 : vector<48x24xi1>, vector<48x24xf32>
    %cst_29 = arith.constant dense<0xFF800000> : vector<24xf32>
    %79 = vector.multi_reduction <maximumf>, %78, %cst_29 [0] : vector<48x24xf32> to vector<24xf32>
    %80 = vector.shape_cast %79 : vector<24xf32> to vector<1x24xf32>
    %81 = vector.broadcast %80 : vector<1x24xf32> to vector<48x24xf32>
    %82 = arith.mulf %15, %81 : vector<48x24xf32>
    %cst_30 = arith.constant dense<0.000000e+00> : vector<48xf32>
    %83 = vector.multi_reduction <add>, %82, %cst_30 [1] : vector<48x24xf32> to vector<48xf32>
    %84 = vector.shape_cast %83 : vector<48xf32> to vector<48x1xf32>
    %85 = arith.subf %74, %84 : vector<48x1xf32>
    %86 = math.exp %85 : vector<48x1xf32>
    %c0_i32 = arith.constant 0 : i32
    %87 = vector.broadcast %c0_i32 : i32 to vector<1x4xi32>
    %88 = arith.cmpi eq, %72, %87 : vector<1x4xi32>
    %89 = arith.extui %88 : vector<1x4xi1> to vector<1x4xi32>
    %90 = arith.sitofp %89 : vector<1x4xi32> to vector<1x4xf32>
    %91 = vector.broadcast %86 : vector<48x1xf32> to vector<48x4xf32>
    %92 = vector.broadcast %90 : vector<1x4xf32> to vector<48x4xf32>
    %93 = arith.mulf %91, %92 : vector<48x4xf32>
    %94 = arith.addf %73, %93 : vector<48x4xf32>
    %95 = vector.extract_strided_slice %69 {offsets = [0, 1], sizes = [48, 1], strides = [1, 1]} : vector<48x4xf32> to vector<48x1xf32>
    %cst_31 = arith.constant -1.000000e+30 : f32
    %96 = vector.shape_cast %95 : vector<48x1xf32> to vector<48x1xf32>
    %97 = vector.broadcast %96 : vector<48x1xf32> to vector<48x24xf32>
    %98 = vector.broadcast %cst_31 : f32 to vector<48x24xf32>
    %99 = arith.select %71, %97, %98 : vector<48x24xi1>, vector<48x24xf32>
    %cst_32 = arith.constant dense<0xFF800000> : vector<24xf32>
    %100 = vector.multi_reduction <maximumf>, %99, %cst_32 [0] : vector<48x24xf32> to vector<24xf32>
    %101 = vector.shape_cast %100 : vector<24xf32> to vector<1x24xf32>
    %102 = vector.broadcast %101 : vector<1x24xf32> to vector<48x24xf32>
    %103 = arith.mulf %15, %102 : vector<48x24xf32>
    %cst_33 = arith.constant dense<0.000000e+00> : vector<48xf32>
    %104 = vector.multi_reduction <add>, %103, %cst_33 [1] : vector<48x24xf32> to vector<48xf32>
    %105 = vector.shape_cast %104 : vector<48xf32> to vector<48x1xf32>
    %106 = arith.subf %95, %105 : vector<48x1xf32>
    %107 = math.exp %106 : vector<48x1xf32>
    %c1_i32_34 = arith.constant 1 : i32
    %108 = vector.broadcast %c1_i32_34 : i32 to vector<1x4xi32>
    %109 = arith.cmpi eq, %72, %108 : vector<1x4xi32>
    %110 = arith.extui %109 : vector<1x4xi1> to vector<1x4xi32>
    %111 = arith.sitofp %110 : vector<1x4xi32> to vector<1x4xf32>
    %112 = vector.broadcast %107 : vector<48x1xf32> to vector<48x4xf32>
    %113 = vector.broadcast %111 : vector<1x4xf32> to vector<48x4xf32>
    %114 = arith.mulf %112, %113 : vector<48x4xf32>
    %115 = arith.addf %94, %114 : vector<48x4xf32>
    %116 = vector.extract_strided_slice %69 {offsets = [0, 2], sizes = [48, 1], strides = [1, 1]} : vector<48x4xf32> to vector<48x1xf32>
    %cst_35 = arith.constant -1.000000e+30 : f32
    %117 = vector.shape_cast %116 : vector<48x1xf32> to vector<48x1xf32>
    %118 = vector.broadcast %117 : vector<48x1xf32> to vector<48x24xf32>
    %119 = vector.broadcast %cst_35 : f32 to vector<48x24xf32>
    %120 = arith.select %71, %118, %119 : vector<48x24xi1>, vector<48x24xf32>
    %cst_36 = arith.constant dense<0xFF800000> : vector<24xf32>
    %121 = vector.multi_reduction <maximumf>, %120, %cst_36 [0] : vector<48x24xf32> to vector<24xf32>
    %122 = vector.shape_cast %121 : vector<24xf32> to vector<1x24xf32>
    %123 = vector.broadcast %122 : vector<1x24xf32> to vector<48x24xf32>
    %124 = arith.mulf %15, %123 : vector<48x24xf32>
    %cst_37 = arith.constant dense<0.000000e+00> : vector<48xf32>
    %125 = vector.multi_reduction <add>, %124, %cst_37 [1] : vector<48x24xf32> to vector<48xf32>
    %126 = vector.shape_cast %125 : vector<48xf32> to vector<48x1xf32>
    %127 = arith.subf %116, %126 : vector<48x1xf32>
    %128 = math.exp %127 : vector<48x1xf32>
    %c2_i32 = arith.constant 2 : i32
    %129 = vector.broadcast %c2_i32 : i32 to vector<1x4xi32>
    %130 = arith.cmpi eq, %72, %129 : vector<1x4xi32>
    %131 = arith.extui %130 : vector<1x4xi1> to vector<1x4xi32>
    %132 = arith.sitofp %131 : vector<1x4xi32> to vector<1x4xf32>
    %133 = vector.broadcast %128 : vector<48x1xf32> to vector<48x4xf32>
    %134 = vector.broadcast %132 : vector<1x4xf32> to vector<48x4xf32>
    %135 = arith.mulf %133, %134 : vector<48x4xf32>
    %136 = arith.addf %115, %135 : vector<48x4xf32>
    %137 = vector.extract_strided_slice %69 {offsets = [0, 3], sizes = [48, 1], strides = [1, 1]} : vector<48x4xf32> to vector<48x1xf32>
    %cst_38 = arith.constant -1.000000e+30 : f32
    %138 = vector.shape_cast %137 : vector<48x1xf32> to vector<48x1xf32>
    %139 = vector.broadcast %138 : vector<48x1xf32> to vector<48x24xf32>
    %140 = vector.broadcast %cst_38 : f32 to vector<48x24xf32>
    %141 = arith.select %71, %139, %140 : vector<48x24xi1>, vector<48x24xf32>
    %cst_39 = arith.constant dense<0xFF800000> : vector<24xf32>
    %142 = vector.multi_reduction <maximumf>, %141, %cst_39 [0] : vector<48x24xf32> to vector<24xf32>
    %143 = vector.shape_cast %142 : vector<24xf32> to vector<1x24xf32>
    %144 = vector.broadcast %143 : vector<1x24xf32> to vector<48x24xf32>
    %145 = arith.mulf %15, %144 : vector<48x24xf32>
    %cst_40 = arith.constant dense<0.000000e+00> : vector<48xf32>
    %146 = vector.multi_reduction <add>, %145, %cst_40 [1] : vector<48x24xf32> to vector<48xf32>
    %147 = vector.shape_cast %146 : vector<48xf32> to vector<48x1xf32>
    %148 = arith.subf %137, %147 : vector<48x1xf32>
    %149 = math.exp %148 : vector<48x1xf32>
    %c3_i32 = arith.constant 3 : i32
    %150 = vector.broadcast %c3_i32 : i32 to vector<1x4xi32>
    %151 = arith.cmpi eq, %72, %150 : vector<1x4xi32>
    %152 = arith.extui %151 : vector<1x4xi1> to vector<1x4xi32>
    %153 = arith.sitofp %152 : vector<1x4xi32> to vector<1x4xf32>
    %154 = vector.broadcast %149 : vector<48x1xf32> to vector<48x4xf32>
    %155 = vector.broadcast %153 : vector<1x4xf32> to vector<48x4xf32>
    %156 = arith.mulf %154, %155 : vector<48x4xf32>
    %157 = arith.addf %136, %156 : vector<48x4xf32>
    %cst_41 = arith.constant dense<0.000000e+00> : vector<24x4xf32>
    %158 = tpu.matmul %27, %157, %cst_41 {dimension_numbers = #tpu.dot_dimension_numbers<[1], [0], [0], [1], [0, 0, 1, 1], [], []>} : vector<24x48xf32>, vector<48x4xf32>, vector<24x4xf32> -> vector<24x4xf32>
    %cst_42 = arith.constant 1.000000e-16 : f32
    %159 = vector.broadcast %cst_42 : f32 to vector<24x4xf32>
    %160 = arith.addf %158, %159 : vector<24x4xf32>
    %cst_43 = arith.constant dense<0.000000e+00> : vector<48x4xf32>
    %161 = tpu.matmul %15, %160, %cst_43 {dimension_numbers = #tpu.dot_dimension_numbers<[1], [0], [0], [1], [0, 0, 1, 1], [], []>} : vector<48x24xf32>, vector<24x4xf32>, vector<48x4xf32> -> vector<48x4xf32>
    %162 = tpu.reciprocal %161 {approx = true} : vector<48x4xf32> -> vector<48x4xf32>
    %163 = arith.mulf %157, %162 : vector<48x4xf32>
    %c0_44 = arith.constant 0 : index
    %c0_45 = arith.constant 0 : index
    %164 = vector.load %arg9[%c0_44, %c0_45] : memref<48x1xf32, #tpu.memory_space<vmem>>, vector<48x1xf32>
    %165 = vector.broadcast %164 : vector<48x1xf32> to vector<48x4xf32>
    %166 = arith.mulf %163, %165 : vector<48x4xf32>
    %cst_46 = arith.constant dense<0.000000e+00> : vector<48x32xf32>
    %167 = tpu.matmul %166, %57, %cst_46 {dimension_numbers = #tpu.dot_dimension_numbers<[1], [0], [0], [1], [0, 0, 1, 1], [], []>} : vector<48x4xf32>, vector<4x32xf32>, vector<48x32xf32> -> vector<48x32xf32>
    %168 = arith.mulf %167, %31 : vector<48x32xf32>
    %cst_47 = arith.constant dense<0.000000e+00> : vector<24x32xf32>
    %169 = tpu.matmul %27, %168, %cst_47 {dimension_numbers = #tpu.dot_dimension_numbers<[1], [0], [0], [1], [0, 0, 1, 1], [], []>} : vector<24x48xf32>, vector<48x32xf32>, vector<24x32xf32> -> vector<24x32xf32>
    %c0_48 = arith.constant 0 : index
    %c0_49 = arith.constant 0 : index
    %170 = vector.load %arg10[%c0_48, %c0_49] : memref<24x32xf32, #tpu.memory_space<vmem>>, vector<24x32xf32>
    tpu.vector_store %arg10[%c0_48, %c0_49], %169 {strides = array<i32>} : memref<24x32xf32, #tpu.memory_space<vmem>>, vector<24x32xf32>,
    return
  }
  func.func @transform_0(%arg0: i32) -> (i32, i32) {
    %c0_i32 = arith.constant 0 : i32
    %c0_i32_0 = arith.constant 0 : i32
    %c0_i32_1 = arith.constant 0 : i32
    return %c0_i32, %c0_i32_0 : i32, i32
  }
  func.func @transform_1(%arg0: i32) -> (i32, i32) {
    %c0_i32 = arith.constant 0 : i32
    %c0_i32_0 = arith.constant 0 : i32
    %c0_i32_1 = arith.constant 0 : i32
    return %c0_i32, %c0_i32_0 : i32, i32
  }
  func.func @transform_2(%arg0: i32) -> (i32, i32) {
    %c0_i32 = arith.constant 0 : i32
    %c0_i32_0 = arith.constant 0 : i32
    %c0_i32_1 = arith.constant 0 : i32
    return %c0_i32, %c0_i32_0 : i32, i32
  }
  func.func @transform_3(%arg0: i32) -> (i32, i32) {
    %c0_i32 = arith.constant 0 : i32
    %c0_i32_0 = arith.constant 0 : i32
    %c0_i32_1 = arith.constant 0 : i32
    return %c0_i32, %c0_i32_0 : i32, i32
  }
  func.func @transform_4(%arg0: i32) -> (i32, i32) {
    %c0_i32 = arith.constant 0 : i32
    %c0_i32_0 = arith.constant 0 : i32
    %c0_i32_1 = arith.constant 0 : i32
    return %c0_i32, %c0_i32_0 : i32, i32
  }
  func.func @transform_5(%arg0: i32) -> (i32, i32) {
    %c0_i32 = arith.constant 0 : i32
    %c0_i32_0 = arith.constant 0 : i32
    %c0_i32_1 = arith.constant 0 : i32
    return %c0_i32, %c0_i32_0 : i32, i32
  }
  func.func @transform_6(%arg0: i32) -> (i32, i32) {
    %c0_i32 = arith.constant 0 : i32
    %c0_i32_0 = arith.constant 0 : i32
    %c0_i32_1 = arith.constant 0 : i32
    return %c0_i32, %c0_i32_0 : i32, i32
  }
  func.func @transform_7(%arg0: i32) -> (i32, i32) {
    %c0_i32 = arith.constant 0 : i32
    %c0_i32_0 = arith.constant 0 : i32
    %c0_i32_1 = arith.constant 0 : i32
    return %c0_i32, %c0_i32_0 : i32, i32
  }
  func.func @transform_8(%arg0: i32) -> (i32, i32) {
    %c0_i32 = arith.constant 0 : i32
    %c0_i32_0 = arith.constant 0 : i32
    %c0_i32_1 = arith.constant 0 : i32
    return %c0_i32, %c0_i32_0 : i32, i32
  }
  func.func @transform_9(%arg0: i32) -> (i32, i32) {
    %c0_i32 = arith.constant 0 : i32
    %c0_i32_0 = arith.constant 0 : i32
    %c0_i32_1 = arith.constant 0 : i32
    return %c0_i32, %c0_i32_0 : i32, i32
  }
}

module attributes {stable_mosaic.version = 11 : i64} {
  func.func @_projector_kernel(%arg0: i32, %arg1: memref<8x385xf32, #tpu.memory_space<vmem>>, %arg2: memref<1x385xf32, #tpu.memory_space<vmem>>, %arg3: memref<1x385xf32, #tpu.memory_space<vmem>>, %arg4: memref<385x32xf32, #tpu.memory_space<vmem>>, %arg5: memref<8x32xf32, #tpu.memory_space<vmem>>) attributes {dimension_semantics = [#tpu.dimension_semantics<arbitrary>], iteration_bounds = array<i64: 1>, scalar_prefetch = 0 : i64, scratch_operands = 0 : i64, tpu.core_type = #tpu.core_type<tc>, window_params = [{pipeline_mode = #tpu.pipeline_mode<synchronous>, transform_indices = @transform_0, window_bounds = array<i64: 8, 385>}, {pipeline_mode = #tpu.pipeline_mode<synchronous>, transform_indices = @transform_1, window_bounds = array<i64: 1, 385>}, {pipeline_mode = #tpu.pipeline_mode<synchronous>, transform_indices = @transform_2, window_bounds = array<i64: 1, 385>}, {pipeline_mode = #tpu.pipeline_mode<synchronous>, transform_indices = @transform_3, window_bounds = array<i64: 385, 32>}, {pipeline_mode = #tpu.pipeline_mode<synchronous>, transform_indices = @transform_4, window_bounds = array<i64: 8, 32>}]} {
    %c0 = arith.constant 0 : index
    %c0_0 = arith.constant 0 : index
    %0 = vector.load %arg1[%c0, %c0_0] : memref<8x385xf32, #tpu.memory_space<vmem>>, vector<8x385xf32>
    %cst = arith.constant dense<0.000000e+00> : vector<8xf32>
    %1 = vector.multi_reduction <add>, %0, %cst [1] : vector<8x385xf32> to vector<8xf32>
    %2 = vector.shape_cast %1 : vector<8xf32> to vector<8x1xf32>
    %cst_1 = arith.constant 3.850000e+02 : f32
    %3 = vector.broadcast %cst_1 : f32 to vector<8x1xf32>
    %4 = arith.divf %2, %3 : vector<8x1xf32>
    %5 = vector.broadcast %4 : vector<8x1xf32> to vector<8x385xf32>
    %6 = arith.subf %0, %5 : vector<8x385xf32>
    %7 = arith.mulf %6, %6 : vector<8x385xf32>
    %cst_2 = arith.constant dense<0.000000e+00> : vector<8xf32>
    %8 = vector.multi_reduction <add>, %7, %cst_2 [1] : vector<8x385xf32> to vector<8xf32>
    %9 = vector.shape_cast %8 : vector<8xf32> to vector<8x1xf32>
    %cst_3 = arith.constant 3.850000e+02 : f32
    %10 = vector.broadcast %cst_3 : f32 to vector<8x1xf32>
    %11 = arith.divf %9, %10 : vector<8x1xf32>
    %12 = vector.broadcast %4 : vector<8x1xf32> to vector<8x385xf32>
    %13 = arith.subf %0, %12 : vector<8x385xf32>
    %cst_4 = arith.constant 9.99999974E-6 : f32
    %14 = vector.broadcast %cst_4 : f32 to vector<8x1xf32>
    %15 = arith.addf %11, %14 : vector<8x1xf32>
    %16 = math.rsqrt %15 : vector<8x1xf32>
    %17 = vector.broadcast %16 : vector<8x1xf32> to vector<8x385xf32>
    %18 = arith.mulf %13, %17 : vector<8x385xf32>
    %c0_5 = arith.constant 0 : index
    %c0_6 = arith.constant 0 : index
    %19 = vector.load %arg2[%c0_5, %c0_6] : memref<1x385xf32, #tpu.memory_space<vmem>>, vector<1x385xf32>
    %20 = vector.broadcast %19 : vector<1x385xf32> to vector<8x385xf32>
    %21 = arith.mulf %18, %20 : vector<8x385xf32>
    %c0_7 = arith.constant 0 : index
    %c0_8 = arith.constant 0 : index
    %22 = vector.load %arg3[%c0_7, %c0_8] : memref<1x385xf32, #tpu.memory_space<vmem>>, vector<1x385xf32>
    %23 = vector.broadcast %22 : vector<1x385xf32> to vector<8x385xf32>
    %24 = arith.addf %21, %23 : vector<8x385xf32>
    %c0_9 = arith.constant 0 : index
    %c0_10 = arith.constant 0 : index
    %25 = vector.load %arg4[%c0_9, %c0_10] : memref<385x32xf32, #tpu.memory_space<vmem>>, vector<385x32xf32>
    %26 = arith.truncf %24 : vector<8x385xf32> to vector<8x385xbf16>
    %27 = arith.truncf %25 : vector<385x32xf32> to vector<385x32xbf16>
    %cst_11 = arith.constant dense<0.000000e+00> : vector<8x32xf32>
    %28 = tpu.matmul %26, %27, %cst_11 {dimension_numbers = #tpu.dot_dimension_numbers<[1], [0], [0], [1], [0, 0, 1, 1], [], []>} : vector<8x385xbf16>, vector<385x32xbf16>, vector<8x32xf32> -> vector<8x32xf32>
    %cst_12 = arith.constant 5.000000e-01 : f32
    %29 = vector.broadcast %cst_12 : f32 to vector<8x32xf32>
    %30 = arith.mulf %29, %28 : vector<8x32xf32>
    %cst_13 = arith.constant 4.471500e-02 : f32
    %31 = vector.broadcast %cst_13 : f32 to vector<8x32xf32>
    %32 = arith.mulf %31, %28 : vector<8x32xf32>
    %33 = arith.mulf %32, %28 : vector<8x32xf32>
    %34 = arith.mulf %33, %28 : vector<8x32xf32>
    %35 = arith.addf %28, %34 : vector<8x32xf32>
    %cst_14 = arith.constant 0.797884583 : f32
    %36 = vector.broadcast %cst_14 : f32 to vector<8x32xf32>
    %37 = arith.mulf %36, %35 : vector<8x32xf32>
    %38 = math.tanh %37 : vector<8x32xf32>
    %cst_15 = arith.constant 1.000000e+00 : f32
    %39 = vector.broadcast %cst_15 : f32 to vector<8x32xf32>
    %40 = arith.addf %39, %38 : vector<8x32xf32>
    %41 = arith.mulf %30, %40 : vector<8x32xf32>
    %c0_16 = arith.constant 0 : index
    %c0_17 = arith.constant 0 : index
    %42 = vector.load %arg5[%c0_16, %c0_17] : memref<8x32xf32, #tpu.memory_space<vmem>>, vector<8x32xf32>
    tpu.vector_store %arg5[%c0_16, %c0_17], %41 {strides = array<i32>} : memref<8x32xf32, #tpu.memory_space<vmem>>, vector<8x32xf32>,
    return
  }
  func.func @transform_0(%arg0: i32) -> (i32, i32) {
    %c0_i32 = arith.constant 0 : i32
    %c0_i32_0 = arith.constant 0 : i32
    %c0_i32_1 = arith.constant 0 : i32
    return %c0_i32, %c0_i32_0 : i32, i32
  }
  func.func @transform_1(%arg0: i32) -> (i32, i32) {
    %c0_i32 = arith.constant 0 : i32
    %c0_i32_0 = arith.constant 0 : i32
    %c0_i32_1 = arith.constant 0 : i32
    return %c0_i32, %c0_i32_0 : i32, i32
  }
  func.func @transform_2(%arg0: i32) -> (i32, i32) {
    %c0_i32 = arith.constant 0 : i32
    %c0_i32_0 = arith.constant 0 : i32
    %c0_i32_1 = arith.constant 0 : i32
    return %c0_i32, %c0_i32_0 : i32, i32
  }
  func.func @transform_3(%arg0: i32) -> (i32, i32) {
    %c0_i32 = arith.constant 0 : i32
    %c0_i32_0 = arith.constant 0 : i32
    %c0_i32_1 = arith.constant 0 : i32
    return %c0_i32, %c0_i32_0 : i32, i32
  }
  func.func @transform_4(%arg0: i32) -> (i32, i32) {
    %c0_i32 = arith.constant 0 : i32
    %c0_i32_0 = arith.constant 0 : i32
    %c0_i32_1 = arith.constant 0 : i32
    return %c0_i32, %c0_i32_0 : i32, i32
  }
}

module attributes {stable_mosaic.version = 11 : i64} {
  func.func @_rgt_relation_kernel(%arg0: i32, %arg1: memref<24x32xf32, #tpu.memory_space<vmem>>, %arg2: memref<8x32xf32, #tpu.memory_space<vmem>>, %arg3: memref<32x32xf32, #tpu.memory_space<vmem>>, %arg4: memref<32x64xf32, #tpu.memory_space<vmem>>, %arg5: memref<1x32xf32, #tpu.memory_space<vmem>>, %arg6: memref<32x1xi32, #tpu.memory_space<vmem>>, %arg7: memref<1x32xi32, #tpu.memory_space<vmem>>, %arg8: memref<32x1xi32, #tpu.memory_space<vmem>>, %arg9: memref<32x1xf32, #tpu.memory_space<vmem>>, %arg10: memref<24x32xf32, #tpu.memory_space<vmem>>) attributes {dimension_semantics = [#tpu.dimension_semantics<arbitrary>], iteration_bounds = array<i64: 1>, scalar_prefetch = 0 : i64, scratch_operands = 0 : i64, tpu.core_type = #tpu.core_type<tc>, window_params = [{pipeline_mode = #tpu.pipeline_mode<synchronous>, transform_indices = @transform_0, window_bounds = array<i64: 24, 32>}, {pipeline_mode = #tpu.pipeline_mode<synchronous>, transform_indices = @transform_1, window_bounds = array<i64: 8, 32>}, {pipeline_mode = #tpu.pipeline_mode<synchronous>, transform_indices = @transform_2, window_bounds = array<i64: 32, 32>}, {pipeline_mode = #tpu.pipeline_mode<synchronous>, transform_indices = @transform_3, window_bounds = array<i64: 32, 64>}, {pipeline_mode = #tpu.pipeline_mode<synchronous>, transform_indices = @transform_4, window_bounds = array<i64: 1, 32>}, {pipeline_mode = #tpu.pipeline_mode<synchronous>, transform_indices = @transform_5, window_bounds = array<i64: 32, 1>}, {pipeline_mode = #tpu.pipeline_mode<synchronous>, transform_indices = @transform_6, window_bounds = array<i64: 1, 32>}, {pipeline_mode = #tpu.pipeline_mode<synchronous>, transform_indices = @transform_7, window_bounds = array<i64: 32, 1>}, {pipeline_mode = #tpu.pipeline_mode<synchronous>, transform_indices = @transform_8, window_bounds = array<i64: 32, 1>}, {pipeline_mode = #tpu.pipeline_mode<synchronous>, transform_indices = @transform_9, window_bounds = array<i64: 24, 32>}]} {
    %c0 = arith.constant 0 : index
    %c0_0 = arith.constant 0 : index
    %0 = vector.load %arg1[%c0, %c0_0] : memref<24x32xf32, #tpu.memory_space<vmem>>, vector<24x32xf32>
    %c0_1 = arith.constant 0 : index
    %c0_2 = arith.constant 0 : index
    %1 = vector.load %arg2[%c0_1, %c0_2] : memref<8x32xf32, #tpu.memory_space<vmem>>, vector<8x32xf32>
    %c0_3 = arith.constant 0 : index
    %c0_4 = arith.constant 0 : index
    %2 = vector.load %arg3[%c0_3, %c0_4] : memref<32x32xf32, #tpu.memory_space<vmem>>, vector<32x32xf32>
    %3 = arith.truncf %0 : vector<24x32xf32> to vector<24x32xbf16>
    %4 = arith.truncf %2 : vector<32x32xf32> to vector<32x32xbf16>
    %cst = arith.constant dense<0.000000e+00> : vector<24x32xf32>
    %5 = tpu.matmul %3, %4, %cst {dimension_numbers = #tpu.dot_dimension_numbers<[1], [0], [0], [1], [0, 0, 1, 1], [], []>} : vector<24x32xbf16>, vector<32x32xbf16>, vector<24x32xf32> -> vector<24x32xf32>
    %c0_5 = arith.constant 0 : index
    %c0_6 = arith.constant 0 : index
    %6 = vector.load %arg4[%c0_5, %c0_6] : memref<32x64xf32, #tpu.memory_space<vmem>>, vector<32x64xf32>
    %7 = arith.truncf %1 : vector<8x32xf32> to vector<8x32xbf16>
    %8 = arith.truncf %6 : vector<32x64xf32> to vector<32x64xbf16>
    %cst_7 = arith.constant dense<0.000000e+00> : vector<8x64xf32>
    %9 = tpu.matmul %7, %8, %cst_7 {dimension_numbers = #tpu.dot_dimension_numbers<[1], [0], [0], [1], [0, 0, 1, 1], [], []>} : vector<8x32xbf16>, vector<32x64xbf16>, vector<8x64xf32> -> vector<8x64xf32>
    %10 = tpu.iota {dimensions = array<i32: 1>} : vector<32x24xi32>
    %c0_8 = arith.constant 0 : index
    %c0_9 = arith.constant 0 : index
    %11 = vector.load %arg6[%c0_8, %c0_9] : memref<32x1xi32, #tpu.memory_space<vmem>>, vector<32x1xi32>
    %12 = vector.broadcast %11 : vector<32x1xi32> to vector<32x24xi32>
    %13 = arith.cmpi eq, %10, %12 : vector<32x24xi32>
    %14 = arith.extui %13 : vector<32x24xi1> to vector<32x24xi32>
    %15 = arith.sitofp %14 : vector<32x24xi32> to vector<32x24xf32>
    %16 = tpu.iota {dimensions = array<i32: 1>} : vector<32x8xi32>
    %c0_10 = arith.constant 0 : index
    %c0_11 = arith.constant 0 : index
    %17 = vector.load %arg8[%c0_10, %c0_11] : memref<32x1xi32, #tpu.memory_space<vmem>>, vector<32x1xi32>
    %18 = vector.broadcast %17 : vector<32x1xi32> to vector<32x8xi32>
    %19 = arith.cmpi eq, %16, %18 : vector<32x8xi32>
    %20 = arith.extui %19 : vector<32x8xi1> to vector<32x8xi32>
    %21 = arith.sitofp %20 : vector<32x8xi32> to vector<32x8xf32>
    %22 = tpu.iota {dimensions = array<i32: 0>} : vector<24x32xi32>
    %c0_12 = arith.constant 0 : index
    %c0_13 = arith.constant 0 : index
    %23 = vector.load %arg7[%c0_12, %c0_13] : memref<1x32xi32, #tpu.memory_space<vmem>>, vector<1x32xi32>
    %24 = vector.broadcast %23 : vector<1x32xi32> to vector<24x32xi32>
    %25 = arith.cmpi eq, %22, %24 : vector<24x32xi32>
    %26 = arith.extui %25 : vector<24x32xi1> to vector<24x32xi32>
    %27 = arith.sitofp %26 : vector<24x32xi32> to vector<24x32xf32>
    %cst_14 = arith.constant dense<0.000000e+00> : vector<32x32xf32>
    %28 = tpu.matmul %15, %5, %cst_14 {dimension_numbers = #tpu.dot_dimension_numbers<[1], [0], [0], [1], [0, 0, 1, 1], [], []>} : vector<32x24xf32>, vector<24x32xf32>, vector<32x32xf32> -> vector<32x32xf32>
    %cst_15 = arith.constant dense<0.000000e+00> : vector<32x64xf32>
    %29 = tpu.matmul %21, %9, %cst_15 {dimension_numbers = #tpu.dot_dimension_numbers<[1], [0], [0], [1], [0, 0, 1, 1], [], []>} : vector<32x8xf32>, vector<8x64xf32>, vector<32x64xf32> -> vector<32x64xf32>
    %30 = vector.extract_strided_slice %29 {offsets = [0, 0], sizes = [32, 32], strides = [1, 1]} : vector<32x64xf32> to vector<32x32xf32>
    %31 = vector.extract_strided_slice %29 {offsets = [0, 32], sizes = [32, 32], strides = [1, 1]} : vector<32x64xf32> to vector<32x32xf32>
    %32 = tpu.iota {dimensions = array<i32: 0>} : vector<32x4xi32>
    %33 = tpu.iota {dimensions = array<i32: 1>} : vector<32x4xi32>
    %c8_i32 = arith.constant 8 : i32
    %34 = vector.broadcast %c8_i32 : i32 to vector<32x4xi32>
    %35 = arith.muli %33, %34 : vector<32x4xi32>
    %36 = arith.cmpi sge, %32, %35 : vector<32x4xi32>
    %c1_i32 = arith.constant 1 : i32
    %37 = vector.broadcast %c1_i32 : i32 to vector<32x4xi32>
    %38 = arith.addi %33, %37 : vector<32x4xi32>
    %c8_i32_16 = arith.constant 8 : i32
    %39 = vector.broadcast %c8_i32_16 : i32 to vector<32x4xi32>
    %40 = arith.muli %38, %39 : vector<32x4xi32>
    %41 = arith.cmpi slt, %32, %40 : vector<32x4xi32>
    %42 = arith.andi %36, %41 : vector<32x4xi1>
    %43 = arith.extui %42 : vector<32x4xi1> to vector<32x4xi32>
    %44 = arith.sitofp %43 : vector<32x4xi32> to vector<32x4xf32>
    %45 = tpu.iota {dimensions = array<i32: 1>} : vector<4x32xi32>
    %46 = tpu.iota {dimensions = array<i32: 0>} : vector<4x32xi32>
    %c8_i32_17 = arith.constant 8 : i32
    %47 = vector.broadcast %c8_i32_17 : i32 to vector<4x32xi32>
    %48 = arith.muli %46, %47 : vector<4x32xi32>
    %49 = arith.cmpi sge, %45, %48 : vector<4x32xi32>
    %c1_i32_18 = arith.constant 1 : i32
    %50 = vector.broadcast %c1_i32_18 : i32 to vector<4x32xi32>
    %51 = arith.addi %46, %50 : vector<4x32xi32>
    %c8_i32_19 = arith.constant 8 : i32
    %52 = vector.broadcast %c8_i32_19 : i32 to vector<4x32xi32>
    %53 = arith.muli %51, %52 : vector<4x32xi32>
    %54 = arith.cmpi slt, %45, %53 : vector<4x32xi32>
    %55 = arith.andi %49, %54 : vector<4x32xi1>
    %56 = arith.extui %55 : vector<4x32xi1> to vector<4x32xi32>
    %57 = arith.sitofp %56 : vector<4x32xi32> to vector<4x32xf32>
    %c0_20 = arith.constant 0 : index
    %c0_21 = arith.constant 0 : index
    %58 = vector.load %arg5[%c0_20, %c0_21] : memref<1x32xf32, #tpu.memory_space<vmem>>, vector<1x32xf32>
    %59 = vector.broadcast %58 : vector<1x32xf32> to vector<32x32xf32>
    %60 = arith.addf %30, %59 : vector<32x32xf32>
    %61 = arith.mulf %28, %60 : vector<32x32xf32>
    %cst_22 = arith.constant dense<0.000000e+00> : vector<32x4xf32>
    %62 = tpu.matmul %61, %44, %cst_22 {dimension_numbers = #tpu.dot_dimension_numbers<[1], [0], [0], [1], [0, 0, 1, 1], [], []>} : vector<32x32xf32>, vector<32x4xf32>, vector<32x4xf32> -> vector<32x4xf32>
    %cst_23 = arith.constant 0.353553385 : f32
    %63 = vector.broadcast %cst_23 : f32 to vector<32x4xf32>
    %64 = arith.mulf %62, %63 : vector<32x4xf32>
    %cst_24 = arith.constant 0.000000e+00 : f32
    %65 = vector.broadcast %cst_24 : f32 to vector<32x4xf32>
    %66 = arith.cmpf oge, %64, %65 : vector<32x4xf32>
    %cst_25 = arith.constant 0.00999999977 : f32
    %67 = vector.broadcast %cst_25 : f32 to vector<32x4xf32>
    %68 = arith.mulf %67, %64 : vector<32x4xf32>
    %69 = arith.select %66, %64, %68 : vector<32x4xi1>, vector<32x4xf32>
    %cst_26 = arith.constant 5.000000e-01 : f32
    %70 = vector.broadcast %cst_26 : f32 to vector<32x24xf32>
    %71 = arith.cmpf ogt, %15, %70 : vector<32x24xf32>
    %72 = tpu.iota {dimensions = array<i32: 1>} : vector<1x4xi32>
    %cst_27 = arith.constant 0.000000e+00 : f32
    %73 = vector.broadcast %cst_27 : f32 to vector<32x4xf32>
    %74 = vector.extract_strided_slice %69 {offsets = [0, 0], sizes = [32, 1], strides = [1, 1]} : vector<32x4xf32> to vector<32x1xf32>
    %cst_28 = arith.constant -1.000000e+30 : f32
    %75 = vector.shape_cast %74 : vector<32x1xf32> to vector<32x1xf32>
    %76 = vector.broadcast %75 : vector<32x1xf32> to vector<32x24xf32>
    %77 = vector.broadcast %cst_28 : f32 to vector<32x24xf32>
    %78 = arith.select %71, %76, %77 : vector<32x24xi1>, vector<32x24xf32>
    %cst_29 = arith.constant dense<0xFF800000> : vector<24xf32>
    %79 = vector.multi_reduction <maximumf>, %78, %cst_29 [0] : vector<32x24xf32> to vector<24xf32>
    %80 = vector.shape_cast %79 : vector<24xf32> to vector<1x24xf32>
    %81 = vector.broadcast %80 : vector<1x24xf32> to vector<32x24xf32>
    %82 = arith.mulf %15, %81 : vector<32x24xf32>
    %cst_30 = arith.constant dense<0.000000e+00> : vector<32xf32>
    %83 = vector.multi_reduction <add>, %82, %cst_30 [1] : vector<32x24xf32> to vector<32xf32>
    %84 = vector.shape_cast %83 : vector<32xf32> to vector<32x1xf32>
    %85 = arith.subf %74, %84 : vector<32x1xf32>
    %86 = math.exp %85 : vector<32x1xf32>
    %c0_i32 = arith.constant 0 : i32
    %87 = vector.broadcast %c0_i32 : i32 to vector<1x4xi32>
    %88 = arith.cmpi eq, %72, %87 : vector<1x4xi32>
    %89 = arith.extui %88 : vector<1x4xi1> to vector<1x4xi32>
    %90 = arith.sitofp %89 : vector<1x4xi32> to vector<1x4xf32>
    %91 = vector.broadcast %86 : vector<32x1xf32> to vector<32x4xf32>
    %92 = vector.broadcast %90 : vector<1x4xf32> to vector<32x4xf32>
    %93 = arith.mulf %91, %92 : vector<32x4xf32>
    %94 = arith.addf %73, %93 : vector<32x4xf32>
    %95 = vector.extract_strided_slice %69 {offsets = [0, 1], sizes = [32, 1], strides = [1, 1]} : vector<32x4xf32> to vector<32x1xf32>
    %cst_31 = arith.constant -1.000000e+30 : f32
    %96 = vector.shape_cast %95 : vector<32x1xf32> to vector<32x1xf32>
    %97 = vector.broadcast %96 : vector<32x1xf32> to vector<32x24xf32>
    %98 = vector.broadcast %cst_31 : f32 to vector<32x24xf32>
    %99 = arith.select %71, %97, %98 : vector<32x24xi1>, vector<32x24xf32>
    %cst_32 = arith.constant dense<0xFF800000> : vector<24xf32>
    %100 = vector.multi_reduction <maximumf>, %99, %cst_32 [0] : vector<32x24xf32> to vector<24xf32>
    %101 = vector.shape_cast %100 : vector<24xf32> to vector<1x24xf32>
    %102 = vector.broadcast %101 : vector<1x24xf32> to vector<32x24xf32>
    %103 = arith.mulf %15, %102 : vector<32x24xf32>
    %cst_33 = arith.constant dense<0.000000e+00> : vector<32xf32>
    %104 = vector.multi_reduction <add>, %103, %cst_33 [1] : vector<32x24xf32> to vector<32xf32>
    %105 = vector.shape_cast %104 : vector<32xf32> to vector<32x1xf32>
    %106 = arith.subf %95, %105 : vector<32x1xf32>
    %107 = math.exp %106 : vector<32x1xf32>
    %c1_i32_34 = arith.constant 1 : i32
    %108 = vector.broadcast %c1_i32_34 : i32 to vector<1x4xi32>
    %109 = arith.cmpi eq, %72, %108 : vector<1x4xi32>
    %110 = arith.extui %109 : vector<1x4xi1> to vector<1x4xi32>
    %111 = arith.sitofp %110 : vector<1x4xi32> to vector<1x4xf32>
    %112 = vector.broadcast %107 : vector<32x1xf32> to vector<32x4xf32>
    %113 = vector.broadcast %111 : vector<1x4xf32> to vector<32x4xf32>
    %114 = arith.mulf %112, %113 : vector<32x4xf32>
    %115 = arith.addf %94, %114 : vector<32x4xf32>
    %116 = vector.extract_strided_slice %69 {offsets = [0, 2], sizes = [32, 1], strides = [1, 1]} : vector<32x4xf32> to vector<32x1xf32>
    %cst_35 = arith.constant -1.000000e+30 : f32
    %117 = vector.shape_cast %116 : vector<32x1xf32> to vector<32x1xf32>
    %118 = vector.broadcast %117 : vector<32x1xf32> to vector<32x24xf32>
    %119 = vector.broadcast %cst_35 : f32 to vector<32x24xf32>
    %120 = arith.select %71, %118, %119 : vector<32x24xi1>, vector<32x24xf32>
    %cst_36 = arith.constant dense<0xFF800000> : vector<24xf32>
    %121 = vector.multi_reduction <maximumf>, %120, %cst_36 [0] : vector<32x24xf32> to vector<24xf32>
    %122 = vector.shape_cast %121 : vector<24xf32> to vector<1x24xf32>
    %123 = vector.broadcast %122 : vector<1x24xf32> to vector<32x24xf32>
    %124 = arith.mulf %15, %123 : vector<32x24xf32>
    %cst_37 = arith.constant dense<0.000000e+00> : vector<32xf32>
    %125 = vector.multi_reduction <add>, %124, %cst_37 [1] : vector<32x24xf32> to vector<32xf32>
    %126 = vector.shape_cast %125 : vector<32xf32> to vector<32x1xf32>
    %127 = arith.subf %116, %126 : vector<32x1xf32>
    %128 = math.exp %127 : vector<32x1xf32>
    %c2_i32 = arith.constant 2 : i32
    %129 = vector.broadcast %c2_i32 : i32 to vector<1x4xi32>
    %130 = arith.cmpi eq, %72, %129 : vector<1x4xi32>
    %131 = arith.extui %130 : vector<1x4xi1> to vector<1x4xi32>
    %132 = arith.sitofp %131 : vector<1x4xi32> to vector<1x4xf32>
    %133 = vector.broadcast %128 : vector<32x1xf32> to vector<32x4xf32>
    %134 = vector.broadcast %132 : vector<1x4xf32> to vector<32x4xf32>
    %135 = arith.mulf %133, %134 : vector<32x4xf32>
    %136 = arith.addf %115, %135 : vector<32x4xf32>
    %137 = vector.extract_strided_slice %69 {offsets = [0, 3], sizes = [32, 1], strides = [1, 1]} : vector<32x4xf32> to vector<32x1xf32>
    %cst_38 = arith.constant -1.000000e+30 : f32
    %138 = vector.shape_cast %137 : vector<32x1xf32> to vector<32x1xf32>
    %139 = vector.broadcast %138 : vector<32x1xf32> to vector<32x24xf32>
    %140 = vector.broadcast %cst_38 : f32 to vector<32x24xf32>
    %141 = arith.select %71, %139, %140 : vector<32x24xi1>, vector<32x24xf32>
    %cst_39 = arith.constant dense<0xFF800000> : vector<24xf32>
    %142 = vector.multi_reduction <maximumf>, %141, %cst_39 [0] : vector<32x24xf32> to vector<24xf32>
    %143 = vector.shape_cast %142 : vector<24xf32> to vector<1x24xf32>
    %144 = vector.broadcast %143 : vector<1x24xf32> to vector<32x24xf32>
    %145 = arith.mulf %15, %144 : vector<32x24xf32>
    %cst_40 = arith.constant dense<0.000000e+00> : vector<32xf32>
    %146 = vector.multi_reduction <add>, %145, %cst_40 [1] : vector<32x24xf32> to vector<32xf32>
    %147 = vector.shape_cast %146 : vector<32xf32> to vector<32x1xf32>
    %148 = arith.subf %137, %147 : vector<32x1xf32>
    %149 = math.exp %148 : vector<32x1xf32>
    %c3_i32 = arith.constant 3 : i32
    %150 = vector.broadcast %c3_i32 : i32 to vector<1x4xi32>
    %151 = arith.cmpi eq, %72, %150 : vector<1x4xi32>
    %152 = arith.extui %151 : vector<1x4xi1> to vector<1x4xi32>
    %153 = arith.sitofp %152 : vector<1x4xi32> to vector<1x4xf32>
    %154 = vector.broadcast %149 : vector<32x1xf32> to vector<32x4xf32>
    %155 = vector.broadcast %153 : vector<1x4xf32> to vector<32x4xf32>
    %156 = arith.mulf %154, %155 : vector<32x4xf32>
    %157 = arith.addf %136, %156 : vector<32x4xf32>
    %cst_41 = arith.constant dense<0.000000e+00> : vector<24x4xf32>
    %158 = tpu.matmul %27, %157, %cst_41 {dimension_numbers = #tpu.dot_dimension_numbers<[1], [0], [0], [1], [0, 0, 1, 1], [], []>} : vector<24x32xf32>, vector<32x4xf32>, vector<24x4xf32> -> vector<24x4xf32>
    %cst_42 = arith.constant 1.000000e-16 : f32
    %159 = vector.broadcast %cst_42 : f32 to vector<24x4xf32>
    %160 = arith.addf %158, %159 : vector<24x4xf32>
    %cst_43 = arith.constant dense<0.000000e+00> : vector<32x4xf32>
    %161 = tpu.matmul %15, %160, %cst_43 {dimension_numbers = #tpu.dot_dimension_numbers<[1], [0], [0], [1], [0, 0, 1, 1], [], []>} : vector<32x24xf32>, vector<24x4xf32>, vector<32x4xf32> -> vector<32x4xf32>
    %162 = tpu.reciprocal %161 {approx = true} : vector<32x4xf32> -> vector<32x4xf32>
    %163 = arith.mulf %157, %162 : vector<32x4xf32>
    %c0_44 = arith.constant 0 : index
    %c0_45 = arith.constant 0 : index
    %164 = vector.load %arg9[%c0_44, %c0_45] : memref<32x1xf32, #tpu.memory_space<vmem>>, vector<32x1xf32>
    %165 = vector.broadcast %164 : vector<32x1xf32> to vector<32x4xf32>
    %166 = arith.mulf %163, %165 : vector<32x4xf32>
    %cst_46 = arith.constant dense<0.000000e+00> : vector<32x32xf32>
    %167 = tpu.matmul %166, %57, %cst_46 {dimension_numbers = #tpu.dot_dimension_numbers<[1], [0], [0], [1], [0, 0, 1, 1], [], []>} : vector<32x4xf32>, vector<4x32xf32>, vector<32x32xf32> -> vector<32x32xf32>
    %168 = arith.mulf %167, %31 : vector<32x32xf32>
    %cst_47 = arith.constant dense<0.000000e+00> : vector<24x32xf32>
    %169 = tpu.matmul %27, %168, %cst_47 {dimension_numbers = #tpu.dot_dimension_numbers<[1], [0], [0], [1], [0, 0, 1, 1], [], []>} : vector<24x32xf32>, vector<32x32xf32>, vector<24x32xf32> -> vector<24x32xf32>
    %c0_48 = arith.constant 0 : index
    %c0_49 = arith.constant 0 : index
    %170 = vector.load %arg10[%c0_48, %c0_49] : memref<24x32xf32, #tpu.memory_space<vmem>>, vector<24x32xf32>
    tpu.vector_store %arg10[%c0_48, %c0_49], %169 {strides = array<i32>} : memref<24x32xf32, #tpu.memory_space<vmem>>, vector<24x32xf32>,
    return
  }
  func.func @transform_0(%arg0: i32) -> (i32, i32) {
    %c0_i32 = arith.constant 0 : i32
    %c0_i32_0 = arith.constant 0 : i32
    %c0_i32_1 = arith.constant 0 : i32
    return %c0_i32, %c0_i32_0 : i32, i32
  }
  func.func @transform_1(%arg0: i32) -> (i32, i32) {
    %c0_i32 = arith.constant 0 : i32
    %c0_i32_0 = arith.constant 0 : i32
    %c0_i32_1 = arith.constant 0 : i32
    return %c0_i32, %c0_i32_0 : i32, i32
  }
  func.func @transform_2(%arg0: i32) -> (i32, i32) {
    %c0_i32 = arith.constant 0 : i32
    %c0_i32_0 = arith.constant 0 : i32
    %c0_i32_1 = arith.constant 0 : i32
    return %c0_i32, %c0_i32_0 : i32, i32
  }
  func.func @transform_3(%arg0: i32) -> (i32, i32) {
    %c0_i32 = arith.constant 0 : i32
    %c0_i32_0 = arith.constant 0 : i32
    %c0_i32_1 = arith.constant 0 : i32
    return %c0_i32, %c0_i32_0 : i32, i32
  }
  func.func @transform_4(%arg0: i32) -> (i32, i32) {
    %c0_i32 = arith.constant 0 : i32
    %c0_i32_0 = arith.constant 0 : i32
    %c0_i32_1 = arith.constant 0 : i32
    return %c0_i32, %c0_i32_0 : i32, i32
  }
  func.func @transform_5(%arg0: i32) -> (i32, i32) {
    %c0_i32 = arith.constant 0 : i32
    %c0_i32_0 = arith.constant 0 : i32
    %c0_i32_1 = arith.constant 0 : i32
    return %c0_i32, %c0_i32_0 : i32, i32
  }
  func.func @transform_6(%arg0: i32) -> (i32, i32) {
    %c0_i32 = arith.constant 0 : i32
    %c0_i32_0 = arith.constant 0 : i32
    %c0_i32_1 = arith.constant 0 : i32
    return %c0_i32, %c0_i32_0 : i32, i32
  }
  func.func @transform_7(%arg0: i32) -> (i32, i32) {
    %c0_i32 = arith.constant 0 : i32
    %c0_i32_0 = arith.constant 0 : i32
    %c0_i32_1 = arith.constant 0 : i32
    return %c0_i32, %c0_i32_0 : i32, i32
  }
  func.func @transform_8(%arg0: i32) -> (i32, i32) {
    %c0_i32 = arith.constant 0 : i32
    %c0_i32_0 = arith.constant 0 : i32
    %c0_i32_1 = arith.constant 0 : i32
    return %c0_i32, %c0_i32_0 : i32, i32
  }
  func.func @transform_9(%arg0: i32) -> (i32, i32) {
    %c0_i32 = arith.constant 0 : i32
    %c0_i32_0 = arith.constant 0 : i32
    %c0_i32_1 = arith.constant 0 : i32
    return %c0_i32, %c0_i32_0 : i32, i32
  }
}

module attributes {stable_mosaic.version = 11 : i64} {
  func.func @_ffn_kernel(%arg0: i32, %arg1: memref<24x32xf32, #tpu.memory_space<vmem>>, %arg2: memref<24x32xf32, #tpu.memory_space<vmem>>, %arg3: memref<1x32xf32, #tpu.memory_space<vmem>>, %arg4: memref<1x32xf32, #tpu.memory_space<vmem>>, %arg5: memref<32x128xf32, #tpu.memory_space<vmem>>, %arg6: memref<128x32xf32, #tpu.memory_space<vmem>>, %arg7: memref<24x32xf32, #tpu.memory_space<vmem>>) attributes {dimension_semantics = [#tpu.dimension_semantics<arbitrary>], iteration_bounds = array<i64: 1>, scalar_prefetch = 0 : i64, scratch_operands = 0 : i64, tpu.core_type = #tpu.core_type<tc>, window_params = [{pipeline_mode = #tpu.pipeline_mode<synchronous>, transform_indices = @transform_0, window_bounds = array<i64: 24, 32>}, {pipeline_mode = #tpu.pipeline_mode<synchronous>, transform_indices = @transform_1, window_bounds = array<i64: 24, 32>}, {pipeline_mode = #tpu.pipeline_mode<synchronous>, transform_indices = @transform_2, window_bounds = array<i64: 1, 32>}, {pipeline_mode = #tpu.pipeline_mode<synchronous>, transform_indices = @transform_3, window_bounds = array<i64: 1, 32>}, {pipeline_mode = #tpu.pipeline_mode<synchronous>, transform_indices = @transform_4, window_bounds = array<i64: 32, 128>}, {pipeline_mode = #tpu.pipeline_mode<synchronous>, transform_indices = @transform_5, window_bounds = array<i64: 128, 32>}, {pipeline_mode = #tpu.pipeline_mode<synchronous>, transform_indices = @transform_6, window_bounds = array<i64: 24, 32>}]} {
    %c0 = arith.constant 0 : index
    %c0_0 = arith.constant 0 : index
    %0 = vector.load %arg1[%c0, %c0_0] : memref<24x32xf32, #tpu.memory_space<vmem>>, vector<24x32xf32>
    %c0_1 = arith.constant 0 : index
    %c0_2 = arith.constant 0 : index
    %1 = vector.load %arg2[%c0_1, %c0_2] : memref<24x32xf32, #tpu.memory_space<vmem>>, vector<24x32xf32>
    %2 = arith.addf %0, %1 : vector<24x32xf32>
    %c0_3 = arith.constant 0 : index
    %c0_4 = arith.constant 0 : index
    %3 = vector.load %arg3[%c0_3, %c0_4] : memref<1x32xf32, #tpu.memory_space<vmem>>, vector<1x32xf32>
    %c0_5 = arith.constant 0 : index
    %c0_6 = arith.constant 0 : index
    %4 = vector.load %arg4[%c0_5, %c0_6] : memref<1x32xf32, #tpu.memory_space<vmem>>, vector<1x32xf32>
    %c0_7 = arith.constant 0 : index
    %c0_8 = arith.constant 0 : index
    %5 = vector.load %arg5[%c0_7, %c0_8] : memref<32x128xf32, #tpu.memory_space<vmem>>, vector<32x128xf32>
    %c0_9 = arith.constant 0 : index
    %c0_10 = arith.constant 0 : index
    %6 = vector.load %arg6[%c0_9, %c0_10] : memref<128x32xf32, #tpu.memory_space<vmem>>, vector<128x32xf32>
    %cst = arith.constant dense<0.000000e+00> : vector<24xf32>
    %7 = vector.multi_reduction <add>, %2, %cst [1] : vector<24x32xf32> to vector<24xf32>
    %8 = vector.shape_cast %7 : vector<24xf32> to vector<24x1xf32>
    %cst_11 = arith.constant 3.200000e+01 : f32
    %9 = vector.broadcast %cst_11 : f32 to vector<24x1xf32>
    %10 = arith.divf %8, %9 : vector<24x1xf32>
    %11 = vector.broadcast %10 : vector<24x1xf32> to vector<24x32xf32>
    %12 = arith.subf %2, %11 : vector<24x32xf32>
    %13 = arith.mulf %12, %12 : vector<24x32xf32>
    %cst_12 = arith.constant dense<0.000000e+00> : vector<24xf32>
    %14 = vector.multi_reduction <add>, %13, %cst_12 [1] : vector<24x32xf32> to vector<24xf32>
    %15 = vector.shape_cast %14 : vector<24xf32> to vector<24x1xf32>
    %cst_13 = arith.constant 3.200000e+01 : f32
    %16 = vector.broadcast %cst_13 : f32 to vector<24x1xf32>
    %17 = arith.divf %15, %16 : vector<24x1xf32>
    %18 = vector.broadcast %10 : vector<24x1xf32> to vector<24x32xf32>
    %19 = arith.subf %2, %18 : vector<24x32xf32>
    %cst_14 = arith.constant 9.99999974E-6 : f32
    %20 = vector.broadcast %cst_14 : f32 to vector<24x1xf32>
    %21 = arith.addf %17, %20 : vector<24x1xf32>
    %22 = math.rsqrt %21 : vector<24x1xf32>
    %23 = vector.broadcast %22 : vector<24x1xf32> to vector<24x32xf32>
    %24 = arith.mulf %19, %23 : vector<24x32xf32>
    %cst_15 = arith.constant dense<0.000000e+00> : vector<24xf32>
    %25 = vector.multi_reduction <add>, %24, %cst_15 [1] : vector<24x32xf32> to vector<24xf32>
    %26 = vector.shape_cast %25 : vector<24xf32> to vector<24x1xf32>
    %cst_16 = arith.constant 3.200000e+01 : f32
    %27 = vector.broadcast %cst_16 : f32 to vector<24x1xf32>
    %28 = arith.divf %26, %27 : vector<24x1xf32>
    %29 = vector.broadcast %28 : vector<24x1xf32> to vector<24x32xf32>
    %30 = arith.subf %24, %29 : vector<24x32xf32>
    %31 = arith.mulf %30, %30 : vector<24x32xf32>
    %cst_17 = arith.constant dense<0.000000e+00> : vector<24xf32>
    %32 = vector.multi_reduction <add>, %31, %cst_17 [1] : vector<24x32xf32> to vector<24xf32>
    %33 = vector.shape_cast %32 : vector<24xf32> to vector<24x1xf32>
    %cst_18 = arith.constant 3.200000e+01 : f32
    %34 = vector.broadcast %cst_18 : f32 to vector<24x1xf32>
    %35 = arith.divf %33, %34 : vector<24x1xf32>
    %36 = vector.broadcast %28 : vector<24x1xf32> to vector<24x32xf32>
    %37 = arith.subf %24, %36 : vector<24x32xf32>
    %cst_19 = arith.constant 9.99999974E-6 : f32
    %38 = vector.broadcast %cst_19 : f32 to vector<24x1xf32>
    %39 = arith.addf %35, %38 : vector<24x1xf32>
    %40 = math.rsqrt %39 : vector<24x1xf32>
    %41 = vector.broadcast %40 : vector<24x1xf32> to vector<24x32xf32>
    %42 = arith.mulf %37, %41 : vector<24x32xf32>
    %43 = vector.broadcast %3 : vector<1x32xf32> to vector<24x32xf32>
    %44 = arith.mulf %42, %43 : vector<24x32xf32>
    %45 = vector.broadcast %4 : vector<1x32xf32> to vector<24x32xf32>
    %46 = arith.addf %44, %45 : vector<24x32xf32>
    %47 = arith.truncf %46 : vector<24x32xf32> to vector<24x32xbf16>
    %48 = arith.truncf %5 : vector<32x128xf32> to vector<32x128xbf16>
    %cst_20 = arith.constant dense<0.000000e+00> : vector<24x128xf32>
    %49 = tpu.matmul %47, %48, %cst_20 {dimension_numbers = #tpu.dot_dimension_numbers<[1], [0], [0], [1], [0, 0, 1, 1], [], []>} : vector<24x32xbf16>, vector<32x128xbf16>, vector<24x128xf32> -> vector<24x128xf32>
    %cst_21 = arith.constant 5.000000e-01 : f32
    %50 = vector.broadcast %cst_21 : f32 to vector<24x128xf32>
    %51 = arith.mulf %50, %49 : vector<24x128xf32>
    %cst_22 = arith.constant 4.471500e-02 : f32
    %52 = vector.broadcast %cst_22 : f32 to vector<24x128xf32>
    %53 = arith.mulf %52, %49 : vector<24x128xf32>
    %54 = arith.mulf %53, %49 : vector<24x128xf32>
    %55 = arith.mulf %54, %49 : vector<24x128xf32>
    %56 = arith.addf %49, %55 : vector<24x128xf32>
    %cst_23 = arith.constant 0.797884583 : f32
    %57 = vector.broadcast %cst_23 : f32 to vector<24x128xf32>
    %58 = arith.mulf %57, %56 : vector<24x128xf32>
    %59 = math.tanh %58 : vector<24x128xf32>
    %cst_24 = arith.constant 1.000000e+00 : f32
    %60 = vector.broadcast %cst_24 : f32 to vector<24x128xf32>
    %61 = arith.addf %60, %59 : vector<24x128xf32>
    %62 = arith.mulf %51, %61 : vector<24x128xf32>
    %63 = arith.truncf %62 : vector<24x128xf32> to vector<24x128xbf16>
    %64 = arith.truncf %6 : vector<128x32xf32> to vector<128x32xbf16>
    %cst_25 = arith.constant dense<0.000000e+00> : vector<24x32xf32>
    %65 = tpu.matmul %63, %64, %cst_25 {dimension_numbers = #tpu.dot_dimension_numbers<[1], [0], [0], [1], [0, 0, 1, 1], [], []>} : vector<24x128xbf16>, vector<128x32xbf16>, vector<24x32xf32> -> vector<24x32xf32>
    %66 = arith.addf %2, %65 : vector<24x32xf32>
    %c0_26 = arith.constant 0 : index
    %c0_27 = arith.constant 0 : index
    %67 = vector.load %arg7[%c0_26, %c0_27] : memref<24x32xf32, #tpu.memory_space<vmem>>, vector<24x32xf32>
    tpu.vector_store %arg7[%c0_26, %c0_27], %66 {strides = array<i32>} : memref<24x32xf32, #tpu.memory_space<vmem>>, vector<24x32xf32>,
    return
  }
  func.func @transform_0(%arg0: i32) -> (i32, i32) {
    %c0_i32 = arith.constant 0 : i32
    %c0_i32_0 = arith.constant 0 : i32
    %c0_i32_1 = arith.constant 0 : i32
    return %c0_i32, %c0_i32_0 : i32, i32
  }
  func.func @transform_1(%arg0: i32) -> (i32, i32) {
    %c0_i32 = arith.constant 0 : i32
    %c0_i32_0 = arith.constant 0 : i32
    %c0_i32_1 = arith.constant 0 : i32
    return %c0_i32, %c0_i32_0 : i32, i32
  }
  func.func @transform_2(%arg0: i32) -> (i32, i32) {
    %c0_i32 = arith.constant 0 : i32
    %c0_i32_0 = arith.constant 0 : i32
    %c0_i32_1 = arith.constant 0 : i32
    return %c0_i32, %c0_i32_0 : i32, i32
  }
  func.func @transform_3(%arg0: i32) -> (i32, i32) {
    %c0_i32 = arith.constant 0 : i32
    %c0_i32_0 = arith.constant 0 : i32
    %c0_i32_1 = arith.constant 0 : i32
    return %c0_i32, %c0_i32_0 : i32, i32
  }
  func.func @transform_4(%arg0: i32) -> (i32, i32) {
    %c0_i32 = arith.constant 0 : i32
    %c0_i32_0 = arith.constant 0 : i32
    %c0_i32_1 = arith.constant 0 : i32
    return %c0_i32, %c0_i32_0 : i32, i32
  }
  func.func @transform_5(%arg0: i32) -> (i32, i32) {
    %c0_i32 = arith.constant 0 : i32
    %c0_i32_0 = arith.constant 0 : i32
    %c0_i32_1 = arith.constant 0 : i32
    return %c0_i32, %c0_i32_0 : i32, i32
  }
  func.func @transform_6(%arg0: i32) -> (i32, i32) {
    %c0_i32 = arith.constant 0 : i32
    %c0_i32_0 = arith.constant 0 : i32
    %c0_i32_1 = arith.constant 0 : i32
    return %c0_i32, %c0_i32_0 : i32, i32
  }
}

module attributes {stable_mosaic.version = 11 : i64} {
  func.func @_rgt_relation_kernel(%arg0: i32, %arg1: memref<8x32xf32, #tpu.memory_space<vmem>>, %arg2: memref<24x32xf32, #tpu.memory_space<vmem>>, %arg3: memref<32x32xf32, #tpu.memory_space<vmem>>, %arg4: memref<32x64xf32, #tpu.memory_space<vmem>>, %arg5: memref<1x32xf32, #tpu.memory_space<vmem>>, %arg6: memref<20x1xi32, #tpu.memory_space<vmem>>, %arg7: memref<1x20xi32, #tpu.memory_space<vmem>>, %arg8: memref<20x1xi32, #tpu.memory_space<vmem>>, %arg9: memref<20x1xf32, #tpu.memory_space<vmem>>, %arg10: memref<8x32xf32, #tpu.memory_space<vmem>>) attributes {dimension_semantics = [#tpu.dimension_semantics<arbitrary>], iteration_bounds = array<i64: 1>, scalar_prefetch = 0 : i64, scratch_operands = 0 : i64, tpu.core_type = #tpu.core_type<tc>, window_params = [{pipeline_mode = #tpu.pipeline_mode<synchronous>, transform_indices = @transform_0, window_bounds = array<i64: 8, 32>}, {pipeline_mode = #tpu.pipeline_mode<synchronous>, transform_indices = @transform_1, window_bounds = array<i64: 24, 32>}, {pipeline_mode = #tpu.pipeline_mode<synchronous>, transform_indices = @transform_2, window_bounds = array<i64: 32, 32>}, {pipeline_mode = #tpu.pipeline_mode<synchronous>, transform_indices = @transform_3, window_bounds = array<i64: 32, 64>}, {pipeline_mode = #tpu.pipeline_mode<synchronous>, transform_indices = @transform_4, window_bounds = array<i64: 1, 32>}, {pipeline_mode = #tpu.pipeline_mode<synchronous>, transform_indices = @transform_5, window_bounds = array<i64: 20, 1>}, {pipeline_mode = #tpu.pipeline_mode<synchronous>, transform_indices = @transform_6, window_bounds = array<i64: 1, 20>}, {pipeline_mode = #tpu.pipeline_mode<synchronous>, transform_indices = @transform_7, window_bounds = array<i64: 20, 1>}, {pipeline_mode = #tpu.pipeline_mode<synchronous>, transform_indices = @transform_8, window_bounds = array<i64: 20, 1>}, {pipeline_mode = #tpu.pipeline_mode<synchronous>, transform_indices = @transform_9, window_bounds = array<i64: 8, 32>}]} {
    %c0 = arith.constant 0 : index
    %c0_0 = arith.constant 0 : index
    %0 = vector.load %arg1[%c0, %c0_0] : memref<8x32xf32, #tpu.memory_space<vmem>>, vector<8x32xf32>
    %c0_1 = arith.constant 0 : index
    %c0_2 = arith.constant 0 : index
    %1 = vector.load %arg2[%c0_1, %c0_2] : memref<24x32xf32, #tpu.memory_space<vmem>>, vector<24x32xf32>
    %c0_3 = arith.constant 0 : index
    %c0_4 = arith.constant 0 : index
    %2 = vector.load %arg3[%c0_3, %c0_4] : memref<32x32xf32, #tpu.memory_space<vmem>>, vector<32x32xf32>
    %3 = arith.truncf %0 : vector<8x32xf32> to vector<8x32xbf16>
    %4 = arith.truncf %2 : vector<32x32xf32> to vector<32x32xbf16>
    %cst = arith.constant dense<0.000000e+00> : vector<8x32xf32>
    %5 = tpu.matmul %3, %4, %cst {dimension_numbers = #tpu.dot_dimension_numbers<[1], [0], [0], [1], [0, 0, 1, 1], [], []>} : vector<8x32xbf16>, vector<32x32xbf16>, vector<8x32xf32> -> vector<8x32xf32>
    %c0_5 = arith.constant 0 : index
    %c0_6 = arith.constant 0 : index
    %6 = vector.load %arg4[%c0_5, %c0_6] : memref<32x64xf32, #tpu.memory_space<vmem>>, vector<32x64xf32>
    %7 = arith.truncf %1 : vector<24x32xf32> to vector<24x32xbf16>
    %8 = arith.truncf %6 : vector<32x64xf32> to vector<32x64xbf16>
    %cst_7 = arith.constant dense<0.000000e+00> : vector<24x64xf32>
    %9 = tpu.matmul %7, %8, %cst_7 {dimension_numbers = #tpu.dot_dimension_numbers<[1], [0], [0], [1], [0, 0, 1, 1], [], []>} : vector<24x32xbf16>, vector<32x64xbf16>, vector<24x64xf32> -> vector<24x64xf32>
    %10 = tpu.iota {dimensions = array<i32: 1>} : vector<20x8xi32>
    %c0_8 = arith.constant 0 : index
    %c0_9 = arith.constant 0 : index
    %11 = vector.load %arg6[%c0_8, %c0_9] : memref<20x1xi32, #tpu.memory_space<vmem>>, vector<20x1xi32>
    %12 = vector.broadcast %11 : vector<20x1xi32> to vector<20x8xi32>
    %13 = arith.cmpi eq, %10, %12 : vector<20x8xi32>
    %14 = arith.extui %13 : vector<20x8xi1> to vector<20x8xi32>
    %15 = arith.sitofp %14 : vector<20x8xi32> to vector<20x8xf32>
    %16 = tpu.iota {dimensions = array<i32: 1>} : vector<20x24xi32>
    %c0_10 = arith.constant 0 : index
    %c0_11 = arith.constant 0 : index
    %17 = vector.load %arg8[%c0_10, %c0_11] : memref<20x1xi32, #tpu.memory_space<vmem>>, vector<20x1xi32>
    %18 = vector.broadcast %17 : vector<20x1xi32> to vector<20x24xi32>
    %19 = arith.cmpi eq, %16, %18 : vector<20x24xi32>
    %20 = arith.extui %19 : vector<20x24xi1> to vector<20x24xi32>
    %21 = arith.sitofp %20 : vector<20x24xi32> to vector<20x24xf32>
    %22 = tpu.iota {dimensions = array<i32: 0>} : vector<8x20xi32>
    %c0_12 = arith.constant 0 : index
    %c0_13 = arith.constant 0 : index
    %23 = vector.load %arg7[%c0_12, %c0_13] : memref<1x20xi32, #tpu.memory_space<vmem>>, vector<1x20xi32>
    %24 = vector.broadcast %23 : vector<1x20xi32> to vector<8x20xi32>
    %25 = arith.cmpi eq, %22, %24 : vector<8x20xi32>
    %26 = arith.extui %25 : vector<8x20xi1> to vector<8x20xi32>
    %27 = arith.sitofp %26 : vector<8x20xi32> to vector<8x20xf32>
    %cst_14 = arith.constant dense<0.000000e+00> : vector<20x32xf32>
    %28 = tpu.matmul %15, %5, %cst_14 {dimension_numbers = #tpu.dot_dimension_numbers<[1], [0], [0], [1], [0, 0, 1, 1], [], []>} : vector<20x8xf32>, vector<8x32xf32>, vector<20x32xf32> -> vector<20x32xf32>
    %cst_15 = arith.constant dense<0.000000e+00> : vector<20x64xf32>
    %29 = tpu.matmul %21, %9, %cst_15 {dimension_numbers = #tpu.dot_dimension_numbers<[1], [0], [0], [1], [0, 0, 1, 1], [], []>} : vector<20x24xf32>, vector<24x64xf32>, vector<20x64xf32> -> vector<20x64xf32>
    %30 = vector.extract_strided_slice %29 {offsets = [0, 0], sizes = [20, 32], strides = [1, 1]} : vector<20x64xf32> to vector<20x32xf32>
    %31 = vector.extract_strided_slice %29 {offsets = [0, 32], sizes = [20, 32], strides = [1, 1]} : vector<20x64xf32> to vector<20x32xf32>
    %32 = tpu.iota {dimensions = array<i32: 0>} : vector<32x4xi32>
    %33 = tpu.iota {dimensions = array<i32: 1>} : vector<32x4xi32>
    %c8_i32 = arith.constant 8 : i32
    %34 = vector.broadcast %c8_i32 : i32 to vector<32x4xi32>
    %35 = arith.muli %33, %34 : vector<32x4xi32>
    %36 = arith.cmpi sge, %32, %35 : vector<32x4xi32>
    %c1_i32 = arith.constant 1 : i32
    %37 = vector.broadcast %c1_i32 : i32 to vector<32x4xi32>
    %38 = arith.addi %33, %37 : vector<32x4xi32>
    %c8_i32_16 = arith.constant 8 : i32
    %39 = vector.broadcast %c8_i32_16 : i32 to vector<32x4xi32>
    %40 = arith.muli %38, %39 : vector<32x4xi32>
    %41 = arith.cmpi slt, %32, %40 : vector<32x4xi32>
    %42 = arith.andi %36, %41 : vector<32x4xi1>
    %43 = arith.extui %42 : vector<32x4xi1> to vector<32x4xi32>
    %44 = arith.sitofp %43 : vector<32x4xi32> to vector<32x4xf32>
    %45 = tpu.iota {dimensions = array<i32: 1>} : vector<4x32xi32>
    %46 = tpu.iota {dimensions = array<i32: 0>} : vector<4x32xi32>
    %c8_i32_17 = arith.constant 8 : i32
    %47 = vector.broadcast %c8_i32_17 : i32 to vector<4x32xi32>
    %48 = arith.muli %46, %47 : vector<4x32xi32>
    %49 = arith.cmpi sge, %45, %48 : vector<4x32xi32>
    %c1_i32_18 = arith.constant 1 : i32
    %50 = vector.broadcast %c1_i32_18 : i32 to vector<4x32xi32>
    %51 = arith.addi %46, %50 : vector<4x32xi32>
    %c8_i32_19 = arith.constant 8 : i32
    %52 = vector.broadcast %c8_i32_19 : i32 to vector<4x32xi32>
    %53 = arith.muli %51, %52 : vector<4x32xi32>
    %54 = arith.cmpi slt, %45, %53 : vector<4x32xi32>
    %55 = arith.andi %49, %54 : vector<4x32xi1>
    %56 = arith.extui %55 : vector<4x32xi1> to vector<4x32xi32>
    %57 = arith.sitofp %56 : vector<4x32xi32> to vector<4x32xf32>
    %c0_20 = arith.constant 0 : index
    %c0_21 = arith.constant 0 : index
    %58 = vector.load %arg5[%c0_20, %c0_21] : memref<1x32xf32, #tpu.memory_space<vmem>>, vector<1x32xf32>
    %59 = vector.broadcast %58 : vector<1x32xf32> to vector<20x32xf32>
    %60 = arith.addf %30, %59 : vector<20x32xf32>
    %61 = arith.mulf %28, %60 : vector<20x32xf32>
    %cst_22 = arith.constant dense<0.000000e+00> : vector<20x4xf32>
    %62 = tpu.matmul %61, %44, %cst_22 {dimension_numbers = #tpu.dot_dimension_numbers<[1], [0], [0], [1], [0, 0, 1, 1], [], []>} : vector<20x32xf32>, vector<32x4xf32>, vector<20x4xf32> -> vector<20x4xf32>
    %cst_23 = arith.constant 0.353553385 : f32
    %63 = vector.broadcast %cst_23 : f32 to vector<20x4xf32>
    %64 = arith.mulf %62, %63 : vector<20x4xf32>
    %cst_24 = arith.constant 0.000000e+00 : f32
    %65 = vector.broadcast %cst_24 : f32 to vector<20x4xf32>
    %66 = arith.cmpf oge, %64, %65 : vector<20x4xf32>
    %cst_25 = arith.constant 0.00999999977 : f32
    %67 = vector.broadcast %cst_25 : f32 to vector<20x4xf32>
    %68 = arith.mulf %67, %64 : vector<20x4xf32>
    %69 = arith.select %66, %64, %68 : vector<20x4xi1>, vector<20x4xf32>
    %cst_26 = arith.constant 5.000000e-01 : f32
    %70 = vector.broadcast %cst_26 : f32 to vector<20x8xf32>
    %71 = arith.cmpf ogt, %15, %70 : vector<20x8xf32>
    %72 = tpu.iota {dimensions = array<i32: 1>} : vector<1x4xi32>
    %cst_27 = arith.constant 0.000000e+00 : f32
    %73 = vector.broadcast %cst_27 : f32 to vector<20x4xf32>
    %74 = vector.extract_strided_slice %69 {offsets = [0, 0], sizes = [20, 1], strides = [1, 1]} : vector<20x4xf32> to vector<20x1xf32>
    %cst_28 = arith.constant -1.000000e+30 : f32
    %75 = vector.shape_cast %74 : vector<20x1xf32> to vector<20x1xf32>
    %76 = vector.broadcast %75 : vector<20x1xf32> to vector<20x8xf32>
    %77 = vector.broadcast %cst_28 : f32 to vector<20x8xf32>
    %78 = arith.select %71, %76, %77 : vector<20x8xi1>, vector<20x8xf32>
    %cst_29 = arith.constant dense<0xFF800000> : vector<8xf32>
    %79 = vector.multi_reduction <maximumf>, %78, %cst_29 [0] : vector<20x8xf32> to vector<8xf32>
    %80 = vector.shape_cast %79 : vector<8xf32> to vector<1x8xf32>
    %81 = vector.broadcast %80 : vector<1x8xf32> to vector<20x8xf32>
    %82 = arith.mulf %15, %81 : vector<20x8xf32>
    %cst_30 = arith.constant dense<0.000000e+00> : vector<20xf32>
    %83 = vector.multi_reduction <add>, %82, %cst_30 [1] : vector<20x8xf32> to vector<20xf32>
    %84 = vector.shape_cast %83 : vector<20xf32> to vector<20x1xf32>
    %85 = arith.subf %74, %84 : vector<20x1xf32>
    %86 = math.exp %85 : vector<20x1xf32>
    %c0_i32 = arith.constant 0 : i32
    %87 = vector.broadcast %c0_i32 : i32 to vector<1x4xi32>
    %88 = arith.cmpi eq, %72, %87 : vector<1x4xi32>
    %89 = arith.extui %88 : vector<1x4xi1> to vector<1x4xi32>
    %90 = arith.sitofp %89 : vector<1x4xi32> to vector<1x4xf32>
    %91 = vector.broadcast %86 : vector<20x1xf32> to vector<20x4xf32>
    %92 = vector.broadcast %90 : vector<1x4xf32> to vector<20x4xf32>
    %93 = arith.mulf %91, %92 : vector<20x4xf32>
    %94 = arith.addf %73, %93 : vector<20x4xf32>
    %95 = vector.extract_strided_slice %69 {offsets = [0, 1], sizes = [20, 1], strides = [1, 1]} : vector<20x4xf32> to vector<20x1xf32>
    %cst_31 = arith.constant -1.000000e+30 : f32
    %96 = vector.shape_cast %95 : vector<20x1xf32> to vector<20x1xf32>
    %97 = vector.broadcast %96 : vector<20x1xf32> to vector<20x8xf32>
    %98 = vector.broadcast %cst_31 : f32 to vector<20x8xf32>
    %99 = arith.select %71, %97, %98 : vector<20x8xi1>, vector<20x8xf32>
    %cst_32 = arith.constant dense<0xFF800000> : vector<8xf32>
    %100 = vector.multi_reduction <maximumf>, %99, %cst_32 [0] : vector<20x8xf32> to vector<8xf32>
    %101 = vector.shape_cast %100 : vector<8xf32> to vector<1x8xf32>
    %102 = vector.broadcast %101 : vector<1x8xf32> to vector<20x8xf32>
    %103 = arith.mulf %15, %102 : vector<20x8xf32>
    %cst_33 = arith.constant dense<0.000000e+00> : vector<20xf32>
    %104 = vector.multi_reduction <add>, %103, %cst_33 [1] : vector<20x8xf32> to vector<20xf32>
    %105 = vector.shape_cast %104 : vector<20xf32> to vector<20x1xf32>
    %106 = arith.subf %95, %105 : vector<20x1xf32>
    %107 = math.exp %106 : vector<20x1xf32>
    %c1_i32_34 = arith.constant 1 : i32
    %108 = vector.broadcast %c1_i32_34 : i32 to vector<1x4xi32>
    %109 = arith.cmpi eq, %72, %108 : vector<1x4xi32>
    %110 = arith.extui %109 : vector<1x4xi1> to vector<1x4xi32>
    %111 = arith.sitofp %110 : vector<1x4xi32> to vector<1x4xf32>
    %112 = vector.broadcast %107 : vector<20x1xf32> to vector<20x4xf32>
    %113 = vector.broadcast %111 : vector<1x4xf32> to vector<20x4xf32>
    %114 = arith.mulf %112, %113 : vector<20x4xf32>
    %115 = arith.addf %94, %114 : vector<20x4xf32>
    %116 = vector.extract_strided_slice %69 {offsets = [0, 2], sizes = [20, 1], strides = [1, 1]} : vector<20x4xf32> to vector<20x1xf32>
    %cst_35 = arith.constant -1.000000e+30 : f32
    %117 = vector.shape_cast %116 : vector<20x1xf32> to vector<20x1xf32>
    %118 = vector.broadcast %117 : vector<20x1xf32> to vector<20x8xf32>
    %119 = vector.broadcast %cst_35 : f32 to vector<20x8xf32>
    %120 = arith.select %71, %118, %119 : vector<20x8xi1>, vector<20x8xf32>
    %cst_36 = arith.constant dense<0xFF800000> : vector<8xf32>
    %121 = vector.multi_reduction <maximumf>, %120, %cst_36 [0] : vector<20x8xf32> to vector<8xf32>
    %122 = vector.shape_cast %121 : vector<8xf32> to vector<1x8xf32>
    %123 = vector.broadcast %122 : vector<1x8xf32> to vector<20x8xf32>
    %124 = arith.mulf %15, %123 : vector<20x8xf32>
    %cst_37 = arith.constant dense<0.000000e+00> : vector<20xf32>
    %125 = vector.multi_reduction <add>, %124, %cst_37 [1] : vector<20x8xf32> to vector<20xf32>
    %126 = vector.shape_cast %125 : vector<20xf32> to vector<20x1xf32>
    %127 = arith.subf %116, %126 : vector<20x1xf32>
    %128 = math.exp %127 : vector<20x1xf32>
    %c2_i32 = arith.constant 2 : i32
    %129 = vector.broadcast %c2_i32 : i32 to vector<1x4xi32>
    %130 = arith.cmpi eq, %72, %129 : vector<1x4xi32>
    %131 = arith.extui %130 : vector<1x4xi1> to vector<1x4xi32>
    %132 = arith.sitofp %131 : vector<1x4xi32> to vector<1x4xf32>
    %133 = vector.broadcast %128 : vector<20x1xf32> to vector<20x4xf32>
    %134 = vector.broadcast %132 : vector<1x4xf32> to vector<20x4xf32>
    %135 = arith.mulf %133, %134 : vector<20x4xf32>
    %136 = arith.addf %115, %135 : vector<20x4xf32>
    %137 = vector.extract_strided_slice %69 {offsets = [0, 3], sizes = [20, 1], strides = [1, 1]} : vector<20x4xf32> to vector<20x1xf32>
    %cst_38 = arith.constant -1.000000e+30 : f32
    %138 = vector.shape_cast %137 : vector<20x1xf32> to vector<20x1xf32>
    %139 = vector.broadcast %138 : vector<20x1xf32> to vector<20x8xf32>
    %140 = vector.broadcast %cst_38 : f32 to vector<20x8xf32>
    %141 = arith.select %71, %139, %140 : vector<20x8xi1>, vector<20x8xf32>
    %cst_39 = arith.constant dense<0xFF800000> : vector<8xf32>
    %142 = vector.multi_reduction <maximumf>, %141, %cst_39 [0] : vector<20x8xf32> to vector<8xf32>
    %143 = vector.shape_cast %142 : vector<8xf32> to vector<1x8xf32>
    %144 = vector.broadcast %143 : vector<1x8xf32> to vector<20x8xf32>
    %145 = arith.mulf %15, %144 : vector<20x8xf32>
    %cst_40 = arith.constant dense<0.000000e+00> : vector<20xf32>
    %146 = vector.multi_reduction <add>, %145, %cst_40 [1] : vector<20x8xf32> to vector<20xf32>
    %147 = vector.shape_cast %146 : vector<20xf32> to vector<20x1xf32>
    %148 = arith.subf %137, %147 : vector<20x1xf32>
    %149 = math.exp %148 : vector<20x1xf32>
    %c3_i32 = arith.constant 3 : i32
    %150 = vector.broadcast %c3_i32 : i32 to vector<1x4xi32>
    %151 = arith.cmpi eq, %72, %150 : vector<1x4xi32>
    %152 = arith.extui %151 : vector<1x4xi1> to vector<1x4xi32>
    %153 = arith.sitofp %152 : vector<1x4xi32> to vector<1x4xf32>
    %154 = vector.broadcast %149 : vector<20x1xf32> to vector<20x4xf32>
    %155 = vector.broadcast %153 : vector<1x4xf32> to vector<20x4xf32>
    %156 = arith.mulf %154, %155 : vector<20x4xf32>
    %157 = arith.addf %136, %156 : vector<20x4xf32>
    %cst_41 = arith.constant dense<0.000000e+00> : vector<8x4xf32>
    %158 = tpu.matmul %27, %157, %cst_41 {dimension_numbers = #tpu.dot_dimension_numbers<[1], [0], [0], [1], [0, 0, 1, 1], [], []>} : vector<8x20xf32>, vector<20x4xf32>, vector<8x4xf32> -> vector<8x4xf32>
    %cst_42 = arith.constant 1.000000e-16 : f32
    %159 = vector.broadcast %cst_42 : f32 to vector<8x4xf32>
    %160 = arith.addf %158, %159 : vector<8x4xf32>
    %cst_43 = arith.constant dense<0.000000e+00> : vector<20x4xf32>
    %161 = tpu.matmul %15, %160, %cst_43 {dimension_numbers = #tpu.dot_dimension_numbers<[1], [0], [0], [1], [0, 0, 1, 1], [], []>} : vector<20x8xf32>, vector<8x4xf32>, vector<20x4xf32> -> vector<20x4xf32>
    %162 = tpu.reciprocal %161 {approx = true} : vector<20x4xf32> -> vector<20x4xf32>
    %163 = arith.mulf %157, %162 : vector<20x4xf32>
    %c0_44 = arith.constant 0 : index
    %c0_45 = arith.constant 0 : index
    %164 = vector.load %arg9[%c0_44, %c0_45] : memref<20x1xf32, #tpu.memory_space<vmem>>, vector<20x1xf32>
    %165 = vector.broadcast %164 : vector<20x1xf32> to vector<20x4xf32>
    %166 = arith.mulf %163, %165 : vector<20x4xf32>
    %cst_46 = arith.constant dense<0.000000e+00> : vector<20x32xf32>
    %167 = tpu.matmul %166, %57, %cst_46 {dimension_numbers = #tpu.dot_dimension_numbers<[1], [0], [0], [1], [0, 0, 1, 1], [], []>} : vector<20x4xf32>, vector<4x32xf32>, vector<20x32xf32> -> vector<20x32xf32>
    %168 = arith.mulf %167, %31 : vector<20x32xf32>
    %cst_47 = arith.constant dense<0.000000e+00> : vector<8x32xf32>
    %169 = tpu.matmul %27, %168, %cst_47 {dimension_numbers = #tpu.dot_dimension_numbers<[1], [0], [0], [1], [0, 0, 1, 1], [], []>} : vector<8x20xf32>, vector<20x32xf32>, vector<8x32xf32> -> vector<8x32xf32>
    %c0_48 = arith.constant 0 : index
    %c0_49 = arith.constant 0 : index
    %170 = vector.load %arg10[%c0_48, %c0_49] : memref<8x32xf32, #tpu.memory_space<vmem>>, vector<8x32xf32>
    tpu.vector_store %arg10[%c0_48, %c0_49], %169 {strides = array<i32>} : memref<8x32xf32, #tpu.memory_space<vmem>>, vector<8x32xf32>,
    return
  }
  func.func @transform_0(%arg0: i32) -> (i32, i32) {
    %c0_i32 = arith.constant 0 : i32
    %c0_i32_0 = arith.constant 0 : i32
    %c0_i32_1 = arith.constant 0 : i32
    return %c0_i32, %c0_i32_0 : i32, i32
  }
  func.func @transform_1(%arg0: i32) -> (i32, i32) {
    %c0_i32 = arith.constant 0 : i32
    %c0_i32_0 = arith.constant 0 : i32
    %c0_i32_1 = arith.constant 0 : i32
    return %c0_i32, %c0_i32_0 : i32, i32
  }
  func.func @transform_2(%arg0: i32) -> (i32, i32) {
    %c0_i32 = arith.constant 0 : i32
    %c0_i32_0 = arith.constant 0 : i32
    %c0_i32_1 = arith.constant 0 : i32
    return %c0_i32, %c0_i32_0 : i32, i32
  }
  func.func @transform_3(%arg0: i32) -> (i32, i32) {
    %c0_i32 = arith.constant 0 : i32
    %c0_i32_0 = arith.constant 0 : i32
    %c0_i32_1 = arith.constant 0 : i32
    return %c0_i32, %c0_i32_0 : i32, i32
  }
  func.func @transform_4(%arg0: i32) -> (i32, i32) {
    %c0_i32 = arith.constant 0 : i32
    %c0_i32_0 = arith.constant 0 : i32
    %c0_i32_1 = arith.constant 0 : i32
    return %c0_i32, %c0_i32_0 : i32, i32
  }
  func.func @transform_5(%arg0: i32) -> (i32, i32) {
    %c0_i32 = arith.constant 0 : i32
    %c0_i32_0 = arith.constant 0 : i32
    %c0_i32_1 = arith.constant 0 : i32
    return %c0_i32, %c0_i32_0 : i32, i32
  }
  func.func @transform_6(%arg0: i32) -> (i32, i32) {
    %c0_i32 = arith.constant 0 : i32
    %c0_i32_0 = arith.constant 0 : i32
    %c0_i32_1 = arith.constant 0 : i32
    return %c0_i32, %c0_i32_0 : i32, i32
  }
  func.func @transform_7(%arg0: i32) -> (i32, i32) {
    %c0_i32 = arith.constant 0 : i32
    %c0_i32_0 = arith.constant 0 : i32
    %c0_i32_1 = arith.constant 0 : i32
    return %c0_i32, %c0_i32_0 : i32, i32
  }
  func.func @transform_8(%arg0: i32) -> (i32, i32) {
    %c0_i32 = arith.constant 0 : i32
    %c0_i32_0 = arith.constant 0 : i32
    %c0_i32_1 = arith.constant 0 : i32
    return %c0_i32, %c0_i32_0 : i32, i32
  }
  func.func @transform_9(%arg0: i32) -> (i32, i32) {
    %c0_i32 = arith.constant 0 : i32
    %c0_i32_0 = arith.constant 0 : i32
    %c0_i32_1 = arith.constant 0 : i32
    return %c0_i32, %c0_i32_0 : i32, i32
  }
}

module attributes {stable_mosaic.version = 11 : i64} {
  func.func @_ffn_kernel(%arg0: i32, %arg1: memref<8x32xf32, #tpu.memory_space<vmem>>, %arg2: memref<8x32xf32, #tpu.memory_space<vmem>>, %arg3: memref<1x32xf32, #tpu.memory_space<vmem>>, %arg4: memref<1x32xf32, #tpu.memory_space<vmem>>, %arg5: memref<32x128xf32, #tpu.memory_space<vmem>>, %arg6: memref<128x32xf32, #tpu.memory_space<vmem>>, %arg7: memref<8x32xf32, #tpu.memory_space<vmem>>) attributes {dimension_semantics = [#tpu.dimension_semantics<arbitrary>], iteration_bounds = array<i64: 1>, scalar_prefetch = 0 : i64, scratch_operands = 0 : i64, tpu.core_type = #tpu.core_type<tc>, window_params = [{pipeline_mode = #tpu.pipeline_mode<synchronous>, transform_indices = @transform_0, window_bounds = array<i64: 8, 32>}, {pipeline_mode = #tpu.pipeline_mode<synchronous>, transform_indices = @transform_1, window_bounds = array<i64: 8, 32>}, {pipeline_mode = #tpu.pipeline_mode<synchronous>, transform_indices = @transform_2, window_bounds = array<i64: 1, 32>}, {pipeline_mode = #tpu.pipeline_mode<synchronous>, transform_indices = @transform_3, window_bounds = array<i64: 1, 32>}, {pipeline_mode = #tpu.pipeline_mode<synchronous>, transform_indices = @transform_4, window_bounds = array<i64: 32, 128>}, {pipeline_mode = #tpu.pipeline_mode<synchronous>, transform_indices = @transform_5, window_bounds = array<i64: 128, 32>}, {pipeline_mode = #tpu.pipeline_mode<synchronous>, transform_indices = @transform_6, window_bounds = array<i64: 8, 32>}]} {
    %c0 = arith.constant 0 : index
    %c0_0 = arith.constant 0 : index
    %0 = vector.load %arg1[%c0, %c0_0] : memref<8x32xf32, #tpu.memory_space<vmem>>, vector<8x32xf32>
    %c0_1 = arith.constant 0 : index
    %c0_2 = arith.constant 0 : index
    %1 = vector.load %arg2[%c0_1, %c0_2] : memref<8x32xf32, #tpu.memory_space<vmem>>, vector<8x32xf32>
    %2 = arith.addf %0, %1 : vector<8x32xf32>
    %c0_3 = arith.constant 0 : index
    %c0_4 = arith.constant 0 : index
    %3 = vector.load %arg3[%c0_3, %c0_4] : memref<1x32xf32, #tpu.memory_space<vmem>>, vector<1x32xf32>
    %c0_5 = arith.constant 0 : index
    %c0_6 = arith.constant 0 : index
    %4 = vector.load %arg4[%c0_5, %c0_6] : memref<1x32xf32, #tpu.memory_space<vmem>>, vector<1x32xf32>
    %c0_7 = arith.constant 0 : index
    %c0_8 = arith.constant 0 : index
    %5 = vector.load %arg5[%c0_7, %c0_8] : memref<32x128xf32, #tpu.memory_space<vmem>>, vector<32x128xf32>
    %c0_9 = arith.constant 0 : index
    %c0_10 = arith.constant 0 : index
    %6 = vector.load %arg6[%c0_9, %c0_10] : memref<128x32xf32, #tpu.memory_space<vmem>>, vector<128x32xf32>
    %cst = arith.constant dense<0.000000e+00> : vector<8xf32>
    %7 = vector.multi_reduction <add>, %2, %cst [1] : vector<8x32xf32> to vector<8xf32>
    %8 = vector.shape_cast %7 : vector<8xf32> to vector<8x1xf32>
    %cst_11 = arith.constant 3.200000e+01 : f32
    %9 = vector.broadcast %cst_11 : f32 to vector<8x1xf32>
    %10 = arith.divf %8, %9 : vector<8x1xf32>
    %11 = vector.broadcast %10 : vector<8x1xf32> to vector<8x32xf32>
    %12 = arith.subf %2, %11 : vector<8x32xf32>
    %13 = arith.mulf %12, %12 : vector<8x32xf32>
    %cst_12 = arith.constant dense<0.000000e+00> : vector<8xf32>
    %14 = vector.multi_reduction <add>, %13, %cst_12 [1] : vector<8x32xf32> to vector<8xf32>
    %15 = vector.shape_cast %14 : vector<8xf32> to vector<8x1xf32>
    %cst_13 = arith.constant 3.200000e+01 : f32
    %16 = vector.broadcast %cst_13 : f32 to vector<8x1xf32>
    %17 = arith.divf %15, %16 : vector<8x1xf32>
    %18 = vector.broadcast %10 : vector<8x1xf32> to vector<8x32xf32>
    %19 = arith.subf %2, %18 : vector<8x32xf32>
    %cst_14 = arith.constant 9.99999974E-6 : f32
    %20 = vector.broadcast %cst_14 : f32 to vector<8x1xf32>
    %21 = arith.addf %17, %20 : vector<8x1xf32>
    %22 = math.rsqrt %21 : vector<8x1xf32>
    %23 = vector.broadcast %22 : vector<8x1xf32> to vector<8x32xf32>
    %24 = arith.mulf %19, %23 : vector<8x32xf32>
    %cst_15 = arith.constant dense<0.000000e+00> : vector<8xf32>
    %25 = vector.multi_reduction <add>, %24, %cst_15 [1] : vector<8x32xf32> to vector<8xf32>
    %26 = vector.shape_cast %25 : vector<8xf32> to vector<8x1xf32>
    %cst_16 = arith.constant 3.200000e+01 : f32
    %27 = vector.broadcast %cst_16 : f32 to vector<8x1xf32>
    %28 = arith.divf %26, %27 : vector<8x1xf32>
    %29 = vector.broadcast %28 : vector<8x1xf32> to vector<8x32xf32>
    %30 = arith.subf %24, %29 : vector<8x32xf32>
    %31 = arith.mulf %30, %30 : vector<8x32xf32>
    %cst_17 = arith.constant dense<0.000000e+00> : vector<8xf32>
    %32 = vector.multi_reduction <add>, %31, %cst_17 [1] : vector<8x32xf32> to vector<8xf32>
    %33 = vector.shape_cast %32 : vector<8xf32> to vector<8x1xf32>
    %cst_18 = arith.constant 3.200000e+01 : f32
    %34 = vector.broadcast %cst_18 : f32 to vector<8x1xf32>
    %35 = arith.divf %33, %34 : vector<8x1xf32>
    %36 = vector.broadcast %28 : vector<8x1xf32> to vector<8x32xf32>
    %37 = arith.subf %24, %36 : vector<8x32xf32>
    %cst_19 = arith.constant 9.99999974E-6 : f32
    %38 = vector.broadcast %cst_19 : f32 to vector<8x1xf32>
    %39 = arith.addf %35, %38 : vector<8x1xf32>
    %40 = math.rsqrt %39 : vector<8x1xf32>
    %41 = vector.broadcast %40 : vector<8x1xf32> to vector<8x32xf32>
    %42 = arith.mulf %37, %41 : vector<8x32xf32>
    %43 = vector.broadcast %3 : vector<1x32xf32> to vector<8x32xf32>
    %44 = arith.mulf %42, %43 : vector<8x32xf32>
    %45 = vector.broadcast %4 : vector<1x32xf32> to vector<8x32xf32>
    %46 = arith.addf %44, %45 : vector<8x32xf32>
    %47 = arith.truncf %46 : vector<8x32xf32> to vector<8x32xbf16>
    %48 = arith.truncf %5 : vector<32x128xf32> to vector<32x128xbf16>
    %cst_20 = arith.constant dense<0.000000e+00> : vector<8x128xf32>
    %49 = tpu.matmul %47, %48, %cst_20 {dimension_numbers = #tpu.dot_dimension_numbers<[1], [0], [0], [1], [0, 0, 1, 1], [], []>} : vector<8x32xbf16>, vector<32x128xbf16>, vector<8x128xf32> -> vector<8x128xf32>
    %cst_21 = arith.constant 5.000000e-01 : f32
    %50 = vector.broadcast %cst_21 : f32 to vector<8x128xf32>
    %51 = arith.mulf %50, %49 : vector<8x128xf32>
    %cst_22 = arith.constant 4.471500e-02 : f32
    %52 = vector.broadcast %cst_22 : f32 to vector<8x128xf32>
    %53 = arith.mulf %52, %49 : vector<8x128xf32>
    %54 = arith.mulf %53, %49 : vector<8x128xf32>
    %55 = arith.mulf %54, %49 : vector<8x128xf32>
    %56 = arith.addf %49, %55 : vector<8x128xf32>
    %cst_23 = arith.constant 0.797884583 : f32
    %57 = vector.broadcast %cst_23 : f32 to vector<8x128xf32>
    %58 = arith.mulf %57, %56 : vector<8x128xf32>
    %59 = math.tanh %58 : vector<8x128xf32>
    %cst_24 = arith.constant 1.000000e+00 : f32
    %60 = vector.broadcast %cst_24 : f32 to vector<8x128xf32>
    %61 = arith.addf %60, %59 : vector<8x128xf32>
    %62 = arith.mulf %51, %61 : vector<8x128xf32>
    %63 = arith.truncf %62 : vector<8x128xf32> to vector<8x128xbf16>
    %64 = arith.truncf %6 : vector<128x32xf32> to vector<128x32xbf16>
    %cst_25 = arith.constant dense<0.000000e+00> : vector<8x32xf32>
    %65 = tpu.matmul %63, %64, %cst_25 {dimension_numbers = #tpu.dot_dimension_numbers<[1], [0], [0], [1], [0, 0, 1, 1], [], []>} : vector<8x128xbf16>, vector<128x32xbf16>, vector<8x32xf32> -> vector<8x32xf32>
    %66 = arith.addf %2, %65 : vector<8x32xf32>
    %c0_26 = arith.constant 0 : index
    %c0_27 = arith.constant 0 : index
    %67 = vector.load %arg7[%c0_26, %c0_27] : memref<8x32xf32, #tpu.memory_space<vmem>>, vector<8x32xf32>
    tpu.vector_store %arg7[%c0_26, %c0_27], %66 {strides = array<i32>} : memref<8x32xf32, #tpu.memory_space<vmem>>, vector<8x32xf32>,
    return
  }
  func.func @transform_0(%arg0: i32) -> (i32, i32) {
    %c0_i32 = arith.constant 0 : i32
    %c0_i32_0 = arith.constant 0 : i32
    %c0_i32_1 = arith.constant 0 : i32
    return %c0_i32, %c0_i32_0 : i32, i32
  }
  func.func @transform_1(%arg0: i32) -> (i32, i32) {
    %c0_i32 = arith.constant 0 : i32
    %c0_i32_0 = arith.constant 0 : i32
    %c0_i32_1 = arith.constant 0 : i32
    return %c0_i32, %c0_i32_0 : i32, i32
  }
  func.func @transform_2(%arg0: i32) -> (i32, i32) {
    %c0_i32 = arith.constant 0 : i32
    %c0_i32_0 = arith.constant 0 : i32
    %c0_i32_1 = arith.constant 0 : i32
    return %c0_i32, %c0_i32_0 : i32, i32
  }
  func.func @transform_3(%arg0: i32) -> (i32, i32) {
    %c0_i32 = arith.constant 0 : i32
    %c0_i32_0 = arith.constant 0 : i32
    %c0_i32_1 = arith.constant 0 : i32
    return %c0_i32, %c0_i32_0 : i32, i32
  }
  func.func @transform_4(%arg0: i32) -> (i32, i32) {
    %c0_i32 = arith.constant 0 : i32
    %c0_i32_0 = arith.constant 0 : i32
    %c0_i32_1 = arith.constant 0 : i32
    return %c0_i32, %c0_i32_0 : i32, i32
  }
  func.func @transform_5(%arg0: i32) -> (i32, i32) {
    %c0_i32 = arith.constant 0 : i32
    %c0_i32_0 = arith.constant 0 : i32
    %c0_i32_1 = arith.constant 0 : i32
    return %c0_i32, %c0_i32_0 : i32, i32
  }
  func.func @transform_6(%arg0: i32) -> (i32, i32) {
    %c0_i32 = arith.constant 0 : i32
    %c0_i32_0 = arith.constant 0 : i32
    %c0_i32_1 = arith.constant 0 : i32
    return %c0_i32, %c0_i32_0 : i32, i32
  }
}

module attributes {stable_mosaic.version = 11 : i64} {
  func.func @_ffn_kernel(%arg0: i32, %arg1: memref<16x32xf32, #tpu.memory_space<vmem>>, %arg2: memref<16x32xf32, #tpu.memory_space<vmem>>, %arg3: memref<1x32xf32, #tpu.memory_space<vmem>>, %arg4: memref<1x32xf32, #tpu.memory_space<vmem>>, %arg5: memref<32x128xf32, #tpu.memory_space<vmem>>, %arg6: memref<128x32xf32, #tpu.memory_space<vmem>>, %arg7: memref<16x32xf32, #tpu.memory_space<vmem>>) attributes {dimension_semantics = [#tpu.dimension_semantics<arbitrary>], iteration_bounds = array<i64: 1>, scalar_prefetch = 0 : i64, scratch_operands = 0 : i64, tpu.core_type = #tpu.core_type<tc>, window_params = [{pipeline_mode = #tpu.pipeline_mode<synchronous>, transform_indices = @transform_0, window_bounds = array<i64: 16, 32>}, {pipeline_mode = #tpu.pipeline_mode<synchronous>, transform_indices = @transform_1, window_bounds = array<i64: 16, 32>}, {pipeline_mode = #tpu.pipeline_mode<synchronous>, transform_indices = @transform_2, window_bounds = array<i64: 1, 32>}, {pipeline_mode = #tpu.pipeline_mode<synchronous>, transform_indices = @transform_3, window_bounds = array<i64: 1, 32>}, {pipeline_mode = #tpu.pipeline_mode<synchronous>, transform_indices = @transform_4, window_bounds = array<i64: 32, 128>}, {pipeline_mode = #tpu.pipeline_mode<synchronous>, transform_indices = @transform_5, window_bounds = array<i64: 128, 32>}, {pipeline_mode = #tpu.pipeline_mode<synchronous>, transform_indices = @transform_6, window_bounds = array<i64: 16, 32>}]} {
    %c0 = arith.constant 0 : index
    %c0_0 = arith.constant 0 : index
    %0 = vector.load %arg1[%c0, %c0_0] : memref<16x32xf32, #tpu.memory_space<vmem>>, vector<16x32xf32>
    %c0_1 = arith.constant 0 : index
    %c0_2 = arith.constant 0 : index
    %1 = vector.load %arg2[%c0_1, %c0_2] : memref<16x32xf32, #tpu.memory_space<vmem>>, vector<16x32xf32>
    %2 = arith.addf %0, %1 : vector<16x32xf32>
    %c0_3 = arith.constant 0 : index
    %c0_4 = arith.constant 0 : index
    %3 = vector.load %arg3[%c0_3, %c0_4] : memref<1x32xf32, #tpu.memory_space<vmem>>, vector<1x32xf32>
    %c0_5 = arith.constant 0 : index
    %c0_6 = arith.constant 0 : index
    %4 = vector.load %arg4[%c0_5, %c0_6] : memref<1x32xf32, #tpu.memory_space<vmem>>, vector<1x32xf32>
    %c0_7 = arith.constant 0 : index
    %c0_8 = arith.constant 0 : index
    %5 = vector.load %arg5[%c0_7, %c0_8] : memref<32x128xf32, #tpu.memory_space<vmem>>, vector<32x128xf32>
    %c0_9 = arith.constant 0 : index
    %c0_10 = arith.constant 0 : index
    %6 = vector.load %arg6[%c0_9, %c0_10] : memref<128x32xf32, #tpu.memory_space<vmem>>, vector<128x32xf32>
    %cst = arith.constant dense<0.000000e+00> : vector<16xf32>
    %7 = vector.multi_reduction <add>, %2, %cst [1] : vector<16x32xf32> to vector<16xf32>
    %8 = vector.shape_cast %7 : vector<16xf32> to vector<16x1xf32>
    %cst_11 = arith.constant 3.200000e+01 : f32
    %9 = vector.broadcast %cst_11 : f32 to vector<16x1xf32>
    %10 = arith.divf %8, %9 : vector<16x1xf32>
    %11 = vector.broadcast %10 : vector<16x1xf32> to vector<16x32xf32>
    %12 = arith.subf %2, %11 : vector<16x32xf32>
    %13 = arith.mulf %12, %12 : vector<16x32xf32>
    %cst_12 = arith.constant dense<0.000000e+00> : vector<16xf32>
    %14 = vector.multi_reduction <add>, %13, %cst_12 [1] : vector<16x32xf32> to vector<16xf32>
    %15 = vector.shape_cast %14 : vector<16xf32> to vector<16x1xf32>
    %cst_13 = arith.constant 3.200000e+01 : f32
    %16 = vector.broadcast %cst_13 : f32 to vector<16x1xf32>
    %17 = arith.divf %15, %16 : vector<16x1xf32>
    %18 = vector.broadcast %10 : vector<16x1xf32> to vector<16x32xf32>
    %19 = arith.subf %2, %18 : vector<16x32xf32>
    %cst_14 = arith.constant 9.99999974E-6 : f32
    %20 = vector.broadcast %cst_14 : f32 to vector<16x1xf32>
    %21 = arith.addf %17, %20 : vector<16x1xf32>
    %22 = math.rsqrt %21 : vector<16x1xf32>
    %23 = vector.broadcast %22 : vector<16x1xf32> to vector<16x32xf32>
    %24 = arith.mulf %19, %23 : vector<16x32xf32>
    %cst_15 = arith.constant dense<0.000000e+00> : vector<16xf32>
    %25 = vector.multi_reduction <add>, %24, %cst_15 [1] : vector<16x32xf32> to vector<16xf32>
    %26 = vector.shape_cast %25 : vector<16xf32> to vector<16x1xf32>
    %cst_16 = arith.constant 3.200000e+01 : f32
    %27 = vector.broadcast %cst_16 : f32 to vector<16x1xf32>
    %28 = arith.divf %26, %27 : vector<16x1xf32>
    %29 = vector.broadcast %28 : vector<16x1xf32> to vector<16x32xf32>
    %30 = arith.subf %24, %29 : vector<16x32xf32>
    %31 = arith.mulf %30, %30 : vector<16x32xf32>
    %cst_17 = arith.constant dense<0.000000e+00> : vector<16xf32>
    %32 = vector.multi_reduction <add>, %31, %cst_17 [1] : vector<16x32xf32> to vector<16xf32>
    %33 = vector.shape_cast %32 : vector<16xf32> to vector<16x1xf32>
    %cst_18 = arith.constant 3.200000e+01 : f32
    %34 = vector.broadcast %cst_18 : f32 to vector<16x1xf32>
    %35 = arith.divf %33, %34 : vector<16x1xf32>
    %36 = vector.broadcast %28 : vector<16x1xf32> to vector<16x32xf32>
    %37 = arith.subf %24, %36 : vector<16x32xf32>
    %cst_19 = arith.constant 9.99999974E-6 : f32
    %38 = vector.broadcast %cst_19 : f32 to vector<16x1xf32>
    %39 = arith.addf %35, %38 : vector<16x1xf32>
    %40 = math.rsqrt %39 : vector<16x1xf32>
    %41 = vector.broadcast %40 : vector<16x1xf32> to vector<16x32xf32>
    %42 = arith.mulf %37, %41 : vector<16x32xf32>
    %43 = vector.broadcast %3 : vector<1x32xf32> to vector<16x32xf32>
    %44 = arith.mulf %42, %43 : vector<16x32xf32>
    %45 = vector.broadcast %4 : vector<1x32xf32> to vector<16x32xf32>
    %46 = arith.addf %44, %45 : vector<16x32xf32>
    %47 = arith.truncf %46 : vector<16x32xf32> to vector<16x32xbf16>
    %48 = arith.truncf %5 : vector<32x128xf32> to vector<32x128xbf16>
    %cst_20 = arith.constant dense<0.000000e+00> : vector<16x128xf32>
    %49 = tpu.matmul %47, %48, %cst_20 {dimension_numbers = #tpu.dot_dimension_numbers<[1], [0], [0], [1], [0, 0, 1, 1], [], []>} : vector<16x32xbf16>, vector<32x128xbf16>, vector<16x128xf32> -> vector<16x128xf32>
    %cst_21 = arith.constant 5.000000e-01 : f32
    %50 = vector.broadcast %cst_21 : f32 to vector<16x128xf32>
    %51 = arith.mulf %50, %49 : vector<16x128xf32>
    %cst_22 = arith.constant 4.471500e-02 : f32
    %52 = vector.broadcast %cst_22 : f32 to vector<16x128xf32>
    %53 = arith.mulf %52, %49 : vector<16x128xf32>
    %54 = arith.mulf %53, %49 : vector<16x128xf32>
    %55 = arith.mulf %54, %49 : vector<16x128xf32>
    %56 = arith.addf %49, %55 : vector<16x128xf32>
    %cst_23 = arith.constant 0.797884583 : f32
    %57 = vector.broadcast %cst_23 : f32 to vector<16x128xf32>
    %58 = arith.mulf %57, %56 : vector<16x128xf32>
    %59 = math.tanh %58 : vector<16x128xf32>
    %cst_24 = arith.constant 1.000000e+00 : f32
    %60 = vector.broadcast %cst_24 : f32 to vector<16x128xf32>
    %61 = arith.addf %60, %59 : vector<16x128xf32>
    %62 = arith.mulf %51, %61 : vector<16x128xf32>
    %63 = arith.truncf %62 : vector<16x128xf32> to vector<16x128xbf16>
    %64 = arith.truncf %6 : vector<128x32xf32> to vector<128x32xbf16>
    %cst_25 = arith.constant dense<0.000000e+00> : vector<16x32xf32>
    %65 = tpu.matmul %63, %64, %cst_25 {dimension_numbers = #tpu.dot_dimension_numbers<[1], [0], [0], [1], [0, 0, 1, 1], [], []>} : vector<16x128xbf16>, vector<128x32xbf16>, vector<16x32xf32> -> vector<16x32xf32>
    %66 = arith.addf %2, %65 : vector<16x32xf32>
    %c0_26 = arith.constant 0 : index
    %c0_27 = arith.constant 0 : index
    %67 = vector.load %arg7[%c0_26, %c0_27] : memref<16x32xf32, #tpu.memory_space<vmem>>, vector<16x32xf32>
    tpu.vector_store %arg7[%c0_26, %c0_27], %66 {strides = array<i32>} : memref<16x32xf32, #tpu.memory_space<vmem>>, vector<16x32xf32>,
    return
  }
  func.func @transform_0(%arg0: i32) -> (i32, i32) {
    %c0_i32 = arith.constant 0 : i32
    %c0_i32_0 = arith.constant 0 : i32
    %c0_i32_1 = arith.constant 0 : i32
    return %c0_i32, %c0_i32_0 : i32, i32
  }
  func.func @transform_1(%arg0: i32) -> (i32, i32) {
    %c0_i32 = arith.constant 0 : i32
    %c0_i32_0 = arith.constant 0 : i32
    %c0_i32_1 = arith.constant 0 : i32
    return %c0_i32, %c0_i32_0 : i32, i32
  }
  func.func @transform_2(%arg0: i32) -> (i32, i32) {
    %c0_i32 = arith.constant 0 : i32
    %c0_i32_0 = arith.constant 0 : i32
    %c0_i32_1 = arith.constant 0 : i32
    return %c0_i32, %c0_i32_0 : i32, i32
  }
  func.func @transform_3(%arg0: i32) -> (i32, i32) {
    %c0_i32 = arith.constant 0 : i32
    %c0_i32_0 = arith.constant 0 : i32
    %c0_i32_1 = arith.constant 0 : i32
    return %c0_i32, %c0_i32_0 : i32, i32
  }
  func.func @transform_4(%arg0: i32) -> (i32, i32) {
    %c0_i32 = arith.constant 0 : i32
    %c0_i32_0 = arith.constant 0 : i32
    %c0_i32_1 = arith.constant 0 : i32
    return %c0_i32, %c0_i32_0 : i32, i32
  }
  func.func @transform_5(%arg0: i32) -> (i32, i32) {
    %c0_i32 = arith.constant 0 : i32
    %c0_i32_0 = arith.constant 0 : i32
    %c0_i32_1 = arith.constant 0 : i32
    return %c0_i32, %c0_i32_0 : i32, i32
  }
  func.func @transform_6(%arg0: i32) -> (i32, i32) {
    %c0_i32 = arith.constant 0 : i32
    %c0_i32_0 = arith.constant 0 : i32
    %c0_i32_1 = arith.constant 0 : i32
    return %c0_i32, %c0_i32_0 : i32, i32
  }
}

module attributes {stable_mosaic.version = 11 : i64} {
  func.func @_ln_relu_kernel(%arg0: i32, %arg1: memref<16x32xf32, #tpu.memory_space<vmem>>, %arg2: memref<1x32xf32, #tpu.memory_space<vmem>>, %arg3: memref<1x32xf32, #tpu.memory_space<vmem>>, %arg4: memref<16x32xf32, #tpu.memory_space<vmem>>) attributes {dimension_semantics = [#tpu.dimension_semantics<arbitrary>], iteration_bounds = array<i64: 1>, scalar_prefetch = 0 : i64, scratch_operands = 0 : i64, tpu.core_type = #tpu.core_type<tc>, window_params = [{pipeline_mode = #tpu.pipeline_mode<synchronous>, transform_indices = @transform_0, window_bounds = array<i64: 16, 32>}, {pipeline_mode = #tpu.pipeline_mode<synchronous>, transform_indices = @transform_1, window_bounds = array<i64: 1, 32>}, {pipeline_mode = #tpu.pipeline_mode<synchronous>, transform_indices = @transform_2, window_bounds = array<i64: 1, 32>}, {pipeline_mode = #tpu.pipeline_mode<synchronous>, transform_indices = @transform_3, window_bounds = array<i64: 16, 32>}]} {
    %c0 = arith.constant 0 : index
    %c0_0 = arith.constant 0 : index
    %0 = vector.load %arg1[%c0, %c0_0] : memref<16x32xf32, #tpu.memory_space<vmem>>, vector<16x32xf32>
    %cst = arith.constant dense<0.000000e+00> : vector<16xf32>
    %1 = vector.multi_reduction <add>, %0, %cst [1] : vector<16x32xf32> to vector<16xf32>
    %2 = vector.shape_cast %1 : vector<16xf32> to vector<16x1xf32>
    %cst_1 = arith.constant 3.200000e+01 : f32
    %3 = vector.broadcast %cst_1 : f32 to vector<16x1xf32>
    %4 = arith.divf %2, %3 : vector<16x1xf32>
    %5 = vector.broadcast %4 : vector<16x1xf32> to vector<16x32xf32>
    %6 = arith.subf %0, %5 : vector<16x32xf32>
    %7 = arith.mulf %6, %6 : vector<16x32xf32>
    %cst_2 = arith.constant dense<0.000000e+00> : vector<16xf32>
    %8 = vector.multi_reduction <add>, %7, %cst_2 [1] : vector<16x32xf32> to vector<16xf32>
    %9 = vector.shape_cast %8 : vector<16xf32> to vector<16x1xf32>
    %cst_3 = arith.constant 3.200000e+01 : f32
    %10 = vector.broadcast %cst_3 : f32 to vector<16x1xf32>
    %11 = arith.divf %9, %10 : vector<16x1xf32>
    %12 = vector.broadcast %4 : vector<16x1xf32> to vector<16x32xf32>
    %13 = arith.subf %0, %12 : vector<16x32xf32>
    %cst_4 = arith.constant 9.99999974E-6 : f32
    %14 = vector.broadcast %cst_4 : f32 to vector<16x1xf32>
    %15 = arith.addf %11, %14 : vector<16x1xf32>
    %16 = math.rsqrt %15 : vector<16x1xf32>
    %17 = vector.broadcast %16 : vector<16x1xf32> to vector<16x32xf32>
    %18 = arith.mulf %13, %17 : vector<16x32xf32>
    %c0_5 = arith.constant 0 : index
    %c0_6 = arith.constant 0 : index
    %19 = vector.load %arg2[%c0_5, %c0_6] : memref<1x32xf32, #tpu.memory_space<vmem>>, vector<1x32xf32>
    %20 = vector.broadcast %19 : vector<1x32xf32> to vector<16x32xf32>
    %21 = arith.mulf %18, %20 : vector<16x32xf32>
    %c0_7 = arith.constant 0 : index
    %c0_8 = arith.constant 0 : index
    %22 = vector.load %arg3[%c0_7, %c0_8] : memref<1x32xf32, #tpu.memory_space<vmem>>, vector<1x32xf32>
    %23 = vector.broadcast %22 : vector<1x32xf32> to vector<16x32xf32>
    %24 = arith.addf %21, %23 : vector<16x32xf32>
    %cst_9 = arith.constant 0.000000e+00 : f32
    %25 = vector.broadcast %cst_9 : f32 to vector<16x32xf32>
    %26 = arith.maximumf %24, %25 : vector<16x32xf32>
    %c0_10 = arith.constant 0 : index
    %c0_11 = arith.constant 0 : index
    %27 = vector.load %arg4[%c0_10, %c0_11] : memref<16x32xf32, #tpu.memory_space<vmem>>, vector<16x32xf32>
    tpu.vector_store %arg4[%c0_10, %c0_11], %26 {strides = array<i32>} : memref<16x32xf32, #tpu.memory_space<vmem>>, vector<16x32xf32>,
    return
  }
  func.func @transform_0(%arg0: i32) -> (i32, i32) {
    %c0_i32 = arith.constant 0 : i32
    %c0_i32_0 = arith.constant 0 : i32
    %c0_i32_1 = arith.constant 0 : i32
    return %c0_i32, %c0_i32_0 : i32, i32
  }
  func.func @transform_1(%arg0: i32) -> (i32, i32) {
    %c0_i32 = arith.constant 0 : i32
    %c0_i32_0 = arith.constant 0 : i32
    %c0_i32_1 = arith.constant 0 : i32
    return %c0_i32, %c0_i32_0 : i32, i32
  }
  func.func @transform_2(%arg0: i32) -> (i32, i32) {
    %c0_i32 = arith.constant 0 : i32
    %c0_i32_0 = arith.constant 0 : i32
    %c0_i32_1 = arith.constant 0 : i32
    return %c0_i32, %c0_i32_0 : i32, i32
  }
  func.func @transform_3(%arg0: i32) -> (i32, i32) {
    %c0_i32 = arith.constant 0 : i32
    %c0_i32_0 = arith.constant 0 : i32
    %c0_i32_1 = arith.constant 0 : i32
    return %c0_i32, %c0_i32_0 : i32, i32
  }
}

module attributes {stable_mosaic.version = 11 : i64} {
  func.func @_ffn_final_kernel(%arg0: i32, %arg1: memref<8x32xf32, #tpu.memory_space<vmem>>, %arg2: memref<8x32xf32, #tpu.memory_space<vmem>>, %arg3: memref<1x32xf32, #tpu.memory_space<vmem>>, %arg4: memref<1x32xf32, #tpu.memory_space<vmem>>, %arg5: memref<32x128xf32, #tpu.memory_space<vmem>>, %arg6: memref<128x32xf32, #tpu.memory_space<vmem>>, %arg7: memref<1x32xf32, #tpu.memory_space<vmem>>, %arg8: memref<1x32xf32, #tpu.memory_space<vmem>>, %arg9: memref<8x32xf32, #tpu.memory_space<vmem>>) attributes {dimension_semantics = [#tpu.dimension_semantics<arbitrary>], iteration_bounds = array<i64: 1>, scalar_prefetch = 0 : i64, scratch_operands = 0 : i64, tpu.core_type = #tpu.core_type<tc>, window_params = [{pipeline_mode = #tpu.pipeline_mode<synchronous>, transform_indices = @transform_0, window_bounds = array<i64: 8, 32>}, {pipeline_mode = #tpu.pipeline_mode<synchronous>, transform_indices = @transform_1, window_bounds = array<i64: 8, 32>}, {pipeline_mode = #tpu.pipeline_mode<synchronous>, transform_indices = @transform_2, window_bounds = array<i64: 1, 32>}, {pipeline_mode = #tpu.pipeline_mode<synchronous>, transform_indices = @transform_3, window_bounds = array<i64: 1, 32>}, {pipeline_mode = #tpu.pipeline_mode<synchronous>, transform_indices = @transform_4, window_bounds = array<i64: 32, 128>}, {pipeline_mode = #tpu.pipeline_mode<synchronous>, transform_indices = @transform_5, window_bounds = array<i64: 128, 32>}, {pipeline_mode = #tpu.pipeline_mode<synchronous>, transform_indices = @transform_6, window_bounds = array<i64: 1, 32>}, {pipeline_mode = #tpu.pipeline_mode<synchronous>, transform_indices = @transform_7, window_bounds = array<i64: 1, 32>}, {pipeline_mode = #tpu.pipeline_mode<synchronous>, transform_indices = @transform_8, window_bounds = array<i64: 8, 32>}]} {
    %c0 = arith.constant 0 : index
    %c0_0 = arith.constant 0 : index
    %0 = vector.load %arg1[%c0, %c0_0] : memref<8x32xf32, #tpu.memory_space<vmem>>, vector<8x32xf32>
    %c0_1 = arith.constant 0 : index
    %c0_2 = arith.constant 0 : index
    %1 = vector.load %arg2[%c0_1, %c0_2] : memref<8x32xf32, #tpu.memory_space<vmem>>, vector<8x32xf32>
    %2 = arith.addf %0, %1 : vector<8x32xf32>
    %c0_3 = arith.constant 0 : index
    %c0_4 = arith.constant 0 : index
    %3 = vector.load %arg3[%c0_3, %c0_4] : memref<1x32xf32, #tpu.memory_space<vmem>>, vector<1x32xf32>
    %c0_5 = arith.constant 0 : index
    %c0_6 = arith.constant 0 : index
    %4 = vector.load %arg4[%c0_5, %c0_6] : memref<1x32xf32, #tpu.memory_space<vmem>>, vector<1x32xf32>
    %c0_7 = arith.constant 0 : index
    %c0_8 = arith.constant 0 : index
    %5 = vector.load %arg5[%c0_7, %c0_8] : memref<32x128xf32, #tpu.memory_space<vmem>>, vector<32x128xf32>
    %c0_9 = arith.constant 0 : index
    %c0_10 = arith.constant 0 : index
    %6 = vector.load %arg6[%c0_9, %c0_10] : memref<128x32xf32, #tpu.memory_space<vmem>>, vector<128x32xf32>
    %cst = arith.constant dense<0.000000e+00> : vector<8xf32>
    %7 = vector.multi_reduction <add>, %2, %cst [1] : vector<8x32xf32> to vector<8xf32>
    %8 = vector.shape_cast %7 : vector<8xf32> to vector<8x1xf32>
    %cst_11 = arith.constant 3.200000e+01 : f32
    %9 = vector.broadcast %cst_11 : f32 to vector<8x1xf32>
    %10 = arith.divf %8, %9 : vector<8x1xf32>
    %11 = vector.broadcast %10 : vector<8x1xf32> to vector<8x32xf32>
    %12 = arith.subf %2, %11 : vector<8x32xf32>
    %13 = arith.mulf %12, %12 : vector<8x32xf32>
    %cst_12 = arith.constant dense<0.000000e+00> : vector<8xf32>
    %14 = vector.multi_reduction <add>, %13, %cst_12 [1] : vector<8x32xf32> to vector<8xf32>
    %15 = vector.shape_cast %14 : vector<8xf32> to vector<8x1xf32>
    %cst_13 = arith.constant 3.200000e+01 : f32
    %16 = vector.broadcast %cst_13 : f32 to vector<8x1xf32>
    %17 = arith.divf %15, %16 : vector<8x1xf32>
    %18 = vector.broadcast %10 : vector<8x1xf32> to vector<8x32xf32>
    %19 = arith.subf %2, %18 : vector<8x32xf32>
    %cst_14 = arith.constant 9.99999974E-6 : f32
    %20 = vector.broadcast %cst_14 : f32 to vector<8x1xf32>
    %21 = arith.addf %17, %20 : vector<8x1xf32>
    %22 = math.rsqrt %21 : vector<8x1xf32>
    %23 = vector.broadcast %22 : vector<8x1xf32> to vector<8x32xf32>
    %24 = arith.mulf %19, %23 : vector<8x32xf32>
    %cst_15 = arith.constant dense<0.000000e+00> : vector<8xf32>
    %25 = vector.multi_reduction <add>, %24, %cst_15 [1] : vector<8x32xf32> to vector<8xf32>
    %26 = vector.shape_cast %25 : vector<8xf32> to vector<8x1xf32>
    %cst_16 = arith.constant 3.200000e+01 : f32
    %27 = vector.broadcast %cst_16 : f32 to vector<8x1xf32>
    %28 = arith.divf %26, %27 : vector<8x1xf32>
    %29 = vector.broadcast %28 : vector<8x1xf32> to vector<8x32xf32>
    %30 = arith.subf %24, %29 : vector<8x32xf32>
    %31 = arith.mulf %30, %30 : vector<8x32xf32>
    %cst_17 = arith.constant dense<0.000000e+00> : vector<8xf32>
    %32 = vector.multi_reduction <add>, %31, %cst_17 [1] : vector<8x32xf32> to vector<8xf32>
    %33 = vector.shape_cast %32 : vector<8xf32> to vector<8x1xf32>
    %cst_18 = arith.constant 3.200000e+01 : f32
    %34 = vector.broadcast %cst_18 : f32 to vector<8x1xf32>
    %35 = arith.divf %33, %34 : vector<8x1xf32>
    %36 = vector.broadcast %28 : vector<8x1xf32> to vector<8x32xf32>
    %37 = arith.subf %24, %36 : vector<8x32xf32>
    %cst_19 = arith.constant 9.99999974E-6 : f32
    %38 = vector.broadcast %cst_19 : f32 to vector<8x1xf32>
    %39 = arith.addf %35, %38 : vector<8x1xf32>
    %40 = math.rsqrt %39 : vector<8x1xf32>
    %41 = vector.broadcast %40 : vector<8x1xf32> to vector<8x32xf32>
    %42 = arith.mulf %37, %41 : vector<8x32xf32>
    %43 = vector.broadcast %3 : vector<1x32xf32> to vector<8x32xf32>
    %44 = arith.mulf %42, %43 : vector<8x32xf32>
    %45 = vector.broadcast %4 : vector<1x32xf32> to vector<8x32xf32>
    %46 = arith.addf %44, %45 : vector<8x32xf32>
    %47 = arith.truncf %46 : vector<8x32xf32> to vector<8x32xbf16>
    %48 = arith.truncf %5 : vector<32x128xf32> to vector<32x128xbf16>
    %cst_20 = arith.constant dense<0.000000e+00> : vector<8x128xf32>
    %49 = tpu.matmul %47, %48, %cst_20 {dimension_numbers = #tpu.dot_dimension_numbers<[1], [0], [0], [1], [0, 0, 1, 1], [], []>} : vector<8x32xbf16>, vector<32x128xbf16>, vector<8x128xf32> -> vector<8x128xf32>
    %cst_21 = arith.constant 5.000000e-01 : f32
    %50 = vector.broadcast %cst_21 : f32 to vector<8x128xf32>
    %51 = arith.mulf %50, %49 : vector<8x128xf32>
    %cst_22 = arith.constant 4.471500e-02 : f32
    %52 = vector.broadcast %cst_22 : f32 to vector<8x128xf32>
    %53 = arith.mulf %52, %49 : vector<8x128xf32>
    %54 = arith.mulf %53, %49 : vector<8x128xf32>
    %55 = arith.mulf %54, %49 : vector<8x128xf32>
    %56 = arith.addf %49, %55 : vector<8x128xf32>
    %cst_23 = arith.constant 0.797884583 : f32
    %57 = vector.broadcast %cst_23 : f32 to vector<8x128xf32>
    %58 = arith.mulf %57, %56 : vector<8x128xf32>
    %59 = math.tanh %58 : vector<8x128xf32>
    %cst_24 = arith.constant 1.000000e+00 : f32
    %60 = vector.broadcast %cst_24 : f32 to vector<8x128xf32>
    %61 = arith.addf %60, %59 : vector<8x128xf32>
    %62 = arith.mulf %51, %61 : vector<8x128xf32>
    %63 = arith.truncf %62 : vector<8x128xf32> to vector<8x128xbf16>
    %64 = arith.truncf %6 : vector<128x32xf32> to vector<128x32xbf16>
    %cst_25 = arith.constant dense<0.000000e+00> : vector<8x32xf32>
    %65 = tpu.matmul %63, %64, %cst_25 {dimension_numbers = #tpu.dot_dimension_numbers<[1], [0], [0], [1], [0, 0, 1, 1], [], []>} : vector<8x128xbf16>, vector<128x32xbf16>, vector<8x32xf32> -> vector<8x32xf32>
    %66 = arith.addf %2, %65 : vector<8x32xf32>
    %cst_26 = arith.constant dense<0.000000e+00> : vector<8xf32>
    %67 = vector.multi_reduction <add>, %66, %cst_26 [1] : vector<8x32xf32> to vector<8xf32>
    %68 = vector.shape_cast %67 : vector<8xf32> to vector<8x1xf32>
    %cst_27 = arith.constant 3.200000e+01 : f32
    %69 = vector.broadcast %cst_27 : f32 to vector<8x1xf32>
    %70 = arith.divf %68, %69 : vector<8x1xf32>
    %71 = vector.broadcast %70 : vector<8x1xf32> to vector<8x32xf32>
    %72 = arith.subf %66, %71 : vector<8x32xf32>
    %73 = arith.mulf %72, %72 : vector<8x32xf32>
    %cst_28 = arith.constant dense<0.000000e+00> : vector<8xf32>
    %74 = vector.multi_reduction <add>, %73, %cst_28 [1] : vector<8x32xf32> to vector<8xf32>
    %75 = vector.shape_cast %74 : vector<8xf32> to vector<8x1xf32>
    %cst_29 = arith.constant 3.200000e+01 : f32
    %76 = vector.broadcast %cst_29 : f32 to vector<8x1xf32>
    %77 = arith.divf %75, %76 : vector<8x1xf32>
    %78 = vector.broadcast %70 : vector<8x1xf32> to vector<8x32xf32>
    %79 = arith.subf %66, %78 : vector<8x32xf32>
    %cst_30 = arith.constant 9.99999974E-6 : f32
    %80 = vector.broadcast %cst_30 : f32 to vector<8x1xf32>
    %81 = arith.addf %77, %80 : vector<8x1xf32>
    %82 = math.rsqrt %81 : vector<8x1xf32>
    %83 = vector.broadcast %82 : vector<8x1xf32> to vector<8x32xf32>
    %84 = arith.mulf %79, %83 : vector<8x32xf32>
    %c0_31 = arith.constant 0 : index
    %c0_32 = arith.constant 0 : index
    %85 = vector.load %arg7[%c0_31, %c0_32] : memref<1x32xf32, #tpu.memory_space<vmem>>, vector<1x32xf32>
    %86 = vector.broadcast %85 : vector<1x32xf32> to vector<8x32xf32>
    %87 = arith.mulf %84, %86 : vector<8x32xf32>
    %c0_33 = arith.constant 0 : index
    %c0_34 = arith.constant 0 : index
    %88 = vector.load %arg8[%c0_33, %c0_34] : memref<1x32xf32, #tpu.memory_space<vmem>>, vector<1x32xf32>
    %89 = vector.broadcast %88 : vector<1x32xf32> to vector<8x32xf32>
    %90 = arith.addf %87, %89 : vector<8x32xf32>
    %cst_35 = arith.constant 0.000000e+00 : f32
    %91 = vector.broadcast %cst_35 : f32 to vector<8x32xf32>
    %92 = arith.maximumf %90, %91 : vector<8x32xf32>
    %c0_36 = arith.constant 0 : index
    %c0_37 = arith.constant 0 : index
    %93 = vector.load %arg9[%c0_36, %c0_37] : memref<8x32xf32, #tpu.memory_space<vmem>>, vector<8x32xf32>
    tpu.vector_store %arg9[%c0_36, %c0_37], %92 {strides = array<i32>} : memref<8x32xf32, #tpu.memory_space<vmem>>, vector<8x32xf32>,
    return
  }
  func.func @transform_0(%arg0: i32) -> (i32, i32) {
    %c0_i32 = arith.constant 0 : i32
    %c0_i32_0 = arith.constant 0 : i32
    %c0_i32_1 = arith.constant 0 : i32
    return %c0_i32, %c0_i32_0 : i32, i32
  }
  func.func @transform_1(%arg0: i32) -> (i32, i32) {
    %c0_i32 = arith.constant 0 : i32
    %c0_i32_0 = arith.constant 0 : i32
    %c0_i32_1 = arith.constant 0 : i32
    return %c0_i32, %c0_i32_0 : i32, i32
  }
  func.func @transform_2(%arg0: i32) -> (i32, i32) {
    %c0_i32 = arith.constant 0 : i32
    %c0_i32_0 = arith.constant 0 : i32
    %c0_i32_1 = arith.constant 0 : i32
    return %c0_i32, %c0_i32_0 : i32, i32
  }
  func.func @transform_3(%arg0: i32) -> (i32, i32) {
    %c0_i32 = arith.constant 0 : i32
    %c0_i32_0 = arith.constant 0 : i32
    %c0_i32_1 = arith.constant 0 : i32
    return %c0_i32, %c0_i32_0 : i32, i32
  }
  func.func @transform_4(%arg0: i32) -> (i32, i32) {
    %c0_i32 = arith.constant 0 : i32
    %c0_i32_0 = arith.constant 0 : i32
    %c0_i32_1 = arith.constant 0 : i32
    return %c0_i32, %c0_i32_0 : i32, i32
  }
  func.func @transform_5(%arg0: i32) -> (i32, i32) {
    %c0_i32 = arith.constant 0 : i32
    %c0_i32_0 = arith.constant 0 : i32
    %c0_i32_1 = arith.constant 0 : i32
    return %c0_i32, %c0_i32_0 : i32, i32
  }
  func.func @transform_6(%arg0: i32) -> (i32, i32) {
    %c0_i32 = arith.constant 0 : i32
    %c0_i32_0 = arith.constant 0 : i32
    %c0_i32_1 = arith.constant 0 : i32
    return %c0_i32, %c0_i32_0 : i32, i32
  }
  func.func @transform_7(%arg0: i32) -> (i32, i32) {
    %c0_i32 = arith.constant 0 : i32
    %c0_i32_0 = arith.constant 0 : i32
    %c0_i32_1 = arith.constant 0 : i32
    return %c0_i32, %c0_i32_0 : i32, i32
  }
  func.func @transform_8(%arg0: i32) -> (i32, i32) {
    %c0_i32 = arith.constant 0 : i32
    %c0_i32_0 = arith.constant 0 : i32
    %c0_i32_1 = arith.constant 0 : i32
    return %c0_i32, %c0_i32_0 : i32, i32
  }
}

module attributes {stable_mosaic.version = 11 : i64} {
  func.func @_vote_final_kernel(%arg0: i32, %arg1: memref<48x384xf32, #tpu.memory_space<vmem>>, %arg2: memref<48x1xf32, #tpu.memory_space<vmem>>, %arg3: memref<16x32xf32, #tpu.memory_space<vmem>>, %arg4: memref<24x32xf32, #tpu.memory_space<vmem>>, %arg5: memref<48x1xi32, #tpu.memory_space<vmem>>, %arg6: memref<1x48xi32, #tpu.memory_space<vmem>>, %arg7: memref<384x32xf32, #tpu.memory_space<vmem>>, %arg8: memref<1x32xf32, #tpu.memory_space<vmem>>, %arg9: memref<32x32xf32, #tpu.memory_space<vmem>>, %arg10: memref<1x32xf32, #tpu.memory_space<vmem>>, %arg11: memref<1x32xf32, #tpu.memory_space<vmem>>, %arg12: memref<1x32xf32, #tpu.memory_space<vmem>>, %arg13: memref<24x32xf32, #tpu.memory_space<vmem>>) attributes {dimension_semantics = [#tpu.dimension_semantics<arbitrary>], iteration_bounds = array<i64: 1>, scalar_prefetch = 0 : i64, scratch_operands = 0 : i64, tpu.core_type = #tpu.core_type<tc>, window_params = [{pipeline_mode = #tpu.pipeline_mode<synchronous>, transform_indices = @transform_0, window_bounds = array<i64: 48, 384>}, {pipeline_mode = #tpu.pipeline_mode<synchronous>, transform_indices = @transform_1, window_bounds = array<i64: 48, 1>}, {pipeline_mode = #tpu.pipeline_mode<synchronous>, transform_indices = @transform_2, window_bounds = array<i64: 16, 32>}, {pipeline_mode = #tpu.pipeline_mode<synchronous>, transform_indices = @transform_3, window_bounds = array<i64: 24, 32>}, {pipeline_mode = #tpu.pipeline_mode<synchronous>, transform_indices = @transform_4, window_bounds = array<i64: 48, 1>}, {pipeline_mode = #tpu.pipeline_mode<synchronous>, transform_indices = @transform_5, window_bounds = array<i64: 1, 48>}, {pipeline_mode = #tpu.pipeline_mode<synchronous>, transform_indices = @transform_6, window_bounds = array<i64: 384, 32>}, {pipeline_mode = #tpu.pipeline_mode<synchronous>, transform_indices = @transform_7, window_bounds = array<i64: 1, 32>}, {pipeline_mode = #tpu.pipeline_mode<synchronous>, transform_indices = @transform_8, window_bounds = array<i64: 32, 32>}, {pipeline_mode = #tpu.pipeline_mode<synchronous>, transform_indices = @transform_9, window_bounds = array<i64: 1, 32>}, {pipeline_mode = #tpu.pipeline_mode<synchronous>, transform_indices = @transform_10, window_bounds = array<i64: 1, 32>}, {pipeline_mode = #tpu.pipeline_mode<synchronous>, transform_indices = @transform_11, window_bounds = array<i64: 1, 32>}, {pipeline_mode = #tpu.pipeline_mode<synchronous>, transform_indices = @transform_12, window_bounds = array<i64: 24, 32>}]} {
    %c0 = arith.constant 0 : index
    %c0_0 = arith.constant 0 : index
    %0 = vector.load %arg1[%c0, %c0_0] : memref<48x384xf32, #tpu.memory_space<vmem>>, vector<48x384xf32>
    %c0_1 = arith.constant 0 : index
    %c0_2 = arith.constant 0 : index
    %1 = vector.load %arg7[%c0_1, %c0_2] : memref<384x32xf32, #tpu.memory_space<vmem>>, vector<384x32xf32>
    %2 = arith.truncf %0 : vector<48x384xf32> to vector<48x384xbf16>
    %3 = arith.truncf %1 : vector<384x32xf32> to vector<384x32xbf16>
    %cst = arith.constant dense<0.000000e+00> : vector<48x32xf32>
    %4 = tpu.matmul %2, %3, %cst {dimension_numbers = #tpu.dot_dimension_numbers<[1], [0], [0], [1], [0, 0, 1, 1], [], []>} : vector<48x384xbf16>, vector<384x32xbf16>, vector<48x32xf32> -> vector<48x32xf32>
    %c0_3 = arith.constant 0 : index
    %c0_4 = arith.constant 0 : index
    %5 = vector.load %arg8[%c0_3, %c0_4] : memref<1x32xf32, #tpu.memory_space<vmem>>, vector<1x32xf32>
    %6 = vector.broadcast %5 : vector<1x32xf32> to vector<48x32xf32>
    %7 = arith.addf %4, %6 : vector<48x32xf32>
    %cst_5 = arith.constant 0.000000e+00 : f32
    %8 = vector.broadcast %cst_5 : f32 to vector<48x32xf32>
    %9 = arith.maximumf %7, %8 : vector<48x32xf32>
    %c0_6 = arith.constant 0 : index
    %c0_7 = arith.constant 0 : index
    %10 = vector.load %arg9[%c0_6, %c0_7] : memref<32x32xf32, #tpu.memory_space<vmem>>, vector<32x32xf32>
    %11 = arith.truncf %9 : vector<48x32xf32> to vector<48x32xbf16>
    %12 = arith.truncf %10 : vector<32x32xf32> to vector<32x32xbf16>
    %cst_8 = arith.constant dense<0.000000e+00> : vector<48x32xf32>
    %13 = tpu.matmul %11, %12, %cst_8 {dimension_numbers = #tpu.dot_dimension_numbers<[1], [0], [0], [1], [0, 0, 1, 1], [], []>} : vector<48x32xbf16>, vector<32x32xbf16>, vector<48x32xf32> -> vector<48x32xf32>
    %c0_9 = arith.constant 0 : index
    %c0_10 = arith.constant 0 : index
    %14 = vector.load %arg10[%c0_9, %c0_10] : memref<1x32xf32, #tpu.memory_space<vmem>>, vector<1x32xf32>
    %15 = vector.broadcast %14 : vector<1x32xf32> to vector<48x32xf32>
    %16 = arith.addf %13, %15 : vector<48x32xf32>
    %c0_11 = arith.constant 0 : index
    %c0_12 = arith.constant 0 : index
    %17 = vector.load %arg2[%c0_11, %c0_12] : memref<48x1xf32, #tpu.memory_space<vmem>>, vector<48x1xf32>
    %cst_13 = arith.constant 0.000000e+00 : f32
    %cst_14 = arith.constant 1.000000e+00 : f32
    %18 = vector.broadcast %cst_13 : f32 to vector<48x1xf32>
    %19 = arith.maximumf %18, %17 : vector<48x1xf32>
    %20 = vector.broadcast %cst_14 : f32 to vector<48x1xf32>
    %21 = arith.minimumf %20, %19 : vector<48x1xf32>
    %22 = tpu.iota {dimensions = array<i32: 1>} : vector<48x16xi32>
    %c0_15 = arith.constant 0 : index
    %c0_16 = arith.constant 0 : index
    %23 = vector.load %arg5[%c0_15, %c0_16] : memref<48x1xi32, #tpu.memory_space<vmem>>, vector<48x1xi32>
    %24 = vector.broadcast %23 : vector<48x1xi32> to vector<48x16xi32>
    %25 = arith.cmpi eq, %22, %24 : vector<48x16xi32>
    %26 = arith.extui %25 : vector<48x16xi1> to vector<48x16xi32>
    %27 = arith.sitofp %26 : vector<48x16xi32> to vector<48x16xf32>
    %c0_17 = arith.constant 0 : index
    %c0_18 = arith.constant 0 : index
    %28 = vector.load %arg3[%c0_17, %c0_18] : memref<16x32xf32, #tpu.memory_space<vmem>>, vector<16x32xf32>
    %cst_19 = arith.constant dense<0.000000e+00> : vector<48x32xf32>
    %29 = tpu.matmul %27, %28, %cst_19 {dimension_numbers = #tpu.dot_dimension_numbers<[1], [0], [0], [1], [0, 0, 1, 1], [], []>} : vector<48x16xf32>, vector<16x32xf32>, vector<48x32xf32> -> vector<48x32xf32>
    %cst_20 = arith.constant 0.00999999977 : f32
    %30 = vector.broadcast %cst_20 : f32 to vector<48x1xf32>
    %31 = arith.addf %21, %30 : vector<48x1xf32>
    %32 = vector.broadcast %31 : vector<48x1xf32> to vector<48x32xf32>
    %33 = arith.mulf %16, %32 : vector<48x32xf32>
    %34 = arith.mulf %29, %33 : vector<48x32xf32>
    %35 = tpu.iota {dimensions = array<i32: 0>} : vector<24x48xi32>
    %c0_21 = arith.constant 0 : index
    %c0_22 = arith.constant 0 : index
    %36 = vector.load %arg6[%c0_21, %c0_22] : memref<1x48xi32, #tpu.memory_space<vmem>>, vector<1x48xi32>
    %37 = vector.broadcast %36 : vector<1x48xi32> to vector<24x48xi32>
    %38 = arith.cmpi eq, %35, %37 : vector<24x48xi32>
    %39 = arith.extui %38 : vector<24x48xi1> to vector<24x48xi32>
    %40 = arith.sitofp %39 : vector<24x48xi32> to vector<24x48xf32>
    %c0_23 = arith.constant 0 : index
    %c0_24 = arith.constant 0 : index
    %41 = vector.load %arg4[%c0_23, %c0_24] : memref<24x32xf32, #tpu.memory_space<vmem>>, vector<24x32xf32>
    %cst_25 = arith.constant dense<0.000000e+00> : vector<24x32xf32>
    %42 = tpu.matmul %40, %34, %cst_25 {dimension_numbers = #tpu.dot_dimension_numbers<[1], [0], [0], [1], [0, 0, 1, 1], [], []>} : vector<24x48xf32>, vector<48x32xf32>, vector<24x32xf32> -> vector<24x32xf32>
    %43 = arith.addf %41, %42 : vector<24x32xf32>
    %cst_26 = arith.constant dense<0.000000e+00> : vector<24xf32>
    %44 = vector.multi_reduction <add>, %43, %cst_26 [1] : vector<24x32xf32> to vector<24xf32>
    %45 = vector.shape_cast %44 : vector<24xf32> to vector<24x1xf32>
    %cst_27 = arith.constant 3.200000e+01 : f32
    %46 = vector.broadcast %cst_27 : f32 to vector<24x1xf32>
    %47 = arith.divf %45, %46 : vector<24x1xf32>
    %48 = vector.broadcast %47 : vector<24x1xf32> to vector<24x32xf32>
    %49 = arith.subf %43, %48 : vector<24x32xf32>
    %50 = arith.mulf %49, %49 : vector<24x32xf32>
    %cst_28 = arith.constant dense<0.000000e+00> : vector<24xf32>
    %51 = vector.multi_reduction <add>, %50, %cst_28 [1] : vector<24x32xf32> to vector<24xf32>
    %52 = vector.shape_cast %51 : vector<24xf32> to vector<24x1xf32>
    %cst_29 = arith.constant 3.200000e+01 : f32
    %53 = vector.broadcast %cst_29 : f32 to vector<24x1xf32>
    %54 = arith.divf %52, %53 : vector<24x1xf32>
    %55 = vector.broadcast %47 : vector<24x1xf32> to vector<24x32xf32>
    %56 = arith.subf %43, %55 : vector<24x32xf32>
    %cst_30 = arith.constant 9.99999974E-6 : f32
    %57 = vector.broadcast %cst_30 : f32 to vector<24x1xf32>
    %58 = arith.addf %54, %57 : vector<24x1xf32>
    %59 = math.rsqrt %58 : vector<24x1xf32>
    %60 = vector.broadcast %59 : vector<24x1xf32> to vector<24x32xf32>
    %61 = arith.mulf %56, %60 : vector<24x32xf32>
    %c0_31 = arith.constant 0 : index
    %c0_32 = arith.constant 0 : index
    %62 = vector.load %arg11[%c0_31, %c0_32] : memref<1x32xf32, #tpu.memory_space<vmem>>, vector<1x32xf32>
    %63 = vector.broadcast %62 : vector<1x32xf32> to vector<24x32xf32>
    %64 = arith.mulf %61, %63 : vector<24x32xf32>
    %c0_33 = arith.constant 0 : index
    %c0_34 = arith.constant 0 : index
    %65 = vector.load %arg12[%c0_33, %c0_34] : memref<1x32xf32, #tpu.memory_space<vmem>>, vector<1x32xf32>
    %66 = vector.broadcast %65 : vector<1x32xf32> to vector<24x32xf32>
    %67 = arith.addf %64, %66 : vector<24x32xf32>
    %cst_35 = arith.constant 0.000000e+00 : f32
    %68 = vector.broadcast %cst_35 : f32 to vector<24x32xf32>
    %69 = arith.maximumf %67, %68 : vector<24x32xf32>
    %c0_36 = arith.constant 0 : index
    %c0_37 = arith.constant 0 : index
    %70 = vector.load %arg13[%c0_36, %c0_37] : memref<24x32xf32, #tpu.memory_space<vmem>>, vector<24x32xf32>
    tpu.vector_store %arg13[%c0_36, %c0_37], %69 {strides = array<i32>} : memref<24x32xf32, #tpu.memory_space<vmem>>, vector<24x32xf32>,
    return
  }
  func.func @transform_0(%arg0: i32) -> (i32, i32) {
    %c0_i32 = arith.constant 0 : i32
    %c0_i32_0 = arith.constant 0 : i32
    %c0_i32_1 = arith.constant 0 : i32
    return %c0_i32, %c0_i32_0 : i32, i32
  }
  func.func @transform_1(%arg0: i32) -> (i32, i32) {
    %c0_i32 = arith.constant 0 : i32
    %c0_i32_0 = arith.constant 0 : i32
    %c0_i32_1 = arith.constant 0 : i32
    return %c0_i32, %c0_i32_0 : i32, i32
  }
  func.func @transform_2(%arg0: i32) -> (i32, i32) {
    %c0_i32 = arith.constant 0 : i32
    %c0_i32_0 = arith.constant 0 : i32
    %c0_i32_1 = arith.constant 0 : i32
    return %c0_i32, %c0_i32_0 : i32, i32
  }
  func.func @transform_3(%arg0: i32) -> (i32, i32) {
    %c0_i32 = arith.constant 0 : i32
    %c0_i32_0 = arith.constant 0 : i32
    %c0_i32_1 = arith.constant 0 : i32
    return %c0_i32, %c0_i32_0 : i32, i32
  }
  func.func @transform_4(%arg0: i32) -> (i32, i32) {
    %c0_i32 = arith.constant 0 : i32
    %c0_i32_0 = arith.constant 0 : i32
    %c0_i32_1 = arith.constant 0 : i32
    return %c0_i32, %c0_i32_0 : i32, i32
  }
  func.func @transform_5(%arg0: i32) -> (i32, i32) {
    %c0_i32 = arith.constant 0 : i32
    %c0_i32_0 = arith.constant 0 : i32
    %c0_i32_1 = arith.constant 0 : i32
    return %c0_i32, %c0_i32_0 : i32, i32
  }
  func.func @transform_6(%arg0: i32) -> (i32, i32) {
    %c0_i32 = arith.constant 0 : i32
    %c0_i32_0 = arith.constant 0 : i32
    %c0_i32_1 = arith.constant 0 : i32
    return %c0_i32, %c0_i32_0 : i32, i32
  }
  func.func @transform_7(%arg0: i32) -> (i32, i32) {
    %c0_i32 = arith.constant 0 : i32
    %c0_i32_0 = arith.constant 0 : i32
    %c0_i32_1 = arith.constant 0 : i32
    return %c0_i32, %c0_i32_0 : i32, i32
  }
  func.func @transform_8(%arg0: i32) -> (i32, i32) {
    %c0_i32 = arith.constant 0 : i32
    %c0_i32_0 = arith.constant 0 : i32
    %c0_i32_1 = arith.constant 0 : i32
    return %c0_i32, %c0_i32_0 : i32, i32
  }
  func.func @transform_9(%arg0: i32) -> (i32, i32) {
    %c0_i32 = arith.constant 0 : i32
    %c0_i32_0 = arith.constant 0 : i32
    %c0_i32_1 = arith.constant 0 : i32
    return %c0_i32, %c0_i32_0 : i32, i32
  }
  func.func @transform_10(%arg0: i32) -> (i32, i32) {
    %c0_i32 = arith.constant 0 : i32
    %c0_i32_0 = arith.constant 0 : i32
    %c0_i32_1 = arith.constant 0 : i32
    return %c0_i32, %c0_i32_0 : i32, i32
  }
  func.func @transform_11(%arg0: i32) -> (i32, i32) {
    %c0_i32 = arith.constant 0 : i32
    %c0_i32_0 = arith.constant 0 : i32
    %c0_i32_1 = arith.constant 0 : i32
    return %c0_i32, %c0_i32_0 : i32, i32
  }
  func.func @transform_12(%arg0: i32) -> (i32, i32) {
    %c0_i32 = arith.constant 0 : i32
    %c0_i32_0 = arith.constant 0 : i32
    %c0_i32_1 = arith.constant 0 : i32
    return %c0_i32, %c0_i32_0 : i32, i32
  }
}

</mosaic_0001>

<llo_original>
// kernel: legislative_graph_encoder.17
$region0: #{legislative_graph_encoder.17}
  #allocation0 [shape = 'u32[]', space=smem, size = 0x4, offset = 0x4, fixed_abs, tag = 'smem constant byte address 0x4 - core index']
  #allocation1 [shape = 'u32[144,128]{1,0:T(1,128)}', space=vmem, size = 0x12000, scoped, tag = 'internal scratch']
  %s0 = inlined_call_operand.vmem [shape: f32[16,401], index: 0, kind: input, shape index: {}]
  %s1 = inlined_call_operand.vmem [shape: f32[1,401], index: 1, kind: input, shape index: {}]
  %s2 = inlined_call_operand.vmem [shape: f32[1,401], index: 2, kind: input, shape index: {}]
  %s3 = inlined_call_operand.vmem [shape: f32[401,32], index: 3, kind: input, shape index: {}]
  %s4 = inlined_call_operand.vmem [shape: f32[16,32], index: 4, kind: output, shape index: {}]
  %s5 = sld [smem:[#allocation0]]
  $region26: #{legislative_graph_encoder.17} parent=0
    _
  %s7 = ssub.s32 1, %s5
  %s8 = scalar_select 0, %s7, %s5
  // Predicated region
  $region2: #{legislative_graph_encoder.17} parent=0 // pred_check
    _
  $region3: #{legislative_graph_encoder.17} parent=0 // pred_check_branch
    %10 = sbr.rel (0) target = $region5
  $region4: #{legislative_graph_encoder.17} parent=0 // pred_region
    _
  $region5: #{legislative_graph_encoder.17} parent=0 // pred_fallthru
    _
  // Predicated region
  $region6: #{legislative_graph_encoder.17} parent=0 // pred_check
    _
  $region7: #{legislative_graph_encoder.17} parent=0 // pred_check_branch
    %12 = sbr.rel (0) target = $region9
  $region8: #{legislative_graph_encoder.17} parent=0 // pred_region
    _
  $region9: #{legislative_graph_encoder.17} parent=0 // pred_fallthru
    _
  // Predicated region
  $region10: #{legislative_graph_encoder.17} parent=0 // pred_check
    _
  $region11: #{legislative_graph_encoder.17} parent=0 // pred_check_branch
    %14 = sbr.rel (0) target = $region13
  $region12: #{legislative_graph_encoder.17} parent=0 // pred_region
    _
  $region13: #{legislative_graph_encoder.17} parent=0 // pred_fallthru
    _
  // Predicated region
  $region14: #{legislative_graph_encoder.17} parent=0 // pred_check
    _
  $region15: #{legislative_graph_encoder.17} parent=0 // pred_check_branch
    %16 = sbr.rel (0) target = $region17
  $region16: #{legislative_graph_encoder.17} parent=0 // pred_region
    _
  $region17: #{legislative_graph_encoder.17} parent=0 // pred_fallthru
    _
  %v18 = vld [vmem:[%s0] sm:$0xff]
  %v19 = vld [vmem:[%s0 + $0x8] sm:$0xff]
  %v20 = vld [vmem:[%s0 + $0x10] sm:$0xff]
  %v21 = vld [vmem:[%s0 + $0x18] sm:$0xff]
  %v22 = vld [vmem:[%s0 + $0x20] sm:$0xff]
  %v23 = vld [vmem:[%s0 + $0x28] sm:$0xff]
  %v24 = vld [vmem:[%s0 + $0x30] sm:$0xff]
  %v25 = vld [vmem:[%s0 + $0x38] sm:$0xff]
  %v26 = vadd.f32 %v18, %v19
  %v27 = vadd.f32 %v26, %v20
  %vm28 = vcmask 138240
  %v29 = vsel %vm28, %v21, 0.0
  %v30 = vadd.f32 %v27, %v29
  %31 = vadd.xlane.f32.xlu0 %v30
  %v32 = vpop.xlane.xlu0 %31
  %v33 = vadd.f32 %v22, %v23
  %v34 = vadd.f32 %v33, %v24
  %v35 = vsel %vm28, %v25, 0.0
  %v36 = vadd.f32 %v34, %v35
  %37 = vadd.xlane.f32.xlu0 %v36
  %v38 = vpop.xlane.xlu0 %37
  %v39 = vrcp.pop 401.0
  %v40 = vmul.f32 %v32, %v39
  %v41 = vmul.f32 %v38, %v39
  %v42 = vsub.f32 %v18, %v40
  %v43 = vsub.f32 %v19, %v40
  %v44 = vsub.f32 %v20, %v40
  %v45 = vsub.f32 %v21, %v40
  %v46 = vsub.f32 %v22, %v41
  %v47 = vsub.f32 %v23, %v41
  %v48 = vsub.f32 %v24, %v41
  %v49 = vsub.f32 %v25, %v41
  %v50 = vmul.f32 %v42, %v42
  %v51 = vmul.f32 %v43, %v43
  %v52 = vmul.f32 %v44, %v44
  %v53 = vmul.f32 %v45, %v45
  %v54 = vmul.f32 %v46, %v46
  %v55 = vmul.f32 %v47, %v47
  %v56 = vmul.f32 %v48, %v48
  %v57 = vmul.f32 %v49, %v49
  %v58 = vadd.f32 %v50, %v51
  %v59 = vadd.f32 %v58, %v52
  %v60 = vsel %vm28, %v53, 0.0
  %v61 = vadd.f32 %v59, %v60
  %62 = vadd.xlane.f32.xlu0 %v61
  %v63 = vpop.xlane.xlu0 %62
  %v64 = vadd.f32 %v54, %v55
  %v65 = vadd.f32 %v64, %v56
  %v66 = vsel %vm28, %v57, 0.0
  %v67 = vadd.f32 %v65, %v66
  %68 = vadd.xlane.f32.xlu0 %v67
  %v69 = vpop.xlane.xlu0 %68
  %v70 = vmul.f32 %v63, %v39
  %v71 = vmul.f32 %v69, %v39
  %v72 = vadd.f32 %v70, 1e-05
  %v73 = vadd.f32 %v71, 1e-05
  %v74 = vrsqrt.pop %v72
  %v75 = vrsqrt.pop %v73
  %v76 = vmul.f32 %v42, %v74
  %v77 = vmul.f32 %v43, %v74
  %v78 = vmul.f32 %v44, %v74
  %v79 = vmul.f32 %v45, %v74
  %v80 = vmul.f32 %v46, %v75
  %v81 = vmul.f32 %v47, %v75
  %v82 = vmul.f32 %v48, %v75
  %v83 = vmul.f32 %v49, %v75
  %v84 = vld [vmem:[%s1] sm:$0xf]
  %v86 = vlaneseq
  %v87 = vshrl.u32 %v86, 7
  %v88 = vsub.s32 0, %v87
  %v89 = vrot.slane %v84, %v88
  %v90 = vlaneseq
  %v91 = vshrl.u32 %v90, 7
  %v92 = vsub.s32 1, %v91
  %v93 = vrot.slane %v84, %v92
  %v94 = vlaneseq
  %v95 = vshrl.u32 %v94, 7
  %v96 = vsub.s32 2, %v95
  %v97 = vrot.slane %v84, %v96
  %v98 = vlaneseq
  %v99 = vshrl.u32 %v98, 7
  %v100 = vsub.s32 3, %v99
  %v101 = vrot.slane %v84, %v100
  %v106 = vmul.f32 %v76, %v89
  %v107 = vmul.f32 %v77, %v93
  %v108 = vmul.f32 %v78, %v97
  %v109 = vmul.f32 %v79, %v101
  %v110 = vmul.f32 %v80, %v89
  %v111 = vmul.f32 %v81, %v93
  %v112 = vmul.f32 %v82, %v97
  %v113 = vmul.f32 %v83, %v101
  %v114 = vld [vmem:[%s2] sm:$0xf]
  %v116 = vlaneseq
  %v117 = vshrl.u32 %v116, 7
  %v118 = vsub.s32 0, %v117
  %v119 = vrot.slane %v114, %v118
  %v120 = vlaneseq
  %v121 = vshrl.u32 %v120, 7
  %v122 = vsub.s32 1, %v121
  %v123 = vrot.slane %v114, %v122
  %v124 = vlaneseq
  %v125 = vshrl.u32 %v124, 7
  %v126 = vsub.s32 2, %v125
  %v127 = vrot.slane %v114, %v126
  %v128 = vlaneseq
  %v129 = vshrl.u32 %v128, 7
  %v130 = vsub.s32 3, %v129
  %v131 = vrot.slane %v114, %v130
  %v136 = vadd.f32 %v106, %v119
  %v137 = vadd.f32 %v107, %v123
  %v138 = vadd.f32 %v108, %v127
  %v139 = vadd.f32 %v109, %v131
  %v140 = vadd.f32 %v110, %v119
  %v141 = vadd.f32 %v111, %v123
  %v142 = vadd.f32 %v112, %v127
  %v143 = vadd.f32 %v113, %v131
  %v144 = vld [vmem:[%s3] sm:$0xff]
  %v145 = vld [vmem:[%s3 + $0x8] sm:$0xff]
  %v146 = vld [vmem:[%s3 + $0x10] sm:$0xff]
  %v147 = vld [vmem:[%s3 + $0x18] sm:$0xff]
  %v148 = vld [vmem:[%s3 + $0x20] sm:$0xff]
  %v149 = vld [vmem:[%s3 + $0x28] sm:$0xff]
  %v150 = vld [vmem:[%s3 + $0x30] sm:$0xff]
  %v151 = vld [vmem:[%s3 + $0x38] sm:$0xff]
  %v152 = vld [vmem:[%s3 + $0x40] sm:$0xff]
  %v153 = vld [vmem:[%s3 + $0x48] sm:$0xff]
  %v154 = vld [vmem:[%s3 + $0x50] sm:$0xff]
  %v155 = vld [vmem:[%s3 + $0x58] sm:$0xff]
  %v156 = vld [vmem:[%s3 + $0x60] sm:$0xff]
  %v157 = vld [vmem:[%s3 + $0x68] sm:$0xff]
  %v158 = vld [vmem:[%s3 + $0x70] sm:$0xff]
  %v159 = vld [vmem:[%s3 + $0x78] sm:$0xff]
  %v160 = vld [vmem:[%s3 + $0x80] sm:$0xff]
  %v161 = vld [vmem:[%s3 + $0x88] sm:$0xff]
  %v162 = vld [vmem:[%s3 + $0x90] sm:$0xff]
  %v163 = vld [vmem:[%s3 + $0x98] sm:$0xff]
  %v164 = vld [vmem:[%s3 + $0xa0] sm:$0xff]
  %v165 = vld [vmem:[%s3 + $0xa8] sm:$0xff]
  %v166 = vld [vmem:[%s3 + $0xb0] sm:$0xff]
  %v167 = vld [vmem:[%s3 + $0xb8] sm:$0xff]
  %v168 = vld [vmem:[%s3 + $0xc0] sm:$0xff]
  %v169 = vld [vmem:[%s3 + $0xc8] sm:$0xff]
  %v170 = vld [vmem:[%s3 + $0xd0] sm:$0xff]
  %v171 = vld [vmem:[%s3 + $0xd8] sm:$0xff]
  %v172 = vld [vmem:[%s3 + $0xe0] sm:$0xff]
  %v173 = vld [vmem:[%s3 + $0xe8] sm:$0xff]
  %v174 = vld [vmem:[%s3 + $0xf0] sm:$0xff]
  %v175 = vld [vmem:[%s3 + $0xf8] sm:$0xff]
  %v176 = vld [vmem:[%s3 + $0x100] sm:$0xff]
  %v177 = vld [vmem:[%s3 + $0x108] sm:$0xff]
  %v178 = vld [vmem:[%s3 + $0x110] sm:$0xff]
  %v179 = vld [vmem:[%s3 + $0x118] sm:$0xff]
  %v180 = vld [vmem:[%s3 + $0x120] sm:$0xff]
  %v181 = vld [vmem:[%s3 + $0x128] sm:$0xff]
  %v182 = vld [vmem:[%s3 + $0x130] sm:$0xff]
  %v183 = vld [vmem:[%s3 + $0x138] sm:$0xff]
  %v184 = vld [vmem:[%s3 + $0x140] sm:$0xff]
  %v185 = vld [vmem:[%s3 + $0x148] sm:$0xff]
  %v186 = vld [vmem:[%s3 + $0x150] sm:$0xff]
  %v187 = vld [vmem:[%s3 + $0x158] sm:$0xff]
  %v188 = vld [vmem:[%s3 + $0x160] sm:$0xff]
  %v189 = vld [vmem:[%s3 + $0x168] sm:$0xff]
  %v190 = vld [vmem:[%s3 + $0x170] sm:$0xff]
  %v191 = vld [vmem:[%s3 + $0x178] sm:$0xff]
  %v192 = vld [vmem:[%s3 + $0x180] sm:$0xff]
  %v193 = vld [vmem:[%s3 + $0x188] sm:$0xff]
  %v194 = vld [vmem:[%s3 + $0x190] sm:$0x1]
  %v195 = vpack.c.bf16 %v140, %v136
  %v196 = vpack.c.bf16 %v141, %v137
  %v197 = vpack.c.bf16 %v142, %v138
  %v198 = vpack.c.bf16 %v143, %v139
  %v199 = vpack.c.bf16 %v145, %v144
  %v200 = vpack.c.bf16 %v147, %v146
  %v201 = vpack.c.bf16 %v149, %v148
  %v202 = vpack.c.bf16 %v151, %v150
  %v203 = vpack.c.bf16 %v153, %v152
  %v204 = vpack.c.bf16 %v155, %v154
  %v205 = vpack.c.bf16 %v157, %v156
  %v206 = vpack.c.bf16 %v159, %v158
  %v207 = vpack.c.bf16 %v161, %v160
  %v208 = vpack.c.bf16 %v163, %v162
  %v209 = vpack.c.bf16 %v165, %v164
  %v210 = vpack.c.bf16 %v167, %v166
  %v211 = vpack.c.bf16 %v169, %v168
  %v212 = vpack.c.bf16 %v171, %v170
  %v213 = vpack.c.bf16 %v173, %v172
  %v214 = vpack.c.bf16 %v175, %v174
  %v215 = vpack.c.bf16 %v177, %v176
  %v216 = vpack.c.bf16 %v179, %v178
  %v217 = vpack.c.bf16 %v181, %v180
  %v218 = vpack.c.bf16 %v183, %v182
  %v219 = vpack.c.bf16 %v185, %v184
  %v220 = vpack.c.bf16 %v187, %v186
  %v221 = vpack.c.bf16 %v189, %v188
  %v222 = vpack.c.bf16 %v191, %v190
  %v223 = vpack.c.bf16 %v193, %v192
  %v224 = vpack.c.bf16 %v194, %v194
  %v226 = vsel %vm28, %v198, 0
  %vm228 = vcmask 1040384
  %v229 = vsel 0, 4294967295, 65535
  %v230 = vsel %vm228, %v229, 0
  %v232 = vand.u32 %v224, %v230
  %234 = vmatprep.subr.bf16.mxu0 0
  %235 = vmatpush1.bf16.msra.mxu0 %v199
  %236 = vmatprep.subr.bf16.mxu0 0
  %237 = vmatpush1.bf16.msra.mxu0 %v200
  %238 = vmatprep.subr.bf16.mxu0 0
  %239 = vmatpush1.bf16.msra.mxu0 %v201
  %240 = vmatprep.subr.bf16.mxu0 0
  %241 = vmatpush1.bf16.msra.mxu0 %v202
  %242 = vmatprep.subr.bf16.mxu0 0
  %243 = vmatpush1.bf16.msra.mxu0 %v203
  %244 = vmatprep.subr.bf16.mxu0 0
  %245 = vmatpush1.bf16.msra.mxu0 %v204
  %246 = vmatprep.subr.bf16.mxu0 0
  %247 = vmatpush1.bf16.msra.mxu0 %v205
  %248 = vmatprep.subr.bf16.mxu0 0
  %249 = vmatpush1.bf16.msra.mxu0 %v206
  %250 = vmatprep.subr.bf16.mxu0 0
  %251 = vmatpush1.bf16.msra.mxu0 %v207
  %252 = vmatprep.subr.bf16.mxu0 0
  %253 = vmatpush1.bf16.msra.mxu0 %v208
  %254 = vmatprep.subr.bf16.mxu0 0
  %255 = vmatpush1.bf16.msra.mxu0 %v209
  %256 = vmatprep.subr.bf16.mxu0 0
  %257 = vmatpush1.bf16.msra.mxu0 %v210
  %258 = vmatprep.subr.bf16.mxu0 0
  %259 = vmatpush1.bf16.msra.mxu0 %v211
  %260 = vmatprep.subr.bf16.mxu0 0
  %261 = vmatpush1.bf16.msra.mxu0 %v212
  %262 = vmatprep.subr.bf16.mxu0 0
  %263 = vmatpush1.bf16.msra.mxu0 %v213
  %264 = vmatprep.subr.bf16.mxu0 0
  %265 = vmatpush1.bf16.msra.mxu0 %v214
  %266 = vmatprep.mubr.bf16.mxu0 %v196
  %267 = vmatmul.mubr.bf16.gmra.mrb[0].mxu0 %v195
  %v268 = vpop.f32.mrb[0].mxu0
  %v269 = vadd.f32 0.0, %v268
  %v270 = vpop.f32.mrb[0].mxu0
  %v271 = vpop.f32.mrb[0].mxu0
  %v272 = vadd.f32 0.0, %v271
  %v273 = vpop.f32.mrb[0].mxu0
  %274 = vdwg.mxu0
  %275 = vmatprep.subr.bf16.mxu0 0
  %276 = vmatpush1.bf16.msra.mxu0 %v215
  %277 = vmatprep.subr.bf16.mxu0 0
  %278 = vmatpush1.bf16.msra.mxu0 %v216
  %279 = vmatprep.subr.bf16.mxu0 0
  %280 = vmatpush1.bf16.msra.mxu0 %v217
  %281 = vmatprep.subr.bf16.mxu0 0
  %282 = vmatpush1.bf16.msra.mxu0 %v218
  %283 = vmatprep.subr.bf16.mxu0 0
  %284 = vmatpush1.bf16.msra.mxu0 %v219
  %285 = vmatprep.subr.bf16.mxu0 0
  %286 = vmatpush1.bf16.msra.mxu0 %v220
  %287 = vmatprep.subr.bf16.mxu0 0
  %288 = vmatpush1.bf16.msra.mxu0 %v221
  %289 = vmatprep.subr.bf16.mxu0 0
  %290 = vmatpush1.bf16.msra.mxu0 %v222
  %291 = vmatprep.subr.bf16.mxu0 0
  %292 = vmatpush1.bf16.msra.mxu0 %v223
  %293 = vmatprep.subr.bf16.mxu0 0
  %294 = vmatpush1.bf16.msra.mxu0 %v232
  %295 = vmatprep.subr.bf16.mxu0 0
  %296 = vmatpush1.bf16.msra.mxu0 0
  %297 = vmatprep.subr.bf16.mxu0 0
  %298 = vmatpush1.bf16.msra.mxu0 0
  %299 = vmatprep.subr.bf16.mxu0 0
  %300 = vmatpush1.bf16.msra.mxu0 0
  %301 = vmatprep.subr.bf16.mxu0 0
  %302 = vmatpush1.bf16.msra.mxu0 0
  %303 = vmatprep.subr.bf16.mxu0 0
  %304 = vmatpush1.bf16.msra.mxu0 0
  %305 = vmatprep.subr.bf16.mxu0 0
  %306 = vmatpush1.bf16.msra.mxu0 0
  %307 = vmatprep.mubr.bf16.mxu0 %v226
  %308 = vmatmul.mubr.bf16.gmra.mrb[0].mxu0 %v197
  %v309 = vpop.f32.mrb[0].mxu0
  %v310 = vadd.f32 %v269, %v309
  %v311 = vpop.f32.mrb[0].mxu0
  %v312 = vpop.f32.mrb[0].mxu0
  %v313 = vadd.f32 %v272, %v312
  %v314 = vpop.f32.mrb[0].mxu0
  %315 = vdwg.mxu0
  %v316 = vmul.f32 %v310, 0.5
  %v317 = vmul.f32 %v313, 0.5
  %v318 = vmul.f32 %v310, 0.044715
  %v319 = vmul.f32 %v313, 0.044715
  %v320 = vmul.f32 %v318, %v310
  %v321 = vmul.f32 %v319, %v313
  %v322 = vmul.f32 %v320, %v310
  %v323 = vmul.f32 %v321, %v313
  %v324 = vadd.f32 %v310, %v322
  %v325 = vadd.f32 %v313, %v323
  %v326 = vmul.f32 %v324, 0.7978846
  %v327 = vmul.f32 %v325, 0.7978846
  %v328 = vtanh.pop %v326
  %v329 = vtanh.pop %v327
  %v330 = vadd.f32 %v328, 1.0
  %v331 = vadd.f32 %v329, 1.0
  %v332 = vmul.f32 %v316, %v330
  %v333 = vmul.f32 %v317, %v331
  %vm334 = vcmask 261120
  %335 = vst.msk [vmem:[%s4] sm:$0xff] %vm334, %v332
  %336 = vst.msk [vmem:[%s4 + $0x8] sm:$0xff] %vm334, %v333
  // Predicated region
  $region18: #{legislative_graph_encoder.17} parent=0 // pred_check
    _
  $region19: #{legislative_graph_encoder.17} parent=0 // pred_check_branch
    %338 = sbr.rel (0) target = $region21
  $region20: #{legislative_graph_encoder.17} parent=0 // pred_region
    _
  $region21: #{legislative_graph_encoder.17} parent=0 // pred_fallthru
    _
  // Predicated region
  $region22: #{legislative_graph_encoder.17} parent=0 // pred_check
    _
  $region23: #{legislative_graph_encoder.17} parent=0 // pred_check_branch
    %340 = sbr.rel (0) target = $region25
  $region24: #{legislative_graph_encoder.17} parent=0 // pred_region
    _
  $region25: #{legislative_graph_encoder.17} parent=0 // pred_fallthru
    _

// kernel: legislative_graph_encoder.18
$region0: #{legislative_graph_encoder.18}
  #allocation0 [shape = 'u32[]', space=smem, size = 0x4, offset = 0x4, fixed_abs, tag = 'smem constant byte address 0x4 - core index']
  #allocation1 [shape = 'u32[144,128]{1,0:T(1,128)}', space=vmem, size = 0x12000, scoped, tag = 'internal scratch']
  %s0 = inlined_call_operand.vmem [shape: f32[24,781], index: 0, kind: input, shape index: {}]
  %s1 = inlined_call_operand.vmem [shape: f32[1,781], index: 1, kind: input, shape index: {}]
  %s2 = inlined_call_operand.vmem [shape: f32[1,781], index: 2, kind: input, shape index: {}]
  %s3 = inlined_call_operand.vmem [shape: f32[781,32], index: 3, kind: input, shape index: {}]
  %s4 = inlined_call_operand.vmem [shape: f32[24,32], index: 4, kind: output, shape index: {}]
  %s5 = sld [smem:[#allocation0]]
  $region26: #{legislative_graph_encoder.18} parent=0
    _
  %s7 = ssub.s32 1, %s5
  %s8 = scalar_select 0, %s7, %s5
  // Predicated region
  $region2: #{legislative_graph_encoder.18} parent=0 // pred_check
    _
  $region3: #{legislative_graph_encoder.18} parent=0 // pred_check_branch
    %10 = sbr.rel (0) target = $region5
  $region4: #{legislative_graph_encoder.18} parent=0 // pred_region
    _
  $region5: #{legislative_graph_encoder.18} parent=0 // pred_fallthru
    _
  // Predicated region
  $region6: #{legislative_graph_encoder.18} parent=0 // pred_check
    _
  $region7: #{legislative_graph_encoder.18} parent=0 // pred_check_branch
    %12 = sbr.rel (0) target = $region9
  $region8: #{legislative_graph_encoder.18} parent=0 // pred_region
    _
  $region9: #{legislative_graph_encoder.18} parent=0 // pred_fallthru
    _
  // Predicated region
  $region10: #{legislative_graph_encoder.18} parent=0 // pred_check
    _
  $region11: #{legislative_graph_encoder.18} parent=0 // pred_check_branch
    %14 = sbr.rel (0) target = $region13
  $region12: #{legislative_graph_encoder.18} parent=0 // pred_region
    _
  $region13: #{legislative_graph_encoder.18} parent=0 // pred_fallthru
    _
  // Predicated region
  $region14: #{legislative_graph_encoder.18} parent=0 // pred_check
    _
  $region15: #{legislative_graph_encoder.18} parent=0 // pred_check_branch
    %16 = sbr.rel (0) target = $region17
  $region16: #{legislative_graph_encoder.18} parent=0 // pred_region
    _
  $region17: #{legislative_graph_encoder.18} parent=0 // pred_fallthru
    _
  %v18 = vld [vmem:[%s0] sm:$0xff]
  %v19 = vld [vmem:[%s0 + $0x8] sm:$0xff]
  %v20 = vld [vmem:[%s0 + $0x10] sm:$0xff]
  %v21 = vld [vmem:[%s0 + $0x18] sm:$0xff]
  %v22 = vld [vmem:[%s0 + $0x20] sm:$0xff]
  %v23 = vld [vmem:[%s0 + $0x28] sm:$0xff]
  %v24 = vld [vmem:[%s0 + $0x30] sm:$0xff]
  %v25 = vld [vmem:[%s0 + $0x38] sm:$0xff]
  %v26 = vld [vmem:[%s0 + $0x40] sm:$0xff]
  %v27 = vld [vmem:[%s0 + $0x48] sm:$0xff]
  %v28 = vld [vmem:[%s0 + $0x50] sm:$0xff]
  %v29 = vld [vmem:[%s0 + $0x58] sm:$0xff]
  %v30 = vld [vmem:[%s0 + $0x60] sm:$0xff]
  %v31 = vld [vmem:[%s0 + $0x68] sm:$0xff]
  %v32 = vld [vmem:[%s0 + $0x70] sm:$0xff]
  %v33 = vld [vmem:[%s0 + $0x78] sm:$0xff]
  %v34 = vld [vmem:[%s0 + $0x80] sm:$0xff]
  %v35 = vld [vmem:[%s0 + $0x88] sm:$0xff]
  %v36 = vld [vmem:[%s0 + $0x90] sm:$0xff]
  %v37 = vld [vmem:[%s0 + $0x98] sm:$0xff]
  %v38 = vld [vmem:[%s0 + $0xa0] sm:$0xff]
  %v39 = vadd.f32 %v18, %v19
  %v40 = vadd.f32 %v39, %v20
  %v41 = vadd.f32 %v40, %v21
  %v42 = vadd.f32 %v41, %v22
  %v43 = vadd.f32 %v42, %v23
  %vm44 = vcmask 105472
  %v45 = vsel %vm44, %v24, 0.0
  %v46 = vadd.f32 %v43, %v45
  %47 = vadd.xlane.f32.xlu0 %v46
  %v48 = vpop.xlane.xlu0 %47
  %v49 = vadd.f32 %v25, %v26
  %v50 = vadd.f32 %v49, %v27
  %v51 = vadd.f32 %v50, %v28
  %v52 = vadd.f32 %v51, %v29
  %v53 = vadd.f32 %v52, %v30
  %v54 = vsel %vm44, %v31, 0.0
  %v55 = vadd.f32 %v53, %v54
  %56 = vadd.xlane.f32.xlu0 %v55
  %v57 = vpop.xlane.xlu0 %56
  %v58 = vadd.f32 %v32, %v33
  %v59 = vadd.f32 %v58, %v34
  %v60 = vadd.f32 %v59, %v35
  %v61 = vadd.f32 %v60, %v36
  %v62 = vadd.f32 %v61, %v37
  %v63 = vsel %vm44, %v38, 0.0
  %v64 = vadd.f32 %v62, %v63
  %65 = vadd.xlane.f32.xlu0 %v64
  %v66 = vpop.xlane.xlu0 %65
  %v67 = vrcp.pop 781.0
  %v68 = vmul.f32 %v48, %v67
  %v69 = vmul.f32 %v57, %v67
  %v70 = vmul.f32 %v66, %v67
  %v71 = vsub.f32 %v18, %v68
  %v72 = vsub.f32 %v19, %v68
  %v73 = vsub.f32 %v20, %v68
  %v74 = vsub.f32 %v21, %v68
  %v75 = vsub.f32 %v22, %v68
  %v76 = vsub.f32 %v23, %v68
  %v77 = vsub.f32 %v24, %v68
  %v78 = vsub.f32 %v25, %v69
  %v79 = vsub.f32 %v26, %v69
  %v80 = vsub.f32 %v27, %v69
  %v81 = vsub.f32 %v28, %v69
  %v82 = vsub.f32 %v29, %v69
  %v83 = vsub.f32 %v30, %v69
  %v84 = vsub.f32 %v31, %v69
  %v85 = vsub.f32 %v32, %v70
  %v86 = vsub.f32 %v33, %v70
  %v87 = vsub.f32 %v34, %v70
  %v88 = vsub.f32 %v35, %v70
  %v89 = vsub.f32 %v36, %v70
  %v90 = vsub.f32 %v37, %v70
  %v91 = vsub.f32 %v38, %v70
  %v92 = vmul.f32 %v71, %v71
  %v93 = vmul.f32 %v72, %v72
  %v94 = vmul.f32 %v73, %v73
  %v95 = vmul.f32 %v74, %v74
  %v96 = vmul.f32 %v75, %v75
  %v97 = vmul.f32 %v76, %v76
  %v98 = vmul.f32 %v77, %v77
  %v99 = vmul.f32 %v78, %v78
  %v100 = vmul.f32 %v79, %v79
  %v101 = vmul.f32 %v80, %v80
  %v102 = vmul.f32 %v81, %v81
  %v103 = vmul.f32 %v82, %v82
  %v104 = vmul.f32 %v83, %v83
  %v105 = vmul.f32 %v84, %v84
  %v106 = vmul.f32 %v85, %v85
  %v107 = vmul.f32 %v86, %v86
  %v108 = vmul.f32 %v87, %v87
  %v109 = vmul.f32 %v88, %v88
  %v110 = vmul.f32 %v89, %v89
  %v111 = vmul.f32 %v90, %v90
  %v112 = vmul.f32 %v91, %v91
  %v113 = vadd.f32 %v92, %v93
  %v114 = vadd.f32 %v113, %v94
  %v115 = vadd.f32 %v114, %v95
  %v116 = vadd.f32 %v115, %v96
  %v117 = vadd.f32 %v116, %v97
  %v118 = vsel %vm44, %v98, 0.0
  %v119 = vadd.f32 %v117, %v118
  %120 = vadd.xlane.f32.xlu0 %v119
  %v121 = vpop.xlane.xlu0 %120
  %v122 = vadd.f32 %v99, %v100
  %v123 = vadd.f32 %v122, %v101
  %v124 = vadd.f32 %v123, %v102
  %v125 = vadd.f32 %v124, %v103
  %v126 = vadd.f32 %v125, %v104
  %v127 = vsel %vm44, %v105, 0.0
  %v128 = vadd.f32 %v126, %v127
  %129 = vadd.xlane.f32.xlu0 %v128
  %v130 = vpop.xlane.xlu0 %129
  %v131 = vadd.f32 %v106, %v107
  %v132 = vadd.f32 %v131, %v108
  %v133 = vadd.f32 %v132, %v109
  %v134 = vadd.f32 %v133, %v110
  %v135 = vadd.f32 %v134, %v111
  %v136 = vsel %vm44, %v112, 0.0
  %v137 = vadd.f32 %v135, %v136
  %138 = vadd.xlane.f32.xlu0 %v137
  %v139 = vpop.xlane.xlu0 %138
  %v140 = vmul.f32 %v121, %v67
  %v141 = vmul.f32 %v130, %v67
  %v142 = vmul.f32 %v139, %v67
  %v143 = vadd.f32 %v140, 1e-05
  %v144 = vadd.f32 %v141, 1e-05
  %v145 = vadd.f32 %v142, 1e-05
  %v146 = vrsqrt.pop %v143
  %v147 = vrsqrt.pop %v144
  %v148 = vrsqrt.pop %v145
  %v149 = vmul.f32 %v71, %v146
  %v150 = vmul.f32 %v72, %v146
  %v151 = vmul.f32 %v73, %v146
  %v152 = vmul.f32 %v74, %v146
  %v153 = vmul.f32 %v75, %v146
  %v154 = vmul.f32 %v76, %v146
  %v155 = vmul.f32 %v77, %v146
  %v156 = vmul.f32 %v78, %v147
  %v157 = vmul.f32 %v79, %v147
  %v158 = vmul.f32 %v80, %v147
  %v159 = vmul.f32 %v81, %v147
  %v160 = vmul.f32 %v82, %v147
  %v161 = vmul.f32 %v83, %v147
  %v162 = vmul.f32 %v84, %v147
  %v163 = vmul.f32 %v85, %v148
  %v164 = vmul.f32 %v86, %v148
  %v165 = vmul.f32 %v87, %v148
  %v166 = vmul.f32 %v88, %v148
  %v167 = vmul.f32 %v89, %v148
  %v168 = vmul.f32 %v90, %v148
  %v169 = vmul.f32 %v91, %v148
  %v170 = vld [vmem:[%s1] sm:$0x7f]
  %v172 = vlaneseq
  %v173 = vshrl.u32 %v172, 7
  %v174 = vsub.s32 0, %v173
  %v175 = vrot.slane %v170, %v174
  %v176 = vlaneseq
  %v177 = vshrl.u32 %v176, 7
  %v178 = vsub.s32 1, %v177
  %v179 = vrot.slane %v170, %v178
  %v180 = vlaneseq
  %v181 = vshrl.u32 %v180, 7
  %v182 = vsub.s32 2, %v181
  %v183 = vrot.slane %v170, %v182
  %v184 = vlaneseq
  %v185 = vshrl.u32 %v184, 7
  %v186 = vsub.s32 3, %v185
  %v187 = vrot.slane %v170, %v186
  %v188 = vlaneseq
  %v189 = vshrl.u32 %v188, 7
  %v190 = vsub.s32 4, %v189
  %v191 = vrot.slane %v170, %v190
  %v192 = vlaneseq
  %v193 = vshrl.u32 %v192, 7
  %v194 = vsub.s32 5, %v193
  %v195 = vrot.slane %v170, %v194
  %v196 = vlaneseq
  %v197 = vshrl.u32 %v196, 7
  %v198 = vsub.s32 6, %v197
  %v199 = vrot.slane %v170, %v198
  %v207 = vmul.f32 %v149, %v175
  %v208 = vmul.f32 %v150, %v179
  %v209 = vmul.f32 %v151, %v183
  %v210 = vmul.f32 %v152, %v187
  %v211 = vmul.f32 %v153, %v191
  %v212 = vmul.f32 %v154, %v195
  %v213 = vmul.f32 %v155, %v199
  %v214 = vmul.f32 %v156, %v175
  %v215 = vmul.f32 %v157, %v179
  %v216 = vmul.f32 %v158, %v183
  %v217 = vmul.f32 %v159, %v187
  %v218 = vmul.f32 %v160, %v191
  %v219 = vmul.f32 %v161, %v195
  %v220 = vmul.f32 %v162, %v199
  %v221 = vmul.f32 %v163, %v175
  %v222 = vmul.f32 %v164, %v179
  %v223 = vmul.f32 %v165, %v183
  %v224 = vmul.f32 %v166, %v187
  %v225 = vmul.f32 %v167, %v191
  %v226 = vmul.f32 %v168, %v195
  %v227 = vmul.f32 %v169, %v199
  %v228 = vld [vmem:[%s2] sm:$0x7f]
  %v230 = vlaneseq
  %v231 = vshrl.u32 %v230, 7
  %v232 = vsub.s32 0, %v231
  %v233 = vrot.slane %v228, %v232
  %v234 = vlaneseq
  %v235 = vshrl.u32 %v234, 7
  %v236 = vsub.s32 1, %v235
  %v237 = vrot.slane %v228, %v236
  %v238 = vlaneseq
  %v239 = vshrl.u32 %v238, 7
  %v240 = vsub.s32 2, %v239
  %v241 = vrot.slane %v228, %v240
  %v242 = vlaneseq
  %v243 = vshrl.u32 %v242, 7
  %v244 = vsub.s32 3, %v243
  %v245 = vrot.slane %v228, %v244
  %v246 = vlaneseq
  %v247 = vshrl.u32 %v246, 7
  %v248 = vsub.s32 4, %v247
  %v249 = vrot.slane %v228, %v248
  %v250 = vlaneseq
  %v251 = vshrl.u32 %v250, 7
  %v252 = vsub.s32 5, %v251
  %v253 = vrot.slane %v228, %v252
  %v254 = vlaneseq
  %v255 = vshrl.u32 %v254, 7
  %v256 = vsub.s32 6, %v255
  %v257 = vrot.slane %v228, %v256
  %v265 = vadd.f32 %v207, %v233
  %v266 = vadd.f32 %v208, %v237
  %v267 = vadd.f32 %v209, %v241
  %v268 = vadd.f32 %v210, %v245
  %v269 = vadd.f32 %v211, %v249
  %v270 = vadd.f32 %v212, %v253
  %v271 = vadd.f32 %v213, %v257
  %v272 = vadd.f32 %v214, %v233
  %v273 = vadd.f32 %v215, %v237
  %v274 = vadd.f32 %v216, %v241
  %v275 = vadd.f32 %v217, %v245
  %v276 = vadd.f32 %v218, %v249
  %v277 = vadd.f32 %v219, %v253
  %v278 = vadd.f32 %v220, %v257
  %v279 = vadd.f32 %v221, %v233
  %v280 = vadd.f32 %v222, %v237
  %v281 = vadd.f32 %v223, %v241
  %v282 = vadd.f32 %v224, %v245
  %v283 = vadd.f32 %v225, %v249
  %v284 = vadd.f32 %v226, %v253
  %v285 = vadd.f32 %v227, %v257
  %v286 = vld [vmem:[%s3] sm:$0xff]
  %v287 = vld [vmem:[%s3 + $0x8] sm:$0xff]
  %v288 = vld [vmem:[%s3 + $0x10] sm:$0xff]
  %v289 = vld [vmem:[%s3 + $0x18] sm:$0xff]
  %v290 = vld [vmem:[%s3 + $0x20] sm:$0xff]
  %v291 = vld [vmem:[%s3 + $0x28] sm:$0xff]
  %v292 = vld [vmem:[%s3 + $0x30] sm:$0xff]
  %v293 = vld [vmem:[%s3 + $0x38] sm:$0xff]
  %v294 = vld [vmem:[%s3 + $0x40] sm:$0xff]
  %v295 = vld [vmem:[%s3 + $0x48] sm:$0xff]
  %v296 = vld [vmem:[%s3 + $0x50] sm:$0xff]
  %v297 = vld [vmem:[%s3 + $0x58] sm:$0xff]
  %v298 = vld [vmem:[%s3 + $0x60] sm:$0xff]
  %v299 = vld [vmem:[%s3 + $0x68] sm:$0xff]
  %v300 = vld [vmem:[%s3 + $0x70] sm:$0xff]
  %v301 = vld [vmem:[%s3 + $0x78] sm:$0xff]
  %v302 = vld [vmem:[%s3 + $0x80] sm:$0xff]
  %v303 = vld [vmem:[%s3 + $0x88] sm:$0xff]
  %v304 = vld [vmem:[%s3 + $0x90] sm:$0xff]
  %v305 = vld [vmem:[%s3 + $0x98] sm:$0xff]
  %v306 = vld [vmem:[%s3 + $0xa0] sm:$0xff]
  %v307 = vld [vmem:[%s3 + $0xa8] sm:$0xff]
  %v308 = vld [vmem:[%s3 + $0xb0] sm:$0xff]
  %v309 = vld [vmem:[%s3 + $0xb8] sm:$0xff]
  %v310 = vld [vmem:[%s3 + $0xc0] sm:$0xff]
  %v311 = vld [vmem:[%s3 + $0xc8] sm:$0xff]
  %v312 = vld [vmem:[%s3 + $0xd0] sm:$0xff]
  %v313 = vld [vmem:[%s3 + $0xd8] sm:$0xff]
  %v314 = vld [vmem:[%s3 + $0xe0] sm:$0xff]
  %v315 = vld [vmem:[%s3 + $0xe8] sm:$0xff]
  %v316 = vld [vmem:[%s3 + $0xf0] sm:$0xff]
  %v317 = vld [vmem:[%s3 + $0xf8] sm:$0xff]
  %v318 = vld [vmem:[%s3 + $0x100] sm:$0xff]
  %v319 = vld [vmem:[%s3 + $0x108] sm:$0xff]
  %v320 = vld [vmem:[%s3 + $0x110] sm:$0xff]
  %v321 = vld [vmem:[%s3 + $0x118] sm:$0xff]
  %v322 = vld [vmem:[%s3 + $0x120] sm:$0xff]
  %v323 = vld [vmem:[%s3 + $0x128] sm:$0xff]
  %v324 = vld [vmem:[%s3 + $0x130] sm:$0xff]
  %v325 = vld [vmem:[%s3 + $0x138] sm:$0xff]
  %v326 = vld [vmem:[%s3 + $0x140] sm:$0xff]
  %v327 = vld [vmem:[%s3 + $0x148] sm:$0xff]
  %v328 = vld [vmem:[%s3 + $0x150] sm:$0xff]
  %v329 = vld [vmem:[%s3 + $0x158] sm:$0xff]
  %v330 = vld [vmem:[%s3 + $0x160] sm:$0xff]
  %v331 = vld [vmem:[%s3 + $0x168] sm:$0xff]
  %v332 = vld [vmem:[%s3 + $0x170] sm:$0xff]
  %v333 = vld [vmem:[%s3 + $0x178] sm:$0xff]
  %v334 = vld [vmem:[%s3 + $0x180] sm:$0xff]
  %v335 = vld [vmem:[%s3 + $0x188] sm:$0xff]
  %v336 = vld [vmem:[%s3 + $0x190] sm:$0xff]
  %v337 = vld [vmem:[%s3 + $0x198] sm:$0xff]
  %v338 = vld [vmem:[%s3 + $0x1a0] sm:$0xff]
  %v339 = vld [vmem:[%s3 + $0x1a8] sm:$0xff]
  %v340 = vld [vmem:[%s3 + $0x1b0] sm:$0xff]
  %v341 = vld [vmem:[%s3 + $0x1b8] sm:$0xff]
  %v342 = vld [vmem:[%s3 + $0x1c0] sm:$0xff]
  %v343 = vld [vmem:[%s3 + $0x1c8] sm:$0xff]
  %v344 = vld [vmem:[%s3 + $0x1d0] sm:$0xff]
  %v345 = vld [vmem:[%s3 + $0x1d8] sm:$0xff]
  %v346 = vld [vmem:[%s3 + $0x1e0] sm:$0xff]
  %v347 = vld [vmem:[%s3 + $0x1e8] sm:$0xff]
  %v348 = vld [vmem:[%s3 + $0x1f0] sm:$0xff]
  %v349 = vld [vmem:[%s3 + $0x1f8] sm:$0xff]
  %v350 = vld [vmem:[%s3 + $0x200] sm:$0xff]
  %v351 = vld [vmem:[%s3 + $0x208] sm:$0xff]
  %v352 = vld [vmem:[%s3 + $0x210] sm:$0xff]
  %v353 = vld [vmem:[%s3 + $0x218] sm:$0xff]
  %v354 = vld [vmem:[%s3 + $0x220] sm:$0xff]
  %v355 = vld [vmem:[%s3 + $0x228] sm:$0xff]
  %v356 = vld [vmem:[%s3 + $0x230] sm:$0xff]
  %v357 = vld [vmem:[%s3 + $0x238] sm:$0xff]
  %v358 = vld [vmem:[%s3 + $0x240] sm:$0xff]
  %v359 = vld [vmem:[%s3 + $0x248] sm:$0xff]
  %v360 = vld [vmem:[%s3 + $0x250] sm:$0xff]
  %v361 = vld [vmem:[%s3 + $0x258] sm:$0xff]
  %v362 = vld [vmem:[%s3 + $0x260] sm:$0xff]
  %v363 = vld [vmem:[%s3 + $0x268] sm:$0xff]
  %v364 = vld [vmem:[%s3 + $0x270] sm:$0xff]
  %v365 = vld [vmem:[%s3 + $0x278] sm:$0xff]
  %v366 = vld [vmem:[%s3 + $0x280] sm:$0xff]
  %v367 = vld [vmem:[%s3 + $0x288] sm:$0xff]
  %v368 = vld [vmem:[%s3 + $0x290] sm:$0xff]
  %v369 = vld [vmem:[%s3 + $0x298] sm:$0xff]
  %v370 = vld [vmem:[%s3 + $0x2a0] sm:$0xff]
  %v371 = vld [vmem:[%s3 + $0x2a8] sm:$0xff]
  %v372 = vld [vmem:[%s3 + $0x2b0] sm:$0xff]
  %v373 = vld [vmem:[%s3 + $0x2b8] sm:$0xff]
  %v374 = vld [vmem:[%s3 + $0x2c0] sm:$0xff]
  %v375 = vld [vmem:[%s3 + $0x2c8] sm:$0xff]
  %v376 = vld [vmem:[%s3 + $0x2d0] sm:$0xff]
  %v377 = vld [vmem:[%s3 + $0x2d8] sm:$0xff]
  %v378 = vld [vmem:[%s3 + $0x2e0] sm:$0xff]
  %v379 = vld [vmem:[%s3 + $0x2e8] sm:$0xff]
  %v380 = vld [vmem:[%s3 + $0x2f0] sm:$0xff]
  %v381 = vld [vmem:[%s3 + $0x2f8] sm:$0xff]
  %v382 = vld [vmem:[%s3 + $0x300] sm:$0xff]
  %v383 = vld [vmem:[%s3 + $0x308] sm:$0x1f]
  %v384 = vpack.c.bf16 %v272, %v265
  %v385 = vpack.c.bf16 %v273, %v266
  %v386 = vpack.c.bf16 %v274, %v267
  %v387 = vpack.c.bf16 %v275, %v268
  %v388 = vpack.c.bf16 %v276, %v269
  %v389 = vpack.c.bf16 %v277, %v270
  %v390 = vpack.c.bf16 %v278, %v271
  %v391 = vpack.c.bf16 %v279, %v279
  %v392 = vpack.c.bf16 %v280, %v280
  %v393 = vpack.c.bf16 %v281, %v281
  %v394 = vpack.c.bf16 %v282, %v282
  %v395 = vpack.c.bf16 %v283, %v283
  %v396 = vpack.c.bf16 %v284, %v284
  %v397 = vpack.c.bf16 %v285, %v285
  %v398 = vpack.c.bf16 %v287, %v286
  %v399 = vpack.c.bf16 %v289, %v288
  %v400 = vpack.c.bf16 %v291, %v290
  %v401 = vpack.c.bf16 %v293, %v292
  %v402 = vpack.c.bf16 %v295, %v294
  %v403 = vpack.c.bf16 %v297, %v296
  %v404 = vpack.c.bf16 %v299, %v298
  %v405 = vpack.c.bf16 %v301, %v300
  %v406 = vpack.c.bf16 %v303, %v302
  %v407 = vpack.c.bf16 %v305, %v304
  %v408 = vpack.c.bf16 %v307, %v306
  %v409 = vpack.c.bf16 %v309, %v308
  %v410 = vpack.c.bf16 %v311, %v310
  %v411 = vpack.c.bf16 %v313, %v312
  %v412 = vpack.c.bf16 %v315, %v314
  %v413 = vpack.c.bf16 %v317, %v316
  %v414 = vpack.c.bf16 %v319, %v318
  %v415 = vpack.c.bf16 %v321, %v320
  %v416 = vpack.c.bf16 %v323, %v322
  %v417 = vpack.c.bf16 %v325, %v324
  %v418 = vpack.c.bf16 %v327, %v326
  %v419 = vpack.c.bf16 %v329, %v328
  %v420 = vpack.c.bf16 %v331, %v330
  %v421 = vpack.c.bf16 %v333, %v332
  %v422 = vpack.c.bf16 %v335, %v334
  %v423 = vpack.c.bf16 %v337, %v336
  %v424 = vpack.c.bf16 %v339, %v338
  %v425 = vpack.c.bf16 %v341, %v340
  %v426 = vpack.c.bf16 %v343, %v342
  %v427 = vpack.c.bf16 %v345, %v344
  %v428 = vpack.c.bf16 %v347, %v346
  %v429 = vpack.c.bf16 %v349, %v348
  %v430 = vpack.c.bf16 %v351, %v350
  %v431 = vpack.c.bf16 %v353, %v352
  %v432 = vpack.c.bf16 %v355, %v354
  %v433 = vpack.c.bf16 %v357, %v356
  %v434 = vpack.c.bf16 %v359, %v358
  %v435 = vpack.c.bf16 %v361, %v360
  %v436 = vpack.c.bf16 %v363, %v362
  %v437 = vpack.c.bf16 %v365, %v364
  %v438 = vpack.c.bf16 %v367, %v366
  %v439 = vpack.c.bf16 %v369, %v368
  %v440 = vpack.c.bf16 %v371, %v370
  %v441 = vpack.c.bf16 %v373, %v372
  %v442 = vpack.c.bf16 %v375, %v374
  %v443 = vpack.c.bf16 %v377, %v376
  %v444 = vpack.c.bf16 %v379, %v378
  %v445 = vpack.c.bf16 %v381, %v380
  %v446 = vpack.c.bf16 %v383, %v382
  %v448 = vsel %vm44, %v390, 0
  %v451 = vsel %vm44, %v397, 0
  %vm453 = vcmask 1045504
  %vm454 = vcmask 1046528
  %v455 = vsel %vm453, 4294967295, 65535
  %v456 = vsel %vm454, %v455, 0
  %v458 = vand.u32 %v446, %v456
  %460 = vmatprep.subr.bf16.mxu0 0
  %461 = vmatpush1.bf16.msra.mxu0 %v398
  %462 = vmatprep.subr.bf16.mxu0 0
  %463 = vmatpush1.bf16.msra.mxu0 %v399
  %464 = vmatprep.subr.bf16.mxu0 0
  %465 = vmatpush1.bf16.msra.mxu0 %v400
  %466 = vmatprep.subr.bf16.mxu0 0
  %467 = vmatpush1.bf16.msra.mxu0 %v401
  %468 = vmatprep.subr.bf16.mxu0 0
  %469 = vmatpush1.bf16.msra.mxu0 %v402
  %470 = vmatprep.subr.bf16.mxu0 0
  %471 = vmatpush1.bf16.msra.mxu0 %v403
  %472 = vmatprep.subr.bf16.mxu0 0
  %473 = vmatpush1.bf16.msra.mxu0 %v404
  %474 = vmatprep.subr.bf16.mxu0 0
  %475 = vmatpush1.bf16.msra.mxu0 %v405
  %476 = vmatprep.subr.bf16.mxu0 0
  %477 = vmatpush1.bf16.msra.mxu0 %v406
  %478 = vmatprep.subr.bf16.mxu0 0
  %479 = vmatpush1.bf16.msra.mxu0 %v407
  %480 = vmatprep.subr.bf16.mxu0 0
  %481 = vmatpush1.bf16.msra.mxu0 %v408
  %482 = vmatprep.subr.bf16.mxu0 0
  %483 = vmatpush1.bf16.msra.mxu0 %v409
  %484 = vmatprep.subr.bf16.mxu0 0
  %485 = vmatpush1.bf16.msra.mxu0 %v410
  %486 = vmatprep.subr.bf16.mxu0 0
  %487 = vmatpush1.bf16.msra.mxu0 %v411
  %488 = vmatprep.subr.bf16.mxu0 0
  %489 = vmatpush1.bf16.msra.mxu0 %v412
  %490 = vmatprep.subr.bf16.mxu0 0
  %491 = vmatpush1.bf16.msra.mxu0 %v413
  %492 = vmatprep.mubr.bf16.mxu0 %v385
  %493 = vmatmul.mubr.bf16.gmra.mrb[0].mxu0 %v384
  %v494 = vpop.f32.mrb[0].mxu0
  %v495 = vadd.f32 0.0, %v494
  %v496 = vpop.f32.mrb[0].mxu0
  %v497 = vpop.f32.mrb[0].mxu0
  %v498 = vadd.f32 0.0, %v497
  %v499 = vpop.f32.mrb[0].mxu0
  %500 = vmatprep.mubr.bf16.mxu0 %v392
  %501 = vmatmul.mubr.bf16.gmra.mrb[0].mxu0 %v391
  %v502 = vpop.f32.mrb[0].mxu0
  %v503 = vadd.f32 0.0, %v502
  %v504 = vpop.f32.mrb[0].mxu0
  %v505 = vpop.f32.mrb[0].mxu0
  %v506 = vpop.f32.mrb[0].mxu0
  %507 = vdwg.mxu0
  %508 = vmatprep.subr.bf16.mxu0 0
  %509 = vmatpush1.bf16.msra.mxu0 %v414
  %510 = vmatprep.subr.bf16.mxu0 0
  %511 = vmatpush1.bf16.msra.mxu0 %v415
  %512 = vmatprep.subr.bf16.mxu0 0
  %513 = vmatpush1.bf16.msra.mxu0 %v416
  %514 = vmatprep.subr.bf16.mxu0 0
  %515 = vmatpush1.bf16.msra.mxu0 %v417
  %516 = vmatprep.subr.bf16.mxu0 0
  %517 = vmatpush1.bf16.msra.mxu0 %v418
  %518 = vmatprep.subr.bf16.mxu0 0
  %519 = vmatpush1.bf16.msra.mxu0 %v419
  %520 = vmatprep.subr.bf16.mxu0 0
  %521 = vmatpush1.bf16.msra.mxu0 %v420
  %522 = vmatprep.subr.bf16.mxu0 0
  %523 = vmatpush1.bf16.msra.mxu0 %v421
  %524 = vmatprep.subr.bf16.mxu0 0
  %525 = vmatpush1.bf16.msra.mxu0 %v422
  %526 = vmatprep.subr.bf16.mxu0 0
  %527 = vmatpush1.bf16.msra.mxu0 %v423
  %528 = vmatprep.subr.bf16.mxu0 0
  %529 = vmatpush1.bf16.msra.mxu0 %v424
  %530 = vmatprep.subr.bf16.mxu0 0
  %531 = vmatpush1.bf16.msra.mxu0 %v425
  %532 = vmatprep.subr.bf16.mxu0 0
  %533 = vmatpush1.bf16.msra.mxu0 %v426
  %534 = vmatprep.subr.bf16.mxu0 0
  %535 = vmatpush1.bf16.msra.mxu0 %v427
  %536 = vmatprep.subr.bf16.mxu0 0
  %537 = vmatpush1.bf16.msra.mxu0 %v428
  %538 = vmatprep.subr.bf16.mxu0 0
  %539 = vmatpush1.bf16.msra.mxu0 %v429
  %540 = vmatprep.mubr.bf16.mxu0 %v387
  %541 = vmatmul.mubr.bf16.gmra.mrb[0].mxu0 %v386
  %v542 = vpop.f32.mrb[0].mxu0
  %v543 = vadd.f32 %v495, %v542
  %v544 = vpop.f32.mrb[0].mxu0
  %v545 = vpop.f32.mrb[0].mxu0
  %v546 = vadd.f32 %v498, %v545
  %v547 = vpop.f32.mrb[0].mxu0
  %548 = vmatprep.mubr.bf16.mxu0 %v394
  %549 = vmatmul.mubr.bf16.gmra.mrb[0].mxu0 %v393
  %v550 = vpop.f32.mrb[0].mxu0
  %v551 = vadd.f32 %v503, %v550
  %v552 = vpop.f32.mrb[0].mxu0
  %v553 = vpop.f32.mrb[0].mxu0
  %v554 = vpop.f32.mrb[0].mxu0
  %555 = vdwg.mxu0
  %556 = vmatprep.subr.bf16.mxu0 0
  %557 = vmatpush1.bf16.msra.mxu0 %v430
  %558 = vmatprep.subr.bf16.mxu0 0
  %559 = vmatpush1.bf16.msra.mxu0 %v431
  %560 = vmatprep.subr.bf16.mxu0 0
  %561 = vmatpush1.bf16.msra.mxu0 %v432
  %562 = vmatprep.subr.bf16.mxu0 0
  %563 = vmatpush1.bf16.msra.mxu0 %v433
  %564 = vmatprep.subr.bf16.mxu0 0
  %565 = vmatpush1.bf16.msra.mxu0 %v434
  %566 = vmatprep.subr.bf16.mxu0 0
  %567 = vmatpush1.bf16.msra.mxu0 %v435
  %568 = vmatprep.subr.bf16.mxu0 0
  %569 = vmatpush1.bf16.msra.mxu0 %v436
  %570 = vmatprep.subr.bf16.mxu0 0
  %571 = vmatpush1.bf16.msra.mxu0 %v437
  %572 = vmatprep.subr.bf16.mxu0 0
  %573 = vmatpush1.bf16.msra.mxu0 %v438
  %574 = vmatprep.subr.bf16.mxu0 0
  %575 = vmatpush1.bf16.msra.mxu0 %v439
  %576 = vmatprep.subr.bf16.mxu0 0
  %577 = vmatpush1.bf16.msra.mxu0 %v440
  %578 = vmatprep.subr.bf16.mxu0 0
  %579 = vmatpush1.bf16.msra.mxu0 %v441
  %580 = vmatprep.subr.bf16.mxu0 0
  %581 = vmatpush1.bf16.msra.mxu0 %v442
  %582 = vmatprep.subr.bf16.mxu0 0
  %583 = vmatpush1.bf16.msra.mxu0 %v443
  %584 = vmatprep.subr.bf16.mxu0 0
  %585 = vmatpush1.bf16.msra.mxu0 %v444
  %586 = vmatprep.subr.bf16.mxu0 0
  %587 = vmatpush1.bf16.msra.mxu0 %v445
  %588 = vmatprep.mubr.bf16.mxu0 %v389
  %589 = vmatmul.mubr.bf16.gmra.mrb[0].mxu0 %v388
  %v590 = vpop.f32.mrb[0].mxu0
  %v591 = vadd.f32 %v543, %v590
  %v592 = vpop.f32.mrb[0].mxu0
  %v593 = vpop.f32.mrb[0].mxu0
  %v594 = vadd.f32 %v546, %v593
  %v595 = vpop.f32.mrb[0].mxu0
  %596 = vmatprep.mubr.bf16.mxu0 %v396
  %597 = vmatmul.mubr.bf16.gmra.mrb[0].mxu0 %v395
  %v598 = vpop.f32.mrb[0].mxu0
  %v599 = vadd.f32 %v551, %v598
  %v600 = vpop.f32.mrb[0].mxu0
  %v601 = vpop.f32.mrb[0].mxu0
  %v602 = vpop.f32.mrb[0].mxu0
  %603 = vdwg.mxu0
  %604 = vmatprep.subr.bf16.mxu0 0
  %605 = vmatpush1.bf16.msra.mxu0 %v458
  %606 = vmatprep.subr.bf16.mxu0 0
  %607 = vmatpush1.bf16.msra.mxu0 0
  %608 = vmatprep.subr.bf16.mxu0 0
  %609 = vmatpush1.bf16.msra.mxu0 0
  %610 = vmatprep.subr.bf16.mxu0 0
  %611 = vmatpush1.bf16.msra.mxu0 0
  %612 = vmatprep.subr.bf16.mxu0 0
  %613 = vmatpush1.bf16.msra.mxu0 0
  %614 = vmatprep.subr.bf16.mxu0 0
  %615 = vmatpush1.bf16.msra.mxu0 0
  %616 = vmatprep.subr.bf16.mxu0 0
  %617 = vmatpush1.bf16.msra.mxu0 0
  %618 = vmatprep.subr.bf16.mxu0 0
  %619 = vmatpush1.bf16.msra.mxu0 0
  %620 = vmatprep.subr.bf16.mxu0 0
  %621 = vmatpush1.bf16.msra.mxu0 0
  %622 = vmatprep.subr.bf16.mxu0 0
  %623 = vmatpush1.bf16.msra.mxu0 0
  %624 = vmatprep.subr.bf16.mxu0 0
  %625 = vmatpush1.bf16.msra.mxu0 0
  %626 = vmatprep.subr.bf16.mxu0 0
  %627 = vmatpush1.bf16.msra.mxu0 0
  %628 = vmatprep.subr.bf16.mxu0 0
  %629 = vmatpush1.bf16.msra.mxu0 0
  %630 = vmatprep.subr.bf16.mxu0 0
  %631 = vmatpush1.bf16.msra.mxu0 0
  %632 = vmatprep.subr.bf16.mxu0 0
  %633 = vmatpush1.bf16.msra.mxu0 0
  %634 = vmatprep.subr.bf16.mxu0 0
  %635 = vmatpush1.bf16.msra.mxu0 0
  %636 = vmatprep.mubr.bf16.mxu0 0
  %637 = vmatmul.mubr.bf16.gmra.mrb[0].mxu0 %v448
  %v638 = vpop.f32.mrb[0].mxu0
  %v639 = vadd.f32 %v591, %v638
  %v640 = vpop.f32.mrb[0].mxu0
  %v641 = vpop.f32.mrb[0].mxu0
  %v642 = vadd.f32 %v594, %v641
  %v643 = vpop.f32.mrb[0].mxu0
  %644 = vmatprep.mubr.bf16.mxu0 0
  %645 = vmatmul.mubr.bf16.gmra.mrb[0].mxu0 %v451
  %v646 = vpop.f32.mrb[0].mxu0
  %v647 = vadd.f32 %v599, %v646
  %v648 = vpop.f32.mrb[0].mxu0
  %v649 = vpop.f32.mrb[0].mxu0
  %v650 = vpop.f32.mrb[0].mxu0
  %651 = vdwg.mxu0
  %v652 = vmul.f32 %v639, 0.5
  %v653 = vmul.f32 %v642, 0.5
  %v654 = vmul.f32 %v647, 0.5
  %v655 = vmul.f32 %v639, 0.044715
  %v656 = vmul.f32 %v642, 0.044715
  %v657 = vmul.f32 %v647, 0.044715
  %v658 = vmul.f32 %v655, %v639
  %v659 = vmul.f32 %v656, %v642
  %v660 = vmul.f32 %v657, %v647
  %v661 = vmul.f32 %v658, %v639
  %v662 = vmul.f32 %v659, %v642
  %v663 = vmul.f32 %v660, %v647
  %v664 = vadd.f32 %v639, %v661
  %v665 = vadd.f32 %v642, %v662
  %v666 = vadd.f32 %v647, %v663
  %v667 = vmul.f32 %v664, 0.7978846
  %v668 = vmul.f32 %v665, 0.7978846
  %v669 = vmul.f32 %v666, 0.7978846
  %v670 = vtanh.pop %v667
  %v671 = vtanh.pop %v668
  %v672 = vtanh.pop %v669
  %v673 = vadd.f32 %v670, 1.0
  %v674 = vadd.f32 %v671, 1.0
  %v675 = vadd.f32 %v672, 1.0
  %v676 = vmul.f32 %v652, %v673
  %v677 = vmul.f32 %v653, %v674
  %v678 = vmul.f32 %v654, %v675
  %vm679 = vcmask 261120
  %680 = vst.msk [vmem:[%s4] sm:$0xff] %vm679, %v676
  %681 = vst.msk [vmem:[%s4 + $0x8] sm:$0xff] %vm679, %v677
  %682 = vst.msk [vmem:[%s4 + $0x10] sm:$0xff] %vm679, %v678
  // Predicated region
  $region18: #{legislative_graph_encoder.18} parent=0 // pred_check
    _
  $region19: #{legislative_graph_encoder.18} parent=0 // pred_check_branch
    %684 = sbr.rel (0) target = $region21
  $region20: #{legislative_graph_encoder.18} parent=0 // pred_region
    _
  $region21: #{legislative_graph_encoder.18} parent=0 // pred_fallthru
    _
  // Predicated region
  $region22: #{legislative_graph_encoder.18} parent=0 // pred_check
    _
  $region23: #{legislative_graph_encoder.18} parent=0 // pred_check_branch
    %686 = sbr.rel (0) target = $region25
  $region24: #{legislative_graph_encoder.18} parent=0 // pred_region
    _
  $region25: #{legislative_graph_encoder.18} parent=0 // pred_fallthru
    _

// kernel: legislative_graph_encoder.19
$region0: #{legislative_graph_encoder.19}
  #allocation0 [shape = 'u32[]', space=smem, size = 0x4, offset = 0x4, fixed_abs, tag = 'smem constant byte address 0x4 - core index']
  #allocation1 [shape = 'u32[144,128]{1,0:T(1,128)}', space=vmem, size = 0x12000, scoped, tag = 'internal scratch']
  %s0 = inlined_call_operand.vmem [shape: f32[8,385], index: 0, kind: input, shape index: {}]
  %s1 = inlined_call_operand.vmem [shape: f32[1,385], index: 1, kind: input, shape index: {}]
  %s2 = inlined_call_operand.vmem [shape: f32[1,385], index: 2, kind: input, shape index: {}]
  %s3 = inlined_call_operand.vmem [shape: f32[385,32], index: 3, kind: input, shape index: {}]
  %s4 = inlined_call_operand.vmem [shape: f32[8,32], index: 4, kind: output, shape index: {}]
  %s5 = sld [smem:[#allocation0]]
  $region26: #{legislative_graph_encoder.19} parent=0
    _
  %s7 = ssub.s32 1, %s5
  %s8 = scalar_select 0, %s7, %s5
  // Predicated region
  $region2: #{legislative_graph_encoder.19} parent=0 // pred_check
    _
  $region3: #{legislative_graph_encoder.19} parent=0 // pred_check_branch
    %10 = sbr.rel (0) target = $region5
  $region4: #{legislative_graph_encoder.19} parent=0 // pred_region
    _
  $region5: #{legislative_graph_encoder.19} parent=0 // pred_fallthru
    _
  // Predicated region
  $region6: #{legislative_graph_encoder.19} parent=0 // pred_check
    _
  $region7: #{legislative_graph_encoder.19} parent=0 // pred_check_branch
    %12 = sbr.rel (0) target = $region9
  $region8: #{legislative_graph_encoder.19} parent=0 // pred_region
    _
  $region9: #{legislative_graph_encoder.19} parent=0 // pred_fallthru
    _
  // Predicated region
  $region10: #{legislative_graph_encoder.19} parent=0 // pred_check
    _
  $region11: #{legislative_graph_encoder.19} parent=0 // pred_check_branch
    %14 = sbr.rel (0) target = $region13
  $region12: #{legislative_graph_encoder.19} parent=0 // pred_region
    _
  $region13: #{legislative_graph_encoder.19} parent=0 // pred_fallthru
    _
  // Predicated region
  $region14: #{legislative_graph_encoder.19} parent=0 // pred_check
    _
  $region15: #{legislative_graph_encoder.19} parent=0 // pred_check_branch
    %16 = sbr.rel (0) target = $region17
  $region16: #{legislative_graph_encoder.19} parent=0 // pred_region
    _
  $region17: #{legislative_graph_encoder.19} parent=0 // pred_fallthru
    _
  %v18 = vld [vmem:[%s0] sm:$0xff]
  %v19 = vld [vmem:[%s0 + $0x8] sm:$0xff]
  %v20 = vld [vmem:[%s0 + $0x10] sm:$0xff]
  %v21 = vld [vmem:[%s0 + $0x18] sm:$0xff]
  %v22 = vadd.f32 %v18, %v19
  %v23 = vadd.f32 %v22, %v20
  %vm24 = vcmask 7168
  %v25 = vsel %vm24, %v21, 0.0
  %v26 = vadd.f32 %v23, %v25
  %27 = vadd.xlane.f32.xlu0 %v26
  %v28 = vpop.xlane.xlu0 %27
  %v29 = vrcp.pop 385.0
  %v30 = vmul.f32 %v28, %v29
  %v31 = vsub.f32 %v18, %v30
  %v32 = vsub.f32 %v19, %v30
  %v33 = vsub.f32 %v20, %v30
  %v34 = vsub.f32 %v21, %v30
  %v35 = vmul.f32 %v31, %v31
  %v36 = vmul.f32 %v32, %v32
  %v37 = vmul.f32 %v33, %v33
  %v38 = vmul.f32 %v34, %v34
  %v39 = vadd.f32 %v35, %v36
  %v40 = vadd.f32 %v39, %v37
  %v41 = vsel %vm24, %v38, 0.0
  %v42 = vadd.f32 %v40, %v41
  %43 = vadd.xlane.f32.xlu0 %v42
  %v44 = vpop.xlane.xlu0 %43
  %v45 = vmul.f32 %v44, %v29
  %v46 = vadd.f32 %v45, 1e-05
  %v47 = vrsqrt.pop %v46
  %v48 = vmul.f32 %v31, %v47
  %v49 = vmul.f32 %v32, %v47
  %v50 = vmul.f32 %v33, %v47
  %v51 = vmul.f32 %v34, %v47
  %v52 = vld [vmem:[%s1] sm:$0xf]
  %v54 = vlaneseq
  %v55 = vshrl.u32 %v54, 7
  %v56 = vsub.s32 0, %v55
  %v57 = vrot.slane %v52, %v56
  %v58 = vlaneseq
  %v59 = vshrl.u32 %v58, 7
  %v60 = vsub.s32 1, %v59
  %v61 = vrot.slane %v52, %v60
  %v62 = vlaneseq
  %v63 = vshrl.u32 %v62, 7
  %v64 = vsub.s32 2, %v63
  %v65 = vrot.slane %v52, %v64
  %v66 = vlaneseq
  %v67 = vshrl.u32 %v66, 7
  %v68 = vsub.s32 3, %v67
  %v69 = vrot.slane %v52, %v68
  %v74 = vmul.f32 %v48, %v57
  %v75 = vmul.f32 %v49, %v61
  %v76 = vmul.f32 %v50, %v65
  %v77 = vmul.f32 %v51, %v69
  %v78 = vld [vmem:[%s2] sm:$0xf]
  %v80 = vlaneseq
  %v81 = vshrl.u32 %v80, 7
  %v82 = vsub.s32 0, %v81
  %v83 = vrot.slane %v78, %v82
  %v84 = vlaneseq
  %v85 = vshrl.u32 %v84, 7
  %v86 = vsub.s32 1, %v85
  %v87 = vrot.slane %v78, %v86
  %v88 = vlaneseq
  %v89 = vshrl.u32 %v88, 7
  %v90 = vsub.s32 2, %v89
  %v91 = vrot.slane %v78, %v90
  %v92 = vlaneseq
  %v93 = vshrl.u32 %v92, 7
  %v94 = vsub.s32 3, %v93
  %v95 = vrot.slane %v78, %v94
  %v100 = vadd.f32 %v74, %v83
  %v101 = vadd.f32 %v75, %v87
  %v102 = vadd.f32 %v76, %v91
  %v103 = vadd.f32 %v77, %v95
  %v104 = vld [vmem:[%s3] sm:$0xff]
  %v105 = vld [vmem:[%s3 + $0x8] sm:$0xff]
  %v106 = vld [vmem:[%s3 + $0x10] sm:$0xff]
  %v107 = vld [vmem:[%s3 + $0x18] sm:$0xff]
  %v108 = vld [vmem:[%s3 + $0x20] sm:$0xff]
  %v109 = vld [vmem:[%s3 + $0x28] sm:$0xff]
  %v110 = vld [vmem:[%s3 + $0x30] sm:$0xff]
  %v111 = vld [vmem:[%s3 + $0x38] sm:$0xff]
  %v112 = vld [vmem:[%s3 + $0x40] sm:$0xff]
  %v113 = vld [vmem:[%s3 + $0x48] sm:$0xff]
  %v114 = vld [vmem:[%s3 + $0x50] sm:$0xff]
  %v115 = vld [vmem:[%s3 + $0x58] sm:$0xff]
  %v116 = vld [vmem:[%s3 + $0x60] sm:$0xff]
  %v117 = vld [vmem:[%s3 + $0x68] sm:$0xff]
  %v118 = vld [vmem:[%s3 + $0x70] sm:$0xff]
  %v119 = vld [vmem:[%s3 + $0x78] sm:$0xff]
  %v120 = vld [vmem:[%s3 + $0x80] sm:$0xff]
  %v121 = vld [vmem:[%s3 + $0x88] sm:$0xff]
  %v122 = vld [vmem:[%s3 + $0x90] sm:$0xff]
  %v123 = vld [vmem:[%s3 + $0x98] sm:$0xff]
  %v124 = vld [vmem:[%s3 + $0xa0] sm:$0xff]
  %v125 = vld [vmem:[%s3 + $0xa8] sm:$0xff]
  %v126 = vld [vmem:[%s3 + $0xb0] sm:$0xff]
  %v127 = vld [vmem:[%s3 + $0xb8] sm:$0xff]
  %v128 = vld [vmem:[%s3 + $0xc0] sm:$0xff]
  %v129 = vld [vmem:[%s3 + $0xc8] sm:$0xff]
  %v130 = vld [vmem:[%s3 + $0xd0] sm:$0xff]
  %v131 = vld [vmem:[%s3 + $0xd8] sm:$0xff]
  %v132 = vld [vmem:[%s3 + $0xe0] sm:$0xff]
  %v133 = vld [vmem:[%s3 + $0xe8] sm:$0xff]
  %v134 = vld [vmem:[%s3 + $0xf0] sm:$0xff]
  %v135 = vld [vmem:[%s3 + $0xf8] sm:$0xff]
  %v136 = vld [vmem:[%s3 + $0x100] sm:$0xff]
  %v137 = vld [vmem:[%s3 + $0x108] sm:$0xff]
  %v138 = vld [vmem:[%s3 + $0x110] sm:$0xff]
  %v139 = vld [vmem:[%s3 + $0x118] sm:$0xff]
  %v140 = vld [vmem:[%s3 + $0x120] sm:$0xff]
  %v141 = vld [vmem:[%s3 + $0x128] sm:$0xff]
  %v142 = vld [vmem:[%s3 + $0x130] sm:$0xff]
  %v143 = vld [vmem:[%s3 + $0x138] sm:$0xff]
  %v144 = vld [vmem:[%s3 + $0x140] sm:$0xff]
  %v145 = vld [vmem:[%s3 + $0x148] sm:$0xff]
  %v146 = vld [vmem:[%s3 + $0x150] sm:$0xff]
  %v147 = vld [vmem:[%s3 + $0x158] sm:$0xff]
  %v148 = vld [vmem:[%s3 + $0x160] sm:$0xff]
  %v149 = vld [vmem:[%s3 + $0x168] sm:$0xff]
  %v150 = vld [vmem:[%s3 + $0x170] sm:$0xff]
  %v151 = vld [vmem:[%s3 + $0x178] sm:$0xff]
  %v152 = vld [vmem:[%s3 + $0x180] sm:$0x1]
  %v153 = vpack.c.bf16 %v100, %v100
  %v154 = vpack.c.bf16 %v101, %v101
  %v155 = vpack.c.bf16 %v102, %v102
  %v156 = vpack.c.bf16 %v103, %v103
  %v157 = vpack.c.bf16 %v105, %v104
  %v158 = vpack.c.bf16 %v107, %v106
  %v159 = vpack.c.bf16 %v109, %v108
  %v160 = vpack.c.bf16 %v111, %v110
  %v161 = vpack.c.bf16 %v113, %v112
  %v162 = vpack.c.bf16 %v115, %v114
  %v163 = vpack.c.bf16 %v117, %v116
  %v164 = vpack.c.bf16 %v119, %v118
  %v165 = vpack.c.bf16 %v121, %v120
  %v166 = vpack.c.bf16 %v123, %v122
  %v167 = vpack.c.bf16 %v125, %v124
  %v168 = vpack.c.bf16 %v127, %v126
  %v169 = vpack.c.bf16 %v129, %v128
  %v170 = vpack.c.bf16 %v131, %v130
  %v171 = vpack.c.bf16 %v133, %v132
  %v172 = vpack.c.bf16 %v135, %v134
  %v173 = vpack.c.bf16 %v137, %v136
  %v174 = vpack.c.bf16 %v139, %v138
  %v175 = vpack.c.bf16 %v141, %v140
  %v176 = vpack.c.bf16 %v143, %v142
  %v177 = vpack.c.bf16 %v145, %v144
  %v178 = vpack.c.bf16 %v147, %v146
  %v179 = vpack.c.bf16 %v149, %v148
  %v180 = vpack.c.bf16 %v151, %v150
  %v181 = vpack.c.bf16 %v152, %v152
  %v183 = vsel %vm24, %v156, 0
  %vm185 = vcmask 1040384
  %v186 = vsel 0, 4294967295, 65535
  %v187 = vsel %vm185, %v186, 0
  %v189 = vand.u32 %v181, %v187
  %191 = vmatprep.subr.bf16.mxu0 0
  %192 = vmatpush1.bf16.msra.mxu0 %v157
  %193 = vmatprep.subr.bf16.mxu0 0
  %194 = vmatpush1.bf16.msra.mxu0 %v158
  %195 = vmatprep.subr.bf16.mxu0 0
  %196 = vmatpush1.bf16.msra.mxu0 %v159
  %197 = vmatprep.subr.bf16.mxu0 0
  %198 = vmatpush1.bf16.msra.mxu0 %v160
  %199 = vmatprep.subr.bf16.mxu0 0
  %200 = vmatpush1.bf16.msra.mxu0 %v161
  %201 = vmatprep.subr.bf16.mxu0 0
  %202 = vmatpush1.bf16.msra.mxu0 %v162
  %203 = vmatprep.subr.bf16.mxu0 0
  %204 = vmatpush1.bf16.msra.mxu0 %v163
  %205 = vmatprep.subr.bf16.mxu0 0
  %206 = vmatpush1.bf16.msra.mxu0 %v164
  %207 = vmatprep.subr.bf16.mxu0 0
  %208 = vmatpush1.bf16.msra.mxu0 %v165
  %209 = vmatprep.subr.bf16.mxu0 0
  %210 = vmatpush1.bf16.msra.mxu0 %v166
  %211 = vmatprep.subr.bf16.mxu0 0
  %212 = vmatpush1.bf16.msra.mxu0 %v167
  %213 = vmatprep.subr.bf16.mxu0 0
  %214 = vmatpush1.bf16.msra.mxu0 %v168
  %215 = vmatprep.subr.bf16.mxu0 0
  %216 = vmatpush1.bf16.msra.mxu0 %v169
  %217 = vmatprep.subr.bf16.mxu0 0
  %218 = vmatpush1.bf16.msra.mxu0 %v170
  %219 = vmatprep.subr.bf16.mxu0 0
  %220 = vmatpush1.bf16.msra.mxu0 %v171
  %221 = vmatprep.subr.bf16.mxu0 0
  %222 = vmatpush1.bf16.msra.mxu0 %v172
  %223 = vmatprep.mubr.bf16.mxu0 %v154
  %224 = vmatmul.mubr.bf16.gmra.mrb[0].mxu0 %v153
  %v225 = vpop.f32.mrb[0].mxu0
  %v226 = vadd.f32 0.0, %v225
  %v227 = vpop.f32.mrb[0].mxu0
  %v228 = vpop.f32.mrb[0].mxu0
  %v229 = vpop.f32.mrb[0].mxu0
  %230 = vdwg.mxu0
  %231 = vmatprep.subr.bf16.mxu0 0
  %232 = vmatpush1.bf16.msra.mxu0 %v173
  %233 = vmatprep.subr.bf16.mxu0 0
  %234 = vmatpush1.bf16.msra.mxu0 %v174
  %235 = vmatprep.subr.bf16.mxu0 0
  %236 = vmatpush1.bf16.msra.mxu0 %v175
  %237 = vmatprep.subr.bf16.mxu0 0
  %238 = vmatpush1.bf16.msra.mxu0 %v176
  %239 = vmatprep.subr.bf16.mxu0 0
  %240 = vmatpush1.bf16.msra.mxu0 %v177
  %241 = vmatprep.subr.bf16.mxu0 0
  %242 = vmatpush1.bf16.msra.mxu0 %v178
  %243 = vmatprep.subr.bf16.mxu0 0
  %244 = vmatpush1.bf16.msra.mxu0 %v179
  %245 = vmatprep.subr.bf16.mxu0 0
  %246 = vmatpush1.bf16.msra.mxu0 %v180
  %247 = vmatprep.subr.bf16.mxu0 0
  %248 = vmatpush1.bf16.msra.mxu0 %v189
  %249 = vmatprep.subr.bf16.mxu0 0
  %250 = vmatpush1.bf16.msra.mxu0 0
  %251 = vmatprep.subr.bf16.mxu0 0
  %252 = vmatpush1.bf16.msra.mxu0 0
  %253 = vmatprep.subr.bf16.mxu0 0
  %254 = vmatpush1.bf16.msra.mxu0 0
  %255 = vmatprep.subr.bf16.mxu0 0
  %256 = vmatpush1.bf16.msra.mxu0 0
  %257 = vmatprep.subr.bf16.mxu0 0
  %258 = vmatpush1.bf16.msra.mxu0 0
  %259 = vmatprep.subr.bf16.mxu0 0
  %260 = vmatpush1.bf16.msra.mxu0 0
  %261 = vmatprep.subr.bf16.mxu0 0
  %262 = vmatpush1.bf16.msra.mxu0 0
  %263 = vmatprep.mubr.bf16.mxu0 %v183
  %264 = vmatmul.mubr.bf16.gmra.mrb[0].mxu0 %v155
  %v265 = vpop.f32.mrb[0].mxu0
  %v266 = vadd.f32 %v226, %v265
  %v267 = vpop.f32.mrb[0].mxu0
  %v268 = vpop.f32.mrb[0].mxu0
  %v269 = vpop.f32.mrb[0].mxu0
  %270 = vdwg.mxu0
  %v271 = vmul.f32 %v266, 0.5
  %v272 = vmul.f32 %v266, 0.044715
  %v273 = vmul.f32 %v272, %v266
  %v274 = vmul.f32 %v273, %v266
  %v275 = vadd.f32 %v266, %v274
  %v276 = vmul.f32 %v275, 0.7978846
  %v277 = vtanh.pop %v276
  %v278 = vadd.f32 %v277, 1.0
  %v279 = vmul.f32 %v271, %v278
  %vm280 = vcmask 261120
  %281 = vst.msk [vmem:[%s4] sm:$0xff] %vm280, %v279
  // Predicated region
  $region18: #{legislative_graph_encoder.19} parent=0 // pred_check
    _
  $region19: #{legislative_graph_encoder.19} parent=0 // pred_check_branch
    %283 = sbr.rel (0) target = $region21
  $region20: #{legislative_graph_encoder.19} parent=0 // pred_region
    _
  $region21: #{legislative_graph_encoder.19} parent=0 // pred_fallthru
    _
  // Predicated region
  $region22: #{legislative_graph_encoder.19} parent=0 // pred_check
    _
  $region23: #{legislative_graph_encoder.19} parent=0 // pred_check_branch
    %285 = sbr.rel (0) target = $region25
  $region24: #{legislative_graph_encoder.19} parent=0 // pred_region
    _
  $region25: #{legislative_graph_encoder.19} parent=0 // pred_fallthru
    _

// kernel: legislative_graph_encoder.22
$region0: #{legislative_graph_encoder.22}
  #allocation0 [shape = 'u32[]', space=smem, size = 0x4, offset = 0x4, fixed_abs, tag = 'smem constant byte address 0x4 - core index']
  #allocation1 [shape = 'u32[144,128]{1,0:T(1,128)}', space=vmem, size = 0x12000, scoped, tag = 'internal scratch']
  %s0 = inlined_call_operand.vmem [shape: f32[24,32], index: 0, kind: input, shape index: {}]
  %s1 = inlined_call_operand.vmem [shape: f32[16,32], index: 1, kind: input, shape index: {}]
  %s2 = inlined_call_operand.vmem [shape: f32[32,32], index: 2, kind: input, shape index: {}]
  %s3 = inlined_call_operand.vmem [shape: f32[32,64], index: 3, kind: input, shape index: {}]
  %s4 = inlined_call_operand.vmem [shape: f32[1,32], index: 4, kind: input, shape index: {}]
  %s5 = inlined_call_operand.vmem [shape: s32[48,1], index: 5, kind: input, shape index: {}]
  %s6 = inlined_call_operand.vmem [shape: s32[1,48], index: 6, kind: input, shape index: {}]
  %s7 = inlined_call_operand.vmem [shape: s32[48,1], index: 7, kind: input, shape index: {}]
  %s8 = inlined_call_operand.vmem [shape: f32[48,1], index: 8, kind: input, shape index: {}]
  %s9 = inlined_call_operand.vmem [shape: f32[24,32], index: 9, kind: output, shape index: {}]
  %s10 = sld [smem:[#allocation0]]
  $region46: #{legislative_graph_encoder.22} parent=0
    _
  %s12 = ssub.s32 1, %s10
  %s13 = scalar_select 0, %s12, %s10
  // Predicated region
  $region2: #{legislative_graph_encoder.22} parent=0 // pred_check
    _
  $region3: #{legislative_graph_encoder.22} parent=0 // pred_check_branch
    %15 = sbr.rel (0) target = $region5
  $region4: #{legislative_graph_encoder.22} parent=0 // pred_region
    _
  $region5: #{legislative_graph_encoder.22} parent=0 // pred_fallthru
    _
  // Predicated region
  $region6: #{legislative_graph_encoder.22} parent=0 // pred_check
    _
  $region7: #{legislative_graph_encoder.22} parent=0 // pred_check_branch
    %17 = sbr.rel (0) target = $region9
  $region8: #{legislative_graph_encoder.22} parent=0 // pred_region
    _
  $region9: #{legislative_graph_encoder.22} parent=0 // pred_fallthru
    _
  // Predicated region
  $region10: #{legislative_graph_encoder.22} parent=0 // pred_check
    _
  $region11: #{legislative_graph_encoder.22} parent=0 // pred_check_branch
    %19 = sbr.rel (0) target = $region13
  $region12: #{legislative_graph_encoder.22} parent=0 // pred_region
    _
  $region13: #{legislative_graph_encoder.22} parent=0 // pred_fallthru
    _
  // Predicated region
  $region14: #{legislative_graph_encoder.22} parent=0 // pred_check
    _
  $region15: #{legislative_graph_encoder.22} parent=0 // pred_check_branch
    %21 = sbr.rel (0) target = $region17
  $region16: #{legislative_graph_encoder.22} parent=0 // pred_region
    _
  $region17: #{legislative_graph_encoder.22} parent=0 // pred_fallthru
    _
  // Predicated region
  $region18: #{legislative_graph_encoder.22} parent=0 // pred_check
    _
  $region19: #{legislative_graph_encoder.22} parent=0 // pred_check_branch
    %23 = sbr.rel (0) target = $region21
  $region20: #{legislative_graph_encoder.22} parent=0 // pred_region
    _
  $region21: #{legislative_graph_encoder.22} parent=0 // pred_fallthru
    _
  // Predicated region
  $region22: #{legislative_graph_encoder.22} parent=0 // pred_check
    _
  $region23: #{legislative_graph_encoder.22} parent=0 // pred_check_branch
    %25 = sbr.rel (0) target = $region25
  $region24: #{legislative_graph_encoder.22} parent=0 // pred_region
    _
  $region25: #{legislative_graph_encoder.22} parent=0 // pred_fallthru
    _
  // Predicated region
  $region26: #{legislative_graph_encoder.22} parent=0 // pred_check
    _
  $region27: #{legislative_graph_encoder.22} parent=0 // pred_check_branch
    %27 = sbr.rel (0) target = $region29
  $region28: #{legislative_graph_encoder.22} parent=0 // pred_region
    _
  $region29: #{legislative_graph_encoder.22} parent=0 // pred_fallthru
    _
  // Predicated region
  $region30: #{legislative_graph_encoder.22} parent=0 // pred_check
    _
  $region31: #{legislative_graph_encoder.22} parent=0 // pred_check_branch
    %29 = sbr.rel (0) target = $region33
  $region32: #{legislative_graph_encoder.22} parent=0 // pred_region
    _
  $region33: #{legislative_graph_encoder.22} parent=0 // pred_fallthru
    _
  // Predicated region
  $region34: #{legislative_graph_encoder.22} parent=0 // pred_check
    _
  $region35: #{legislative_graph_encoder.22} parent=0 // pred_check_branch
    %31 = sbr.rel (0) target = $region37
  $region36: #{legislative_graph_encoder.22} parent=0 // pred_region
    _
  $region37: #{legislative_graph_encoder.22} parent=0 // pred_fallthru
    _
  %v33 = vld [vmem:[%s0] sm:$0xff]
  %v34 = vld [vmem:[%s0 + $0x8] sm:$0xff]
  %v35 = vld [vmem:[%s0 + $0x10] sm:$0xff]
  %v36 = vld [vmem:[%s1] sm:$0xff]
  %v37 = vld [vmem:[%s1 + $0x8] sm:$0xff]
  %v38 = vld [vmem:[%s2] sm:$0xff]
  %v39 = vld [vmem:[%s2 + $0x8] sm:$0xff]
  %v40 = vld [vmem:[%s2 + $0x10] sm:$0xff]
  %v41 = vld [vmem:[%s2 + $0x18] sm:$0xff]
  %v42 = vpack.c.bf16 %v34, %v33
  %v43 = vpack.c.bf16 %v35, %v35
  %v44 = vpack.c.bf16 %v39, %v38
  %v45 = vpack.c.bf16 %v41, %v40
  %vm46 = vcmask 261120
  %v48 = vsel %vm46, %v42, 0
  %v51 = vsel %vm46, %v43, 0
  %53 = vmatprep.subr.bf16.mxu0 0
  %54 = vmatpush1.bf16.msra.mxu0 %v44
  %55 = vmatprep.subr.bf16.mxu0 0
  %56 = vmatpush1.bf16.msra.mxu0 %v45
  %57 = vmatprep.subr.bf16.mxu0 0
  %58 = vmatpush1.bf16.msra.mxu0 0
  %59 = vmatprep.subr.bf16.mxu0 0
  %60 = vmatpush1.bf16.msra.mxu0 0
  %61 = vmatprep.subr.bf16.mxu0 0
  %62 = vmatpush1.bf16.msra.mxu0 0
  %63 = vmatprep.subr.bf16.mxu0 0
  %64 = vmatpush1.bf16.msra.mxu0 0
  %65 = vmatprep.subr.bf16.mxu0 0
  %66 = vmatpush1.bf16.msra.mxu0 0
  %67 = vmatprep.subr.bf16.mxu0 0
  %68 = vmatpush1.bf16.msra.mxu0 0
  %69 = vmatprep.subr.bf16.mxu0 0
  %70 = vmatpush1.bf16.msra.mxu0 0
  %71 = vmatprep.subr.bf16.mxu0 0
  %72 = vmatpush1.bf16.msra.mxu0 0
  %73 = vmatprep.subr.bf16.mxu0 0
  %74 = vmatpush1.bf16.msra.mxu0 0
  %75 = vmatprep.subr.bf16.mxu0 0
  %76 = vmatpush1.bf16.msra.mxu0 0
  %77 = vmatprep.subr.bf16.mxu0 0
  %78 = vmatpush1.bf16.msra.mxu0 0
  %79 = vmatprep.subr.bf16.mxu0 0
  %80 = vmatpush1.bf16.msra.mxu0 0
  %81 = vmatprep.subr.bf16.mxu0 0
  %82 = vmatpush1.bf16.msra.mxu0 0
  %83 = vmatprep.subr.bf16.mxu0 0
  %84 = vmatpush1.bf16.msra.mxu0 0
  %85 = vmatprep.mubr.bf16.mxu0 0
  %86 = vmatmul.mubr.bf16.gmra.mrb[0].mxu0 %v48
  %v87 = vpop.f32.mrb[0].mxu0
  %v88 = vadd.f32 0.0, %v87
  %v89 = vpop.f32.mrb[0].mxu0
  %v90 = vpop.f32.mrb[0].mxu0
  %v91 = vadd.f32 0.0, %v90
  %v92 = vpop.f32.mrb[0].mxu0
  %93 = vmatprep.mubr.bf16.mxu0 0
  %94 = vmatmul.mubr.bf16.gmra.mrb[0].mxu0 %v51
  %v95 = vpop.f32.mrb[0].mxu0
  %v96 = vadd.f32 0.0, %v95
  %v97 = vpop.f32.mrb[0].mxu0
  %v98 = vpop.f32.mrb[0].mxu0
  %v99 = vpop.f32.mrb[0].mxu0
  %100 = vdwg.mxu0
  %v101 = vld [vmem:[%s3] sm:$0xff]
  %v102 = vld [vmem:[%s3 + $0x8] sm:$0xff]
  %v103 = vld [vmem:[%s3 + $0x10] sm:$0xff]
  %v104 = vld [vmem:[%s3 + $0x18] sm:$0xff]
  %v105 = vpack.c.bf16 %v37, %v36
  %v106 = vpack.c.bf16 %v102, %v101
  %v107 = vpack.c.bf16 %v104, %v103
  %v109 = vsel %vm46, %v105, 0
  %111 = vmatprep.subr.bf16.mxu0 0
  %112 = vmatpush1.bf16.msra.mxu0 %v106
  %113 = vmatprep.subr.bf16.mxu0 0
  %114 = vmatpush1.bf16.msra.mxu0 %v107
  %115 = vmatprep.subr.bf16.mxu0 0
  %116 = vmatpush1.bf16.msra.mxu0 0
  %117 = vmatprep.subr.bf16.mxu0 0
  %118 = vmatpush1.bf16.msra.mxu0 0
  %119 = vmatprep.subr.bf16.mxu0 0
  %120 = vmatpush1.bf16.msra.mxu0 0
  %121 = vmatprep.subr.bf16.mxu0 0
  %122 = vmatpush1.bf16.msra.mxu0 0
  %123 = vmatprep.subr.bf16.mxu0 0
  %124 = vmatpush1.bf16.msra.mxu0 0
  %125 = vmatprep.subr.bf16.mxu0 0
  %126 = vmatpush1.bf16.msra.mxu0 0
  %127 = vmatprep.subr.bf16.mxu0 0
  %128 = vmatpush1.bf16.msra.mxu0 0
  %129 = vmatprep.subr.bf16.mxu0 0
  %130 = vmatpush1.bf16.msra.mxu0 0
  %131 = vmatprep.subr.bf16.mxu0 0
  %132 = vmatpush1.bf16.msra.mxu0 0
  %133 = vmatprep.subr.bf16.mxu0 0
  %134 = vmatpush1.bf16.msra.mxu0 0
  %135 = vmatprep.subr.bf16.mxu0 0
  %136 = vmatpush1.bf16.msra.mxu0 0
  %137 = vmatprep.subr.bf16.mxu0 0
  %138 = vmatpush1.bf16.msra.mxu0 0
  %139 = vmatprep.subr.bf16.mxu0 0
  %140 = vmatpush1.bf16.msra.mxu0 0
  %141 = vmatprep.subr.bf16.mxu0 0
  %142 = vmatpush1.bf16.msra.mxu0 0
  %143 = vmatprep.mubr.bf16.mxu0 0
  %144 = vmatmul.mubr.bf16.gmra.mrb[0].mxu0 %v109
  %v145 = vpop.f32.mrb[0].mxu0
  %v146 = vadd.f32 0.0, %v145
  %v147 = vpop.f32.mrb[0].mxu0
  %v148 = vpop.f32.mrb[0].mxu0
  %v149 = vadd.f32 0.0, %v148
  %v150 = vpop.f32.mrb[0].mxu0
  %151 = vdwg.mxu0
  %v152 = vlaneseq
  %v153 = vand.u32 %v152, 127
  %v154 = vld [vmem:[%s5] sm:$0xff]
  %v155 = vld [vmem:[%s5 + $0x8] sm:$0xff]
  %v156 = vld [vmem:[%s5 + $0x10] sm:$0xff]
  %v157 = vld [vmem:[%s5 + $0x18] sm:$0xff]
  %v158 = vld [vmem:[%s5 + $0x20] sm:$0xff]
  %v159 = vld [vmem:[%s5 + $0x28] sm:$0xff]
  %160 = vset.pattern.permute.xlu0 0
  %161 = vperm.xlu0 %160, %v154
  %v162 = vpop.permute.xlu0 %161
  %163 = vset.pattern.permute.xlu0 0
  %164 = vperm.xlu0 %163, %v155
  %v165 = vpop.permute.xlu0 %164
  %166 = vset.pattern.permute.xlu0 0
  %167 = vperm.xlu0 %166, %v156
  %v168 = vpop.permute.xlu0 %167
  %169 = vset.pattern.permute.xlu0 0
  %170 = vperm.xlu0 %169, %v157
  %v171 = vpop.permute.xlu0 %170
  %172 = vset.pattern.permute.xlu0 0
  %173 = vperm.xlu0 %172, %v158
  %v174 = vpop.permute.xlu0 %173
  %175 = vset.pattern.permute.xlu0 0
  %176 = vperm.xlu0 %175, %v159
  %v177 = vpop.permute.xlu0 %176
  %vm178 = vcmp.eq.s32.totalorder %v153, %v162
  %vm179 = vcmp.eq.s32.totalorder %v153, %v165
  %vm180 = vcmp.eq.s32.totalorder %v153, %v168
  %vm181 = vcmp.eq.s32.totalorder %v153, %v171
  %vm182 = vcmp.eq.s32.totalorder %v153, %v174
  %vm183 = vcmp.eq.s32.totalorder %v153, %v177
  %v184 = vsel %vm178, 1, 0
  %v185 = vsel %vm179, 1, 0
  %v186 = vsel %vm180, 1, 0
  %v187 = vsel %vm181, 1, 0
  %v188 = vsel %vm182, 1, 0
  %v189 = vsel %vm183, 1, 0
  %v190 = vcvt.s32.f32 %v184
  %v191 = vcvt.s32.f32 %v185
  %v192 = vcvt.s32.f32 %v186
  %v193 = vcvt.s32.f32 %v187
  %v194 = vcvt.s32.f32 %v188
  %v195 = vcvt.s32.f32 %v189
  %v196 = vld [vmem:[%s7] sm:$0xff]
  %v197 = vld [vmem:[%s7 + $0x8] sm:$0xff]
  %v198 = vld [vmem:[%s7 + $0x10] sm:$0xff]
  %v199 = vld [vmem:[%s7 + $0x18] sm:$0xff]
  %v200 = vld [vmem:[%s7 + $0x20] sm:$0xff]
  %v201 = vld [vmem:[%s7 + $0x28] sm:$0xff]
  %202 = vset.pattern.permute.xlu0 0
  %203 = vperm.xlu0 %202, %v196
  %v204 = vpop.permute.xlu0 %203
  %205 = vset.pattern.permute.xlu0 0
  %206 = vperm.xlu0 %205, %v197
  %v207 = vpop.permute.xlu0 %206
  %208 = vset.pattern.permute.xlu0 0
  %209 = vperm.xlu0 %208, %v198
  %v210 = vpop.permute.xlu0 %209
  %211 = vset.pattern.permute.xlu0 0
  %212 = vperm.xlu0 %211, %v199
  %v213 = vpop.permute.xlu0 %212
  %214 = vset.pattern.permute.xlu0 0
  %215 = vperm.xlu0 %214, %v200
  %v216 = vpop.permute.xlu0 %215
  %217 = vset.pattern.permute.xlu0 0
  %218 = vperm.xlu0 %217, %v201
  %v219 = vpop.permute.xlu0 %218
  %vm220 = vcmp.eq.s32.totalorder %v153, %v204
  %vm221 = vcmp.eq.s32.totalorder %v153, %v207
  %vm222 = vcmp.eq.s32.totalorder %v153, %v210
  %vm223 = vcmp.eq.s32.totalorder %v153, %v213
  %vm224 = vcmp.eq.s32.totalorder %v153, %v216
  %vm225 = vcmp.eq.s32.totalorder %v153, %v219
  %v226 = vsel %vm220, 1, 0
  %v227 = vsel %vm221, 1, 0
  %v228 = vsel %vm222, 1, 0
  %v229 = vsel %vm223, 1, 0
  %v230 = vsel %vm224, 1, 0
  %v231 = vsel %vm225, 1, 0
  %v232 = vcvt.s32.f32 %v226
  %v233 = vcvt.s32.f32 %v227
  %v234 = vcvt.s32.f32 %v228
  %v235 = vcvt.s32.f32 %v229
  %v236 = vcvt.s32.f32 %v230
  %v237 = vcvt.s32.f32 %v231
  %v238 = vlaneseq
  %v239 = vshrl.u32 %v238, 7
  %v240 = vadd.s32 %v239, 8
  %v241 = vadd.s32 %v239, 16
  %v242 = vld [vmem:[%s6] sm:$0x1]
  %v243 = vlaneseq
  %v244 = vshrl.u32 %v243, 7
  %v245 = vsub.s32 0, %v244
  %v246 = vrot.slane %v242, %v245
  %vm247 = vcmp.eq.s32.totalorder %v239, %v246
  %vm248 = vcmp.eq.s32.totalorder %v240, %v246
  %vm249 = vcmp.eq.s32.totalorder %v241, %v246
  %v250 = vsel %vm247, 1, 0
  %v251 = vsel %vm248, 1, 0
  %v252 = vsel %vm249, 1, 0
  %v253 = vcvt.s32.f32 %v250
  %v254 = vcvt.s32.f32 %v251
  %v255 = vcvt.s32.f32 %v252
  %vm256 = vcmask 195584
  %v258 = vsel %vm256, %v190, 0
  %v261 = vsel %vm256, %v191, 0
  %v264 = vsel %vm256, %v192, 0
  %v267 = vsel %vm256, %v193, 0
  %v270 = vsel %vm256, %v194, 0
  %v273 = vsel %vm256, %v195, 0
  %275 = vmatprep.subr.mxu0 0.0
  %276 = vmatpush1.msra.mxu0 %v88
  %277 = vmatprep.subr.mxu0 0.0
  %278 = vmatpush1.msra.mxu0 %v91
  %279 = vmatprep.subr.mxu0 0.0
  %280 = vmatpush1.msra.mxu0 %v96
  %281 = vmatprep.subr.mxu0 0.0
  %282 = vmatpush1.msra.mxu0 0.0
  %283 = vmatprep.subr.mxu0 0.0
  %284 = vmatpush1.msra.mxu0 0.0
  %285 = vmatprep.subr.mxu0 0.0
  %286 = vmatpush1.msra.mxu0 0.0
  %287 = vmatprep.subr.mxu0 0.0
  %288 = vmatpush1.msra.mxu0 0.0
  %289 = vmatprep.subr.mxu0 0.0
  %290 = vmatpush1.msra.mxu0 0.0
  %291 = vmatprep.subr.mxu0 0.0
  %292 = vmatpush1.msra.mxu0 0.0
  %293 = vmatprep.subr.mxu0 0.0
  %294 = vmatpush1.msra.mxu0 0.0
  %295 = vmatprep.subr.mxu0 0.0
  %296 = vmatpush1.msra.mxu0 0.0
  %297 = vmatprep.subr.mxu0 0.0
  %298 = vmatpush1.msra.mxu0 0.0
  %299 = vmatprep.subr.mxu0 0.0
  %300 = vmatpush1.msra.mxu0 0.0
  %301 = vmatprep.subr.mxu0 0.0
  %302 = vmatpush1.msra.mxu0 0.0
  %303 = vmatprep.subr.mxu0 0.0
  %304 = vmatpush1.msra.mxu0 0.0
  %305 = vmatprep.subr.mxu0 0.0
  %306 = vmatpush1.msra.mxu0 0.0
  %307 = vmatprep.subr.mxu0 0.0
  %308 = vmatpush1.msra.mxu0 0.0
  %309 = vmatprep.subr.mxu0 0.0
  %310 = vmatpush1.msra.mxu0 0.0
  %311 = vmatprep.subr.mxu0 0.0
  %312 = vmatpush1.msra.mxu0 0.0
  %313 = vmatprep.subr.mxu0 0.0
  %314 = vmatpush1.msra.mxu0 0.0
  %315 = vmatprep.subr.mxu0 0.0
  %316 = vmatpush1.msra.mxu0 0.0
  %317 = vmatprep.subr.mxu0 0.0
  %318 = vmatpush1.msra.mxu0 0.0
  %319 = vmatprep.subr.mxu0 0.0
  %320 = vmatpush1.msra.mxu0 0.0
  %321 = vmatprep.subr.mxu0 0.0
  %322 = vmatpush1.msra.mxu0 0.0
  %323 = vmatprep.subr.mxu0 0.0
  %324 = vmatpush1.msra.mxu0 0.0
  %325 = vmatprep.subr.mxu0 0.0
  %326 = vmatpush1.msra.mxu0 0.0
  %327 = vmatprep.subr.mxu0 0.0
  %328 = vmatpush1.msra.mxu0 0.0
  %329 = vmatprep.subr.mxu0 0.0
  %330 = vmatpush1.msra.mxu0 0.0
  %331 = vmatprep.subr.mxu0 0.0
  %332 = vmatpush1.msra.mxu0 0.0
  %333 = vmatprep.subr.mxu0 0.0
  %334 = vmatpush1.msra.mxu0 0.0
  %335 = vmatprep.subr.mxu0 0.0
  %336 = vmatpush1.msra.mxu0 0.0
  %337 = vmatprep.subr.mxu0 0.0
  %338 = vmatpush1.msra.mxu0 0.0
  %339 = vmatprep.mubr.f32.mxu0 0.0
  %340 = vmatmul.mubr.f32.gmra.mrb[0].mxu0 %v258
  %v341 = vpop.f32.mrb[0].mxu0
  %v342 = vadd.f32 0.0, %v341
  %v343 = vpop.f32.mrb[0].mxu0
  %344 = vmatprep.mubr.f32.mxu0 0.0
  %345 = vmatmul.mubr.f32.gmra.mrb[0].mxu0 %v261
  %v346 = vpop.f32.mrb[0].mxu0
  %v347 = vadd.f32 0.0, %v346
  %v348 = vpop.f32.mrb[0].mxu0
  %349 = vmatprep.mubr.f32.mxu0 0.0
  %350 = vmatmul.mubr.f32.gmra.mrb[0].mxu0 %v264
  %v351 = vpop.f32.mrb[0].mxu0
  %v352 = vadd.f32 0.0, %v351
  %v353 = vpop.f32.mrb[0].mxu0
  %354 = vmatprep.mubr.f32.mxu0 0.0
  %355 = vmatmul.mubr.f32.gmra.mrb[0].mxu0 %v267
  %v356 = vpop.f32.mrb[0].mxu0
  %v357 = vadd.f32 0.0, %v356
  %v358 = vpop.f32.mrb[0].mxu0
  %359 = vmatprep.mubr.f32.mxu0 0.0
  %360 = vmatmul.mubr.f32.gmra.mrb[0].mxu0 %v270
  %v361 = vpop.f32.mrb[0].mxu0
  %v362 = vadd.f32 0.0, %v361
  %v363 = vpop.f32.mrb[0].mxu0
  %364 = vmatprep.mubr.f32.mxu0 0.0
  %365 = vmatmul.mubr.f32.gmra.mrb[0].mxu0 %v273
  %v366 = vpop.f32.mrb[0].mxu0
  %v367 = vadd.f32 0.0, %v366
  %v368 = vpop.f32.mrb[0].mxu0
  %369 = vdwg.mxu0
  %vm370 = vcmask 130048
  %v372 = vsel %vm370, %v232, 0
  %v375 = vsel %vm370, %v233, 0
  %v378 = vsel %vm370, %v234, 0
  %v381 = vsel %vm370, %v235, 0
  %v384 = vsel %vm370, %v236, 0
  %v387 = vsel %vm370, %v237, 0
  %389 = vmatprep.subr.mxu0 0.0
  %390 = vmatpush1.msra.mxu0 %v146
  %391 = vmatprep.subr.mxu0 0.0
  %392 = vmatpush1.msra.mxu0 %v149
  %393 = vmatprep.subr.mxu0 0.0
  %394 = vmatpush1.msra.mxu0 0.0
  %395 = vmatprep.subr.mxu0 0.0
  %396 = vmatpush1.msra.mxu0 0.0
  %397 = vmatprep.subr.mxu0 0.0
  %398 = vmatpush1.msra.mxu0 0.0
  %399 = vmatprep.subr.mxu0 0.0
  %400 = vmatpush1.msra.mxu0 0.0
  %401 = vmatprep.subr.mxu0 0.0
  %402 = vmatpush1.msra.mxu0 0.0
  %403 = vmatprep.subr.mxu0 0.0
  %404 = vmatpush1.msra.mxu0 0.0
  %405 = vmatprep.subr.mxu0 0.0
  %406 = vmatpush1.msra.mxu0 0.0
  %407 = vmatprep.subr.mxu0 0.0
  %408 = vmatpush1.msra.mxu0 0.0
  %409 = vmatprep.subr.mxu0 0.0
  %410 = vmatpush1.msra.mxu0 0.0
  %411 = vmatprep.subr.mxu0 0.0
  %412 = vmatpush1.msra.mxu0 0.0
  %413 = vmatprep.subr.mxu0 0.0
  %414 = vmatpush1.msra.mxu0 0.0
  %415 = vmatprep.subr.mxu0 0.0
  %416 = vmatpush1.msra.mxu0 0.0
  %417 = vmatprep.subr.mxu0 0.0
  %418 = vmatpush1.msra.mxu0 0.0
  %419 = vmatprep.subr.mxu0 0.0
  %420 = vmatpush1.msra.mxu0 0.0
  %421 = vmatprep.subr.mxu0 0.0
  %422 = vmatpush1.msra.mxu0 0.0
  %423 = vmatprep.subr.mxu0 0.0
  %424 = vmatpush1.msra.mxu0 0.0
  %425 = vmatprep.subr.mxu0 0.0
  %426 = vmatpush1.msra.mxu0 0.0
  %427 = vmatprep.subr.mxu0 0.0
  %428 = vmatpush1.msra.mxu0 0.0
  %429 = vmatprep.subr.mxu0 0.0
  %430 = vmatpush1.msra.mxu0 0.0
  %431 = vmatprep.subr.mxu0 0.0
  %432 = vmatpush1.msra.mxu0 0.0
  %433 = vmatprep.subr.mxu0 0.0
  %434 = vmatpush1.msra.mxu0 0.0
  %435 = vmatprep.subr.mxu0 0.0
  %436 = vmatpush1.msra.mxu0 0.0
  %437 = vmatprep.subr.mxu0 0.0
  %438 = vmatpush1.msra.mxu0 0.0
  %439 = vmatprep.subr.mxu0 0.0
  %440 = vmatpush1.msra.mxu0 0.0
  %441 = vmatprep.subr.mxu0 0.0
  %442 = vmatpush1.msra.mxu0 0.0
  %443 = vmatprep.subr.mxu0 0.0
  %444 = vmatpush1.msra.mxu0 0.0
  %445 = vmatprep.subr.mxu0 0.0
  %446 = vmatpush1.msra.mxu0 0.0
  %447 = vmatprep.subr.mxu0 0.0
  %448 = vmatpush1.msra.mxu0 0.0
  %449 = vmatprep.subr.mxu0 0.0
  %450 = vmatpush1.msra.mxu0 0.0
  %451 = vmatprep.subr.mxu0 0.0
  %452 = vmatpush1.msra.mxu0 0.0
  %453 = vmatprep.mubr.f32.mxu0 0.0
  %454 = vmatmul.mubr.f32.gmra.mrb[0].mxu0 %v372
  %v455 = vpop.f32.mrb[0].mxu0
  %v456 = vadd.f32 0.0, %v455
  %v457 = vpop.f32.mrb[0].mxu0
  %458 = vmatprep.mubr.f32.mxu0 0.0
  %459 = vmatmul.mubr.f32.gmra.mrb[0].mxu0 %v375
  %v460 = vpop.f32.mrb[0].mxu0
  %v461 = vadd.f32 0.0, %v460
  %v462 = vpop.f32.mrb[0].mxu0
  %463 = vmatprep.mubr.f32.mxu0 0.0
  %464 = vmatmul.mubr.f32.gmra.mrb[0].mxu0 %v378
  %v465 = vpop.f32.mrb[0].mxu0
  %v466 = vadd.f32 0.0, %v465
  %v467 = vpop.f32.mrb[0].mxu0
  %468 = vmatprep.mubr.f32.mxu0 0.0
  %469 = vmatmul.mubr.f32.gmra.mrb[0].mxu0 %v381
  %v470 = vpop.f32.mrb[0].mxu0
  %v471 = vadd.f32 0.0, %v470
  %v472 = vpop.f32.mrb[0].mxu0
  %473 = vmatprep.mubr.f32.mxu0 0.0
  %474 = vmatmul.mubr.f32.gmra.mrb[0].mxu0 %v384
  %v475 = vpop.f32.mrb[0].mxu0
  %v476 = vadd.f32 0.0, %v475
  %v477 = vpop.f32.mrb[0].mxu0
  %478 = vmatprep.mubr.f32.mxu0 0.0
  %479 = vmatmul.mubr.f32.gmra.mrb[0].mxu0 %v387
  %v480 = vpop.f32.mrb[0].mxu0
  %v481 = vadd.f32 0.0, %v480
  %v482 = vpop.f32.mrb[0].mxu0
  %483 = vdwg.mxu0
  %v484 = vadd.s32 %v239, 24
  %v485 = vmul.u32 %v153, 8
  %vm486 = vcmp.ge.s32.totalorder %v239, %v485
  %vm487 = vcmp.ge.s32.totalorder %v240, %v485
  %vm488 = vcmp.ge.s32.totalorder %v241, %v485
  %vm489 = vcmp.ge.s32.totalorder %v484, %v485
  %v490 = vadd.s32 %v153, 1
  %v491 = vmul.u32 %v490, 8
  %vm492 = vcmp.lt.s32.totalorder %v239, %v491
  %vm493 = vcmp.lt.s32.totalorder %v240, %v491
  %vm494 = vcmp.lt.s32.totalorder %v241, %v491
  %vm495 = vcmp.lt.s32.totalorder %v484, %v491
  %vm496 = vmand %vm486, %vm492
  %vm497 = vmand %vm487, %vm493
  %vm498 = vmand %vm488, %vm494
  %vm499 = vmand %vm489, %vm495
  %v500 = vsel %vm496, 1, 0
  %v501 = vsel %vm497, 1, 0
  %v502 = vsel %vm498, 1, 0
  %v503 = vsel %vm499, 1, 0
  %v504 = vcvt.s32.f32 %v500
  %v505 = vcvt.s32.f32 %v501
  %v506 = vcvt.s32.f32 %v502
  %v507 = vcvt.s32.f32 %v503
  %v508 = vmul.u32 %v239, 8
  %vm509 = vcmp.ge.s32.totalorder %v153, %v508
  %v510 = vadd.s32 %v239, 1
  %v511 = vmul.u32 %v510, 8
  %vm512 = vcmp.lt.s32.totalorder %v153, %v511
  %vm513 = vmand %vm509, %vm512
  %v514 = vsel %vm513, 1, 0
  %v515 = vcvt.s32.f32 %v514
  %v516 = vld [vmem:[%s4] sm:$0x1]
  %v518 = vlaneseq
  %v519 = vshrl.u32 %v518, 7
  %v520 = vsub.s32 0, %v519
  %v521 = vrot.slane %v516, %v520
  %v523 = vadd.f32 %v456, %v521
  %v524 = vadd.f32 %v461, %v521
  %v525 = vadd.f32 %v466, %v521
  %v526 = vadd.f32 %v471, %v521
  %v527 = vadd.f32 %v476, %v521
  %v528 = vadd.f32 %v481, %v521
  %v529 = vmul.f32 %v342, %v523
  %v530 = vmul.f32 %v347, %v524
  %v531 = vmul.f32 %v352, %v525
  %v532 = vmul.f32 %v357, %v526
  %v533 = vmul.f32 %v362, %v527
  %v534 = vmul.f32 %v367, %v528
  %v536 = vsel %vm46, %v529, 0
  %v539 = vsel %vm46, %v530, 0
  %v542 = vsel %vm46, %v531, 0
  %v545 = vsel %vm46, %v532, 0
  %v548 = vsel %vm46, %v533, 0
  %v551 = vsel %vm46, %v534, 0
  %553 = vmatprep.subr.mxu0 0.0
  %554 = vmatpush1.msra.mxu0 %v504
  %555 = vmatprep.subr.mxu0 0.0
  %556 = vmatpush1.msra.mxu0 %v505
  %557 = vmatprep.subr.mxu0 0.0
  %558 = vmatpush1.msra.mxu0 %v506
  %559 = vmatprep.subr.mxu0 0.0
  %560 = vmatpush1.msra.mxu0 %v507
  %561 = vmatprep.subr.mxu0 0.0
  %562 = vmatpush1.msra.mxu0 0.0
  %563 = vmatprep.subr.mxu0 0.0
  %564 = vmatpush1.msra.mxu0 0.0
  %565 = vmatprep.subr.mxu0 0.0
  %566 = vmatpush1.msra.mxu0 0.0
  %567 = vmatprep.subr.mxu0 0.0
  %568 = vmatpush1.msra.mxu0 0.0
  %569 = vmatprep.subr.mxu0 0.0
  %570 = vmatpush1.msra.mxu0 0.0
  %571 = vmatprep.subr.mxu0 0.0
  %572 = vmatpush1.msra.mxu0 0.0
  %573 = vmatprep.subr.mxu0 0.0
  %574 = vmatpush1.msra.mxu0 0.0
  %575 = vmatprep.subr.mxu0 0.0
  %576 = vmatpush1.msra.mxu0 0.0
  %577 = vmatprep.subr.mxu0 0.0
  %578 = vmatpush1.msra.mxu0 0.0
  %579 = vmatprep.subr.mxu0 0.0
  %580 = vmatpush1.msra.mxu0 0.0
  %581 = vmatprep.subr.mxu0 0.0
  %582 = vmatpush1.msra.mxu0 0.0
  %583 = vmatprep.subr.mxu0 0.0
  %584 = vmatpush1.msra.mxu0 0.0
  %585 = vmatprep.subr.mxu0 0.0
  %586 = vmatpush1.msra.mxu0 0.0
  %587 = vmatprep.subr.mxu0 0.0
  %588 = vmatpush1.msra.mxu0 0.0
  %589 = vmatprep.subr.mxu0 0.0
  %590 = vmatpush1.msra.mxu0 0.0
  %591 = vmatprep.subr.mxu0 0.0
  %592 = vmatpush1.msra.mxu0 0.0
  %593 = vmatprep.subr.mxu0 0.0
  %594 = vmatpush1.msra.mxu0 0.0
  %595 = vmatprep.subr.mxu0 0.0
  %596 = vmatpush1.msra.mxu0 0.0
  %597 = vmatprep.subr.mxu0 0.0
  %598 = vmatpush1.msra.mxu0 0.0
  %599 = vmatprep.subr.mxu0 0.0
  %600 = vmatpush1.msra.mxu0 0.0
  %601 = vmatprep.subr.mxu0 0.0
  %602 = vmatpush1.msra.mxu0 0.0
  %603 = vmatprep.subr.mxu0 0.0
  %604 = vmatpush1.msra.mxu0 0.0
  %605 = vmatprep.subr.mxu0 0.0
  %606 = vmatpush1.msra.mxu0 0.0
  %607 = vmatprep.subr.mxu0 0.0
  %608 = vmatpush1.msra.mxu0 0.0
  %609 = vmatprep.subr.mxu0 0.0
  %610 = vmatpush1.msra.mxu0 0.0
  %611 = vmatprep.subr.mxu0 0.0
  %612 = vmatpush1.msra.mxu0 0.0
  %613 = vmatprep.subr.mxu0 0.0
  %614 = vmatpush1.msra.mxu0 0.0
  %615 = vmatprep.subr.mxu0 0.0
  %616 = vmatpush1.msra.mxu0 0.0
  %617 = vmatprep.mubr.f32.mxu0 0.0
  %618 = vmatmul.mubr.f32.gmra.mrb[0].mxu0 %v536
  %v619 = vpop.f32.mrb[0].mxu0
  %v620 = vadd.f32 0.0, %v619
  %v621 = vpop.f32.mrb[0].mxu0
  %622 = vmatprep.mubr.f32.mxu0 0.0
  %623 = vmatmul.mubr.f32.gmra.mrb[0].mxu0 %v539
  %v624 = vpop.f32.mrb[0].mxu0
  %v625 = vadd.f32 0.0, %v624
  %v626 = vpop.f32.mrb[0].mxu0
  %627 = vmatprep.mubr.f32.mxu0 0.0
  %628 = vmatmul.mubr.f32.gmra.mrb[0].mxu0 %v542
  %v629 = vpop.f32.mrb[0].mxu0
  %v630 = vadd.f32 0.0, %v629
  %v631 = vpop.f32.mrb[0].mxu0
  %632 = vmatprep.mubr.f32.mxu0 0.0
  %633 = vmatmul.mubr.f32.gmra.mrb[0].mxu0 %v545
  %v634 = vpop.f32.mrb[0].mxu0
  %v635 = vadd.f32 0.0, %v634
  %v636 = vpop.f32.mrb[0].mxu0
  %637 = vmatprep.mubr.f32.mxu0 0.0
  %638 = vmatmul.mubr.f32.gmra.mrb[0].mxu0 %v548
  %v639 = vpop.f32.mrb[0].mxu0
  %v640 = vadd.f32 0.0, %v639
  %v641 = vpop.f32.mrb[0].mxu0
  %642 = vmatprep.mubr.f32.mxu0 0.0
  %643 = vmatmul.mubr.f32.gmra.mrb[0].mxu0 %v551
  %v644 = vpop.f32.mrb[0].mxu0
  %v645 = vadd.f32 0.0, %v644
  %v646 = vpop.f32.mrb[0].mxu0
  %647 = vdwg.mxu0
  %v648 = vmul.f32 %v620, 0.35355338
  %v649 = vmul.f32 %v625, 0.35355338
  %v650 = vmul.f32 %v630, 0.35355338
  %v651 = vmul.f32 %v635, 0.35355338
  %v652 = vmul.f32 %v640, 0.35355338
  %v653 = vmul.f32 %v645, 0.35355338
  %vm654 = vcmp.ge.f32.partialorder %v648, 0.0
  %vm655 = vcmp.ge.f32.partialorder %v649, 0.0
  %vm656 = vcmp.ge.f32.partialorder %v650, 0.0
  %vm657 = vcmp.ge.f32.partialorder %v651, 0.0
  %vm658 = vcmp.ge.f32.partialorder %v652, 0.0
  %vm659 = vcmp.ge.f32.partialorder %v653, 0.0
  %v660 = vmul.f32 %v648, 0.01
  %v661 = vmul.f32 %v649, 0.01
  %v662 = vmul.f32 %v650, 0.01
  %v663 = vmul.f32 %v651, 0.01
  %v664 = vmul.f32 %v652, 0.01
  %v665 = vmul.f32 %v653, 0.01
  %v666 = vsel %vm654, %v648, %v660
  %v667 = vsel %vm655, %v649, %v661
  %v668 = vsel %vm656, %v650, %v662
  %v669 = vsel %vm657, %v651, %v663
  %v670 = vsel %vm658, %v652, %v664
  %v671 = vsel %vm659, %v653, %v665
  %vm672 = vcmp.gt.f32.partialorder %v190, 0.5
  %vm673 = vcmp.gt.f32.partialorder %v191, 0.5
  %vm674 = vcmp.gt.f32.partialorder %v192, 0.5
  %vm675 = vcmp.gt.f32.partialorder %v193, 0.5
  %vm676 = vcmp.gt.f32.partialorder %v194, 0.5
  %vm677 = vcmp.gt.f32.partialorder %v195, 0.5
  %679 = vset.pattern.permute.xlu0 0
  %680 = vperm.xlu0 %679, %v666
  %v681 = vpop.permute.xlu0 %680
  %684 = vset.pattern.permute.xlu0 0
  %685 = vperm.xlu0 %684, %v667
  %v686 = vpop.permute.xlu0 %685
  %689 = vset.pattern.permute.xlu0 0
  %690 = vperm.xlu0 %689, %v668
  %v691 = vpop.permute.xlu0 %690
  %694 = vset.pattern.permute.xlu0 0
  %695 = vperm.xlu0 %694, %v669
  %v696 = vpop.permute.xlu0 %695
  %699 = vset.pattern.permute.xlu0 0
  %700 = vperm.xlu0 %699, %v670
  %v701 = vpop.permute.xlu0 %700
  %704 = vset.pattern.permute.xlu0 0
  %705 = vperm.xlu0 %704, %v671
  %v706 = vpop.permute.xlu0 %705
  %v708 = vsel %vm672, %v681, -1e+30
  %v709 = vsel %vm673, %v686, -1e+30
  %v710 = vsel %vm674, %v691, -1e+30
  %v711 = vsel %vm675, %v696, -1e+30
  %v712 = vsel %vm676, %v701, -1e+30
  %v713 = vsel %vm677, %v706, -1e+30
  %v714 = vsel %vm256, %v708, -inf
  %v715 = vsel %vm256, %v709, -inf
  %v716 = vsel %vm256, %v710, -inf
  %v717 = vsel %vm256, %v711, -inf
  %v718 = vsel %vm256, %v712, -inf
  %v719 = vmax.f32 %v714, %v718
  %v720 = vsel %vm256, %v713, -inf
  %v721 = vmax.f32 %v715, %v720
  %v722 = vmax.f32 %v719, %v721
  %v723 = vmax.f32 %v716, %v717
  %v724 = vmax.f32 %v722, %v723
  %v725 = vrot.slane %v724, 4
  %v726 = vmax.f32 %v724, %v725
  %v727 = vrot.slane %v726, 2
  %v728 = vmax.f32 %v726, %v727
  %v729 = vrot.slane %v728, 1
  %v730 = vmax.f32 %v728, %v729
  %v731 = vmul.f32 %v190, %v730
  %v732 = vmul.f32 %v191, %v730
  %v733 = vmul.f32 %v192, %v730
  %v734 = vmul.f32 %v193, %v730
  %v735 = vmul.f32 %v194, %v730
  %v736 = vmul.f32 %v195, %v730
  %v737 = vsel %vm256, %v731, 0.0
  %738 = vadd.xlane.f32.xlu0 %v737
  %v739 = vpop.xlane.xlu0 %738
  %v740 = vsel %vm256, %v732, 0.0
  %741 = vadd.xlane.f32.xlu0 %v740
  %v742 = vpop.xlane.xlu0 %741
  %v743 = vsel %vm256, %v733, 0.0
  %744 = vadd.xlane.f32.xlu0 %v743
  %v745 = vpop.xlane.xlu0 %744
  %v746 = vsel %vm256, %v734, 0.0
  %747 = vadd.xlane.f32.xlu0 %v746
  %v748 = vpop.xlane.xlu0 %747
  %v749 = vsel %vm256, %v735, 0.0
  %750 = vadd.xlane.f32.xlu0 %v749
  %v751 = vpop.xlane.xlu0 %750
  %v752 = vsel %vm256, %v736, 0.0
  %753 = vadd.xlane.f32.xlu0 %v752
  %v754 = vpop.xlane.xlu0 %753
  %v755 = vsub.f32 %v666, %v739
  %v756 = vsub.f32 %v667, %v742
  %v757 = vsub.f32 %v668, %v745
  %v758 = vsub.f32 %v669, %v748
  %v759 = vsub.f32 %v670, %v751
  %v760 = vsub.f32 %v671, %v754
  %v761 = vmul.f32 %v755, 1.442695
  %v762 = vpow.pop %v761
  %v763 = vmul.f32 %v756, 1.442695
  %v764 = vpow.pop %v763
  %v765 = vmul.f32 %v757, 1.442695
  %v766 = vpow.pop %v765
  %v767 = vmul.f32 %v758, 1.442695
  %v768 = vpow.pop %v767
  %v769 = vmul.f32 %v759, 1.442695
  %v770 = vpow.pop %v769
  %v771 = vmul.f32 %v760, 1.442695
  %v772 = vpow.pop %v771
  %vm773 = vcmp.eq.s32.totalorder %v153, 0
  %v774 = vsel %vm773, 1, 0
  %v775 = vcvt.s32.f32 %v774
  %777 = vset.pattern.permute.xlu0 0
  %778 = vperm.xlu0 %777, %v762
  %v779 = vpop.permute.xlu0 %778
  %782 = vset.pattern.permute.xlu0 0
  %783 = vperm.xlu0 %782, %v764
  %v784 = vpop.permute.xlu0 %783
  %787 = vset.pattern.permute.xlu0 0
  %788 = vperm.xlu0 %787, %v766
  %v789 = vpop.permute.xlu0 %788
  %792 = vset.pattern.permute.xlu0 0
  %793 = vperm.xlu0 %792, %v768
  %v794 = vpop.permute.xlu0 %793
  %797 = vset.pattern.permute.xlu0 0
  %798 = vperm.xlu0 %797, %v770
  %v799 = vpop.permute.xlu0 %798
  %802 = vset.pattern.permute.xlu0 0
  %803 = vperm.xlu0 %802, %v772
  %v804 = vpop.permute.xlu0 %803
  %v806 = vmul.f32 %v779, %v775
  %v807 = vmul.f32 %v784, %v775
  %v808 = vmul.f32 %v789, %v775
  %v809 = vmul.f32 %v794, %v775
  %v810 = vmul.f32 %v799, %v775
  %v811 = vmul.f32 %v804, %v775
  %v812 = vadd.f32 %v806, 0.0
  %v813 = vadd.f32 %v807, 0.0
  %v814 = vadd.f32 %v808, 0.0
  %v815 = vadd.f32 %v809, 0.0
  %v816 = vadd.f32 %v810, 0.0
  %v817 = vadd.f32 %v811, 0.0
  %818 = vset.pattern.permute.xlu0 1
  %819 = vperm.xlu0 %818, %v666
  %v820 = vpop.permute.xlu0 %819
  %822 = vset.pattern.permute.xlu0 1
  %823 = vperm.xlu0 %822, %v667
  %v824 = vpop.permute.xlu0 %823
  %826 = vset.pattern.permute.xlu0 1
  %827 = vperm.xlu0 %826, %v668
  %v828 = vpop.permute.xlu0 %827
  %830 = vset.pattern.permute.xlu0 1
  %831 = vperm.xlu0 %830, %v669
  %v832 = vpop.permute.xlu0 %831
  %834 = vset.pattern.permute.xlu0 1
  %835 = vperm.xlu0 %834, %v670
  %v836 = vpop.permute.xlu0 %835
  %838 = vset.pattern.permute.xlu0 1
  %839 = vperm.xlu0 %838, %v671
  %v840 = vpop.permute.xlu0 %839
  %v842 = vsel %vm672, %v820, -1e+30
  %v843 = vsel %vm673, %v824, -1e+30
  %v844 = vsel %vm674, %v828, -1e+30
  %v845 = vsel %vm675, %v832, -1e+30
  %v846 = vsel %vm676, %v836, -1e+30
  %v847 = vsel %vm677, %v840, -1e+30
  %v848 = vsel %vm256, %v842, -inf
  %v849 = vsel %vm256, %v843, -inf
  %v850 = vsel %vm256, %v844, -inf
  %v851 = vsel %vm256, %v845, -inf
  %v852 = vsel %vm256, %v846, -inf
  %v853 = vmax.f32 %v848, %v852
  %v854 = vsel %vm256, %v847, -inf
  %v855 = vmax.f32 %v849, %v854
  %v856 = vmax.f32 %v853, %v855
  %v857 = vmax.f32 %v850, %v851
  %v858 = vmax.f32 %v856, %v857
  %v859 = vrot.slane %v858, 4
  %v860 = vmax.f32 %v858, %v859
  %v861 = vrot.slane %v860, 2
  %v862 = vmax.f32 %v860, %v861
  %v863 = vrot.slane %v862, 1
  %v864 = vmax.f32 %v862, %v863
  %v865 = vmul.f32 %v190, %v864
  %v866 = vmul.f32 %v191, %v864
  %v867 = vmul.f32 %v192, %v864
  %v868 = vmul.f32 %v193, %v864
  %v869 = vmul.f32 %v194, %v864
  %v870 = vmul.f32 %v195, %v864
  %v871 = vsel %vm256, %v865, 0.0
  %872 = vadd.xlane.f32.xlu0 %v871
  %v873 = vpop.xlane.xlu0 %872
  %v874 = vsel %vm256, %v866, 0.0
  %875 = vadd.xlane.f32.xlu0 %v874
  %v876 = vpop.xlane.xlu0 %875
  %v877 = vsel %vm256, %v867, 0.0
  %878 = vadd.xlane.f32.xlu0 %v877
  %v879 = vpop.xlane.xlu0 %878
  %v880 = vsel %vm256, %v868, 0.0
  %881 = vadd.xlane.f32.xlu0 %v880
  %v882 = vpop.xlane.xlu0 %881
  %v883 = vsel %vm256, %v869, 0.0
  %884 = vadd.xlane.f32.xlu0 %v883
  %v885 = vpop.xlane.xlu0 %884
  %v886 = vsel %vm256, %v870, 0.0
  %887 = vadd.xlane.f32.xlu0 %v886
  %v888 = vpop.xlane.xlu0 %887
  %v889 = vsub.f32 %v666, %v873
  %v890 = vsub.f32 %v667, %v876
  %v891 = vsub.f32 %v668, %v879
  %v892 = vsub.f32 %v669, %v882
  %v893 = vsub.f32 %v670, %v885
  %v894 = vsub.f32 %v671, %v888
  %v895 = vmul.f32 %v889, 1.442695
  %v896 = vpow.pop %v895
  %v897 = vmul.f32 %v890, 1.442695
  %v898 = vpow.pop %v897
  %v899 = vmul.f32 %v891, 1.442695
  %v900 = vpow.pop %v899
  %v901 = vmul.f32 %v892, 1.442695
  %v902 = vpow.pop %v901
  %v903 = vmul.f32 %v893, 1.442695
  %v904 = vpow.pop %v903
  %v905 = vmul.f32 %v894, 1.442695
  %v906 = vpow.pop %v905
  %vm907 = vcmp.eq.s32.totalorder %v153, 1
  %v908 = vsel %vm907, 1, 0
  %v909 = vcvt.s32.f32 %v908
  %911 = vset.pattern.permute.xlu0 1
  %912 = vperm.xlu0 %911, %v896
  %v913 = vpop.permute.xlu0 %912
  %916 = vset.pattern.permute.xlu0 1
  %917 = vperm.xlu0 %916, %v898
  %v918 = vpop.permute.xlu0 %917
  %921 = vset.pattern.permute.xlu0 1
  %922 = vperm.xlu0 %921, %v900
  %v923 = vpop.permute.xlu0 %922
  %926 = vset.pattern.permute.xlu0 1
  %927 = vperm.xlu0 %926, %v902
  %v928 = vpop.permute.xlu0 %927
  %931 = vset.pattern.permute.xlu0 1
  %932 = vperm.xlu0 %931, %v904
  %v933 = vpop.permute.xlu0 %932
  %936 = vset.pattern.permute.xlu0 1
  %937 = vperm.xlu0 %936, %v906
  %v938 = vpop.permute.xlu0 %937
  %v940 = vmul.f32 %v913, %v909
  %v941 = vmul.f32 %v918, %v909
  %v942 = vmul.f32 %v923, %v909
  %v943 = vmul.f32 %v928, %v909
  %v944 = vmul.f32 %v933, %v909
  %v945 = vmul.f32 %v938, %v909
  %v946 = vadd.f32 %v812, %v940
  %v947 = vadd.f32 %v813, %v941
  %v948 = vadd.f32 %v814, %v942
  %v949 = vadd.f32 %v815, %v943
  %v950 = vadd.f32 %v816, %v944
  %v951 = vadd.f32 %v817, %v945
  %952 = vset.pattern.permute.xlu0 2
  %953 = vperm.xlu0 %952, %v666
  %v954 = vpop.permute.xlu0 %953
  %956 = vset.pattern.permute.xlu0 2
  %957 = vperm.xlu0 %956, %v667
  %v958 = vpop.permute.xlu0 %957
  %960 = vset.pattern.permute.xlu0 2
  %961 = vperm.xlu0 %960, %v668
  %v962 = vpop.permute.xlu0 %961
  %964 = vset.pattern.permute.xlu0 2
  %965 = vperm.xlu0 %964, %v669
  %v966 = vpop.permute.xlu0 %965
  %968 = vset.pattern.permute.xlu0 2
  %969 = vperm.xlu0 %968, %v670
  %v970 = vpop.permute.xlu0 %969
  %972 = vset.pattern.permute.xlu0 2
  %973 = vperm.xlu0 %972, %v671
  %v974 = vpop.permute.xlu0 %973
  %v976 = vsel %vm672, %v954, -1e+30
  %v977 = vsel %vm673, %v958, -1e+30
  %v978 = vsel %vm674, %v962, -1e+30
  %v979 = vsel %vm675, %v966, -1e+30
  %v980 = vsel %vm676, %v970, -1e+30
  %v981 = vsel %vm677, %v974, -1e+30
  %v982 = vsel %vm256, %v976, -inf
  %v983 = vsel %vm256, %v977, -inf
  %v984 = vsel %vm256, %v978, -inf
  %v985 = vsel %vm256, %v979, -inf
  %v986 = vsel %vm256, %v980, -inf
  %v987 = vmax.f32 %v982, %v986
  %v988 = vsel %vm256, %v981, -inf
  %v989 = vmax.f32 %v983, %v988
  %v990 = vmax.f32 %v987, %v989
  %v991 = vmax.f32 %v984, %v985
  %v992 = vmax.f32 %v990, %v991
  %v993 = vrot.slane %v992, 4
  %v994 = vmax.f32 %v992, %v993
  %v995 = vrot.slane %v994, 2
  %v996 = vmax.f32 %v994, %v995
  %v997 = vrot.slane %v996, 1
  %v998 = vmax.f32 %v996, %v997
  %v999 = vmul.f32 %v190, %v998
  %v1000 = vmul.f32 %v191, %v998
  %v1001 = vmul.f32 %v192, %v998
  %v1002 = vmul.f32 %v193, %v998
  %v1003 = vmul.f32 %v194, %v998
  %v1004 = vmul.f32 %v195, %v998
  %v1005 = vsel %vm256, %v999, 0.0
  %1006 = vadd.xlane.f32.xlu0 %v1005
  %v1007 = vpop.xlane.xlu0 %1006
  %v1008 = vsel %vm256, %v1000, 0.0
  %1009 = vadd.xlane.f32.xlu0 %v1008
  %v1010 = vpop.xlane.xlu0 %1009
  %v1011 = vsel %vm256, %v1001, 0.0
  %1012 = vadd.xlane.f32.xlu0 %v1011
  %v1013 = vpop.xlane.xlu0 %1012
  %v1014 = vsel %vm256, %v1002, 0.0
  %1015 = vadd.xlane.f32.xlu0 %v1014
  %v1016 = vpop.xlane.xlu0 %1015
  %v1017 = vsel %vm256, %v1003, 0.0
  %1018 = vadd.xlane.f32.xlu0 %v1017
  %v1019 = vpop.xlane.xlu0 %1018
  %v1020 = vsel %vm256, %v1004, 0.0
  %1021 = vadd.xlane.f32.xlu0 %v1020
  %v1022 = vpop.xlane.xlu0 %1021
  %v1023 = vsub.f32 %v666, %v1007
  %v1024 = vsub.f32 %v667, %v1010
  %v1025 = vsub.f32 %v668, %v1013
  %v1026 = vsub.f32 %v669, %v1016
  %v1027 = vsub.f32 %v670, %v1019
  %v1028 = vsub.f32 %v671, %v1022
  %v1029 = vmul.f32 %v1023, 1.442695
  %v1030 = vpow.pop %v1029
  %v1031 = vmul.f32 %v1024, 1.442695
  %v1032 = vpow.pop %v1031
  %v1033 = vmul.f32 %v1025, 1.442695
  %v1034 = vpow.pop %v1033
  %v1035 = vmul.f32 %v1026, 1.442695
  %v1036 = vpow.pop %v1035
  %v1037 = vmul.f32 %v1027, 1.442695
  %v1038 = vpow.pop %v1037
  %v1039 = vmul.f32 %v1028, 1.442695
  %v1040 = vpow.pop %v1039
  %vm1041 = vcmp.eq.s32.totalorder %v153, 2
  %v1042 = vsel %vm1041, 1, 0
  %v1043 = vcvt.s32.f32 %v1042
  %1045 = vset.pattern.permute.xlu0 2
  %1046 = vperm.xlu0 %1045, %v1030
  %v1047 = vpop.permute.xlu0 %1046
  %1050 = vset.pattern.permute.xlu0 2
  %1051 = vperm.xlu0 %1050, %v1032
  %v1052 = vpop.permute.xlu0 %1051
  %1055 = vset.pattern.permute.xlu0 2
  %1056 = vperm.xlu0 %1055, %v1034
  %v1057 = vpop.permute.xlu0 %1056
  %1060 = vset.pattern.permute.xlu0 2
  %1061 = vperm.xlu0 %1060, %v1036
  %v1062 = vpop.permute.xlu0 %1061
  %1065 = vset.pattern.permute.xlu0 2
  %1066 = vperm.xlu0 %1065, %v1038
  %v1067 = vpop.permute.xlu0 %1066
  %1070 = vset.pattern.permute.xlu0 2
  %1071 = vperm.xlu0 %1070, %v1040
  %v1072 = vpop.permute.xlu0 %1071
  %v1074 = vmul.f32 %v1047, %v1043
  %v1075 = vmul.f32 %v1052, %v1043
  %v1076 = vmul.f32 %v1057, %v1043
  %v1077 = vmul.f32 %v1062, %v1043
  %v1078 = vmul.f32 %v1067, %v1043
  %v1079 = vmul.f32 %v1072, %v1043
  %v1080 = vadd.f32 %v946, %v1074
  %v1081 = vadd.f32 %v947, %v1075
  %v1082 = vadd.f32 %v948, %v1076
  %v1083 = vadd.f32 %v949, %v1077
  %v1084 = vadd.f32 %v950, %v1078
  %v1085 = vadd.f32 %v951, %v1079
  %1086 = vset.pattern.permute.xlu0 3
  %1087 = vperm.xlu0 %1086, %v666
  %v1088 = vpop.permute.xlu0 %1087
  %1090 = vset.pattern.permute.xlu0 3
  %1091 = vperm.xlu0 %1090, %v667
  %v1092 = vpop.permute.xlu0 %1091
  %1094 = vset.pattern.permute.xlu0 3
  %1095 = vperm.xlu0 %1094, %v668
  %v1096 = vpop.permute.xlu0 %1095
  %1098 = vset.pattern.permute.xlu0 3
  %1099 = vperm.xlu0 %1098, %v669
  %v1100 = vpop.permute.xlu0 %1099
  %1102 = vset.pattern.permute.xlu0 3
  %1103 = vperm.xlu0 %1102, %v670
  %v1104 = vpop.permute.xlu0 %1103
  %1106 = vset.pattern.permute.xlu0 3
  %1107 = vperm.xlu0 %1106, %v671
  %v1108 = vpop.permute.xlu0 %1107
  %v1110 = vsel %vm672, %v1088, -1e+30
  %v1111 = vsel %vm673, %v1092, -1e+30
  %v1112 = vsel %vm674, %v1096, -1e+30
  %v1113 = vsel %vm675, %v1100, -1e+30
  %v1114 = vsel %vm676, %v1104, -1e+30
  %v1115 = vsel %vm677, %v1108, -1e+30
  %v1116 = vsel %vm256, %v1110, -inf
  %v1117 = vsel %vm256, %v1111, -inf
  %v1118 = vsel %vm256, %v1112, -inf
  %v1119 = vsel %vm256, %v1113, -inf
  %v1120 = vsel %vm256, %v1114, -inf
  %v1121 = vmax.f32 %v1116, %v1120
  %v1122 = vsel %vm256, %v1115, -inf
  %v1123 = vmax.f32 %v1117, %v1122
  %v1124 = vmax.f32 %v1121, %v1123
  %v1125 = vmax.f32 %v1118, %v1119
  %v1126 = vmax.f32 %v1124, %v1125
  %v1127 = vrot.slane %v1126, 4
  %v1128 = vmax.f32 %v1126, %v1127
  %v1129 = vrot.slane %v1128, 2
  %v1130 = vmax.f32 %v1128, %v1129
  %v1131 = vrot.slane %v1130, 1
  %v1132 = vmax.f32 %v1130, %v1131
  %v1133 = vmul.f32 %v190, %v1132
  %v1134 = vmul.f32 %v191, %v1132
  %v1135 = vmul.f32 %v192, %v1132
  %v1136 = vmul.f32 %v193, %v1132
  %v1137 = vmul.f32 %v194, %v1132
  %v1138 = vmul.f32 %v195, %v1132
  %v1139 = vsel %vm256, %v1133, 0.0
  %1140 = vadd.xlane.f32.xlu0 %v1139
  %v1141 = vpop.xlane.xlu0 %1140
  %v1142 = vsel %vm256, %v1134, 0.0
  %1143 = vadd.xlane.f32.xlu0 %v1142
  %v1144 = vpop.xlane.xlu0 %1143
  %v1145 = vsel %vm256, %v1135, 0.0
  %1146 = vadd.xlane.f32.xlu0 %v1145
  %v1147 = vpop.xlane.xlu0 %1146
  %v1148 = vsel %vm256, %v1136, 0.0
  %1149 = vadd.xlane.f32.xlu0 %v1148
  %v1150 = vpop.xlane.xlu0 %1149
  %v1151 = vsel %vm256, %v1137, 0.0
  %1152 = vadd.xlane.f32.xlu0 %v1151
  %v1153 = vpop.xlane.xlu0 %1152
  %v1154 = vsel %vm256, %v1138, 0.0
  %1155 = vadd.xlane.f32.xlu0 %v1154
  %v1156 = vpop.xlane.xlu0 %1155
  %v1157 = vsub.f32 %v666, %v1141
  %v1158 = vsub.f32 %v667, %v1144
  %v1159 = vsub.f32 %v668, %v1147
  %v1160 = vsub.f32 %v669, %v1150
  %v1161 = vsub.f32 %v670, %v1153
  %v1162 = vsub.f32 %v671, %v1156
  %v1163 = vmul.f32 %v1157, 1.442695
  %v1164 = vpow.pop %v1163
  %v1165 = vmul.f32 %v1158, 1.442695
  %v1166 = vpow.pop %v1165
  %v1167 = vmul.f32 %v1159, 1.442695
  %v1168 = vpow.pop %v1167
  %v1169 = vmul.f32 %v1160, 1.442695
  %v1170 = vpow.pop %v1169
  %v1171 = vmul.f32 %v1161, 1.442695
  %v1172 = vpow.pop %v1171
  %v1173 = vmul.f32 %v1162, 1.442695
  %v1174 = vpow.pop %v1173
  %vm1175 = vcmp.eq.s32.totalorder %v153, 3
  %v1176 = vsel %vm1175, 1, 0
  %v1177 = vcvt.s32.f32 %v1176
  %1179 = vset.pattern.permute.xlu0 3
  %1180 = vperm.xlu0 %1179, %v1164
  %v1181 = vpop.permute.xlu0 %1180
  %1184 = vset.pattern.permute.xlu0 3
  %1185 = vperm.xlu0 %1184, %v1166
  %v1186 = vpop.permute.xlu0 %1185
  %1189 = vset.pattern.permute.xlu0 3
  %1190 = vperm.xlu0 %1189, %v1168
  %v1191 = vpop.permute.xlu0 %1190
  %1194 = vset.pattern.permute.xlu0 3
  %1195 = vperm.xlu0 %1194, %v1170
  %v1196 = vpop.permute.xlu0 %1195
  %1199 = vset.pattern.permute.xlu0 3
  %1200 = vperm.xlu0 %1199, %v1172
  %v1201 = vpop.permute.xlu0 %1200
  %1204 = vset.pattern.permute.xlu0 3
  %1205 = vperm.xlu0 %1204, %v1174
  %v1206 = vpop.permute.xlu0 %1205
  %v1208 = vmul.f32 %v1181, %v1177
  %v1209 = vmul.f32 %v1186, %v1177
  %v1210 = vmul.f32 %v1191, %v1177
  %v1211 = vmul.f32 %v1196, %v1177
  %v1212 = vmul.f32 %v1201, %v1177
  %v1213 = vmul.f32 %v1206, %v1177
  %v1214 = vadd.f32 %v1080, %v1208
  %v1215 = vadd.f32 %v1081, %v1209
  %v1216 = vadd.f32 %v1082, %v1210
  %v1217 = vadd.f32 %v1083, %v1211
  %v1218 = vadd.f32 %v1084, %v1212
  %v1219 = vadd.f32 %v1085, %v1213
  %vm1220 = vcmask 392192
  %v1222 = vsel %vm1220, %v253, 0
  %v1225 = vsel %vm1220, %v254, 0
  %v1228 = vsel %vm1220, %v255, 0
  %1230 = vmatprep.subr.mxu0 0.0
  %1231 = vmatpush1.msra.mxu0 %v1214
  %1232 = vmatprep.subr.mxu0 0.0
  %1233 = vmatpush1.msra.mxu0 %v1215
  %1234 = vmatprep.subr.mxu0 0.0
  %1235 = vmatpush1.msra.mxu0 %v1216
  %1236 = vmatprep.subr.mxu0 0.0
  %1237 = vmatpush1.msra.mxu0 %v1217
  %1238 = vmatprep.subr.mxu0 0.0
  %1239 = vmatpush1.msra.mxu0 %v1218
  %1240 = vmatprep.subr.mxu0 0.0
  %1241 = vmatpush1.msra.mxu0 %v1219
  %1242 = vmatprep.subr.mxu0 0.0
  %1243 = vmatpush1.msra.mxu0 0.0
  %1244 = vmatprep.subr.mxu0 0.0
  %1245 = vmatpush1.msra.mxu0 0.0
  %1246 = vmatprep.subr.mxu0 0.0
  %1247 = vmatpush1.msra.mxu0 0.0
  %1248 = vmatprep.subr.mxu0 0.0
  %1249 = vmatpush1.msra.mxu0 0.0
  %1250 = vmatprep.subr.mxu0 0.0
  %1251 = vmatpush1.msra.mxu0 0.0
  %1252 = vmatprep.subr.mxu0 0.0
  %1253 = vmatpush1.msra.mxu0 0.0
  %1254 = vmatprep.subr.mxu0 0.0
  %1255 = vmatpush1.msra.mxu0 0.0
  %1256 = vmatprep.subr.mxu0 0.0
  %1257 = vmatpush1.msra.mxu0 0.0
  %1258 = vmatprep.subr.mxu0 0.0
  %1259 = vmatpush1.msra.mxu0 0.0
  %1260 = vmatprep.subr.mxu0 0.0
  %1261 = vmatpush1.msra.mxu0 0.0
  %1262 = vmatprep.subr.mxu0 0.0
  %1263 = vmatpush1.msra.mxu0 0.0
  %1264 = vmatprep.subr.mxu0 0.0
  %1265 = vmatpush1.msra.mxu0 0.0
  %1266 = vmatprep.subr.mxu0 0.0
  %1267 = vmatpush1.msra.mxu0 0.0
  %1268 = vmatprep.subr.mxu0 0.0
  %1269 = vmatpush1.msra.mxu0 0.0
  %1270 = vmatprep.subr.mxu0 0.0
  %1271 = vmatpush1.msra.mxu0 0.0
  %1272 = vmatprep.subr.mxu0 0.0
  %1273 = vmatpush1.msra.mxu0 0.0
  %1274 = vmatprep.subr.mxu0 0.0
  %1275 = vmatpush1.msra.mxu0 0.0
  %1276 = vmatprep.subr.mxu0 0.0
  %1277 = vmatpush1.msra.mxu0 0.0
  %1278 = vmatprep.subr.mxu0 0.0
  %1279 = vmatpush1.msra.mxu0 0.0
  %1280 = vmatprep.subr.mxu0 0.0
  %1281 = vmatpush1.msra.mxu0 0.0
  %1282 = vmatprep.subr.mxu0 0.0
  %1283 = vmatpush1.msra.mxu0 0.0
  %1284 = vmatprep.subr.mxu0 0.0
  %1285 = vmatpush1.msra.mxu0 0.0
  %1286 = vmatprep.subr.mxu0 0.0
  %1287 = vmatpush1.msra.mxu0 0.0
  %1288 = vmatprep.subr.mxu0 0.0
  %1289 = vmatpush1.msra.mxu0 0.0
  %1290 = vmatprep.subr.mxu0 0.0
  %1291 = vmatpush1.msra.mxu0 0.0
  %1292 = vmatprep.subr.mxu0 0.0
  %1293 = vmatpush1.msra.mxu0 0.0
  %1294 = vmatprep.mubr.f32.mxu0 0.0
  %1295 = vmatmul.mubr.f32.gmra.mrb[0].mxu0 %v1222
  %v1296 = vpop.f32.mrb[0].mxu0
  %v1297 = vadd.f32 1e-16, %v1296
  %v1298 = vpop.f32.mrb[0].mxu0
  %1299 = vmatprep.mubr.f32.mxu0 0.0
  %1300 = vmatmul.mubr.f32.gmra.mrb[0].mxu0 %v1225
  %v1301 = vpop.f32.mrb[0].mxu0
  %v1302 = vadd.f32 1e-16, %v1301
  %v1303 = vpop.f32.mrb[0].mxu0
  %1304 = vmatprep.mubr.f32.mxu0 0.0
  %1305 = vmatmul.mubr.f32.gmra.mrb[0].mxu0 %v1228
  %v1306 = vpop.f32.mrb[0].mxu0
  %v1307 = vadd.f32 1e-16, %v1306
  %v1308 = vpop.f32.mrb[0].mxu0
  %1309 = vdwg.mxu0
  %1310 = vmatprep.subr.mxu0 0.0
  %1311 = vmatpush1.msra.mxu0 %v1297
  %1312 = vmatprep.subr.mxu0 0.0
  %1313 = vmatpush1.msra.mxu0 %v1302
  %1314 = vmatprep.subr.mxu0 0.0
  %1315 = vmatpush1.msra.mxu0 %v1307
  %1316 = vmatprep.subr.mxu0 0.0
  %1317 = vmatpush1.msra.mxu0 0.0
  %1318 = vmatprep.subr.mxu0 0.0
  %1319 = vmatpush1.msra.mxu0 0.0
  %1320 = vmatprep.subr.mxu0 0.0
  %1321 = vmatpush1.msra.mxu0 0.0
  %1322 = vmatprep.subr.mxu0 0.0
  %1323 = vmatpush1.msra.mxu0 0.0
  %1324 = vmatprep.subr.mxu0 0.0
  %1325 = vmatpush1.msra.mxu0 0.0
  %1326 = vmatprep.subr.mxu0 0.0
  %1327 = vmatpush1.msra.mxu0 0.0
  %1328 = vmatprep.subr.mxu0 0.0
  %1329 = vmatpush1.msra.mxu0 0.0
  %1330 = vmatprep.subr.mxu0 0.0
  %1331 = vmatpush1.msra.mxu0 0.0
  %1332 = vmatprep.subr.mxu0 0.0
  %1333 = vmatpush1.msra.mxu0 0.0
  %1334 = vmatprep.subr.mxu0 0.0
  %1335 = vmatpush1.msra.mxu0 0.0
  %1336 = vmatprep.subr.mxu0 0.0
  %1337 = vmatpush1.msra.mxu0 0.0
  %1338 = vmatprep.subr.mxu0 0.0
  %1339 = vmatpush1.msra.mxu0 0.0
  %1340 = vmatprep.subr.mxu0 0.0
  %1341 = vmatpush1.msra.mxu0 0.0
  %1342 = vmatprep.subr.mxu0 0.0
  %1343 = vmatpush1.msra.mxu0 0.0
  %1344 = vmatprep.subr.mxu0 0.0
  %1345 = vmatpush1.msra.mxu0 0.0
  %1346 = vmatprep.subr.mxu0 0.0
  %1347 = vmatpush1.msra.mxu0 0.0
  %1348 = vmatprep.subr.mxu0 0.0
  %1349 = vmatpush1.msra.mxu0 0.0
  %1350 = vmatprep.subr.mxu0 0.0
  %1351 = vmatpush1.msra.mxu0 0.0
  %1352 = vmatprep.subr.mxu0 0.0
  %1353 = vmatpush1.msra.mxu0 0.0
  %1354 = vmatprep.subr.mxu0 0.0
  %1355 = vmatpush1.msra.mxu0 0.0
  %1356 = vmatprep.subr.mxu0 0.0
  %1357 = vmatpush1.msra.mxu0 0.0
  %1358 = vmatprep.subr.mxu0 0.0
  %1359 = vmatpush1.msra.mxu0 0.0
  %1360 = vmatprep.subr.mxu0 0.0
  %1361 = vmatpush1.msra.mxu0 0.0
  %1362 = vmatprep.subr.mxu0 0.0
  %1363 = vmatpush1.msra.mxu0 0.0
  %1364 = vmatprep.subr.mxu0 0.0
  %1365 = vmatpush1.msra.mxu0 0.0
  %1366 = vmatprep.subr.mxu0 0.0
  %1367 = vmatpush1.msra.mxu0 0.0
  %1368 = vmatprep.subr.mxu0 0.0
  %1369 = vmatpush1.msra.mxu0 0.0
  %1370 = vmatprep.subr.mxu0 0.0
  %1371 = vmatpush1.msra.mxu0 0.0
  %1372 = vmatprep.subr.mxu0 0.0
  %1373 = vmatpush1.msra.mxu0 0.0
  %1374 = vmatprep.mubr.f32.mxu0 0.0
  %1375 = vmatmul.mubr.f32.gmra.mrb[0].mxu0 %v258
  %v1376 = vpop.f32.mrb[0].mxu0
  %v1377 = vadd.f32 0.0, %v1376
  %v1378 = vpop.f32.mrb[0].mxu0
  %1379 = vmatprep.mubr.f32.mxu0 0.0
  %1380 = vmatmul.mubr.f32.gmra.mrb[0].mxu0 %v261
  %v1381 = vpop.f32.mrb[0].mxu0
  %v1382 = vadd.f32 0.0, %v1381
  %v1383 = vpop.f32.mrb[0].mxu0
  %1384 = vmatprep.mubr.f32.mxu0 0.0
  %1385 = vmatmul.mubr.f32.gmra.mrb[0].mxu0 %v264
  %v1386 = vpop.f32.mrb[0].mxu0
  %v1387 = vadd.f32 0.0, %v1386
  %v1388 = vpop.f32.mrb[0].mxu0
  %1389 = vmatprep.mubr.f32.mxu0 0.0
  %1390 = vmatmul.mubr.f32.gmra.mrb[0].mxu0 %v267
  %v1391 = vpop.f32.mrb[0].mxu0
  %v1392 = vadd.f32 0.0, %v1391
  %v1393 = vpop.f32.mrb[0].mxu0
  %1394 = vmatprep.mubr.f32.mxu0 0.0
  %1395 = vmatmul.mubr.f32.gmra.mrb[0].mxu0 %v270
  %v1396 = vpop.f32.mrb[0].mxu0
  %v1397 = vadd.f32 0.0, %v1396
  %v1398 = vpop.f32.mrb[0].mxu0
  %1399 = vmatprep.mubr.f32.mxu0 0.0
  %1400 = vmatmul.mubr.f32.gmra.mrb[0].mxu0 %v273
  %v1401 = vpop.f32.mrb[0].mxu0
  %v1402 = vadd.f32 0.0, %v1401
  %v1403 = vpop.f32.mrb[0].mxu0
  %1404 = vdwg.mxu0
  %v1405 = vrcp.pop %v1377
  %v1406 = vrcp.pop %v1382
  %v1407 = vrcp.pop %v1387
  %v1408 = vrcp.pop %v1392
  %v1409 = vrcp.pop %v1397
  %v1410 = vrcp.pop %v1402
  %v1411 = vmul.f32 %v1214, %v1405
  %v1412 = vmul.f32 %v1215, %v1406
  %v1413 = vmul.f32 %v1216, %v1407
  %v1414 = vmul.f32 %v1217, %v1408
  %v1415 = vmul.f32 %v1218, %v1409
  %v1416 = vmul.f32 %v1219, %v1410
  %v1417 = vld [vmem:[%s8] sm:$0xff]
  %v1418 = vld [vmem:[%s8 + $0x8] sm:$0xff]
  %v1419 = vld [vmem:[%s8 + $0x10] sm:$0xff]
  %v1420 = vld [vmem:[%s8 + $0x18] sm:$0xff]
  %v1421 = vld [vmem:[%s8 + $0x20] sm:$0xff]
  %v1422 = vld [vmem:[%s8 + $0x28] sm:$0xff]
  %1424 = vset.pattern.permute.xlu0 0
  %1425 = vperm.xlu0 %1424, %v1417
  %v1426 = vpop.permute.xlu0 %1425
  %1429 = vset.pattern.permute.xlu0 0
  %1430 = vperm.xlu0 %1429, %v1418
  %v1431 = vpop.permute.xlu0 %1430
  %1434 = vset.pattern.permute.xlu0 0
  %1435 = vperm.xlu0 %1434, %v1419
  %v1436 = vpop.permute.xlu0 %1435
  %1439 = vset.pattern.permute.xlu0 0
  %1440 = vperm.xlu0 %1439, %v1420
  %v1441 = vpop.permute.xlu0 %1440
  %1444 = vset.pattern.permute.xlu0 0
  %1445 = vperm.xlu0 %1444, %v1421
  %v1446 = vpop.permute.xlu0 %1445
  %1449 = vset.pattern.permute.xlu0 0
  %1450 = vperm.xlu0 %1449, %v1422
  %v1451 = vpop.permute.xlu0 %1450
  %v1453 = vmul.f32 %v1411, %v1426
  %v1454 = vmul.f32 %v1412, %v1431
  %v1455 = vmul.f32 %v1413, %v1436
  %v1456 = vmul.f32 %v1414, %v1441
  %v1457 = vmul.f32 %v1415, %v1446
  %v1458 = vmul.f32 %v1416, %v1451
  %vm1459 = vcmask 31744
  %v1461 = vsel %vm1459, %v1453, 0
  %v1464 = vsel %vm1459, %v1454, 0
  %v1467 = vsel %vm1459, %v1455, 0
  %v1470 = vsel %vm1459, %v1456, 0
  %v1473 = vsel %vm1459, %v1457, 0
  %v1476 = vsel %vm1459, %v1458, 0
  %vm1478 = vcmask 1043456
  %v1480 = vsel %vm1478, %v515, 0
  %1482 = vmatprep.subr.mxu0 0.0
  %1483 = vmatpush1.msra.mxu0 %v1480
  %1484 = vmatprep.subr.mxu0 0.0
  %1485 = vmatpush1.msra.mxu0 0.0
  %1486 = vmatprep.subr.mxu0 0.0
  %1487 = vmatpush1.msra.mxu0 0.0
  %1488 = vmatprep.subr.mxu0 0.0
  %1489 = vmatpush1.msra.mxu0 0.0
  %1490 = vmatprep.subr.mxu0 0.0
  %1491 = vmatpush1.msra.mxu0 0.0
  %1492 = vmatprep.subr.mxu0 0.0
  %1493 = vmatpush1.msra.mxu0 0.0
  %1494 = vmatprep.subr.mxu0 0.0
  %1495 = vmatpush1.msra.mxu0 0.0
  %1496 = vmatprep.subr.mxu0 0.0
  %1497 = vmatpush1.msra.mxu0 0.0
  %1498 = vmatprep.subr.mxu0 0.0
  %1499 = vmatpush1.msra.mxu0 0.0
  %1500 = vmatprep.subr.mxu0 0.0
  %1501 = vmatpush1.msra.mxu0 0.0
  %1502 = vmatprep.subr.mxu0 0.0
  %1503 = vmatpush1.msra.mxu0 0.0
  %1504 = vmatprep.subr.mxu0 0.0
  %1505 = vmatpush1.msra.mxu0 0.0
  %1506 = vmatprep.subr.mxu0 0.0
  %1507 = vmatpush1.msra.mxu0 0.0
  %1508 = vmatprep.subr.mxu0 0.0
  %1509 = vmatpush1.msra.mxu0 0.0
  %1510 = vmatprep.subr.mxu0 0.0
  %1511 = vmatpush1.msra.mxu0 0.0
  %1512 = vmatprep.subr.mxu0 0.0
  %1513 = vmatpush1.msra.mxu0 0.0
  %1514 = vmatprep.subr.mxu0 0.0
  %1515 = vmatpush1.msra.mxu0 0.0
  %1516 = vmatprep.subr.mxu0 0.0
  %1517 = vmatpush1.msra.mxu0 0.0
  %1518 = vmatprep.subr.mxu0 0.0
  %1519 = vmatpush1.msra.mxu0 0.0
  %1520 = vmatprep.subr.mxu0 0.0
  %1521 = vmatpush1.msra.mxu0 0.0
  %1522 = vmatprep.subr.mxu0 0.0
  %1523 = vmatpush1.msra.mxu0 0.0
  %1524 = vmatprep.subr.mxu0 0.0
  %1525 = vmatpush1.msra.mxu0 0.0
  %1526 = vmatprep.subr.mxu0 0.0
  %1527 = vmatpush1.msra.mxu0 0.0
  %1528 = vmatprep.subr.mxu0 0.0
  %1529 = vmatpush1.msra.mxu0 0.0
  %1530 = vmatprep.subr.mxu0 0.0
  %1531 = vmatpush1.msra.mxu0 0.0
  %1532 = vmatprep.subr.mxu0 0.0
  %1533 = vmatpush1.msra.mxu0 0.0
  %1534 = vmatprep.subr.mxu0 0.0
  %1535 = vmatpush1.msra.mxu0 0.0
  %1536 = vmatprep.subr.mxu0 0.0
  %1537 = vmatpush1.msra.mxu0 0.0
  %1538 = vmatprep.subr.mxu0 0.0
  %1539 = vmatpush1.msra.mxu0 0.0
  %1540 = vmatprep.subr.mxu0 0.0
  %1541 = vmatpush1.msra.mxu0 0.0
  %1542 = vmatprep.subr.mxu0 0.0
  %1543 = vmatpush1.msra.mxu0 0.0
  %1544 = vmatprep.subr.mxu0 0.0
  %1545 = vmatpush1.msra.mxu0 0.0
  %1546 = vmatprep.mubr.f32.mxu0 0.0
  %1547 = vmatmul.mubr.f32.gmra.mrb[0].mxu0 %v1461
  %v1548 = vpop.f32.mrb[0].mxu0
  %v1549 = vadd.f32 0.0, %v1548
  %v1550 = vpop.f32.mrb[0].mxu0
  %1551 = vmatprep.mubr.f32.mxu0 0.0
  %1552 = vmatmul.mubr.f32.gmra.mrb[0].mxu0 %v1464
  %v1553 = vpop.f32.mrb[0].mxu0
  %v1554 = vadd.f32 0.0, %v1553
  %v1555 = vpop.f32.mrb[0].mxu0
  %1556 = vmatprep.mubr.f32.mxu0 0.0
  %1557 = vmatmul.mubr.f32.gmra.mrb[0].mxu0 %v1467
  %v1558 = vpop.f32.mrb[0].mxu0
  %v1559 = vadd.f32 0.0, %v1558
  %v1560 = vpop.f32.mrb[0].mxu0
  %1561 = vmatprep.mubr.f32.mxu0 0.0
  %1562 = vmatmul.mubr.f32.gmra.mrb[0].mxu0 %v1470
  %v1563 = vpop.f32.mrb[0].mxu0
  %v1564 = vadd.f32 0.0, %v1563
  %v1565 = vpop.f32.mrb[0].mxu0
  %1566 = vmatprep.mubr.f32.mxu0 0.0
  %1567 = vmatmul.mubr.f32.gmra.mrb[0].mxu0 %v1473
  %v1568 = vpop.f32.mrb[0].mxu0
  %v1569 = vadd.f32 0.0, %v1568
  %v1570 = vpop.f32.mrb[0].mxu0
  %1571 = vmatprep.mubr.f32.mxu0 0.0
  %1572 = vmatmul.mubr.f32.gmra.mrb[0].mxu0 %v1476
  %v1573 = vpop.f32.mrb[0].mxu0
  %v1574 = vadd.f32 0.0, %v1573
  %v1575 = vpop.f32.mrb[0].mxu0
  %1576 = vdwg.mxu0
  %1583 = vrot.lane.b32.xlu0 %v456, 96
  %v1584 = vpop.permute.xlu0 %1583
  %1585 = vrot.lane.b32.xlu0 %v461, 96
  %v1586 = vpop.permute.xlu0 %1585
  %1587 = vrot.lane.b32.xlu0 %v466, 96
  %v1588 = vpop.permute.xlu0 %1587
  %1589 = vrot.lane.b32.xlu0 %v471, 96
  %v1590 = vpop.permute.xlu0 %1589
  %1591 = vrot.lane.b32.xlu0 %v476, 96
  %v1592 = vpop.permute.xlu0 %1591
  %1593 = vrot.lane.b32.xlu0 %v481, 96
  %v1594 = vpop.permute.xlu0 %1593
  %v1601 = vmul.f32 %v1549, %v1584
  %v1602 = vmul.f32 %v1554, %v1586
  %v1603 = vmul.f32 %v1559, %v1588
  %v1604 = vmul.f32 %v1564, %v1590
  %v1605 = vmul.f32 %v1569, %v1592
  %v1606 = vmul.f32 %v1574, %v1594
  %1607 = vmatprep.subr.mxu0 0.0
  %1608 = vmatpush1.msra.mxu0 %v1601
  %1609 = vmatprep.subr.mxu0 0.0
  %1610 = vmatpush1.msra.mxu0 %v1602
  %1611 = vmatprep.subr.mxu0 0.0
  %1612 = vmatpush1.msra.mxu0 %v1603
  %1613 = vmatprep.subr.mxu0 0.0
  %1614 = vmatpush1.msra.mxu0 %v1604
  %1615 = vmatprep.subr.mxu0 0.0
  %1616 = vmatpush1.msra.mxu0 %v1605
  %1617 = vmatprep.subr.mxu0 0.0
  %1618 = vmatpush1.msra.mxu0 %v1606
  %1619 = vmatprep.subr.mxu0 0.0
  %1620 = vmatpush1.msra.mxu0 0.0
  %1621 = vmatprep.subr.mxu0 0.0
  %1622 = vmatpush1.msra.mxu0 0.0
  %1623 = vmatprep.subr.mxu0 0.0
  %1624 = vmatpush1.msra.mxu0 0.0
  %1625 = vmatprep.subr.mxu0 0.0
  %1626 = vmatpush1.msra.mxu0 0.0
  %1627 = vmatprep.subr.mxu0 0.0
  %1628 = vmatpush1.msra.mxu0 0.0
  %1629 = vmatprep.subr.mxu0 0.0
  %1630 = vmatpush1.msra.mxu0 0.0
  %1631 = vmatprep.subr.mxu0 0.0
  %1632 = vmatpush1.msra.mxu0 0.0
  %1633 = vmatprep.subr.mxu0 0.0
  %1634 = vmatpush1.msra.mxu0 0.0
  %1635 = vmatprep.subr.mxu0 0.0
  %1636 = vmatpush1.msra.mxu0 0.0
  %1637 = vmatprep.subr.mxu0 0.0
  %1638 = vmatpush1.msra.mxu0 0.0
  %1639 = vmatprep.subr.mxu0 0.0
  %1640 = vmatpush1.msra.mxu0 0.0
  %1641 = vmatprep.subr.mxu0 0.0
  %1642 = vmatpush1.msra.mxu0 0.0
  %1643 = vmatprep.subr.mxu0 0.0
  %1644 = vmatpush1.msra.mxu0 0.0
  %1645 = vmatprep.subr.mxu0 0.0
  %1646 = vmatpush1.msra.mxu0 0.0
  %1647 = vmatprep.subr.mxu0 0.0
  %1648 = vmatpush1.msra.mxu0 0.0
  %1649 = vmatprep.subr.mxu0 0.0
  %1650 = vmatpush1.msra.mxu0 0.0
  %1651 = vmatprep.subr.mxu0 0.0
  %1652 = vmatpush1.msra.mxu0 0.0
  %1653 = vmatprep.subr.mxu0 0.0
  %1654 = vmatpush1.msra.mxu0 0.0
  %1655 = vmatprep.subr.mxu0 0.0
  %1656 = vmatpush1.msra.mxu0 0.0
  %1657 = vmatprep.subr.mxu0 0.0
  %1658 = vmatpush1.msra.mxu0 0.0
  %1659 = vmatprep.subr.mxu0 0.0
  %1660 = vmatpush1.msra.mxu0 0.0
  %1661 = vmatprep.subr.mxu0 0.0
  %1662 = vmatpush1.msra.mxu0 0.0
  %1663 = vmatprep.subr.mxu0 0.0
  %1664 = vmatpush1.msra.mxu0 0.0
  %1665 = vmatprep.subr.mxu0 0.0
  %1666 = vmatpush1.msra.mxu0 0.0
  %1667 = vmatprep.subr.mxu0 0.0
  %1668 = vmatpush1.msra.mxu0 0.0
  %1669 = vmatprep.subr.mxu0 0.0
  %1670 = vmatpush1.msra.mxu0 0.0
  %1671 = vmatprep.mubr.f32.mxu0 0.0
  %1672 = vmatmul.mubr.f32.gmra.mrb[0].mxu0 %v1222
  %v1673 = vpop.f32.mrb[0].mxu0
  %v1674 = vadd.f32 0.0, %v1673
  %v1675 = vpop.f32.mrb[0].mxu0
  %1676 = vmatprep.mubr.f32.mxu0 0.0
  %1677 = vmatmul.mubr.f32.gmra.mrb[0].mxu0 %v1225
  %v1678 = vpop.f32.mrb[0].mxu0
  %v1679 = vadd.f32 0.0, %v1678
  %v1680 = vpop.f32.mrb[0].mxu0
  %1681 = vmatprep.mubr.f32.mxu0 0.0
  %1682 = vmatmul.mubr.f32.gmra.mrb[0].mxu0 %v1228
  %v1683 = vpop.f32.mrb[0].mxu0
  %v1684 = vadd.f32 0.0, %v1683
  %v1685 = vpop.f32.mrb[0].mxu0
  %1686 = vdwg.mxu0
  %1687 = vst.msk [vmem:[%s9] sm:$0xff] %vm46, %v1674
  %1688 = vst.msk [vmem:[%s9 + $0x8] sm:$0xff] %vm46, %v1679
  %1689 = vst.msk [vmem:[%s9 + $0x10] sm:$0xff] %vm46, %v1684
  // Predicated region
  $region38: #{legislative_graph_encoder.22} parent=0 // pred_check
    _
  $region39: #{legislative_graph_encoder.22} parent=0 // pred_check_branch
    %1691 = sbr.rel (0) target = $region41
  $region40: #{legislative_graph_encoder.22} parent=0 // pred_region
    _
  $region41: #{legislative_graph_encoder.22} parent=0 // pred_fallthru
    _
  // Predicated region
  $region42: #{legislative_graph_encoder.22} parent=0 // pred_check
    _
  $region43: #{legislative_graph_encoder.22} parent=0 // pred_check_branch
    %1693 = sbr.rel (0) target = $region45
  $region44: #{legislative_graph_encoder.22} parent=0 // pred_region
    _
  $region45: #{legislative_graph_encoder.22} parent=0 // pred_fallthru
    _

// kernel: legislative_graph_encoder.24
$region0: #{legislative_graph_encoder.24}
  #allocation0 [shape = 'u32[]', space=smem, size = 0x4, offset = 0x4, fixed_abs, tag = 'smem constant byte address 0x4 - core index']
  #allocation1 [shape = 'u32[144,128]{1,0:T(1,128)}', space=vmem, size = 0x12000, scoped, tag = 'internal scratch']
  %s0 = inlined_call_operand.vmem [shape: f32[24,32], index: 0, kind: input, shape index: {}]
  %s1 = inlined_call_operand.vmem [shape: f32[24,32], index: 1, kind: input, shape index: {}]
  %s2 = inlined_call_operand.vmem [shape: f32[1,32], index: 2, kind: input, shape index: {}]
  %s3 = inlined_call_operand.vmem [shape: f32[1,32], index: 3, kind: input, shape index: {}]
  %s4 = inlined_call_operand.vmem [shape: f32[32,128], index: 4, kind: input, shape index: {}]
  %s5 = inlined_call_operand.vmem [shape: f32[128,32], index: 5, kind: input, shape index: {}]
  %s6 = inlined_call_operand.vmem [shape: f32[24,32], index: 6, kind: output, shape index: {}]
  %s7 = sld [smem:[#allocation0]]
  $region34: #{legislative_graph_encoder.24} parent=0
    _
  %s9 = ssub.s32 1, %s7
  %s10 = scalar_select 0, %s9, %s7
  // Predicated region
  $region2: #{legislative_graph_encoder.24} parent=0 // pred_check
    _
  $region3: #{legislative_graph_encoder.24} parent=0 // pred_check_branch
    %12 = sbr.rel (0) target = $region5
  $region4: #{legislative_graph_encoder.24} parent=0 // pred_region
    _
  $region5: #{legislative_graph_encoder.24} parent=0 // pred_fallthru
    _
  // Predicated region
  $region6: #{legislative_graph_encoder.24} parent=0 // pred_check
    _
  $region7: #{legislative_graph_encoder.24} parent=0 // pred_check_branch
    %14 = sbr.rel (0) target = $region9
  $region8: #{legislative_graph_encoder.24} parent=0 // pred_region
    _
  $region9: #{legislative_graph_encoder.24} parent=0 // pred_fallthru
    _
  // Predicated region
  $region10: #{legislative_graph_encoder.24} parent=0 // pred_check
    _
  $region11: #{legislative_graph_encoder.24} parent=0 // pred_check_branch
    %16 = sbr.rel (0) target = $region13
  $region12: #{legislative_graph_encoder.24} parent=0 // pred_region
    _
  $region13: #{legislative_graph_encoder.24} parent=0 // pred_fallthru
    _
  // Predicated region
  $region14: #{legislative_graph_encoder.24} parent=0 // pred_check
    _
  $region15: #{legislative_graph_encoder.24} parent=0 // pred_check_branch
    %18 = sbr.rel (0) target = $region17
  $region16: #{legislative_graph_encoder.24} parent=0 // pred_region
    _
  $region17: #{legislative_graph_encoder.24} parent=0 // pred_fallthru
    _
  // Predicated region
  $region18: #{legislative_graph_encoder.24} parent=0 // pred_check
    _
  $region19: #{legislative_graph_encoder.24} parent=0 // pred_check_branch
    %20 = sbr.rel (0) target = $region21
  $region20: #{legislative_graph_encoder.24} parent=0 // pred_region
    _
  $region21: #{legislative_graph_encoder.24} parent=0 // pred_fallthru
    _
  // Predicated region
  $region22: #{legislative_graph_encoder.24} parent=0 // pred_check
    _
  $region23: #{legislative_graph_encoder.24} parent=0 // pred_check_branch
    %22 = sbr.rel (0) target = $region25
  $region24: #{legislative_graph_encoder.24} parent=0 // pred_region
    _
  $region25: #{legislative_graph_encoder.24} parent=0 // pred_fallthru
    _
  %v24 = vld [vmem:[%s0] sm:$0xff]
  %v25 = vld [vmem:[%s0 + $0x8] sm:$0xff]
  %v26 = vld [vmem:[%s0 + $0x10] sm:$0xff]
  %v27 = vld [vmem:[%s1] sm:$0xff]
  %v28 = vld [vmem:[%s1 + $0x8] sm:$0xff]
  %v29 = vld [vmem:[%s1 + $0x10] sm:$0xff]
  %v30 = vadd.f32 %v24, %v27
  %v31 = vadd.f32 %v25, %v28
  %v32 = vadd.f32 %v26, %v29
  %v33 = vld [vmem:[%s2] sm:$0x1]
  %v34 = vld [vmem:[%s3] sm:$0x1]
  %v35 = vld [vmem:[%s4] sm:$0xff]
  %v36 = vld [vmem:[%s4 + $0x8] sm:$0xff]
  %v37 = vld [vmem:[%s4 + $0x10] sm:$0xff]
  %v38 = vld [vmem:[%s4 + $0x18] sm:$0xff]
  %v39 = vld [vmem:[%s5] sm:$0xff]
  %v40 = vld [vmem:[%s5 + $0x8] sm:$0xff]
  %v41 = vld [vmem:[%s5 + $0x10] sm:$0xff]
  %v42 = vld [vmem:[%s5 + $0x18] sm:$0xff]
  %v43 = vld [vmem:[%s5 + $0x20] sm:$0xff]
  %v44 = vld [vmem:[%s5 + $0x28] sm:$0xff]
  %v45 = vld [vmem:[%s5 + $0x30] sm:$0xff]
  %v46 = vld [vmem:[%s5 + $0x38] sm:$0xff]
  %v47 = vld [vmem:[%s5 + $0x40] sm:$0xff]
  %v48 = vld [vmem:[%s5 + $0x48] sm:$0xff]
  %v49 = vld [vmem:[%s5 + $0x50] sm:$0xff]
  %v50 = vld [vmem:[%s5 + $0x58] sm:$0xff]
  %v51 = vld [vmem:[%s5 + $0x60] sm:$0xff]
  %v52 = vld [vmem:[%s5 + $0x68] sm:$0xff]
  %v53 = vld [vmem:[%s5 + $0x70] sm:$0xff]
  %v54 = vld [vmem:[%s5 + $0x78] sm:$0xff]
  %vm55 = vcmask 261120
  %v56 = vsel %vm55, %v30, 0.0
  %57 = vadd.xlane.f32.xlu0 %v56
  %v58 = vpop.xlane.xlu0 %57
  %v59 = vsel %vm55, %v31, 0.0
  %60 = vadd.xlane.f32.xlu0 %v59
  %v61 = vpop.xlane.xlu0 %60
  %v62 = vsel %vm55, %v32, 0.0
  %63 = vadd.xlane.f32.xlu0 %v62
  %v64 = vpop.xlane.xlu0 %63
  %v65 = vrcp.pop 32.0
  %v66 = vmul.f32 %v58, %v65
  %v67 = vmul.f32 %v61, %v65
  %v68 = vmul.f32 %v64, %v65
  %v69 = vsub.f32 %v30, %v66
  %v70 = vsub.f32 %v31, %v67
  %v71 = vsub.f32 %v32, %v68
  %v72 = vmul.f32 %v69, %v69
  %v73 = vmul.f32 %v70, %v70
  %v74 = vmul.f32 %v71, %v71
  %v75 = vsel %vm55, %v72, 0.0
  %76 = vadd.xlane.f32.xlu0 %v75
  %v77 = vpop.xlane.xlu0 %76
  %v78 = vsel %vm55, %v73, 0.0
  %79 = vadd.xlane.f32.xlu0 %v78
  %v80 = vpop.xlane.xlu0 %79
  %v81 = vsel %vm55, %v74, 0.0
  %82 = vadd.xlane.f32.xlu0 %v81
  %v83 = vpop.xlane.xlu0 %82
  %v84 = vmul.f32 %v77, %v65
  %v85 = vmul.f32 %v80, %v65
  %v86 = vmul.f32 %v83, %v65
  %v87 = vadd.f32 %v84, 1e-05
  %v88 = vadd.f32 %v85, 1e-05
  %v89 = vadd.f32 %v86, 1e-05
  %v90 = vrsqrt.pop %v87
  %v91 = vrsqrt.pop %v88
  %v92 = vrsqrt.pop %v89
  %v93 = vmul.f32 %v69, %v90
  %v94 = vmul.f32 %v70, %v91
  %v95 = vmul.f32 %v71, %v92
  %v96 = vsel %vm55, %v93, 0.0
  %97 = vadd.xlane.f32.xlu0 %v96
  %v98 = vpop.xlane.xlu0 %97
  %v99 = vsel %vm55, %v94, 0.0
  %100 = vadd.xlane.f32.xlu0 %v99
  %v101 = vpop.xlane.xlu0 %100
  %v102 = vsel %vm55, %v95, 0.0
  %103 = vadd.xlane.f32.xlu0 %v102
  %v104 = vpop.xlane.xlu0 %103
  %v105 = vmul.f32 %v98, %v65
  %v106 = vmul.f32 %v101, %v65
  %v107 = vmul.f32 %v104, %v65
  %v108 = vsub.f32 %v93, %v105
  %v109 = vsub.f32 %v94, %v106
  %v110 = vsub.f32 %v95, %v107
  %v111 = vmul.f32 %v108, %v108
  %v112 = vmul.f32 %v109, %v109
  %v113 = vmul.f32 %v110, %v110
  %v114 = vsel %vm55, %v111, 0.0
  %115 = vadd.xlane.f32.xlu0 %v114
  %v116 = vpop.xlane.xlu0 %115
  %v117 = vsel %vm55, %v112, 0.0
  %118 = vadd.xlane.f32.xlu0 %v117
  %v119 = vpop.xlane.xlu0 %118
  %v120 = vsel %vm55, %v113, 0.0
  %121 = vadd.xlane.f32.xlu0 %v120
  %v122 = vpop.xlane.xlu0 %121
  %v123 = vmul.f32 %v116, %v65
  %v124 = vmul.f32 %v119, %v65
  %v125 = vmul.f32 %v122, %v65
  %v126 = vadd.f32 %v123, 1e-05
  %v127 = vadd.f32 %v124, 1e-05
  %v128 = vadd.f32 %v125, 1e-05
  %v129 = vrsqrt.pop %v126
  %v130 = vrsqrt.pop %v127
  %v131 = vrsqrt.pop %v128
  %v132 = vmul.f32 %v108, %v129
  %v133 = vmul.f32 %v109, %v130
  %v134 = vmul.f32 %v110, %v131
  %v136 = vlaneseq
  %v137 = vshrl.u32 %v136, 7
  %v138 = vsub.s32 0, %v137
  %v139 = vrot.slane %v33, %v138
  %v141 = vmul.f32 %v132, %v139
  %v142 = vmul.f32 %v133, %v139
  %v143 = vmul.f32 %v134, %v139
  %v145 = vlaneseq
  %v146 = vshrl.u32 %v145, 7
  %v147 = vsub.s32 0, %v146
  %v148 = vrot.slane %v34, %v147
  %v150 = vadd.f32 %v141, %v148
  %v151 = vadd.f32 %v142, %v148
  %v152 = vadd.f32 %v143, %v148
  %v153 = vpack.c.bf16 %v151, %v150
  %v154 = vpack.c.bf16 %v152, %v152
  %v155 = vpack.c.bf16 %v36, %v35
  %v156 = vpack.c.bf16 %v38, %v37
  %v158 = vsel %vm55, %v153, 0
  %v161 = vsel %vm55, %v154, 0
  %163 = vmatprep.subr.bf16.mxu0 0
  %164 = vmatpush1.bf16.msra.mxu0 %v155
  %165 = vmatprep.subr.bf16.mxu0 0
  %166 = vmatpush1.bf16.msra.mxu0 %v156
  %167 = vmatprep.subr.bf16.mxu0 0
  %168 = vmatpush1.bf16.msra.mxu0 0
  %169 = vmatprep.subr.bf16.mxu0 0
  %170 = vmatpush1.bf16.msra.mxu0 0
  %171 = vmatprep.subr.bf16.mxu0 0
  %172 = vmatpush1.bf16.msra.mxu0 0
  %173 = vmatprep.subr.bf16.mxu0 0
  %174 = vmatpush1.bf16.msra.mxu0 0
  %175 = vmatprep.subr.bf16.mxu0 0
  %176 = vmatpush1.bf16.msra.mxu0 0
  %177 = vmatprep.subr.bf16.mxu0 0
  %178 = vmatpush1.bf16.msra.mxu0 0
  %179 = vmatprep.subr.bf16.mxu0 0
  %180 = vmatpush1.bf16.msra.mxu0 0
  %181 = vmatprep.subr.bf16.mxu0 0
  %182 = vmatpush1.bf16.msra.mxu0 0
  %183 = vmatprep.subr.bf16.mxu0 0
  %184 = vmatpush1.bf16.msra.mxu0 0
  %185 = vmatprep.subr.bf16.mxu0 0
  %186 = vmatpush1.bf16.msra.mxu0 0
  %187 = vmatprep.subr.bf16.mxu0 0
  %188 = vmatpush1.bf16.msra.mxu0 0
  %189 = vmatprep.subr.bf16.mxu0 0
  %190 = vmatpush1.bf16.msra.mxu0 0
  %191 = vmatprep.subr.bf16.mxu0 0
  %192 = vmatpush1.bf16.msra.mxu0 0
  %193 = vmatprep.subr.bf16.mxu0 0
  %194 = vmatpush1.bf16.msra.mxu0 0
  %195 = vmatprep.mubr.bf16.mxu0 0
  %196 = vmatmul.mubr.bf16.gmra.mrb[0].mxu0 %v158
  %v197 = vpop.f32.mrb[0].mxu0
  %v198 = vadd.f32 0.0, %v197
  %v199 = vpop.f32.mrb[0].mxu0
  %v200 = vpop.f32.mrb[0].mxu0
  %v201 = vadd.f32 0.0, %v200
  %v202 = vpop.f32.mrb[0].mxu0
  %203 = vmatprep.mubr.bf16.mxu0 0
  %204 = vmatmul.mubr.bf16.gmra.mrb[0].mxu0 %v161
  %v205 = vpop.f32.mrb[0].mxu0
  %v206 = vadd.f32 0.0, %v205
  %v207 = vpop.f32.mrb[0].mxu0
  %v208 = vpop.f32.mrb[0].mxu0
  %v209 = vpop.f32.mrb[0].mxu0
  %210 = vdwg.mxu0
  %v211 = vmul.f32 %v198, 0.5
  %v212 = vmul.f32 %v201, 0.5
  %v213 = vmul.f32 %v206, 0.5
  %v214 = vmul.f32 %v198, 0.044715
  %v215 = vmul.f32 %v201, 0.044715
  %v216 = vmul.f32 %v206, 0.044715
  %v217 = vmul.f32 %v214, %v198
  %v218 = vmul.f32 %v215, %v201
  %v219 = vmul.f32 %v216, %v206
  %v220 = vmul.f32 %v217, %v198
  %v221 = vmul.f32 %v218, %v201
  %v222 = vmul.f32 %v219, %v206
  %v223 = vadd.f32 %v198, %v220
  %v224 = vadd.f32 %v201, %v221
  %v225 = vadd.f32 %v206, %v222
  %v226 = vmul.f32 %v223, 0.7978846
  %v227 = vmul.f32 %v224, 0.7978846
  %v228 = vmul.f32 %v225, 0.7978846
  %v229 = vtanh.pop %v226
  %v230 = vtanh.pop %v227
  %v231 = vtanh.pop %v228
  %v232 = vadd.f32 %v229, 1.0
  %v233 = vadd.f32 %v230, 1.0
  %v234 = vadd.f32 %v231, 1.0
  %v235 = vmul.f32 %v211, %v232
  %v236 = vmul.f32 %v212, %v233
  %v237 = vmul.f32 %v213, %v234
  %v238 = vpack.c.bf16 %v236, %v235
  %v239 = vpack.c.bf16 %v237, %v237
  %v240 = vpack.c.bf16 %v40, %v39
  %v241 = vpack.c.bf16 %v42, %v41
  %v242 = vpack.c.bf16 %v44, %v43
  %v243 = vpack.c.bf16 %v46, %v45
  %v244 = vpack.c.bf16 %v48, %v47
  %v245 = vpack.c.bf16 %v50, %v49
  %v246 = vpack.c.bf16 %v52, %v51
  %v247 = vpack.c.bf16 %v54, %v53
  %248 = vmatprep.subr.bf16.mxu0 0
  %249 = vmatpush1.bf16.msra.mxu0 %v240
  %250 = vmatprep.subr.bf16.mxu0 0
  %251 = vmatpush1.bf16.msra.mxu0 %v241
  %252 = vmatprep.subr.bf16.mxu0 0
  %253 = vmatpush1.bf16.msra.mxu0 %v242
  %254 = vmatprep.subr.bf16.mxu0 0
  %255 = vmatpush1.bf16.msra.mxu0 %v243
  %256 = vmatprep.subr.bf16.mxu0 0
  %257 = vmatpush1.bf16.msra.mxu0 %v244
  %258 = vmatprep.subr.bf16.mxu0 0
  %259 = vmatpush1.bf16.msra.mxu0 %v245
  %260 = vmatprep.subr.bf16.mxu0 0
  %261 = vmatpush1.bf16.msra.mxu0 %v246
  %262 = vmatprep.subr.bf16.mxu0 0
  %263 = vmatpush1.bf16.msra.mxu0 %v247
  %264 = vmatprep.subr.bf16.mxu0 0
  %265 = vmatpush1.bf16.msra.mxu0 0
  %266 = vmatprep.subr.bf16.mxu0 0
  %267 = vmatpush1.bf16.msra.mxu0 0
  %268 = vmatprep.subr.bf16.mxu0 0
  %269 = vmatpush1.bf16.msra.mxu0 0
  %270 = vmatprep.subr.bf16.mxu0 0
  %271 = vmatpush1.bf16.msra.mxu0 0
  %272 = vmatprep.subr.bf16.mxu0 0
  %273 = vmatpush1.bf16.msra.mxu0 0
  %274 = vmatprep.subr.bf16.mxu0 0
  %275 = vmatpush1.bf16.msra.mxu0 0
  %276 = vmatprep.subr.bf16.mxu0 0
  %277 = vmatpush1.bf16.msra.mxu0 0
  %278 = vmatprep.subr.bf16.mxu0 0
  %279 = vmatpush1.bf16.msra.mxu0 0
  %280 = vmatprep.mubr.bf16.mxu0 0
  %281 = vmatmul.mubr.bf16.gmra.mrb[0].mxu0 %v238
  %v282 = vpop.f32.mrb[0].mxu0
  %v283 = vadd.f32 0.0, %v282
  %v284 = vpop.f32.mrb[0].mxu0
  %v285 = vpop.f32.mrb[0].mxu0
  %v286 = vadd.f32 0.0, %v285
  %v287 = vpop.f32.mrb[0].mxu0
  %288 = vmatprep.mubr.bf16.mxu0 0
  %289 = vmatmul.mubr.bf16.gmra.mrb[0].mxu0 %v239
  %v290 = vpop.f32.mrb[0].mxu0
  %v291 = vadd.f32 0.0, %v290
  %v292 = vpop.f32.mrb[0].mxu0
  %v293 = vpop.f32.mrb[0].mxu0
  %v294 = vpop.f32.mrb[0].mxu0
  %295 = vdwg.mxu0
  %v296 = vadd.f32 %v30, %v283
  %v297 = vadd.f32 %v31, %v286
  %v298 = vadd.f32 %v32, %v291
  %299 = vst.msk [vmem:[%s6] sm:$0xff] %vm55, %v296
  %300 = vst.msk [vmem:[%s6 + $0x8] sm:$0xff] %vm55, %v297
  %301 = vst.msk [vmem:[%s6 + $0x10] sm:$0xff] %vm55, %v298
  // Predicated region
  $region26: #{legislative_graph_encoder.24} parent=0 // pred_check
    _
  $region27: #{legislative_graph_encoder.24} parent=0 // pred_check_branch
    %303 = sbr.rel (0) target = $region29
  $region28: #{legislative_graph_encoder.24} parent=0 // pred_region
    _
  $region29: #{legislative_graph_encoder.24} parent=0 // pred_fallthru
    _
  // Predicated region
  $region30: #{legislative_graph_encoder.24} parent=0 // pred_check
    _
  $region31: #{legislative_graph_encoder.24} parent=0 // pred_check_branch
    %305 = sbr.rel (0) target = $region33
  $region32: #{legislative_graph_encoder.24} parent=0 // pred_region
    _
  $region33: #{legislative_graph_encoder.24} parent=0 // pred_fallthru
    _

// kernel: legislative_graph_encoder.21
$region0: #{legislative_graph_encoder.21}
  #allocation0 [shape = 'u32[]', space=smem, size = 0x4, offset = 0x4, fixed_abs, tag = 'smem constant byte address 0x4 - core index']
  #allocation1 [shape = 'u32[144,128]{1,0:T(1,128)}', space=vmem, size = 0x12000, scoped, tag = 'internal scratch']
  %s0 = inlined_call_operand.vmem [shape: f32[24,32], index: 0, kind: input, shape index: {}]
  %s1 = inlined_call_operand.vmem [shape: f32[8,32], index: 1, kind: input, shape index: {}]
  %s2 = inlined_call_operand.vmem [shape: f32[32,32], index: 2, kind: input, shape index: {}]
  %s3 = inlined_call_operand.vmem [shape: f32[32,64], index: 3, kind: input, shape index: {}]
  %s4 = inlined_call_operand.vmem [shape: f32[1,32], index: 4, kind: input, shape index: {}]
  %s5 = inlined_call_operand.vmem [shape: s32[32,1], index: 5, kind: input, shape index: {}]
  %s6 = inlined_call_operand.vmem [shape: s32[1,32], index: 6, kind: input, shape index: {}]
  %s7 = inlined_call_operand.vmem [shape: s32[32,1], index: 7, kind: input, shape index: {}]
  %s8 = inlined_call_operand.vmem [shape: f32[32,1], index: 8, kind: input, shape index: {}]
  %s9 = inlined_call_operand.vmem [shape: f32[24,32], index: 9, kind: output, shape index: {}]
  %s10 = sld [smem:[#allocation0]]
  $region46: #{legislative_graph_encoder.21} parent=0
    _
  %s12 = ssub.s32 1, %s10
  %s13 = scalar_select 0, %s12, %s10
  // Predicated region
  $region2: #{legislative_graph_encoder.21} parent=0 // pred_check
    _
  $region3: #{legislative_graph_encoder.21} parent=0 // pred_check_branch
    %15 = sbr.rel (0) target = $region5
  $region4: #{legislative_graph_encoder.21} parent=0 // pred_region
    _
  $region5: #{legislative_graph_encoder.21} parent=0 // pred_fallthru
    _
  // Predicated region
  $region6: #{legislative_graph_encoder.21} parent=0 // pred_check
    _
  $region7: #{legislative_graph_encoder.21} parent=0 // pred_check_branch
    %17 = sbr.rel (0) target = $region9
  $region8: #{legislative_graph_encoder.21} parent=0 // pred_region
    _
  $region9: #{legislative_graph_encoder.21} parent=0 // pred_fallthru
    _
  // Predicated region
  $region10: #{legislative_graph_encoder.21} parent=0 // pred_check
    _
  $region11: #{legislative_graph_encoder.21} parent=0 // pred_check_branch
    %19 = sbr.rel (0) target = $region13
  $region12: #{legislative_graph_encoder.21} parent=0 // pred_region
    _
  $region13: #{legislative_graph_encoder.21} parent=0 // pred_fallthru
    _
  // Predicated region
  $region14: #{legislative_graph_encoder.21} parent=0 // pred_check
    _
  $region15: #{legislative_graph_encoder.21} parent=0 // pred_check_branch
    %21 = sbr.rel (0) target = $region17
  $region16: #{legislative_graph_encoder.21} parent=0 // pred_region
    _
  $region17: #{legislative_graph_encoder.21} parent=0 // pred_fallthru
    _
  // Predicated region
  $region18: #{legislative_graph_encoder.21} parent=0 // pred_check
    _
  $region19: #{legislative_graph_encoder.21} parent=0 // pred_check_branch
    %23 = sbr.rel (0) target = $region21
  $region20: #{legislative_graph_encoder.21} parent=0 // pred_region
    _
  $region21: #{legislative_graph_encoder.21} parent=0 // pred_fallthru
    _
  // Predicated region
  $region22: #{legislative_graph_encoder.21} parent=0 // pred_check
    _
  $region23: #{legislative_graph_encoder.21} parent=0 // pred_check_branch
    %25 = sbr.rel (0) target = $region25
  $region24: #{legislative_graph_encoder.21} parent=0 // pred_region
    _
  $region25: #{legislative_graph_encoder.21} parent=0 // pred_fallthru
    _
  // Predicated region
  $region26: #{legislative_graph_encoder.21} parent=0 // pred_check
    _
  $region27: #{legislative_graph_encoder.21} parent=0 // pred_check_branch
    %27 = sbr.rel (0) target = $region29
  $region28: #{legislative_graph_encoder.21} parent=0 // pred_region
    _
  $region29: #{legislative_graph_encoder.21} parent=0 // pred_fallthru
    _
  // Predicated region
  $region30: #{legislative_graph_encoder.21} parent=0 // pred_check
    _
  $region31: #{legislative_graph_encoder.21} parent=0 // pred_check_branch
    %29 = sbr.rel (0) target = $region33
  $region32: #{legislative_graph_encoder.21} parent=0 // pred_region
    _
  $region33: #{legislative_graph_encoder.21} parent=0 // pred_fallthru
    _
  // Predicated region
  $region34: #{legislative_graph_encoder.21} parent=0 // pred_check
    _
  $region35: #{legislative_graph_encoder.21} parent=0 // pred_check_branch
    %31 = sbr.rel (0) target = $region37
  $region36: #{legislative_graph_encoder.21} parent=0 // pred_region
    _
  $region37: #{legislative_graph_encoder.21} parent=0 // pred_fallthru
    _
  %v33 = vld [vmem:[%s0] sm:$0xff]
  %v34 = vld [vmem:[%s0 + $0x8] sm:$0xff]
  %v35 = vld [vmem:[%s0 + $0x10] sm:$0xff]
  %v36 = vld [vmem:[%s1] sm:$0xff]
  %v37 = vld [vmem:[%s2] sm:$0xff]
  %v38 = vld [vmem:[%s2 + $0x8] sm:$0xff]
  %v39 = vld [vmem:[%s2 + $0x10] sm:$0xff]
  %v40 = vld [vmem:[%s2 + $0x18] sm:$0xff]
  %v41 = vpack.c.bf16 %v34, %v33
  %v42 = vpack.c.bf16 %v35, %v35
  %v43 = vpack.c.bf16 %v38, %v37
  %v44 = vpack.c.bf16 %v40, %v39
  %vm45 = vcmask 261120
  %v47 = vsel %vm45, %v41, 0
  %v50 = vsel %vm45, %v42, 0
  %52 = vmatprep.subr.bf16.mxu0 0
  %53 = vmatpush1.bf16.msra.mxu0 %v43
  %54 = vmatprep.subr.bf16.mxu0 0
  %55 = vmatpush1.bf16.msra.mxu0 %v44
  %56 = vmatprep.subr.bf16.mxu0 0
  %57 = vmatpush1.bf16.msra.mxu0 0
  %58 = vmatprep.subr.bf16.mxu0 0
  %59 = vmatpush1.bf16.msra.mxu0 0
  %60 = vmatprep.subr.bf16.mxu0 0
  %61 = vmatpush1.bf16.msra.mxu0 0
  %62 = vmatprep.subr.bf16.mxu0 0
  %63 = vmatpush1.bf16.msra.mxu0 0
  %64 = vmatprep.subr.bf16.mxu0 0
  %65 = vmatpush1.bf16.msra.mxu0 0
  %66 = vmatprep.subr.bf16.mxu0 0
  %67 = vmatpush1.bf16.msra.mxu0 0
  %68 = vmatprep.subr.bf16.mxu0 0
  %69 = vmatpush1.bf16.msra.mxu0 0
  %70 = vmatprep.subr.bf16.mxu0 0
  %71 = vmatpush1.bf16.msra.mxu0 0
  %72 = vmatprep.subr.bf16.mxu0 0
  %73 = vmatpush1.bf16.msra.mxu0 0
  %74 = vmatprep.subr.bf16.mxu0 0
  %75 = vmatpush1.bf16.msra.mxu0 0
  %76 = vmatprep.subr.bf16.mxu0 0
  %77 = vmatpush1.bf16.msra.mxu0 0
  %78 = vmatprep.subr.bf16.mxu0 0
  %79 = vmatpush1.bf16.msra.mxu0 0
  %80 = vmatprep.subr.bf16.mxu0 0
  %81 = vmatpush1.bf16.msra.mxu0 0
  %82 = vmatprep.subr.bf16.mxu0 0
  %83 = vmatpush1.bf16.msra.mxu0 0
  %84 = vmatprep.mubr.bf16.mxu0 0
  %85 = vmatmul.mubr.bf16.gmra.mrb[0].mxu0 %v47
  %v86 = vpop.f32.mrb[0].mxu0
  %v87 = vadd.f32 0.0, %v86
  %v88 = vpop.f32.mrb[0].mxu0
  %v89 = vpop.f32.mrb[0].mxu0
  %v90 = vadd.f32 0.0, %v89
  %v91 = vpop.f32.mrb[0].mxu0
  %92 = vmatprep.mubr.bf16.mxu0 0
  %93 = vmatmul.mubr.bf16.gmra.mrb[0].mxu0 %v50
  %v94 = vpop.f32.mrb[0].mxu0
  %v95 = vadd.f32 0.0, %v94
  %v96 = vpop.f32.mrb[0].mxu0
  %v97 = vpop.f32.mrb[0].mxu0
  %v98 = vpop.f32.mrb[0].mxu0
  %99 = vdwg.mxu0
  %v100 = vld [vmem:[%s3] sm:$0xff]
  %v101 = vld [vmem:[%s3 + $0x8] sm:$0xff]
  %v102 = vld [vmem:[%s3 + $0x10] sm:$0xff]
  %v103 = vld [vmem:[%s3 + $0x18] sm:$0xff]
  %v104 = vpack.c.bf16 %v36, %v36
  %v105 = vpack.c.bf16 %v101, %v100
  %v106 = vpack.c.bf16 %v103, %v102
  %v108 = vsel %vm45, %v104, 0
  %110 = vmatprep.subr.bf16.mxu0 0
  %111 = vmatpush1.bf16.msra.mxu0 %v105
  %112 = vmatprep.subr.bf16.mxu0 0
  %113 = vmatpush1.bf16.msra.mxu0 %v106
  %114 = vmatprep.subr.bf16.mxu0 0
  %115 = vmatpush1.bf16.msra.mxu0 0
  %116 = vmatprep.subr.bf16.mxu0 0
  %117 = vmatpush1.bf16.msra.mxu0 0
  %118 = vmatprep.subr.bf16.mxu0 0
  %119 = vmatpush1.bf16.msra.mxu0 0
  %120 = vmatprep.subr.bf16.mxu0 0
  %121 = vmatpush1.bf16.msra.mxu0 0
  %122 = vmatprep.subr.bf16.mxu0 0
  %123 = vmatpush1.bf16.msra.mxu0 0
  %124 = vmatprep.subr.bf16.mxu0 0
  %125 = vmatpush1.bf16.msra.mxu0 0
  %126 = vmatprep.subr.bf16.mxu0 0
  %127 = vmatpush1.bf16.msra.mxu0 0
  %128 = vmatprep.subr.bf16.mxu0 0
  %129 = vmatpush1.bf16.msra.mxu0 0
  %130 = vmatprep.subr.bf16.mxu0 0
  %131 = vmatpush1.bf16.msra.mxu0 0
  %132 = vmatprep.subr.bf16.mxu0 0
  %133 = vmatpush1.bf16.msra.mxu0 0
  %134 = vmatprep.subr.bf16.mxu0 0
  %135 = vmatpush1.bf16.msra.mxu0 0
  %136 = vmatprep.subr.bf16.mxu0 0
  %137 = vmatpush1.bf16.msra.mxu0 0
  %138 = vmatprep.subr.bf16.mxu0 0
  %139 = vmatpush1.bf16.msra.mxu0 0
  %140 = vmatprep.subr.bf16.mxu0 0
  %141 = vmatpush1.bf16.msra.mxu0 0
  %142 = vmatprep.mubr.bf16.mxu0 0
  %143 = vmatmul.mubr.bf16.gmra.mrb[0].mxu0 %v108
  %v144 = vpop.f32.mrb[0].mxu0
  %v145 = vadd.f32 0.0, %v144
  %v146 = vpop.f32.mrb[0].mxu0
  %v147 = vpop.f32.mrb[0].mxu0
  %v148 = vpop.f32.mrb[0].mxu0
  %149 = vdwg.mxu0
  %v150 = vlaneseq
  %v151 = vand.u32 %v150, 127
  %v152 = vld [vmem:[%s5] sm:$0xff]
  %v153 = vld [vmem:[%s5 + $0x8] sm:$0xff]
  %v154 = vld [vmem:[%s5 + $0x10] sm:$0xff]
  %v155 = vld [vmem:[%s5 + $0x18] sm:$0xff]
  %156 = vset.pattern.permute.xlu0 0
  %157 = vperm.xlu0 %156, %v152
  %v158 = vpop.permute.xlu0 %157
  %159 = vset.pattern.permute.xlu0 0
  %160 = vperm.xlu0 %159, %v153
  %v161 = vpop.permute.xlu0 %160
  %162 = vset.pattern.permute.xlu0 0
  %163 = vperm.xlu0 %162, %v154
  %v164 = vpop.permute.xlu0 %163
  %165 = vset.pattern.permute.xlu0 0
  %166 = vperm.xlu0 %165, %v155
  %v167 = vpop.permute.xlu0 %166
  %vm168 = vcmp.eq.s32.totalorder %v151, %v158
  %vm169 = vcmp.eq.s32.totalorder %v151, %v161
  %vm170 = vcmp.eq.s32.totalorder %v151, %v164
  %vm171 = vcmp.eq.s32.totalorder %v151, %v167
  %v172 = vsel %vm168, 1, 0
  %v173 = vsel %vm169, 1, 0
  %v174 = vsel %vm170, 1, 0
  %v175 = vsel %vm171, 1, 0
  %v176 = vcvt.s32.f32 %v172
  %v177 = vcvt.s32.f32 %v173
  %v178 = vcvt.s32.f32 %v174
  %v179 = vcvt.s32.f32 %v175
  %v180 = vld [vmem:[%s7] sm:$0xff]
  %v181 = vld [vmem:[%s7 + $0x8] sm:$0xff]
  %v182 = vld [vmem:[%s7 + $0x10] sm:$0xff]
  %v183 = vld [vmem:[%s7 + $0x18] sm:$0xff]
  %184 = vset.pattern.permute.xlu0 0
  %185 = vperm.xlu0 %184, %v180
  %v186 = vpop.permute.xlu0 %185
  %187 = vset.pattern.permute.xlu0 0
  %188 = vperm.xlu0 %187, %v181
  %v189 = vpop.permute.xlu0 %188
  %190 = vset.pattern.permute.xlu0 0
  %191 = vperm.xlu0 %190, %v182
  %v192 = vpop.permute.xlu0 %191
  %193 = vset.pattern.permute.xlu0 0
  %194 = vperm.xlu0 %193, %v183
  %v195 = vpop.permute.xlu0 %194
  %vm196 = vcmp.eq.s32.totalorder %v151, %v186
  %vm197 = vcmp.eq.s32.totalorder %v151, %v189
  %vm198 = vcmp.eq.s32.totalorder %v151, %v192
  %vm199 = vcmp.eq.s32.totalorder %v151, %v195
  %v200 = vsel %vm196, 1, 0
  %v201 = vsel %vm197, 1, 0
  %v202 = vsel %vm198, 1, 0
  %v203 = vsel %vm199, 1, 0
  %v204 = vcvt.s32.f32 %v200
  %v205 = vcvt.s32.f32 %v201
  %v206 = vcvt.s32.f32 %v202
  %v207 = vcvt.s32.f32 %v203
  %v208 = vlaneseq
  %v209 = vshrl.u32 %v208, 7
  %v210 = vadd.s32 %v209, 8
  %v211 = vadd.s32 %v209, 16
  %v212 = vld [vmem:[%s6] sm:$0x1]
  %v213 = vlaneseq
  %v214 = vshrl.u32 %v213, 7
  %v215 = vsub.s32 0, %v214
  %v216 = vrot.slane %v212, %v215
  %vm217 = vcmp.eq.s32.totalorder %v209, %v216
  %vm218 = vcmp.eq.s32.totalorder %v210, %v216
  %vm219 = vcmp.eq.s32.totalorder %v211, %v216
  %v220 = vsel %vm217, 1, 0
  %v221 = vsel %vm218, 1, 0
  %v222 = vsel %vm219, 1, 0
  %v223 = vcvt.s32.f32 %v220
  %v224 = vcvt.s32.f32 %v221
  %v225 = vcvt.s32.f32 %v222
  %vm226 = vcmask 195584
  %v228 = vsel %vm226, %v176, 0
  %v231 = vsel %vm226, %v177, 0
  %v234 = vsel %vm226, %v178, 0
  %v237 = vsel %vm226, %v179, 0
  %239 = vmatprep.subr.mxu0 0.0
  %240 = vmatpush1.msra.mxu0 %v87
  %241 = vmatprep.subr.mxu0 0.0
  %242 = vmatpush1.msra.mxu0 %v90
  %243 = vmatprep.subr.mxu0 0.0
  %244 = vmatpush1.msra.mxu0 %v95
  %245 = vmatprep.subr.mxu0 0.0
  %246 = vmatpush1.msra.mxu0 0.0
  %247 = vmatprep.subr.mxu0 0.0
  %248 = vmatpush1.msra.mxu0 0.0
  %249 = vmatprep.subr.mxu0 0.0
  %250 = vmatpush1.msra.mxu0 0.0
  %251 = vmatprep.subr.mxu0 0.0
  %252 = vmatpush1.msra.mxu0 0.0
  %253 = vmatprep.subr.mxu0 0.0
  %254 = vmatpush1.msra.mxu0 0.0
  %255 = vmatprep.subr.mxu0 0.0
  %256 = vmatpush1.msra.mxu0 0.0
  %257 = vmatprep.subr.mxu0 0.0
  %258 = vmatpush1.msra.mxu0 0.0
  %259 = vmatprep.subr.mxu0 0.0
  %260 = vmatpush1.msra.mxu0 0.0
  %261 = vmatprep.subr.mxu0 0.0
  %262 = vmatpush1.msra.mxu0 0.0
  %263 = vmatprep.subr.mxu0 0.0
  %264 = vmatpush1.msra.mxu0 0.0
  %265 = vmatprep.subr.mxu0 0.0
  %266 = vmatpush1.msra.mxu0 0.0
  %267 = vmatprep.subr.mxu0 0.0
  %268 = vmatpush1.msra.mxu0 0.0
  %269 = vmatprep.subr.mxu0 0.0
  %270 = vmatpush1.msra.mxu0 0.0
  %271 = vmatprep.subr.mxu0 0.0
  %272 = vmatpush1.msra.mxu0 0.0
  %273 = vmatprep.subr.mxu0 0.0
  %274 = vmatpush1.msra.mxu0 0.0
  %275 = vmatprep.subr.mxu0 0.0
  %276 = vmatpush1.msra.mxu0 0.0
  %277 = vmatprep.subr.mxu0 0.0
  %278 = vmatpush1.msra.mxu0 0.0
  %279 = vmatprep.subr.mxu0 0.0
  %280 = vmatpush1.msra.mxu0 0.0
  %281 = vmatprep.subr.mxu0 0.0
  %282 = vmatpush1.msra.mxu0 0.0
  %283 = vmatprep.subr.mxu0 0.0
  %284 = vmatpush1.msra.mxu0 0.0
  %285 = vmatprep.subr.mxu0 0.0
  %286 = vmatpush1.msra.mxu0 0.0
  %287 = vmatprep.subr.mxu0 0.0
  %288 = vmatpush1.msra.mxu0 0.0
  %289 = vmatprep.subr.mxu0 0.0
  %290 = vmatpush1.msra.mxu0 0.0
  %291 = vmatprep.subr.mxu0 0.0
  %292 = vmatpush1.msra.mxu0 0.0
  %293 = vmatprep.subr.mxu0 0.0
  %294 = vmatpush1.msra.mxu0 0.0
  %295 = vmatprep.subr.mxu0 0.0
  %296 = vmatpush1.msra.mxu0 0.0
  %297 = vmatprep.subr.mxu0 0.0
  %298 = vmatpush1.msra.mxu0 0.0
  %299 = vmatprep.subr.mxu0 0.0
  %300 = vmatpush1.msra.mxu0 0.0
  %301 = vmatprep.subr.mxu0 0.0
  %302 = vmatpush1.msra.mxu0 0.0
  %303 = vmatprep.mubr.f32.mxu0 0.0
  %304 = vmatmul.mubr.f32.gmra.mrb[0].mxu0 %v228
  %v305 = vpop.f32.mrb[0].mxu0
  %v306 = vadd.f32 0.0, %v305
  %v307 = vpop.f32.mrb[0].mxu0
  %308 = vmatprep.mubr.f32.mxu0 0.0
  %309 = vmatmul.mubr.f32.gmra.mrb[0].mxu0 %v231
  %v310 = vpop.f32.mrb[0].mxu0
  %v311 = vadd.f32 0.0, %v310
  %v312 = vpop.f32.mrb[0].mxu0
  %313 = vmatprep.mubr.f32.mxu0 0.0
  %314 = vmatmul.mubr.f32.gmra.mrb[0].mxu0 %v234
  %v315 = vpop.f32.mrb[0].mxu0
  %v316 = vadd.f32 0.0, %v315
  %v317 = vpop.f32.mrb[0].mxu0
  %318 = vmatprep.mubr.f32.mxu0 0.0
  %319 = vmatmul.mubr.f32.gmra.mrb[0].mxu0 %v237
  %v320 = vpop.f32.mrb[0].mxu0
  %v321 = vadd.f32 0.0, %v320
  %v322 = vpop.f32.mrb[0].mxu0
  %323 = vdwg.mxu0
  %vm324 = vcmask 64512
  %v326 = vsel %vm324, %v204, 0
  %v329 = vsel %vm324, %v205, 0
  %v332 = vsel %vm324, %v206, 0
  %v335 = vsel %vm324, %v207, 0
  %337 = vmatprep.subr.mxu0 0.0
  %338 = vmatpush1.msra.mxu0 %v145
  %339 = vmatprep.subr.mxu0 0.0
  %340 = vmatpush1.msra.mxu0 0.0
  %341 = vmatprep.subr.mxu0 0.0
  %342 = vmatpush1.msra.mxu0 0.0
  %343 = vmatprep.subr.mxu0 0.0
  %344 = vmatpush1.msra.mxu0 0.0
  %345 = vmatprep.subr.mxu0 0.0
  %346 = vmatpush1.msra.mxu0 0.0
  %347 = vmatprep.subr.mxu0 0.0
  %348 = vmatpush1.msra.mxu0 0.0
  %349 = vmatprep.subr.mxu0 0.0
  %350 = vmatpush1.msra.mxu0 0.0
  %351 = vmatprep.subr.mxu0 0.0
  %352 = vmatpush1.msra.mxu0 0.0
  %353 = vmatprep.subr.mxu0 0.0
  %354 = vmatpush1.msra.mxu0 0.0
  %355 = vmatprep.subr.mxu0 0.0
  %356 = vmatpush1.msra.mxu0 0.0
  %357 = vmatprep.subr.mxu0 0.0
  %358 = vmatpush1.msra.mxu0 0.0
  %359 = vmatprep.subr.mxu0 0.0
  %360 = vmatpush1.msra.mxu0 0.0
  %361 = vmatprep.subr.mxu0 0.0
  %362 = vmatpush1.msra.mxu0 0.0
  %363 = vmatprep.subr.mxu0 0.0
  %364 = vmatpush1.msra.mxu0 0.0
  %365 = vmatprep.subr.mxu0 0.0
  %366 = vmatpush1.msra.mxu0 0.0
  %367 = vmatprep.subr.mxu0 0.0
  %368 = vmatpush1.msra.mxu0 0.0
  %369 = vmatprep.subr.mxu0 0.0
  %370 = vmatpush1.msra.mxu0 0.0
  %371 = vmatprep.subr.mxu0 0.0
  %372 = vmatpush1.msra.mxu0 0.0
  %373 = vmatprep.subr.mxu0 0.0
  %374 = vmatpush1.msra.mxu0 0.0
  %375 = vmatprep.subr.mxu0 0.0
  %376 = vmatpush1.msra.mxu0 0.0
  %377 = vmatprep.subr.mxu0 0.0
  %378 = vmatpush1.msra.mxu0 0.0
  %379 = vmatprep.subr.mxu0 0.0
  %380 = vmatpush1.msra.mxu0 0.0
  %381 = vmatprep.subr.mxu0 0.0
  %382 = vmatpush1.msra.mxu0 0.0
  %383 = vmatprep.subr.mxu0 0.0
  %384 = vmatpush1.msra.mxu0 0.0
  %385 = vmatprep.subr.mxu0 0.0
  %386 = vmatpush1.msra.mxu0 0.0
  %387 = vmatprep.subr.mxu0 0.0
  %388 = vmatpush1.msra.mxu0 0.0
  %389 = vmatprep.subr.mxu0 0.0
  %390 = vmatpush1.msra.mxu0 0.0
  %391 = vmatprep.subr.mxu0 0.0
  %392 = vmatpush1.msra.mxu0 0.0
  %393 = vmatprep.subr.mxu0 0.0
  %394 = vmatpush1.msra.mxu0 0.0
  %395 = vmatprep.subr.mxu0 0.0
  %396 = vmatpush1.msra.mxu0 0.0
  %397 = vmatprep.subr.mxu0 0.0
  %398 = vmatpush1.msra.mxu0 0.0
  %399 = vmatprep.subr.mxu0 0.0
  %400 = vmatpush1.msra.mxu0 0.0
  %401 = vmatprep.mubr.f32.mxu0 0.0
  %402 = vmatmul.mubr.f32.gmra.mrb[0].mxu0 %v326
  %v403 = vpop.f32.mrb[0].mxu0
  %v404 = vadd.f32 0.0, %v403
  %v405 = vpop.f32.mrb[0].mxu0
  %406 = vmatprep.mubr.f32.mxu0 0.0
  %407 = vmatmul.mubr.f32.gmra.mrb[0].mxu0 %v329
  %v408 = vpop.f32.mrb[0].mxu0
  %v409 = vadd.f32 0.0, %v408
  %v410 = vpop.f32.mrb[0].mxu0
  %411 = vmatprep.mubr.f32.mxu0 0.0
  %412 = vmatmul.mubr.f32.gmra.mrb[0].mxu0 %v332
  %v413 = vpop.f32.mrb[0].mxu0
  %v414 = vadd.f32 0.0, %v413
  %v415 = vpop.f32.mrb[0].mxu0
  %416 = vmatprep.mubr.f32.mxu0 0.0
  %417 = vmatmul.mubr.f32.gmra.mrb[0].mxu0 %v335
  %v418 = vpop.f32.mrb[0].mxu0
  %v419 = vadd.f32 0.0, %v418
  %v420 = vpop.f32.mrb[0].mxu0
  %421 = vdwg.mxu0
  %v422 = vadd.s32 %v209, 24
  %v423 = vmul.u32 %v151, 8
  %vm424 = vcmp.ge.s32.totalorder %v209, %v423
  %vm425 = vcmp.ge.s32.totalorder %v210, %v423
  %vm426 = vcmp.ge.s32.totalorder %v211, %v423
  %vm427 = vcmp.ge.s32.totalorder %v422, %v423
  %v428 = vadd.s32 %v151, 1
  %v429 = vmul.u32 %v428, 8
  %vm430 = vcmp.lt.s32.totalorder %v209, %v429
  %vm431 = vcmp.lt.s32.totalorder %v210, %v429
  %vm432 = vcmp.lt.s32.totalorder %v211, %v429
  %vm433 = vcmp.lt.s32.totalorder %v422, %v429
  %vm434 = vmand %vm424, %vm430
  %vm435 = vmand %vm425, %vm431
  %vm436 = vmand %vm426, %vm432
  %vm437 = vmand %vm427, %vm433
  %v438 = vsel %vm434, 1, 0
  %v439 = vsel %vm435, 1, 0
  %v440 = vsel %vm436, 1, 0
  %v441 = vsel %vm437, 1, 0
  %v442 = vcvt.s32.f32 %v438
  %v443 = vcvt.s32.f32 %v439
  %v444 = vcvt.s32.f32 %v440
  %v445 = vcvt.s32.f32 %v441
  %v446 = vmul.u32 %v209, 8
  %vm447 = vcmp.ge.s32.totalorder %v151, %v446
  %v448 = vadd.s32 %v209, 1
  %v449 = vmul.u32 %v448, 8
  %vm450 = vcmp.lt.s32.totalorder %v151, %v449
  %vm451 = vmand %vm447, %vm450
  %v452 = vsel %vm451, 1, 0
  %v453 = vcvt.s32.f32 %v452
  %v454 = vld [vmem:[%s4] sm:$0x1]
  %v456 = vlaneseq
  %v457 = vshrl.u32 %v456, 7
  %v458 = vsub.s32 0, %v457
  %v459 = vrot.slane %v454, %v458
  %v461 = vadd.f32 %v404, %v459
  %v462 = vadd.f32 %v409, %v459
  %v463 = vadd.f32 %v414, %v459
  %v464 = vadd.f32 %v419, %v459
  %v465 = vmul.f32 %v306, %v461
  %v466 = vmul.f32 %v311, %v462
  %v467 = vmul.f32 %v316, %v463
  %v468 = vmul.f32 %v321, %v464
  %v470 = vsel %vm45, %v465, 0
  %v473 = vsel %vm45, %v466, 0
  %v476 = vsel %vm45, %v467, 0
  %v479 = vsel %vm45, %v468, 0
  %481 = vmatprep.subr.mxu0 0.0
  %482 = vmatpush1.msra.mxu0 %v442
  %483 = vmatprep.subr.mxu0 0.0
  %484 = vmatpush1.msra.mxu0 %v443
  %485 = vmatprep.subr.mxu0 0.0
  %486 = vmatpush1.msra.mxu0 %v444
  %487 = vmatprep.subr.mxu0 0.0
  %488 = vmatpush1.msra.mxu0 %v445
  %489 = vmatprep.subr.mxu0 0.0
  %490 = vmatpush1.msra.mxu0 0.0
  %491 = vmatprep.subr.mxu0 0.0
  %492 = vmatpush1.msra.mxu0 0.0
  %493 = vmatprep.subr.mxu0 0.0
  %494 = vmatpush1.msra.mxu0 0.0
  %495 = vmatprep.subr.mxu0 0.0
  %496 = vmatpush1.msra.mxu0 0.0
  %497 = vmatprep.subr.mxu0 0.0
  %498 = vmatpush1.msra.mxu0 0.0
  %499 = vmatprep.subr.mxu0 0.0
  %500 = vmatpush1.msra.mxu0 0.0
  %501 = vmatprep.subr.mxu0 0.0
  %502 = vmatpush1.msra.mxu0 0.0
  %503 = vmatprep.subr.mxu0 0.0
  %504 = vmatpush1.msra.mxu0 0.0
  %505 = vmatprep.subr.mxu0 0.0
  %506 = vmatpush1.msra.mxu0 0.0
  %507 = vmatprep.subr.mxu0 0.0
  %508 = vmatpush1.msra.mxu0 0.0
  %509 = vmatprep.subr.mxu0 0.0
  %510 = vmatpush1.msra.mxu0 0.0
  %511 = vmatprep.subr.mxu0 0.0
  %512 = vmatpush1.msra.mxu0 0.0
  %513 = vmatprep.subr.mxu0 0.0
  %514 = vmatpush1.msra.mxu0 0.0
  %515 = vmatprep.subr.mxu0 0.0
  %516 = vmatpush1.msra.mxu0 0.0
  %517 = vmatprep.subr.mxu0 0.0
  %518 = vmatpush1.msra.mxu0 0.0
  %519 = vmatprep.subr.mxu0 0.0
  %520 = vmatpush1.msra.mxu0 0.0
  %521 = vmatprep.subr.mxu0 0.0
  %522 = vmatpush1.msra.mxu0 0.0
  %523 = vmatprep.subr.mxu0 0.0
  %524 = vmatpush1.msra.mxu0 0.0
  %525 = vmatprep.subr.mxu0 0.0
  %526 = vmatpush1.msra.mxu0 0.0
  %527 = vmatprep.subr.mxu0 0.0
  %528 = vmatpush1.msra.mxu0 0.0
  %529 = vmatprep.subr.mxu0 0.0
  %530 = vmatpush1.msra.mxu0 0.0
  %531 = vmatprep.subr.mxu0 0.0
  %532 = vmatpush1.msra.mxu0 0.0
  %533 = vmatprep.subr.mxu0 0.0
  %534 = vmatpush1.msra.mxu0 0.0
  %535 = vmatprep.subr.mxu0 0.0
  %536 = vmatpush1.msra.mxu0 0.0
  %537 = vmatprep.subr.mxu0 0.0
  %538 = vmatpush1.msra.mxu0 0.0
  %539 = vmatprep.subr.mxu0 0.0
  %540 = vmatpush1.msra.mxu0 0.0
  %541 = vmatprep.subr.mxu0 0.0
  %542 = vmatpush1.msra.mxu0 0.0
  %543 = vmatprep.subr.mxu0 0.0
  %544 = vmatpush1.msra.mxu0 0.0
  %545 = vmatprep.mubr.f32.mxu0 0.0
  %546 = vmatmul.mubr.f32.gmra.mrb[0].mxu0 %v470
  %v547 = vpop.f32.mrb[0].mxu0
  %v548 = vadd.f32 0.0, %v547
  %v549 = vpop.f32.mrb[0].mxu0
  %550 = vmatprep.mubr.f32.mxu0 0.0
  %551 = vmatmul.mubr.f32.gmra.mrb[0].mxu0 %v473
  %v552 = vpop.f32.mrb[0].mxu0
  %v553 = vadd.f32 0.0, %v552
  %v554 = vpop.f32.mrb[0].mxu0
  %555 = vmatprep.mubr.f32.mxu0 0.0
  %556 = vmatmul.mubr.f32.gmra.mrb[0].mxu0 %v476
  %v557 = vpop.f32.mrb[0].mxu0
  %v558 = vadd.f32 0.0, %v557
  %v559 = vpop.f32.mrb[0].mxu0
  %560 = vmatprep.mubr.f32.mxu0 0.0
  %561 = vmatmul.mubr.f32.gmra.mrb[0].mxu0 %v479
  %v562 = vpop.f32.mrb[0].mxu0
  %v563 = vadd.f32 0.0, %v562
  %v564 = vpop.f32.mrb[0].mxu0
  %565 = vdwg.mxu0
  %v566 = vmul.f32 %v548, 0.35355338
  %v567 = vmul.f32 %v553, 0.35355338
  %v568 = vmul.f32 %v558, 0.35355338
  %v569 = vmul.f32 %v563, 0.35355338
  %vm570 = vcmp.ge.f32.partialorder %v566, 0.0
  %vm571 = vcmp.ge.f32.partialorder %v567, 0.0
  %vm572 = vcmp.ge.f32.partialorder %v568, 0.0
  %vm573 = vcmp.ge.f32.partialorder %v569, 0.0
  %v574 = vmul.f32 %v566, 0.01
  %v575 = vmul.f32 %v567, 0.01
  %v576 = vmul.f32 %v568, 0.01
  %v577 = vmul.f32 %v569, 0.01
  %v578 = vsel %vm570, %v566, %v574
  %v579 = vsel %vm571, %v567, %v575
  %v580 = vsel %vm572, %v568, %v576
  %v581 = vsel %vm573, %v569, %v577
  %vm582 = vcmp.gt.f32.partialorder %v176, 0.5
  %vm583 = vcmp.gt.f32.partialorder %v177, 0.5
  %vm584 = vcmp.gt.f32.partialorder %v178, 0.5
  %vm585 = vcmp.gt.f32.partialorder %v179, 0.5
  %587 = vset.pattern.permute.xlu0 0
  %588 = vperm.xlu0 %587, %v578
  %v589 = vpop.permute.xlu0 %588
  %592 = vset.pattern.permute.xlu0 0
  %593 = vperm.xlu0 %592, %v579
  %v594 = vpop.permute.xlu0 %593
  %597 = vset.pattern.permute.xlu0 0
  %598 = vperm.xlu0 %597, %v580
  %v599 = vpop.permute.xlu0 %598
  %602 = vset.pattern.permute.xlu0 0
  %603 = vperm.xlu0 %602, %v581
  %v604 = vpop.permute.xlu0 %603
  %v606 = vsel %vm582, %v589, -1e+30
  %v607 = vsel %vm583, %v594, -1e+30
  %v608 = vsel %vm584, %v599, -1e+30
  %v609 = vsel %vm585, %v604, -1e+30
  %v610 = vsel %vm226, %v606, -inf
  %v611 = vsel %vm226, %v607, -inf
  %v612 = vsel %vm226, %v608, -inf
  %v613 = vsel %vm226, %v609, -inf
  %v614 = vmax.f32 %v610, %v611
  %v615 = vmax.f32 %v612, %v613
  %v616 = vmax.f32 %v614, %v615
  %v617 = vrot.slane %v616, 4
  %v618 = vmax.f32 %v616, %v617
  %v619 = vrot.slane %v618, 2
  %v620 = vmax.f32 %v618, %v619
  %v621 = vrot.slane %v620, 1
  %v622 = vmax.f32 %v620, %v621
  %v623 = vmul.f32 %v176, %v622
  %v624 = vmul.f32 %v177, %v622
  %v625 = vmul.f32 %v178, %v622
  %v626 = vmul.f32 %v179, %v622
  %v627 = vsel %vm226, %v623, 0.0
  %628 = vadd.xlane.f32.xlu0 %v627
  %v629 = vpop.xlane.xlu0 %628
  %v630 = vsel %vm226, %v624, 0.0
  %631 = vadd.xlane.f32.xlu0 %v630
  %v632 = vpop.xlane.xlu0 %631
  %v633 = vsel %vm226, %v625, 0.0
  %634 = vadd.xlane.f32.xlu0 %v633
  %v635 = vpop.xlane.xlu0 %634
  %v636 = vsel %vm226, %v626, 0.0
  %637 = vadd.xlane.f32.xlu0 %v636
  %v638 = vpop.xlane.xlu0 %637
  %v639 = vsub.f32 %v578, %v629
  %v640 = vsub.f32 %v579, %v632
  %v641 = vsub.f32 %v580, %v635
  %v642 = vsub.f32 %v581, %v638
  %v643 = vmul.f32 %v639, 1.442695
  %v644 = vpow.pop %v643
  %v645 = vmul.f32 %v640, 1.442695
  %v646 = vpow.pop %v645
  %v647 = vmul.f32 %v641, 1.442695
  %v648 = vpow.pop %v647
  %v649 = vmul.f32 %v642, 1.442695
  %v650 = vpow.pop %v649
  %vm651 = vcmp.eq.s32.totalorder %v151, 0
  %v652 = vsel %vm651, 1, 0
  %v653 = vcvt.s32.f32 %v652
  %655 = vset.pattern.permute.xlu0 0
  %656 = vperm.xlu0 %655, %v644
  %v657 = vpop.permute.xlu0 %656
  %660 = vset.pattern.permute.xlu0 0
  %661 = vperm.xlu0 %660, %v646
  %v662 = vpop.permute.xlu0 %661
  %665 = vset.pattern.permute.xlu0 0
  %666 = vperm.xlu0 %665, %v648
  %v667 = vpop.permute.xlu0 %666
  %670 = vset.pattern.permute.xlu0 0
  %671 = vperm.xlu0 %670, %v650
  %v672 = vpop.permute.xlu0 %671
  %v674 = vmul.f32 %v657, %v653
  %v675 = vmul.f32 %v662, %v653
  %v676 = vmul.f32 %v667, %v653
  %v677 = vmul.f32 %v672, %v653
  %v678 = vadd.f32 %v674, 0.0
  %v679 = vadd.f32 %v675, 0.0
  %v680 = vadd.f32 %v676, 0.0
  %v681 = vadd.f32 %v677, 0.0
  %682 = vset.pattern.permute.xlu0 1
  %683 = vperm.xlu0 %682, %v578
  %v684 = vpop.permute.xlu0 %683
  %686 = vset.pattern.permute.xlu0 1
  %687 = vperm.xlu0 %686, %v579
  %v688 = vpop.permute.xlu0 %687
  %690 = vset.pattern.permute.xlu0 1
  %691 = vperm.xlu0 %690, %v580
  %v692 = vpop.permute.xlu0 %691
  %694 = vset.pattern.permute.xlu0 1
  %695 = vperm.xlu0 %694, %v581
  %v696 = vpop.permute.xlu0 %695
  %v698 = vsel %vm582, %v684, -1e+30
  %v699 = vsel %vm583, %v688, -1e+30
  %v700 = vsel %vm584, %v692, -1e+30
  %v701 = vsel %vm585, %v696, -1e+30
  %v702 = vsel %vm226, %v698, -inf
  %v703 = vsel %vm226, %v699, -inf
  %v704 = vsel %vm226, %v700, -inf
  %v705 = vsel %vm226, %v701, -inf
  %v706 = vmax.f32 %v702, %v703
  %v707 = vmax.f32 %v704, %v705
  %v708 = vmax.f32 %v706, %v707
  %v709 = vrot.slane %v708, 4
  %v710 = vmax.f32 %v708, %v709
  %v711 = vrot.slane %v710, 2
  %v712 = vmax.f32 %v710, %v711
  %v713 = vrot.slane %v712, 1
  %v714 = vmax.f32 %v712, %v713
  %v715 = vmul.f32 %v176, %v714
  %v716 = vmul.f32 %v177, %v714
  %v717 = vmul.f32 %v178, %v714
  %v718 = vmul.f32 %v179, %v714
  %v719 = vsel %vm226, %v715, 0.0
  %720 = vadd.xlane.f32.xlu0 %v719
  %v721 = vpop.xlane.xlu0 %720
  %v722 = vsel %vm226, %v716, 0.0
  %723 = vadd.xlane.f32.xlu0 %v722
  %v724 = vpop.xlane.xlu0 %723
  %v725 = vsel %vm226, %v717, 0.0
  %726 = vadd.xlane.f32.xlu0 %v725
  %v727 = vpop.xlane.xlu0 %726
  %v728 = vsel %vm226, %v718, 0.0
  %729 = vadd.xlane.f32.xlu0 %v728
  %v730 = vpop.xlane.xlu0 %729
  %v731 = vsub.f32 %v578, %v721
  %v732 = vsub.f32 %v579, %v724
  %v733 = vsub.f32 %v580, %v727
  %v734 = vsub.f32 %v581, %v730
  %v735 = vmul.f32 %v731, 1.442695
  %v736 = vpow.pop %v735
  %v737 = vmul.f32 %v732, 1.442695
  %v738 = vpow.pop %v737
  %v739 = vmul.f32 %v733, 1.442695
  %v740 = vpow.pop %v739
  %v741 = vmul.f32 %v734, 1.442695
  %v742 = vpow.pop %v741
  %vm743 = vcmp.eq.s32.totalorder %v151, 1
  %v744 = vsel %vm743, 1, 0
  %v745 = vcvt.s32.f32 %v744
  %747 = vset.pattern.permute.xlu0 1
  %748 = vperm.xlu0 %747, %v736
  %v749 = vpop.permute.xlu0 %748
  %752 = vset.pattern.permute.xlu0 1
  %753 = vperm.xlu0 %752, %v738
  %v754 = vpop.permute.xlu0 %753
  %757 = vset.pattern.permute.xlu0 1
  %758 = vperm.xlu0 %757, %v740
  %v759 = vpop.permute.xlu0 %758
  %762 = vset.pattern.permute.xlu0 1
  %763 = vperm.xlu0 %762, %v742
  %v764 = vpop.permute.xlu0 %763
  %v766 = vmul.f32 %v749, %v745
  %v767 = vmul.f32 %v754, %v745
  %v768 = vmul.f32 %v759, %v745
  %v769 = vmul.f32 %v764, %v745
  %v770 = vadd.f32 %v678, %v766
  %v771 = vadd.f32 %v679, %v767
  %v772 = vadd.f32 %v680, %v768
  %v773 = vadd.f32 %v681, %v769
  %774 = vset.pattern.permute.xlu0 2
  %775 = vperm.xlu0 %774, %v578
  %v776 = vpop.permute.xlu0 %775
  %778 = vset.pattern.permute.xlu0 2
  %779 = vperm.xlu0 %778, %v579
  %v780 = vpop.permute.xlu0 %779
  %782 = vset.pattern.permute.xlu0 2
  %783 = vperm.xlu0 %782, %v580
  %v784 = vpop.permute.xlu0 %783
  %786 = vset.pattern.permute.xlu0 2
  %787 = vperm.xlu0 %786, %v581
  %v788 = vpop.permute.xlu0 %787
  %v790 = vsel %vm582, %v776, -1e+30
  %v791 = vsel %vm583, %v780, -1e+30
  %v792 = vsel %vm584, %v784, -1e+30
  %v793 = vsel %vm585, %v788, -1e+30
  %v794 = vsel %vm226, %v790, -inf
  %v795 = vsel %vm226, %v791, -inf
  %v796 = vsel %vm226, %v792, -inf
  %v797 = vsel %vm226, %v793, -inf
  %v798 = vmax.f32 %v794, %v795
  %v799 = vmax.f32 %v796, %v797
  %v800 = vmax.f32 %v798, %v799
  %v801 = vrot.slane %v800, 4
  %v802 = vmax.f32 %v800, %v801
  %v803 = vrot.slane %v802, 2
  %v804 = vmax.f32 %v802, %v803
  %v805 = vrot.slane %v804, 1
  %v806 = vmax.f32 %v804, %v805
  %v807 = vmul.f32 %v176, %v806
  %v808 = vmul.f32 %v177, %v806
  %v809 = vmul.f32 %v178, %v806
  %v810 = vmul.f32 %v179, %v806
  %v811 = vsel %vm226, %v807, 0.0
  %812 = vadd.xlane.f32.xlu0 %v811
  %v813 = vpop.xlane.xlu0 %812
  %v814 = vsel %vm226, %v808, 0.0
  %815 = vadd.xlane.f32.xlu0 %v814
  %v816 = vpop.xlane.xlu0 %815
  %v817 = vsel %vm226, %v809, 0.0
  %818 = vadd.xlane.f32.xlu0 %v817
  %v819 = vpop.xlane.xlu0 %818
  %v820 = vsel %vm226, %v810, 0.0
  %821 = vadd.xlane.f32.xlu0 %v820
  %v822 = vpop.xlane.xlu0 %821
  %v823 = vsub.f32 %v578, %v813
  %v824 = vsub.f32 %v579, %v816
  %v825 = vsub.f32 %v580, %v819
  %v826 = vsub.f32 %v581, %v822
  %v827 = vmul.f32 %v823, 1.442695
  %v828 = vpow.pop %v827
  %v829 = vmul.f32 %v824, 1.442695
  %v830 = vpow.pop %v829
  %v831 = vmul.f32 %v825, 1.442695
  %v832 = vpow.pop %v831
  %v833 = vmul.f32 %v826, 1.442695
  %v834 = vpow.pop %v833
  %vm835 = vcmp.eq.s32.totalorder %v151, 2
  %v836 = vsel %vm835, 1, 0
  %v837 = vcvt.s32.f32 %v836
  %839 = vset.pattern.permute.xlu0 2
  %840 = vperm.xlu0 %839, %v828
  %v841 = vpop.permute.xlu0 %840
  %844 = vset.pattern.permute.xlu0 2
  %845 = vperm.xlu0 %844, %v830
  %v846 = vpop.permute.xlu0 %845
  %849 = vset.pattern.permute.xlu0 2
  %850 = vperm.xlu0 %849, %v832
  %v851 = vpop.permute.xlu0 %850
  %854 = vset.pattern.permute.xlu0 2
  %855 = vperm.xlu0 %854, %v834
  %v856 = vpop.permute.xlu0 %855
  %v858 = vmul.f32 %v841, %v837
  %v859 = vmul.f32 %v846, %v837
  %v860 = vmul.f32 %v851, %v837
  %v861 = vmul.f32 %v856, %v837
  %v862 = vadd.f32 %v770, %v858
  %v863 = vadd.f32 %v771, %v859
  %v864 = vadd.f32 %v772, %v860
  %v865 = vadd.f32 %v773, %v861
  %866 = vset.pattern.permute.xlu0 3
  %867 = vperm.xlu0 %866, %v578
  %v868 = vpop.permute.xlu0 %867
  %870 = vset.pattern.permute.xlu0 3
  %871 = vperm.xlu0 %870, %v579
  %v872 = vpop.permute.xlu0 %871
  %874 = vset.pattern.permute.xlu0 3
  %875 = vperm.xlu0 %874, %v580
  %v876 = vpop.permute.xlu0 %875
  %878 = vset.pattern.permute.xlu0 3
  %879 = vperm.xlu0 %878, %v581
  %v880 = vpop.permute.xlu0 %879
  %v882 = vsel %vm582, %v868, -1e+30
  %v883 = vsel %vm583, %v872, -1e+30
  %v884 = vsel %vm584, %v876, -1e+30
  %v885 = vsel %vm585, %v880, -1e+30
  %v886 = vsel %vm226, %v882, -inf
  %v887 = vsel %vm226, %v883, -inf
  %v888 = vsel %vm226, %v884, -inf
  %v889 = vsel %vm226, %v885, -inf
  %v890 = vmax.f32 %v886, %v887
  %v891 = vmax.f32 %v888, %v889
  %v892 = vmax.f32 %v890, %v891
  %v893 = vrot.slane %v892, 4
  %v894 = vmax.f32 %v892, %v893
  %v895 = vrot.slane %v894, 2
  %v896 = vmax.f32 %v894, %v895
  %v897 = vrot.slane %v896, 1
  %v898 = vmax.f32 %v896, %v897
  %v899 = vmul.f32 %v176, %v898
  %v900 = vmul.f32 %v177, %v898
  %v901 = vmul.f32 %v178, %v898
  %v902 = vmul.f32 %v179, %v898
  %v903 = vsel %vm226, %v899, 0.0
  %904 = vadd.xlane.f32.xlu0 %v903
  %v905 = vpop.xlane.xlu0 %904
  %v906 = vsel %vm226, %v900, 0.0
  %907 = vadd.xlane.f32.xlu0 %v906
  %v908 = vpop.xlane.xlu0 %907
  %v909 = vsel %vm226, %v901, 0.0
  %910 = vadd.xlane.f32.xlu0 %v909
  %v911 = vpop.xlane.xlu0 %910
  %v912 = vsel %vm226, %v902, 0.0
  %913 = vadd.xlane.f32.xlu0 %v912
  %v914 = vpop.xlane.xlu0 %913
  %v915 = vsub.f32 %v578, %v905
  %v916 = vsub.f32 %v579, %v908
  %v917 = vsub.f32 %v580, %v911
  %v918 = vsub.f32 %v581, %v914
  %v919 = vmul.f32 %v915, 1.442695
  %v920 = vpow.pop %v919
  %v921 = vmul.f32 %v916, 1.442695
  %v922 = vpow.pop %v921
  %v923 = vmul.f32 %v917, 1.442695
  %v924 = vpow.pop %v923
  %v925 = vmul.f32 %v918, 1.442695
  %v926 = vpow.pop %v925
  %vm927 = vcmp.eq.s32.totalorder %v151, 3
  %v928 = vsel %vm927, 1, 0
  %v929 = vcvt.s32.f32 %v928
  %931 = vset.pattern.permute.xlu0 3
  %932 = vperm.xlu0 %931, %v920
  %v933 = vpop.permute.xlu0 %932
  %936 = vset.pattern.permute.xlu0 3
  %937 = vperm.xlu0 %936, %v922
  %v938 = vpop.permute.xlu0 %937
  %941 = vset.pattern.permute.xlu0 3
  %942 = vperm.xlu0 %941, %v924
  %v943 = vpop.permute.xlu0 %942
  %946 = vset.pattern.permute.xlu0 3
  %947 = vperm.xlu0 %946, %v926
  %v948 = vpop.permute.xlu0 %947
  %v950 = vmul.f32 %v933, %v929
  %v951 = vmul.f32 %v938, %v929
  %v952 = vmul.f32 %v943, %v929
  %v953 = vmul.f32 %v948, %v929
  %v954 = vadd.f32 %v862, %v950
  %v955 = vadd.f32 %v863, %v951
  %v956 = vadd.f32 %v864, %v952
  %v957 = vadd.f32 %v865, %v953
  %v959 = vsel %vm45, %v223, 0
  %v962 = vsel %vm45, %v224, 0
  %v965 = vsel %vm45, %v225, 0
  %967 = vmatprep.subr.mxu0 0.0
  %968 = vmatpush1.msra.mxu0 %v954
  %969 = vmatprep.subr.mxu0 0.0
  %970 = vmatpush1.msra.mxu0 %v955
  %971 = vmatprep.subr.mxu0 0.0
  %972 = vmatpush1.msra.mxu0 %v956
  %973 = vmatprep.subr.mxu0 0.0
  %974 = vmatpush1.msra.mxu0 %v957
  %975 = vmatprep.subr.mxu0 0.0
  %976 = vmatpush1.msra.mxu0 0.0
  %977 = vmatprep.subr.mxu0 0.0
  %978 = vmatpush1.msra.mxu0 0.0
  %979 = vmatprep.subr.mxu0 0.0
  %980 = vmatpush1.msra.mxu0 0.0
  %981 = vmatprep.subr.mxu0 0.0
  %982 = vmatpush1.msra.mxu0 0.0
  %983 = vmatprep.subr.mxu0 0.0
  %984 = vmatpush1.msra.mxu0 0.0
  %985 = vmatprep.subr.mxu0 0.0
  %986 = vmatpush1.msra.mxu0 0.0
  %987 = vmatprep.subr.mxu0 0.0
  %988 = vmatpush1.msra.mxu0 0.0
  %989 = vmatprep.subr.mxu0 0.0
  %990 = vmatpush1.msra.mxu0 0.0
  %991 = vmatprep.subr.mxu0 0.0
  %992 = vmatpush1.msra.mxu0 0.0
  %993 = vmatprep.subr.mxu0 0.0
  %994 = vmatpush1.msra.mxu0 0.0
  %995 = vmatprep.subr.mxu0 0.0
  %996 = vmatpush1.msra.mxu0 0.0
  %997 = vmatprep.subr.mxu0 0.0
  %998 = vmatpush1.msra.mxu0 0.0
  %999 = vmatprep.subr.mxu0 0.0
  %1000 = vmatpush1.msra.mxu0 0.0
  %1001 = vmatprep.subr.mxu0 0.0
  %1002 = vmatpush1.msra.mxu0 0.0
  %1003 = vmatprep.subr.mxu0 0.0
  %1004 = vmatpush1.msra.mxu0 0.0
  %1005 = vmatprep.subr.mxu0 0.0
  %1006 = vmatpush1.msra.mxu0 0.0
  %1007 = vmatprep.subr.mxu0 0.0
  %1008 = vmatpush1.msra.mxu0 0.0
  %1009 = vmatprep.subr.mxu0 0.0
  %1010 = vmatpush1.msra.mxu0 0.0
  %1011 = vmatprep.subr.mxu0 0.0
  %1012 = vmatpush1.msra.mxu0 0.0
  %1013 = vmatprep.subr.mxu0 0.0
  %1014 = vmatpush1.msra.mxu0 0.0
  %1015 = vmatprep.subr.mxu0 0.0
  %1016 = vmatpush1.msra.mxu0 0.0
  %1017 = vmatprep.subr.mxu0 0.0
  %1018 = vmatpush1.msra.mxu0 0.0
  %1019 = vmatprep.subr.mxu0 0.0
  %1020 = vmatpush1.msra.mxu0 0.0
  %1021 = vmatprep.subr.mxu0 0.0
  %1022 = vmatpush1.msra.mxu0 0.0
  %1023 = vmatprep.subr.mxu0 0.0
  %1024 = vmatpush1.msra.mxu0 0.0
  %1025 = vmatprep.subr.mxu0 0.0
  %1026 = vmatpush1.msra.mxu0 0.0
  %1027 = vmatprep.subr.mxu0 0.0
  %1028 = vmatpush1.msra.mxu0 0.0
  %1029 = vmatprep.subr.mxu0 0.0
  %1030 = vmatpush1.msra.mxu0 0.0
  %1031 = vmatprep.mubr.f32.mxu0 0.0
  %1032 = vmatmul.mubr.f32.gmra.mrb[0].mxu0 %v959
  %v1033 = vpop.f32.mrb[0].mxu0
  %v1034 = vadd.f32 1e-16, %v1033
  %v1035 = vpop.f32.mrb[0].mxu0
  %1036 = vmatprep.mubr.f32.mxu0 0.0
  %1037 = vmatmul.mubr.f32.gmra.mrb[0].mxu0 %v962
  %v1038 = vpop.f32.mrb[0].mxu0
  %v1039 = vadd.f32 1e-16, %v1038
  %v1040 = vpop.f32.mrb[0].mxu0
  %1041 = vmatprep.mubr.f32.mxu0 0.0
  %1042 = vmatmul.mubr.f32.gmra.mrb[0].mxu0 %v965
  %v1043 = vpop.f32.mrb[0].mxu0
  %v1044 = vadd.f32 1e-16, %v1043
  %v1045 = vpop.f32.mrb[0].mxu0
  %1046 = vdwg.mxu0
  %1047 = vmatprep.subr.mxu0 0.0
  %1048 = vmatpush1.msra.mxu0 %v1034
  %1049 = vmatprep.subr.mxu0 0.0
  %1050 = vmatpush1.msra.mxu0 %v1039
  %1051 = vmatprep.subr.mxu0 0.0
  %1052 = vmatpush1.msra.mxu0 %v1044
  %1053 = vmatprep.subr.mxu0 0.0
  %1054 = vmatpush1.msra.mxu0 0.0
  %1055 = vmatprep.subr.mxu0 0.0
  %1056 = vmatpush1.msra.mxu0 0.0
  %1057 = vmatprep.subr.mxu0 0.0
  %1058 = vmatpush1.msra.mxu0 0.0
  %1059 = vmatprep.subr.mxu0 0.0
  %1060 = vmatpush1.msra.mxu0 0.0
  %1061 = vmatprep.subr.mxu0 0.0
  %1062 = vmatpush1.msra.mxu0 0.0
  %1063 = vmatprep.subr.mxu0 0.0
  %1064 = vmatpush1.msra.mxu0 0.0
  %1065 = vmatprep.subr.mxu0 0.0
  %1066 = vmatpush1.msra.mxu0 0.0
  %1067 = vmatprep.subr.mxu0 0.0
  %1068 = vmatpush1.msra.mxu0 0.0
  %1069 = vmatprep.subr.mxu0 0.0
  %1070 = vmatpush1.msra.mxu0 0.0
  %1071 = vmatprep.subr.mxu0 0.0
  %1072 = vmatpush1.msra.mxu0 0.0
  %1073 = vmatprep.subr.mxu0 0.0
  %1074 = vmatpush1.msra.mxu0 0.0
  %1075 = vmatprep.subr.mxu0 0.0
  %1076 = vmatpush1.msra.mxu0 0.0
  %1077 = vmatprep.subr.mxu0 0.0
  %1078 = vmatpush1.msra.mxu0 0.0
  %1079 = vmatprep.subr.mxu0 0.0
  %1080 = vmatpush1.msra.mxu0 0.0
  %1081 = vmatprep.subr.mxu0 0.0
  %1082 = vmatpush1.msra.mxu0 0.0
  %1083 = vmatprep.subr.mxu0 0.0
  %1084 = vmatpush1.msra.mxu0 0.0
  %1085 = vmatprep.subr.mxu0 0.0
  %1086 = vmatpush1.msra.mxu0 0.0
  %1087 = vmatprep.subr.mxu0 0.0
  %1088 = vmatpush1.msra.mxu0 0.0
  %1089 = vmatprep.subr.mxu0 0.0
  %1090 = vmatpush1.msra.mxu0 0.0
  %1091 = vmatprep.subr.mxu0 0.0
  %1092 = vmatpush1.msra.mxu0 0.0
  %1093 = vmatprep.subr.mxu0 0.0
  %1094 = vmatpush1.msra.mxu0 0.0
  %1095 = vmatprep.subr.mxu0 0.0
  %1096 = vmatpush1.msra.mxu0 0.0
  %1097 = vmatprep.subr.mxu0 0.0
  %1098 = vmatpush1.msra.mxu0 0.0
  %1099 = vmatprep.subr.mxu0 0.0
  %1100 = vmatpush1.msra.mxu0 0.0
  %1101 = vmatprep.subr.mxu0 0.0
  %1102 = vmatpush1.msra.mxu0 0.0
  %1103 = vmatprep.subr.mxu0 0.0
  %1104 = vmatpush1.msra.mxu0 0.0
  %1105 = vmatprep.subr.mxu0 0.0
  %1106 = vmatpush1.msra.mxu0 0.0
  %1107 = vmatprep.subr.mxu0 0.0
  %1108 = vmatpush1.msra.mxu0 0.0
  %1109 = vmatprep.subr.mxu0 0.0
  %1110 = vmatpush1.msra.mxu0 0.0
  %1111 = vmatprep.mubr.f32.mxu0 0.0
  %1112 = vmatmul.mubr.f32.gmra.mrb[0].mxu0 %v228
  %v1113 = vpop.f32.mrb[0].mxu0
  %v1114 = vadd.f32 0.0, %v1113
  %v1115 = vpop.f32.mrb[0].mxu0
  %1116 = vmatprep.mubr.f32.mxu0 0.0
  %1117 = vmatmul.mubr.f32.gmra.mrb[0].mxu0 %v231
  %v1118 = vpop.f32.mrb[0].mxu0
  %v1119 = vadd.f32 0.0, %v1118
  %v1120 = vpop.f32.mrb[0].mxu0
  %1121 = vmatprep.mubr.f32.mxu0 0.0
  %1122 = vmatmul.mubr.f32.gmra.mrb[0].mxu0 %v234
  %v1123 = vpop.f32.mrb[0].mxu0
  %v1124 = vadd.f32 0.0, %v1123
  %v1125 = vpop.f32.mrb[0].mxu0
  %1126 = vmatprep.mubr.f32.mxu0 0.0
  %1127 = vmatmul.mubr.f32.gmra.mrb[0].mxu0 %v237
  %v1128 = vpop.f32.mrb[0].mxu0
  %v1129 = vadd.f32 0.0, %v1128
  %v1130 = vpop.f32.mrb[0].mxu0
  %1131 = vdwg.mxu0
  %v1132 = vrcp.pop %v1114
  %v1133 = vrcp.pop %v1119
  %v1134 = vrcp.pop %v1124
  %v1135 = vrcp.pop %v1129
  %v1136 = vmul.f32 %v954, %v1132
  %v1137 = vmul.f32 %v955, %v1133
  %v1138 = vmul.f32 %v956, %v1134
  %v1139 = vmul.f32 %v957, %v1135
  %v1140 = vld [vmem:[%s8] sm:$0xff]
  %v1141 = vld [vmem:[%s8 + $0x8] sm:$0xff]
  %v1142 = vld [vmem:[%s8 + $0x10] sm:$0xff]
  %v1143 = vld [vmem:[%s8 + $0x18] sm:$0xff]
  %1145 = vset.pattern.permute.xlu0 0
  %1146 = vperm.xlu0 %1145, %v1140
  %v1147 = vpop.permute.xlu0 %1146
  %1150 = vset.pattern.permute.xlu0 0
  %1151 = vperm.xlu0 %1150, %v1141
  %v1152 = vpop.permute.xlu0 %1151
  %1155 = vset.pattern.permute.xlu0 0
  %1156 = vperm.xlu0 %1155, %v1142
  %v1157 = vpop.permute.xlu0 %1156
  %1160 = vset.pattern.permute.xlu0 0
  %1161 = vperm.xlu0 %1160, %v1143
  %v1162 = vpop.permute.xlu0 %1161
  %v1164 = vmul.f32 %v1136, %v1147
  %v1165 = vmul.f32 %v1137, %v1152
  %v1166 = vmul.f32 %v1138, %v1157
  %v1167 = vmul.f32 %v1139, %v1162
  %vm1168 = vcmask 31744
  %v1170 = vsel %vm1168, %v1164, 0
  %v1173 = vsel %vm1168, %v1165, 0
  %v1176 = vsel %vm1168, %v1166, 0
  %v1179 = vsel %vm1168, %v1167, 0
  %vm1181 = vcmask 1043456
  %v1183 = vsel %vm1181, %v453, 0
  %1185 = vmatprep.subr.mxu0 0.0
  %1186 = vmatpush1.msra.mxu0 %v1183
  %1187 = vmatprep.subr.mxu0 0.0
  %1188 = vmatpush1.msra.mxu0 0.0
  %1189 = vmatprep.subr.mxu0 0.0
  %1190 = vmatpush1.msra.mxu0 0.0
  %1191 = vmatprep.subr.mxu0 0.0
  %1192 = vmatpush1.msra.mxu0 0.0
  %1193 = vmatprep.subr.mxu0 0.0
  %1194 = vmatpush1.msra.mxu0 0.0
  %1195 = vmatprep.subr.mxu0 0.0
  %1196 = vmatpush1.msra.mxu0 0.0
  %1197 = vmatprep.subr.mxu0 0.0
  %1198 = vmatpush1.msra.mxu0 0.0
  %1199 = vmatprep.subr.mxu0 0.0
  %1200 = vmatpush1.msra.mxu0 0.0
  %1201 = vmatprep.subr.mxu0 0.0
  %1202 = vmatpush1.msra.mxu0 0.0
  %1203 = vmatprep.subr.mxu0 0.0
  %1204 = vmatpush1.msra.mxu0 0.0
  %1205 = vmatprep.subr.mxu0 0.0
  %1206 = vmatpush1.msra.mxu0 0.0
  %1207 = vmatprep.subr.mxu0 0.0
  %1208 = vmatpush1.msra.mxu0 0.0
  %1209 = vmatprep.subr.mxu0 0.0
  %1210 = vmatpush1.msra.mxu0 0.0
  %1211 = vmatprep.subr.mxu0 0.0
  %1212 = vmatpush1.msra.mxu0 0.0
  %1213 = vmatprep.subr.mxu0 0.0
  %1214 = vmatpush1.msra.mxu0 0.0
  %1215 = vmatprep.subr.mxu0 0.0
  %1216 = vmatpush1.msra.mxu0 0.0
  %1217 = vmatprep.subr.mxu0 0.0
  %1218 = vmatpush1.msra.mxu0 0.0
  %1219 = vmatprep.subr.mxu0 0.0
  %1220 = vmatpush1.msra.mxu0 0.0
  %1221 = vmatprep.subr.mxu0 0.0
  %1222 = vmatpush1.msra.mxu0 0.0
  %1223 = vmatprep.subr.mxu0 0.0
  %1224 = vmatpush1.msra.mxu0 0.0
  %1225 = vmatprep.subr.mxu0 0.0
  %1226 = vmatpush1.msra.mxu0 0.0
  %1227 = vmatprep.subr.mxu0 0.0
  %1228 = vmatpush1.msra.mxu0 0.0
  %1229 = vmatprep.subr.mxu0 0.0
  %1230 = vmatpush1.msra.mxu0 0.0
  %1231 = vmatprep.subr.mxu0 0.0
  %1232 = vmatpush1.msra.mxu0 0.0
  %1233 = vmatprep.subr.mxu0 0.0
  %1234 = vmatpush1.msra.mxu0 0.0
  %1235 = vmatprep.subr.mxu0 0.0
  %1236 = vmatpush1.msra.mxu0 0.0
  %1237 = vmatprep.subr.mxu0 0.0
  %1238 = vmatpush1.msra.mxu0 0.0
  %1239 = vmatprep.subr.mxu0 0.0
  %1240 = vmatpush1.msra.mxu0 0.0
  %1241 = vmatprep.subr.mxu0 0.0
  %1242 = vmatpush1.msra.mxu0 0.0
  %1243 = vmatprep.subr.mxu0 0.0
  %1244 = vmatpush1.msra.mxu0 0.0
  %1245 = vmatprep.subr.mxu0 0.0
  %1246 = vmatpush1.msra.mxu0 0.0
  %1247 = vmatprep.subr.mxu0 0.0
  %1248 = vmatpush1.msra.mxu0 0.0
  %1249 = vmatprep.mubr.f32.mxu0 0.0
  %1250 = vmatmul.mubr.f32.gmra.mrb[0].mxu0 %v1170
  %v1251 = vpop.f32.mrb[0].mxu0
  %v1252 = vadd.f32 0.0, %v1251
  %v1253 = vpop.f32.mrb[0].mxu0
  %1254 = vmatprep.mubr.f32.mxu0 0.0
  %1255 = vmatmul.mubr.f32.gmra.mrb[0].mxu0 %v1173
  %v1256 = vpop.f32.mrb[0].mxu0
  %v1257 = vadd.f32 0.0, %v1256
  %v1258 = vpop.f32.mrb[0].mxu0
  %1259 = vmatprep.mubr.f32.mxu0 0.0
  %1260 = vmatmul.mubr.f32.gmra.mrb[0].mxu0 %v1176
  %v1261 = vpop.f32.mrb[0].mxu0
  %v1262 = vadd.f32 0.0, %v1261
  %v1263 = vpop.f32.mrb[0].mxu0
  %1264 = vmatprep.mubr.f32.mxu0 0.0
  %1265 = vmatmul.mubr.f32.gmra.mrb[0].mxu0 %v1179
  %v1266 = vpop.f32.mrb[0].mxu0
  %v1267 = vadd.f32 0.0, %v1266
  %v1268 = vpop.f32.mrb[0].mxu0
  %1269 = vdwg.mxu0
  %1274 = vrot.lane.b32.xlu0 %v404, 96
  %v1275 = vpop.permute.xlu0 %1274
  %1276 = vrot.lane.b32.xlu0 %v409, 96
  %v1277 = vpop.permute.xlu0 %1276
  %1278 = vrot.lane.b32.xlu0 %v414, 96
  %v1279 = vpop.permute.xlu0 %1278
  %1280 = vrot.lane.b32.xlu0 %v419, 96
  %v1281 = vpop.permute.xlu0 %1280
  %v1286 = vmul.f32 %v1252, %v1275
  %v1287 = vmul.f32 %v1257, %v1277
  %v1288 = vmul.f32 %v1262, %v1279
  %v1289 = vmul.f32 %v1267, %v1281
  %1290 = vmatprep.subr.mxu0 0.0
  %1291 = vmatpush1.msra.mxu0 %v1286
  %1292 = vmatprep.subr.mxu0 0.0
  %1293 = vmatpush1.msra.mxu0 %v1287
  %1294 = vmatprep.subr.mxu0 0.0
  %1295 = vmatpush1.msra.mxu0 %v1288
  %1296 = vmatprep.subr.mxu0 0.0
  %1297 = vmatpush1.msra.mxu0 %v1289
  %1298 = vmatprep.subr.mxu0 0.0
  %1299 = vmatpush1.msra.mxu0 0.0
  %1300 = vmatprep.subr.mxu0 0.0
  %1301 = vmatpush1.msra.mxu0 0.0
  %1302 = vmatprep.subr.mxu0 0.0
  %1303 = vmatpush1.msra.mxu0 0.0
  %1304 = vmatprep.subr.mxu0 0.0
  %1305 = vmatpush1.msra.mxu0 0.0
  %1306 = vmatprep.subr.mxu0 0.0
  %1307 = vmatpush1.msra.mxu0 0.0
  %1308 = vmatprep.subr.mxu0 0.0
  %1309 = vmatpush1.msra.mxu0 0.0
  %1310 = vmatprep.subr.mxu0 0.0
  %1311 = vmatpush1.msra.mxu0 0.0
  %1312 = vmatprep.subr.mxu0 0.0
  %1313 = vmatpush1.msra.mxu0 0.0
  %1314 = vmatprep.subr.mxu0 0.0
  %1315 = vmatpush1.msra.mxu0 0.0
  %1316 = vmatprep.subr.mxu0 0.0
  %1317 = vmatpush1.msra.mxu0 0.0
  %1318 = vmatprep.subr.mxu0 0.0
  %1319 = vmatpush1.msra.mxu0 0.0
  %1320 = vmatprep.subr.mxu0 0.0
  %1321 = vmatpush1.msra.mxu0 0.0
  %1322 = vmatprep.subr.mxu0 0.0
  %1323 = vmatpush1.msra.mxu0 0.0
  %1324 = vmatprep.subr.mxu0 0.0
  %1325 = vmatpush1.msra.mxu0 0.0
  %1326 = vmatprep.subr.mxu0 0.0
  %1327 = vmatpush1.msra.mxu0 0.0
  %1328 = vmatprep.subr.mxu0 0.0
  %1329 = vmatpush1.msra.mxu0 0.0
  %1330 = vmatprep.subr.mxu0 0.0
  %1331 = vmatpush1.msra.mxu0 0.0
  %1332 = vmatprep.subr.mxu0 0.0
  %1333 = vmatpush1.msra.mxu0 0.0
  %1334 = vmatprep.subr.mxu0 0.0
  %1335 = vmatpush1.msra.mxu0 0.0
  %1336 = vmatprep.subr.mxu0 0.0
  %1337 = vmatpush1.msra.mxu0 0.0
  %1338 = vmatprep.subr.mxu0 0.0
  %1339 = vmatpush1.msra.mxu0 0.0
  %1340 = vmatprep.subr.mxu0 0.0
  %1341 = vmatpush1.msra.mxu0 0.0
  %1342 = vmatprep.subr.mxu0 0.0
  %1343 = vmatpush1.msra.mxu0 0.0
  %1344 = vmatprep.subr.mxu0 0.0
  %1345 = vmatpush1.msra.mxu0 0.0
  %1346 = vmatprep.subr.mxu0 0.0
  %1347 = vmatpush1.msra.mxu0 0.0
  %1348 = vmatprep.subr.mxu0 0.0
  %1349 = vmatpush1.msra.mxu0 0.0
  %1350 = vmatprep.subr.mxu0 0.0
  %1351 = vmatpush1.msra.mxu0 0.0
  %1352 = vmatprep.subr.mxu0 0.0
  %1353 = vmatpush1.msra.mxu0 0.0
  %1354 = vmatprep.mubr.f32.mxu0 0.0
  %1355 = vmatmul.mubr.f32.gmra.mrb[0].mxu0 %v959
  %v1356 = vpop.f32.mrb[0].mxu0
  %v1357 = vadd.f32 0.0, %v1356
  %v1358 = vpop.f32.mrb[0].mxu0
  %1359 = vmatprep.mubr.f32.mxu0 0.0
  %1360 = vmatmul.mubr.f32.gmra.mrb[0].mxu0 %v962
  %v1361 = vpop.f32.mrb[0].mxu0
  %v1362 = vadd.f32 0.0, %v1361
  %v1363 = vpop.f32.mrb[0].mxu0
  %1364 = vmatprep.mubr.f32.mxu0 0.0
  %1365 = vmatmul.mubr.f32.gmra.mrb[0].mxu0 %v965
  %v1366 = vpop.f32.mrb[0].mxu0
  %v1367 = vadd.f32 0.0, %v1366
  %v1368 = vpop.f32.mrb[0].mxu0
  %1369 = vdwg.mxu0
  %1370 = vst.msk [vmem:[%s9] sm:$0xff] %vm45, %v1357
  %1371 = vst.msk [vmem:[%s9 + $0x8] sm:$0xff] %vm45, %v1362
  %1372 = vst.msk [vmem:[%s9 + $0x10] sm:$0xff] %vm45, %v1367
  // Predicated region
  $region38: #{legislative_graph_encoder.21} parent=0 // pred_check
    _
  $region39: #{legislative_graph_encoder.21} parent=0 // pred_check_branch
    %1374 = sbr.rel (0) target = $region41
  $region40: #{legislative_graph_encoder.21} parent=0 // pred_region
    _
  $region41: #{legislative_graph_encoder.21} parent=0 // pred_fallthru
    _
  // Predicated region
  $region42: #{legislative_graph_encoder.21} parent=0 // pred_check
    _
  $region43: #{legislative_graph_encoder.21} parent=0 // pred_check_branch
    %1376 = sbr.rel (0) target = $region45
  $region44: #{legislative_graph_encoder.21} parent=0 // pred_region
    _
  $region45: #{legislative_graph_encoder.21} parent=0 // pred_fallthru
    _

// kernel: legislative_graph_encoder.20
$region0: #{legislative_graph_encoder.20}
  #allocation0 [shape = 'u32[]', space=smem, size = 0x4, offset = 0x4, fixed_abs, tag = 'smem constant byte address 0x4 - core index']
  #allocation1 [shape = 'u32[144,128]{1,0:T(1,128)}', space=vmem, size = 0x12000, scoped, tag = 'internal scratch']
  %s0 = inlined_call_operand.vmem [shape: f32[8,32], index: 0, kind: input, shape index: {}]
  %s1 = inlined_call_operand.vmem [shape: f32[24,32], index: 1, kind: input, shape index: {}]
  %s2 = inlined_call_operand.vmem [shape: f32[32,32], index: 2, kind: input, shape index: {}]
  %s3 = inlined_call_operand.vmem [shape: f32[32,64], index: 3, kind: input, shape index: {}]
  %s4 = inlined_call_operand.vmem [shape: f32[1,32], index: 4, kind: input, shape index: {}]
  %s5 = inlined_call_operand.vmem [shape: s32[20,1], index: 5, kind: input, shape index: {}]
  %s6 = inlined_call_operand.vmem [shape: s32[1,20], index: 6, kind: input, shape index: {}]
  %s7 = inlined_call_operand.vmem [shape: s32[20,1], index: 7, kind: input, shape index: {}]
  %s8 = inlined_call_operand.vmem [shape: f32[20,1], index: 8, kind: input, shape index: {}]
  %s9 = inlined_call_operand.vmem [shape: f32[8,32], index: 9, kind: output, shape index: {}]
  %s10 = sld [smem:[#allocation0]]
  $region46: #{legislative_graph_encoder.20} parent=0
    _
  %s12 = ssub.s32 1, %s10
  %s13 = scalar_select 0, %s12, %s10
  // Predicated region
  $region2: #{legislative_graph_encoder.20} parent=0 // pred_check
    _
  $region3: #{legislative_graph_encoder.20} parent=0 // pred_check_branch
    %15 = sbr.rel (0) target = $region5
  $region4: #{legislative_graph_encoder.20} parent=0 // pred_region
    _
  $region5: #{legislative_graph_encoder.20} parent=0 // pred_fallthru
    _
  // Predicated region
  $region6: #{legislative_graph_encoder.20} parent=0 // pred_check
    _
  $region7: #{legislative_graph_encoder.20} parent=0 // pred_check_branch
    %17 = sbr.rel (0) target = $region9
  $region8: #{legislative_graph_encoder.20} parent=0 // pred_region
    _
  $region9: #{legislative_graph_encoder.20} parent=0 // pred_fallthru
    _
  // Predicated region
  $region10: #{legislative_graph_encoder.20} parent=0 // pred_check
    _
  $region11: #{legislative_graph_encoder.20} parent=0 // pred_check_branch
    %19 = sbr.rel (0) target = $region13
  $region12: #{legislative_graph_encoder.20} parent=0 // pred_region
    _
  $region13: #{legislative_graph_encoder.20} parent=0 // pred_fallthru
    _
  // Predicated region
  $region14: #{legislative_graph_encoder.20} parent=0 // pred_check
    _
  $region15: #{legislative_graph_encoder.20} parent=0 // pred_check_branch
    %21 = sbr.rel (0) target = $region17
  $region16: #{legislative_graph_encoder.20} parent=0 // pred_region
    _
  $region17: #{legislative_graph_encoder.20} parent=0 // pred_fallthru
    _
  // Predicated region
  $region18: #{legislative_graph_encoder.20} parent=0 // pred_check
    _
  $region19: #{legislative_graph_encoder.20} parent=0 // pred_check_branch
    %23 = sbr.rel (0) target = $region21
  $region20: #{legislative_graph_encoder.20} parent=0 // pred_region
    _
  $region21: #{legislative_graph_encoder.20} parent=0 // pred_fallthru
    _
  // Predicated region
  $region22: #{legislative_graph_encoder.20} parent=0 // pred_check
    _
  $region23: #{legislative_graph_encoder.20} parent=0 // pred_check_branch
    %25 = sbr.rel (0) target = $region25
  $region24: #{legislative_graph_encoder.20} parent=0 // pred_region
    _
  $region25: #{legislative_graph_encoder.20} parent=0 // pred_fallthru
    _
  // Predicated region
  $region26: #{legislative_graph_encoder.20} parent=0 // pred_check
    _
  $region27: #{legislative_graph_encoder.20} parent=0 // pred_check_branch
    %27 = sbr.rel (0) target = $region29
  $region28: #{legislative_graph_encoder.20} parent=0 // pred_region
    _
  $region29: #{legislative_graph_encoder.20} parent=0 // pred_fallthru
    _
  // Predicated region
  $region30: #{legislative_graph_encoder.20} parent=0 // pred_check
    _
  $region31: #{legislative_graph_encoder.20} parent=0 // pred_check_branch
    %29 = sbr.rel (0) target = $region33
  $region32: #{legislative_graph_encoder.20} parent=0 // pred_region
    _
  $region33: #{legislative_graph_encoder.20} parent=0 // pred_fallthru
    _
  // Predicated region
  $region34: #{legislative_graph_encoder.20} parent=0 // pred_check
    _
  $region35: #{legislative_graph_encoder.20} parent=0 // pred_check_branch
    %31 = sbr.rel (0) target = $region37
  $region36: #{legislative_graph_encoder.20} parent=0 // pred_region
    _
  $region37: #{legislative_graph_encoder.20} parent=0 // pred_fallthru
    _
  %v33 = vld [vmem:[%s0] sm:$0xff]
  %v34 = vld [vmem:[%s1] sm:$0xff]
  %v35 = vld [vmem:[%s1 + $0x8] sm:$0xff]
  %v36 = vld [vmem:[%s1 + $0x10] sm:$0xff]
  %v37 = vld [vmem:[%s2] sm:$0xff]
  %v38 = vld [vmem:[%s2 + $0x8] sm:$0xff]
  %v39 = vld [vmem:[%s2 + $0x10] sm:$0xff]
  %v40 = vld [vmem:[%s2 + $0x18] sm:$0xff]
  %v41 = vpack.c.bf16 %v33, %v33
  %v42 = vpack.c.bf16 %v38, %v37
  %v43 = vpack.c.bf16 %v40, %v39
  %vm44 = vcmask 261120
  %v46 = vsel %vm44, %v41, 0
  %48 = vmatprep.subr.bf16.mxu0 0
  %49 = vmatpush1.bf16.msra.mxu0 %v42
  %50 = vmatprep.subr.bf16.mxu0 0
  %51 = vmatpush1.bf16.msra.mxu0 %v43
  %52 = vmatprep.subr.bf16.mxu0 0
  %53 = vmatpush1.bf16.msra.mxu0 0
  %54 = vmatprep.subr.bf16.mxu0 0
  %55 = vmatpush1.bf16.msra.mxu0 0
  %56 = vmatprep.subr.bf16.mxu0 0
  %57 = vmatpush1.bf16.msra.mxu0 0
  %58 = vmatprep.subr.bf16.mxu0 0
  %59 = vmatpush1.bf16.msra.mxu0 0
  %60 = vmatprep.subr.bf16.mxu0 0
  %61 = vmatpush1.bf16.msra.mxu0 0
  %62 = vmatprep.subr.bf16.mxu0 0
  %63 = vmatpush1.bf16.msra.mxu0 0
  %64 = vmatprep.subr.bf16.mxu0 0
  %65 = vmatpush1.bf16.msra.mxu0 0
  %66 = vmatprep.subr.bf16.mxu0 0
  %67 = vmatpush1.bf16.msra.mxu0 0
  %68 = vmatprep.subr.bf16.mxu0 0
  %69 = vmatpush1.bf16.msra.mxu0 0
  %70 = vmatprep.subr.bf16.mxu0 0
  %71 = vmatpush1.bf16.msra.mxu0 0
  %72 = vmatprep.subr.bf16.mxu0 0
  %73 = vmatpush1.bf16.msra.mxu0 0
  %74 = vmatprep.subr.bf16.mxu0 0
  %75 = vmatpush1.bf16.msra.mxu0 0
  %76 = vmatprep.subr.bf16.mxu0 0
  %77 = vmatpush1.bf16.msra.mxu0 0
  %78 = vmatprep.subr.bf16.mxu0 0
  %79 = vmatpush1.bf16.msra.mxu0 0
  %80 = vmatprep.mubr.bf16.mxu0 0
  %81 = vmatmul.mubr.bf16.gmra.mrb[0].mxu0 %v46
  %v82 = vpop.f32.mrb[0].mxu0
  %v83 = vadd.f32 0.0, %v82
  %v84 = vpop.f32.mrb[0].mxu0
  %v85 = vpop.f32.mrb[0].mxu0
  %v86 = vpop.f32.mrb[0].mxu0
  %87 = vdwg.mxu0
  %v88 = vld [vmem:[%s3] sm:$0xff]
  %v89 = vld [vmem:[%s3 + $0x8] sm:$0xff]
  %v90 = vld [vmem:[%s3 + $0x10] sm:$0xff]
  %v91 = vld [vmem:[%s3 + $0x18] sm:$0xff]
  %v92 = vpack.c.bf16 %v35, %v34
  %v93 = vpack.c.bf16 %v36, %v36
  %v94 = vpack.c.bf16 %v89, %v88
  %v95 = vpack.c.bf16 %v91, %v90
  %v97 = vsel %vm44, %v92, 0
  %v100 = vsel %vm44, %v93, 0
  %102 = vmatprep.subr.bf16.mxu0 0
  %103 = vmatpush1.bf16.msra.mxu0 %v94
  %104 = vmatprep.subr.bf16.mxu0 0
  %105 = vmatpush1.bf16.msra.mxu0 %v95
  %106 = vmatprep.subr.bf16.mxu0 0
  %107 = vmatpush1.bf16.msra.mxu0 0
  %108 = vmatprep.subr.bf16.mxu0 0
  %109 = vmatpush1.bf16.msra.mxu0 0
  %110 = vmatprep.subr.bf16.mxu0 0
  %111 = vmatpush1.bf16.msra.mxu0 0
  %112 = vmatprep.subr.bf16.mxu0 0
  %113 = vmatpush1.bf16.msra.mxu0 0
  %114 = vmatprep.subr.bf16.mxu0 0
  %115 = vmatpush1.bf16.msra.mxu0 0
  %116 = vmatprep.subr.bf16.mxu0 0
  %117 = vmatpush1.bf16.msra.mxu0 0
  %118 = vmatprep.subr.bf16.mxu0 0
  %119 = vmatpush1.bf16.msra.mxu0 0
  %120 = vmatprep.subr.bf16.mxu0 0
  %121 = vmatpush1.bf16.msra.mxu0 0
  %122 = vmatprep.subr.bf16.mxu0 0
  %123 = vmatpush1.bf16.msra.mxu0 0
  %124 = vmatprep.subr.bf16.mxu0 0
  %125 = vmatpush1.bf16.msra.mxu0 0
  %126 = vmatprep.subr.bf16.mxu0 0
  %127 = vmatpush1.bf16.msra.mxu0 0
  %128 = vmatprep.subr.bf16.mxu0 0
  %129 = vmatpush1.bf16.msra.mxu0 0
  %130 = vmatprep.subr.bf16.mxu0 0
  %131 = vmatpush1.bf16.msra.mxu0 0
  %132 = vmatprep.subr.bf16.mxu0 0
  %133 = vmatpush1.bf16.msra.mxu0 0
  %134 = vmatprep.mubr.bf16.mxu0 0
  %135 = vmatmul.mubr.bf16.gmra.mrb[0].mxu0 %v97
  %v136 = vpop.f32.mrb[0].mxu0
  %v137 = vadd.f32 0.0, %v136
  %v138 = vpop.f32.mrb[0].mxu0
  %v139 = vpop.f32.mrb[0].mxu0
  %v140 = vadd.f32 0.0, %v139
  %v141 = vpop.f32.mrb[0].mxu0
  %142 = vmatprep.mubr.bf16.mxu0 0
  %143 = vmatmul.mubr.bf16.gmra.mrb[0].mxu0 %v100
  %v144 = vpop.f32.mrb[0].mxu0
  %v145 = vadd.f32 0.0, %v144
  %v146 = vpop.f32.mrb[0].mxu0
  %v147 = vpop.f32.mrb[0].mxu0
  %v148 = vpop.f32.mrb[0].mxu0
  %149 = vdwg.mxu0
  %v150 = vlaneseq
  %v151 = vand.u32 %v150, 127
  %v152 = vld [vmem:[%s5] sm:$0xff]
  %v153 = vld [vmem:[%s5 + $0x8] sm:$0xff]
  %v154 = vld [vmem:[%s5 + $0x10] sm:$0xf]
  %155 = vset.pattern.permute.xlu0 0
  %156 = vperm.xlu0 %155, %v152
  %v157 = vpop.permute.xlu0 %156
  %158 = vset.pattern.permute.xlu0 0
  %159 = vperm.xlu0 %158, %v153
  %v160 = vpop.permute.xlu0 %159
  %161 = vset.pattern.permute.xlu0 0
  %162 = vperm.xlu0 %161, %v154
  %v163 = vpop.permute.xlu0 %162
  %vm164 = vcmp.eq.s32.totalorder %v151, %v157
  %vm165 = vcmp.eq.s32.totalorder %v151, %v160
  %vm166 = vcmp.eq.s32.totalorder %v151, %v163
  %v167 = vsel %vm164, 1, 0
  %v168 = vsel %vm165, 1, 0
  %v169 = vsel %vm166, 1, 0
  %v170 = vcvt.s32.f32 %v167
  %v171 = vcvt.s32.f32 %v168
  %v172 = vcvt.s32.f32 %v169
  %v173 = vld [vmem:[%s7] sm:$0xff]
  %v174 = vld [vmem:[%s7 + $0x8] sm:$0xff]
  %v175 = vld [vmem:[%s7 + $0x10] sm:$0xf]
  %176 = vset.pattern.permute.xlu0 0
  %177 = vperm.xlu0 %176, %v173
  %v178 = vpop.permute.xlu0 %177
  %179 = vset.pattern.permute.xlu0 0
  %180 = vperm.xlu0 %179, %v174
  %v181 = vpop.permute.xlu0 %180
  %182 = vset.pattern.permute.xlu0 0
  %183 = vperm.xlu0 %182, %v175
  %v184 = vpop.permute.xlu0 %183
  %vm185 = vcmp.eq.s32.totalorder %v151, %v178
  %vm186 = vcmp.eq.s32.totalorder %v151, %v181
  %vm187 = vcmp.eq.s32.totalorder %v151, %v184
  %v188 = vsel %vm185, 1, 0
  %v189 = vsel %vm186, 1, 0
  %v190 = vsel %vm187, 1, 0
  %v191 = vcvt.s32.f32 %v188
  %v192 = vcvt.s32.f32 %v189
  %v193 = vcvt.s32.f32 %v190
  %v194 = vlaneseq
  %v195 = vshrl.u32 %v194, 7
  %v196 = vld [vmem:[%s6] sm:$0x1]
  %v197 = vlaneseq
  %v198 = vshrl.u32 %v197, 7
  %v199 = vsub.s32 0, %v198
  %v200 = vrot.slane %v196, %v199
  %vm201 = vcmp.eq.s32.totalorder %v195, %v200
  %v202 = vsel %vm201, 1, 0
  %v203 = vcvt.s32.f32 %v202
  %vm204 = vcmask 64512
  %v206 = vsel %vm204, %v170, 0
  %v209 = vsel %vm204, %v171, 0
  %v212 = vsel %vm204, %v172, 0
  %214 = vmatprep.subr.mxu0 0.0
  %215 = vmatpush1.msra.mxu0 %v83
  %216 = vmatprep.subr.mxu0 0.0
  %217 = vmatpush1.msra.mxu0 0.0
  %218 = vmatprep.subr.mxu0 0.0
  %219 = vmatpush1.msra.mxu0 0.0
  %220 = vmatprep.subr.mxu0 0.0
  %221 = vmatpush1.msra.mxu0 0.0
  %222 = vmatprep.subr.mxu0 0.0
  %223 = vmatpush1.msra.mxu0 0.0
  %224 = vmatprep.subr.mxu0 0.0
  %225 = vmatpush1.msra.mxu0 0.0
  %226 = vmatprep.subr.mxu0 0.0
  %227 = vmatpush1.msra.mxu0 0.0
  %228 = vmatprep.subr.mxu0 0.0
  %229 = vmatpush1.msra.mxu0 0.0
  %230 = vmatprep.subr.mxu0 0.0
  %231 = vmatpush1.msra.mxu0 0.0
  %232 = vmatprep.subr.mxu0 0.0
  %233 = vmatpush1.msra.mxu0 0.0
  %234 = vmatprep.subr.mxu0 0.0
  %235 = vmatpush1.msra.mxu0 0.0
  %236 = vmatprep.subr.mxu0 0.0
  %237 = vmatpush1.msra.mxu0 0.0
  %238 = vmatprep.subr.mxu0 0.0
  %239 = vmatpush1.msra.mxu0 0.0
  %240 = vmatprep.subr.mxu0 0.0
  %241 = vmatpush1.msra.mxu0 0.0
  %242 = vmatprep.subr.mxu0 0.0
  %243 = vmatpush1.msra.mxu0 0.0
  %244 = vmatprep.subr.mxu0 0.0
  %245 = vmatpush1.msra.mxu0 0.0
  %246 = vmatprep.subr.mxu0 0.0
  %247 = vmatpush1.msra.mxu0 0.0
  %248 = vmatprep.subr.mxu0 0.0
  %249 = vmatpush1.msra.mxu0 0.0
  %250 = vmatprep.subr.mxu0 0.0
  %251 = vmatpush1.msra.mxu0 0.0
  %252 = vmatprep.subr.mxu0 0.0
  %253 = vmatpush1.msra.mxu0 0.0
  %254 = vmatprep.subr.mxu0 0.0
  %255 = vmatpush1.msra.mxu0 0.0
  %256 = vmatprep.subr.mxu0 0.0
  %257 = vmatpush1.msra.mxu0 0.0
  %258 = vmatprep.subr.mxu0 0.0
  %259 = vmatpush1.msra.mxu0 0.0
  %260 = vmatprep.subr.mxu0 0.0
  %261 = vmatpush1.msra.mxu0 0.0
  %262 = vmatprep.subr.mxu0 0.0
  %263 = vmatpush1.msra.mxu0 0.0
  %264 = vmatprep.subr.mxu0 0.0
  %265 = vmatpush1.msra.mxu0 0.0
  %266 = vmatprep.subr.mxu0 0.0
  %267 = vmatpush1.msra.mxu0 0.0
  %268 = vmatprep.subr.mxu0 0.0
  %269 = vmatpush1.msra.mxu0 0.0
  %270 = vmatprep.subr.mxu0 0.0
  %271 = vmatpush1.msra.mxu0 0.0
  %272 = vmatprep.subr.mxu0 0.0
  %273 = vmatpush1.msra.mxu0 0.0
  %274 = vmatprep.subr.mxu0 0.0
  %275 = vmatpush1.msra.mxu0 0.0
  %276 = vmatprep.subr.mxu0 0.0
  %277 = vmatpush1.msra.mxu0 0.0
  %278 = vmatprep.mubr.f32.mxu0 0.0
  %279 = vmatmul.mubr.f32.gmra.mrb[0].mxu0 %v206
  %v280 = vpop.f32.mrb[0].mxu0
  %v281 = vadd.f32 0.0, %v280
  %v282 = vpop.f32.mrb[0].mxu0
  %283 = vmatprep.mubr.f32.mxu0 0.0
  %284 = vmatmul.mubr.f32.gmra.mrb[0].mxu0 %v209
  %v285 = vpop.f32.mrb[0].mxu0
  %v286 = vadd.f32 0.0, %v285
  %v287 = vpop.f32.mrb[0].mxu0
  %288 = vmatprep.mubr.f32.mxu0 0.0
  %289 = vmatmul.mubr.f32.gmra.mrb[0].mxu0 %v212
  %v290 = vpop.f32.mrb[0].mxu0
  %v291 = vadd.f32 0.0, %v290
  %v292 = vpop.f32.mrb[0].mxu0
  %293 = vdwg.mxu0
  %vm294 = vcmask 195584
  %v296 = vsel %vm294, %v191, 0
  %v299 = vsel %vm294, %v192, 0
  %v302 = vsel %vm294, %v193, 0
  %304 = vmatprep.subr.mxu0 0.0
  %305 = vmatpush1.msra.mxu0 %v137
  %306 = vmatprep.subr.mxu0 0.0
  %307 = vmatpush1.msra.mxu0 %v140
  %308 = vmatprep.subr.mxu0 0.0
  %309 = vmatpush1.msra.mxu0 %v145
  %310 = vmatprep.subr.mxu0 0.0
  %311 = vmatpush1.msra.mxu0 0.0
  %312 = vmatprep.subr.mxu0 0.0
  %313 = vmatpush1.msra.mxu0 0.0
  %314 = vmatprep.subr.mxu0 0.0
  %315 = vmatpush1.msra.mxu0 0.0
  %316 = vmatprep.subr.mxu0 0.0
  %317 = vmatpush1.msra.mxu0 0.0
  %318 = vmatprep.subr.mxu0 0.0
  %319 = vmatpush1.msra.mxu0 0.0
  %320 = vmatprep.subr.mxu0 0.0
  %321 = vmatpush1.msra.mxu0 0.0
  %322 = vmatprep.subr.mxu0 0.0
  %323 = vmatpush1.msra.mxu0 0.0
  %324 = vmatprep.subr.mxu0 0.0
  %325 = vmatpush1.msra.mxu0 0.0
  %326 = vmatprep.subr.mxu0 0.0
  %327 = vmatpush1.msra.mxu0 0.0
  %328 = vmatprep.subr.mxu0 0.0
  %329 = vmatpush1.msra.mxu0 0.0
  %330 = vmatprep.subr.mxu0 0.0
  %331 = vmatpush1.msra.mxu0 0.0
  %332 = vmatprep.subr.mxu0 0.0
  %333 = vmatpush1.msra.mxu0 0.0
  %334 = vmatprep.subr.mxu0 0.0
  %335 = vmatpush1.msra.mxu0 0.0
  %336 = vmatprep.subr.mxu0 0.0
  %337 = vmatpush1.msra.mxu0 0.0
  %338 = vmatprep.subr.mxu0 0.0
  %339 = vmatpush1.msra.mxu0 0.0
  %340 = vmatprep.subr.mxu0 0.0
  %341 = vmatpush1.msra.mxu0 0.0
  %342 = vmatprep.subr.mxu0 0.0
  %343 = vmatpush1.msra.mxu0 0.0
  %344 = vmatprep.subr.mxu0 0.0
  %345 = vmatpush1.msra.mxu0 0.0
  %346 = vmatprep.subr.mxu0 0.0
  %347 = vmatpush1.msra.mxu0 0.0
  %348 = vmatprep.subr.mxu0 0.0
  %349 = vmatpush1.msra.mxu0 0.0
  %350 = vmatprep.subr.mxu0 0.0
  %351 = vmatpush1.msra.mxu0 0.0
  %352 = vmatprep.subr.mxu0 0.0
  %353 = vmatpush1.msra.mxu0 0.0
  %354 = vmatprep.subr.mxu0 0.0
  %355 = vmatpush1.msra.mxu0 0.0
  %356 = vmatprep.subr.mxu0 0.0
  %357 = vmatpush1.msra.mxu0 0.0
  %358 = vmatprep.subr.mxu0 0.0
  %359 = vmatpush1.msra.mxu0 0.0
  %360 = vmatprep.subr.mxu0 0.0
  %361 = vmatpush1.msra.mxu0 0.0
  %362 = vmatprep.subr.mxu0 0.0
  %363 = vmatpush1.msra.mxu0 0.0
  %364 = vmatprep.subr.mxu0 0.0
  %365 = vmatpush1.msra.mxu0 0.0
  %366 = vmatprep.subr.mxu0 0.0
  %367 = vmatpush1.msra.mxu0 0.0
  %368 = vmatprep.mubr.f32.mxu0 0.0
  %369 = vmatmul.mubr.f32.gmra.mrb[0].mxu0 %v296
  %v370 = vpop.f32.mrb[0].mxu0
  %v371 = vadd.f32 0.0, %v370
  %v372 = vpop.f32.mrb[0].mxu0
  %373 = vmatprep.mubr.f32.mxu0 0.0
  %374 = vmatmul.mubr.f32.gmra.mrb[0].mxu0 %v299
  %v375 = vpop.f32.mrb[0].mxu0
  %v376 = vadd.f32 0.0, %v375
  %v377 = vpop.f32.mrb[0].mxu0
  %378 = vmatprep.mubr.f32.mxu0 0.0
  %379 = vmatmul.mubr.f32.gmra.mrb[0].mxu0 %v302
  %v380 = vpop.f32.mrb[0].mxu0
  %v381 = vadd.f32 0.0, %v380
  %v382 = vpop.f32.mrb[0].mxu0
  %383 = vdwg.mxu0
  %v384 = vadd.s32 %v195, 8
  %v385 = vadd.s32 %v195, 16
  %v386 = vadd.s32 %v195, 24
  %v387 = vmul.u32 %v151, 8
  %vm388 = vcmp.ge.s32.totalorder %v195, %v387
  %vm389 = vcmp.ge.s32.totalorder %v384, %v387
  %vm390 = vcmp.ge.s32.totalorder %v385, %v387
  %vm391 = vcmp.ge.s32.totalorder %v386, %v387
  %v392 = vadd.s32 %v151, 1
  %v393 = vmul.u32 %v392, 8
  %vm394 = vcmp.lt.s32.totalorder %v195, %v393
  %vm395 = vcmp.lt.s32.totalorder %v384, %v393
  %vm396 = vcmp.lt.s32.totalorder %v385, %v393
  %vm397 = vcmp.lt.s32.totalorder %v386, %v393
  %vm398 = vmand %vm388, %vm394
  %vm399 = vmand %vm389, %vm395
  %vm400 = vmand %vm390, %vm396
  %vm401 = vmand %vm391, %vm397
  %v402 = vsel %vm398, 1, 0
  %v403 = vsel %vm399, 1, 0
  %v404 = vsel %vm400, 1, 0
  %v405 = vsel %vm401, 1, 0
  %v406 = vcvt.s32.f32 %v402
  %v407 = vcvt.s32.f32 %v403
  %v408 = vcvt.s32.f32 %v404
  %v409 = vcvt.s32.f32 %v405
  %v410 = vmul.u32 %v195, 8
  %vm411 = vcmp.ge.s32.totalorder %v151, %v410
  %v412 = vadd.s32 %v195, 1
  %v413 = vmul.u32 %v412, 8
  %vm414 = vcmp.lt.s32.totalorder %v151, %v413
  %vm415 = vmand %vm411, %vm414
  %v416 = vsel %vm415, 1, 0
  %v417 = vcvt.s32.f32 %v416
  %v418 = vld [vmem:[%s4] sm:$0x1]
  %v420 = vlaneseq
  %v421 = vshrl.u32 %v420, 7
  %v422 = vsub.s32 0, %v421
  %v423 = vrot.slane %v418, %v422
  %v425 = vadd.f32 %v371, %v423
  %v426 = vadd.f32 %v376, %v423
  %v427 = vadd.f32 %v381, %v423
  %v428 = vmul.f32 %v281, %v425
  %v429 = vmul.f32 %v286, %v426
  %v430 = vmul.f32 %v291, %v427
  %v432 = vsel %vm44, %v428, 0
  %v435 = vsel %vm44, %v429, 0
  %v438 = vsel %vm44, %v430, 0
  %440 = vmatprep.subr.mxu0 0.0
  %441 = vmatpush1.msra.mxu0 %v406
  %442 = vmatprep.subr.mxu0 0.0
  %443 = vmatpush1.msra.mxu0 %v407
  %444 = vmatprep.subr.mxu0 0.0
  %445 = vmatpush1.msra.mxu0 %v408
  %446 = vmatprep.subr.mxu0 0.0
  %447 = vmatpush1.msra.mxu0 %v409
  %448 = vmatprep.subr.mxu0 0.0
  %449 = vmatpush1.msra.mxu0 0.0
  %450 = vmatprep.subr.mxu0 0.0
  %451 = vmatpush1.msra.mxu0 0.0
  %452 = vmatprep.subr.mxu0 0.0
  %453 = vmatpush1.msra.mxu0 0.0
  %454 = vmatprep.subr.mxu0 0.0
  %455 = vmatpush1.msra.mxu0 0.0
  %456 = vmatprep.subr.mxu0 0.0
  %457 = vmatpush1.msra.mxu0 0.0
  %458 = vmatprep.subr.mxu0 0.0
  %459 = vmatpush1.msra.mxu0 0.0
  %460 = vmatprep.subr.mxu0 0.0
  %461 = vmatpush1.msra.mxu0 0.0
  %462 = vmatprep.subr.mxu0 0.0
  %463 = vmatpush1.msra.mxu0 0.0
  %464 = vmatprep.subr.mxu0 0.0
  %465 = vmatpush1.msra.mxu0 0.0
  %466 = vmatprep.subr.mxu0 0.0
  %467 = vmatpush1.msra.mxu0 0.0
  %468 = vmatprep.subr.mxu0 0.0
  %469 = vmatpush1.msra.mxu0 0.0
  %470 = vmatprep.subr.mxu0 0.0
  %471 = vmatpush1.msra.mxu0 0.0
  %472 = vmatprep.subr.mxu0 0.0
  %473 = vmatpush1.msra.mxu0 0.0
  %474 = vmatprep.subr.mxu0 0.0
  %475 = vmatpush1.msra.mxu0 0.0
  %476 = vmatprep.subr.mxu0 0.0
  %477 = vmatpush1.msra.mxu0 0.0
  %478 = vmatprep.subr.mxu0 0.0
  %479 = vmatpush1.msra.mxu0 0.0
  %480 = vmatprep.subr.mxu0 0.0
  %481 = vmatpush1.msra.mxu0 0.0
  %482 = vmatprep.subr.mxu0 0.0
  %483 = vmatpush1.msra.mxu0 0.0
  %484 = vmatprep.subr.mxu0 0.0
  %485 = vmatpush1.msra.mxu0 0.0
  %486 = vmatprep.subr.mxu0 0.0
  %487 = vmatpush1.msra.mxu0 0.0
  %488 = vmatprep.subr.mxu0 0.0
  %489 = vmatpush1.msra.mxu0 0.0
  %490 = vmatprep.subr.mxu0 0.0
  %491 = vmatpush1.msra.mxu0 0.0
  %492 = vmatprep.subr.mxu0 0.0
  %493 = vmatpush1.msra.mxu0 0.0
  %494 = vmatprep.subr.mxu0 0.0
  %495 = vmatpush1.msra.mxu0 0.0
  %496 = vmatprep.subr.mxu0 0.0
  %497 = vmatpush1.msra.mxu0 0.0
  %498 = vmatprep.subr.mxu0 0.0
  %499 = vmatpush1.msra.mxu0 0.0
  %500 = vmatprep.subr.mxu0 0.0
  %501 = vmatpush1.msra.mxu0 0.0
  %502 = vmatprep.subr.mxu0 0.0
  %503 = vmatpush1.msra.mxu0 0.0
  %504 = vmatprep.mubr.f32.mxu0 0.0
  %505 = vmatmul.mubr.f32.gmra.mrb[0].mxu0 %v432
  %v506 = vpop.f32.mrb[0].mxu0
  %v507 = vadd.f32 0.0, %v506
  %v508 = vpop.f32.mrb[0].mxu0
  %509 = vmatprep.mubr.f32.mxu0 0.0
  %510 = vmatmul.mubr.f32.gmra.mrb[0].mxu0 %v435
  %v511 = vpop.f32.mrb[0].mxu0
  %v512 = vadd.f32 0.0, %v511
  %v513 = vpop.f32.mrb[0].mxu0
  %514 = vmatprep.mubr.f32.mxu0 0.0
  %515 = vmatmul.mubr.f32.gmra.mrb[0].mxu0 %v438
  %v516 = vpop.f32.mrb[0].mxu0
  %v517 = vadd.f32 0.0, %v516
  %v518 = vpop.f32.mrb[0].mxu0
  %519 = vdwg.mxu0
  %v520 = vmul.f32 %v507, 0.35355338
  %v521 = vmul.f32 %v512, 0.35355338
  %v522 = vmul.f32 %v517, 0.35355338
  %vm523 = vcmp.ge.f32.partialorder %v520, 0.0
  %vm524 = vcmp.ge.f32.partialorder %v521, 0.0
  %vm525 = vcmp.ge.f32.partialorder %v522, 0.0
  %v526 = vmul.f32 %v520, 0.01
  %v527 = vmul.f32 %v521, 0.01
  %v528 = vmul.f32 %v522, 0.01
  %v529 = vsel %vm523, %v520, %v526
  %v530 = vsel %vm524, %v521, %v527
  %v531 = vsel %vm525, %v522, %v528
  %vm532 = vcmp.gt.f32.partialorder %v170, 0.5
  %vm533 = vcmp.gt.f32.partialorder %v171, 0.5
  %vm534 = vcmp.gt.f32.partialorder %v172, 0.5
  %536 = vset.pattern.permute.xlu0 0
  %537 = vperm.xlu0 %536, %v529
  %v538 = vpop.permute.xlu0 %537
  %541 = vset.pattern.permute.xlu0 0
  %542 = vperm.xlu0 %541, %v530
  %v543 = vpop.permute.xlu0 %542
  %546 = vset.pattern.permute.xlu0 0
  %547 = vperm.xlu0 %546, %v531
  %v548 = vpop.permute.xlu0 %547
  %v550 = vsel %vm532, %v538, -1e+30
  %v551 = vsel %vm533, %v543, -1e+30
  %v552 = vsel %vm534, %v548, -1e+30
  %v553 = vsel %vm204, %v550, -inf
  %v554 = vsel %vm204, %v551, -inf
  %vm555 = vcmask 60416
  %v556 = vsel %vm555, %v552, -inf
  %v557 = vmax.f32 %v553, %v554
  %v558 = vmax.f32 %v557, %v556
  %v559 = vrot.slane %v558, 4
  %v560 = vmax.f32 %v558, %v559
  %v561 = vrot.slane %v560, 2
  %v562 = vmax.f32 %v560, %v561
  %v563 = vrot.slane %v562, 1
  %v564 = vmax.f32 %v562, %v563
  %v565 = vmul.f32 %v170, %v564
  %v566 = vmul.f32 %v171, %v564
  %v567 = vmul.f32 %v172, %v564
  %v568 = vsel %vm204, %v565, 0.0
  %569 = vadd.xlane.f32.xlu0 %v568
  %v570 = vpop.xlane.xlu0 %569
  %v571 = vsel %vm204, %v566, 0.0
  %572 = vadd.xlane.f32.xlu0 %v571
  %v573 = vpop.xlane.xlu0 %572
  %v574 = vsel %vm555, %v567, 0.0
  %575 = vadd.xlane.f32.xlu0 %v574
  %v576 = vpop.xlane.xlu0 %575
  %v577 = vsub.f32 %v529, %v570
  %v578 = vsub.f32 %v530, %v573
  %v579 = vsub.f32 %v531, %v576
  %v580 = vmul.f32 %v577, 1.442695
  %v581 = vpow.pop %v580
  %v582 = vmul.f32 %v578, 1.442695
  %v583 = vpow.pop %v582
  %v584 = vmul.f32 %v579, 1.442695
  %v585 = vpow.pop %v584
  %vm586 = vcmp.eq.s32.totalorder %v151, 0
  %v587 = vsel %vm586, 1, 0
  %v588 = vcvt.s32.f32 %v587
  %590 = vset.pattern.permute.xlu0 0
  %591 = vperm.xlu0 %590, %v581
  %v592 = vpop.permute.xlu0 %591
  %595 = vset.pattern.permute.xlu0 0
  %596 = vperm.xlu0 %595, %v583
  %v597 = vpop.permute.xlu0 %596
  %600 = vset.pattern.permute.xlu0 0
  %601 = vperm.xlu0 %600, %v585
  %v602 = vpop.permute.xlu0 %601
  %v604 = vmul.f32 %v592, %v588
  %v605 = vmul.f32 %v597, %v588
  %v606 = vmul.f32 %v602, %v588
  %v607 = vadd.f32 %v604, 0.0
  %v608 = vadd.f32 %v605, 0.0
  %v609 = vadd.f32 %v606, 0.0
  %610 = vset.pattern.permute.xlu0 1
  %611 = vperm.xlu0 %610, %v529
  %v612 = vpop.permute.xlu0 %611
  %614 = vset.pattern.permute.xlu0 1
  %615 = vperm.xlu0 %614, %v530
  %v616 = vpop.permute.xlu0 %615
  %618 = vset.pattern.permute.xlu0 1
  %619 = vperm.xlu0 %618, %v531
  %v620 = vpop.permute.xlu0 %619
  %v622 = vsel %vm532, %v612, -1e+30
  %v623 = vsel %vm533, %v616, -1e+30
  %v624 = vsel %vm534, %v620, -1e+30
  %v625 = vsel %vm204, %v622, -inf
  %v626 = vsel %vm204, %v623, -inf
  %v627 = vsel %vm555, %v624, -inf
  %v628 = vmax.f32 %v625, %v626
  %v629 = vmax.f32 %v628, %v627
  %v630 = vrot.slane %v629, 4
  %v631 = vmax.f32 %v629, %v630
  %v632 = vrot.slane %v631, 2
  %v633 = vmax.f32 %v631, %v632
  %v634 = vrot.slane %v633, 1
  %v635 = vmax.f32 %v633, %v634
  %v636 = vmul.f32 %v170, %v635
  %v637 = vmul.f32 %v171, %v635
  %v638 = vmul.f32 %v172, %v635
  %v639 = vsel %vm204, %v636, 0.0
  %640 = vadd.xlane.f32.xlu0 %v639
  %v641 = vpop.xlane.xlu0 %640
  %v642 = vsel %vm204, %v637, 0.0
  %643 = vadd.xlane.f32.xlu0 %v642
  %v644 = vpop.xlane.xlu0 %643
  %v645 = vsel %vm555, %v638, 0.0
  %646 = vadd.xlane.f32.xlu0 %v645
  %v647 = vpop.xlane.xlu0 %646
  %v648 = vsub.f32 %v529, %v641
  %v649 = vsub.f32 %v530, %v644
  %v650 = vsub.f32 %v531, %v647
  %v651 = vmul.f32 %v648, 1.442695
  %v652 = vpow.pop %v651
  %v653 = vmul.f32 %v649, 1.442695
  %v654 = vpow.pop %v653
  %v655 = vmul.f32 %v650, 1.442695
  %v656 = vpow.pop %v655
  %vm657 = vcmp.eq.s32.totalorder %v151, 1
  %v658 = vsel %vm657, 1, 0
  %v659 = vcvt.s32.f32 %v658
  %661 = vset.pattern.permute.xlu0 1
  %662 = vperm.xlu0 %661, %v652
  %v663 = vpop.permute.xlu0 %662
  %666 = vset.pattern.permute.xlu0 1
  %667 = vperm.xlu0 %666, %v654
  %v668 = vpop.permute.xlu0 %667
  %671 = vset.pattern.permute.xlu0 1
  %672 = vperm.xlu0 %671, %v656
  %v673 = vpop.permute.xlu0 %672
  %v675 = vmul.f32 %v663, %v659
  %v676 = vmul.f32 %v668, %v659
  %v677 = vmul.f32 %v673, %v659
  %v678 = vadd.f32 %v607, %v675
  %v679 = vadd.f32 %v608, %v676
  %v680 = vadd.f32 %v609, %v677
  %681 = vset.pattern.permute.xlu0 2
  %682 = vperm.xlu0 %681, %v529
  %v683 = vpop.permute.xlu0 %682
  %685 = vset.pattern.permute.xlu0 2
  %686 = vperm.xlu0 %685, %v530
  %v687 = vpop.permute.xlu0 %686
  %689 = vset.pattern.permute.xlu0 2
  %690 = vperm.xlu0 %689, %v531
  %v691 = vpop.permute.xlu0 %690
  %v693 = vsel %vm532, %v683, -1e+30
  %v694 = vsel %vm533, %v687, -1e+30
  %v695 = vsel %vm534, %v691, -1e+30
  %v696 = vsel %vm204, %v693, -inf
  %v697 = vsel %vm204, %v694, -inf
  %v698 = vsel %vm555, %v695, -inf
  %v699 = vmax.f32 %v696, %v697
  %v700 = vmax.f32 %v699, %v698
  %v701 = vrot.slane %v700, 4
  %v702 = vmax.f32 %v700, %v701
  %v703 = vrot.slane %v702, 2
  %v704 = vmax.f32 %v702, %v703
  %v705 = vrot.slane %v704, 1
  %v706 = vmax.f32 %v704, %v705
  %v707 = vmul.f32 %v170, %v706
  %v708 = vmul.f32 %v171, %v706
  %v709 = vmul.f32 %v172, %v706
  %v710 = vsel %vm204, %v707, 0.0
  %711 = vadd.xlane.f32.xlu0 %v710
  %v712 = vpop.xlane.xlu0 %711
  %v713 = vsel %vm204, %v708, 0.0
  %714 = vadd.xlane.f32.xlu0 %v713
  %v715 = vpop.xlane.xlu0 %714
  %v716 = vsel %vm555, %v709, 0.0
  %717 = vadd.xlane.f32.xlu0 %v716
  %v718 = vpop.xlane.xlu0 %717
  %v719 = vsub.f32 %v529, %v712
  %v720 = vsub.f32 %v530, %v715
  %v721 = vsub.f32 %v531, %v718
  %v722 = vmul.f32 %v719, 1.442695
  %v723 = vpow.pop %v722
  %v724 = vmul.f32 %v720, 1.442695
  %v725 = vpow.pop %v724
  %v726 = vmul.f32 %v721, 1.442695
  %v727 = vpow.pop %v726
  %vm728 = vcmp.eq.s32.totalorder %v151, 2
  %v729 = vsel %vm728, 1, 0
  %v730 = vcvt.s32.f32 %v729
  %732 = vset.pattern.permute.xlu0 2
  %733 = vperm.xlu0 %732, %v723
  %v734 = vpop.permute.xlu0 %733
  %737 = vset.pattern.permute.xlu0 2
  %738 = vperm.xlu0 %737, %v725
  %v739 = vpop.permute.xlu0 %738
  %742 = vset.pattern.permute.xlu0 2
  %743 = vperm.xlu0 %742, %v727
  %v744 = vpop.permute.xlu0 %743
  %v746 = vmul.f32 %v734, %v730
  %v747 = vmul.f32 %v739, %v730
  %v748 = vmul.f32 %v744, %v730
  %v749 = vadd.f32 %v678, %v746
  %v750 = vadd.f32 %v679, %v747
  %v751 = vadd.f32 %v680, %v748
  %752 = vset.pattern.permute.xlu0 3
  %753 = vperm.xlu0 %752, %v529
  %v754 = vpop.permute.xlu0 %753
  %756 = vset.pattern.permute.xlu0 3
  %757 = vperm.xlu0 %756, %v530
  %v758 = vpop.permute.xlu0 %757
  %760 = vset.pattern.permute.xlu0 3
  %761 = vperm.xlu0 %760, %v531
  %v762 = vpop.permute.xlu0 %761
  %v764 = vsel %vm532, %v754, -1e+30
  %v765 = vsel %vm533, %v758, -1e+30
  %v766 = vsel %vm534, %v762, -1e+30
  %v767 = vsel %vm204, %v764, -inf
  %v768 = vsel %vm204, %v765, -inf
  %v769 = vsel %vm555, %v766, -inf
  %v770 = vmax.f32 %v767, %v768
  %v771 = vmax.f32 %v770, %v769
  %v772 = vrot.slane %v771, 4
  %v773 = vmax.f32 %v771, %v772
  %v774 = vrot.slane %v773, 2
  %v775 = vmax.f32 %v773, %v774
  %v776 = vrot.slane %v775, 1
  %v777 = vmax.f32 %v775, %v776
  %v778 = vmul.f32 %v170, %v777
  %v779 = vmul.f32 %v171, %v777
  %v780 = vmul.f32 %v172, %v777
  %v781 = vsel %vm204, %v778, 0.0
  %782 = vadd.xlane.f32.xlu0 %v781
  %v783 = vpop.xlane.xlu0 %782
  %v784 = vsel %vm204, %v779, 0.0
  %785 = vadd.xlane.f32.xlu0 %v784
  %v786 = vpop.xlane.xlu0 %785
  %v787 = vsel %vm555, %v780, 0.0
  %788 = vadd.xlane.f32.xlu0 %v787
  %v789 = vpop.xlane.xlu0 %788
  %v790 = vsub.f32 %v529, %v783
  %v791 = vsub.f32 %v530, %v786
  %v792 = vsub.f32 %v531, %v789
  %v793 = vmul.f32 %v790, 1.442695
  %v794 = vpow.pop %v793
  %v795 = vmul.f32 %v791, 1.442695
  %v796 = vpow.pop %v795
  %v797 = vmul.f32 %v792, 1.442695
  %v798 = vpow.pop %v797
  %vm799 = vcmp.eq.s32.totalorder %v151, 3
  %v800 = vsel %vm799, 1, 0
  %v801 = vcvt.s32.f32 %v800
  %803 = vset.pattern.permute.xlu0 3
  %804 = vperm.xlu0 %803, %v794
  %v805 = vpop.permute.xlu0 %804
  %808 = vset.pattern.permute.xlu0 3
  %809 = vperm.xlu0 %808, %v796
  %v810 = vpop.permute.xlu0 %809
  %813 = vset.pattern.permute.xlu0 3
  %814 = vperm.xlu0 %813, %v798
  %v815 = vpop.permute.xlu0 %814
  %v817 = vmul.f32 %v805, %v801
  %v818 = vmul.f32 %v810, %v801
  %v819 = vmul.f32 %v815, %v801
  %v820 = vadd.f32 %v749, %v817
  %v821 = vadd.f32 %v750, %v818
  %v822 = vadd.f32 %v751, %v819
  %vm823 = vcmask 162816
  %v825 = vsel %vm823, %v203, 0
  %vm827 = vcmask 1043456
  %v829 = vsel %vm827, %v822, 0
  %831 = vmatprep.subr.mxu0 0.0
  %832 = vmatpush1.msra.mxu0 %v820
  %833 = vmatprep.subr.mxu0 0.0
  %834 = vmatpush1.msra.mxu0 %v821
  %835 = vmatprep.subr.mxu0 0.0
  %836 = vmatpush1.msra.mxu0 %v829
  %837 = vmatprep.subr.mxu0 0.0
  %838 = vmatpush1.msra.mxu0 0.0
  %839 = vmatprep.subr.mxu0 0.0
  %840 = vmatpush1.msra.mxu0 0.0
  %841 = vmatprep.subr.mxu0 0.0
  %842 = vmatpush1.msra.mxu0 0.0
  %843 = vmatprep.subr.mxu0 0.0
  %844 = vmatpush1.msra.mxu0 0.0
  %845 = vmatprep.subr.mxu0 0.0
  %846 = vmatpush1.msra.mxu0 0.0
  %847 = vmatprep.subr.mxu0 0.0
  %848 = vmatpush1.msra.mxu0 0.0
  %849 = vmatprep.subr.mxu0 0.0
  %850 = vmatpush1.msra.mxu0 0.0
  %851 = vmatprep.subr.mxu0 0.0
  %852 = vmatpush1.msra.mxu0 0.0
  %853 = vmatprep.subr.mxu0 0.0
  %854 = vmatpush1.msra.mxu0 0.0
  %855 = vmatprep.subr.mxu0 0.0
  %856 = vmatpush1.msra.mxu0 0.0
  %857 = vmatprep.subr.mxu0 0.0
  %858 = vmatpush1.msra.mxu0 0.0
  %859 = vmatprep.subr.mxu0 0.0
  %860 = vmatpush1.msra.mxu0 0.0
  %861 = vmatprep.subr.mxu0 0.0
  %862 = vmatpush1.msra.mxu0 0.0
  %863 = vmatprep.subr.mxu0 0.0
  %864 = vmatpush1.msra.mxu0 0.0
  %865 = vmatprep.subr.mxu0 0.0
  %866 = vmatpush1.msra.mxu0 0.0
  %867 = vmatprep.subr.mxu0 0.0
  %868 = vmatpush1.msra.mxu0 0.0
  %869 = vmatprep.subr.mxu0 0.0
  %870 = vmatpush1.msra.mxu0 0.0
  %871 = vmatprep.subr.mxu0 0.0
  %872 = vmatpush1.msra.mxu0 0.0
  %873 = vmatprep.subr.mxu0 0.0
  %874 = vmatpush1.msra.mxu0 0.0
  %875 = vmatprep.subr.mxu0 0.0
  %876 = vmatpush1.msra.mxu0 0.0
  %877 = vmatprep.subr.mxu0 0.0
  %878 = vmatpush1.msra.mxu0 0.0
  %879 = vmatprep.subr.mxu0 0.0
  %880 = vmatpush1.msra.mxu0 0.0
  %881 = vmatprep.subr.mxu0 0.0
  %882 = vmatpush1.msra.mxu0 0.0
  %883 = vmatprep.subr.mxu0 0.0
  %884 = vmatpush1.msra.mxu0 0.0
  %885 = vmatprep.subr.mxu0 0.0
  %886 = vmatpush1.msra.mxu0 0.0
  %887 = vmatprep.subr.mxu0 0.0
  %888 = vmatpush1.msra.mxu0 0.0
  %889 = vmatprep.subr.mxu0 0.0
  %890 = vmatpush1.msra.mxu0 0.0
  %891 = vmatprep.subr.mxu0 0.0
  %892 = vmatpush1.msra.mxu0 0.0
  %893 = vmatprep.subr.mxu0 0.0
  %894 = vmatpush1.msra.mxu0 0.0
  %895 = vmatprep.mubr.f32.mxu0 0.0
  %896 = vmatmul.mubr.f32.gmra.mrb[0].mxu0 %v825
  %v897 = vpop.f32.mrb[0].mxu0
  %v898 = vadd.f32 1e-16, %v897
  %v899 = vpop.f32.mrb[0].mxu0
  %900 = vdwg.mxu0
  %901 = vmatprep.subr.mxu0 0.0
  %902 = vmatpush1.msra.mxu0 %v898
  %903 = vmatprep.subr.mxu0 0.0
  %904 = vmatpush1.msra.mxu0 0.0
  %905 = vmatprep.subr.mxu0 0.0
  %906 = vmatpush1.msra.mxu0 0.0
  %907 = vmatprep.subr.mxu0 0.0
  %908 = vmatpush1.msra.mxu0 0.0
  %909 = vmatprep.subr.mxu0 0.0
  %910 = vmatpush1.msra.mxu0 0.0
  %911 = vmatprep.subr.mxu0 0.0
  %912 = vmatpush1.msra.mxu0 0.0
  %913 = vmatprep.subr.mxu0 0.0
  %914 = vmatpush1.msra.mxu0 0.0
  %915 = vmatprep.subr.mxu0 0.0
  %916 = vmatpush1.msra.mxu0 0.0
  %917 = vmatprep.subr.mxu0 0.0
  %918 = vmatpush1.msra.mxu0 0.0
  %919 = vmatprep.subr.mxu0 0.0
  %920 = vmatpush1.msra.mxu0 0.0
  %921 = vmatprep.subr.mxu0 0.0
  %922 = vmatpush1.msra.mxu0 0.0
  %923 = vmatprep.subr.mxu0 0.0
  %924 = vmatpush1.msra.mxu0 0.0
  %925 = vmatprep.subr.mxu0 0.0
  %926 = vmatpush1.msra.mxu0 0.0
  %927 = vmatprep.subr.mxu0 0.0
  %928 = vmatpush1.msra.mxu0 0.0
  %929 = vmatprep.subr.mxu0 0.0
  %930 = vmatpush1.msra.mxu0 0.0
  %931 = vmatprep.subr.mxu0 0.0
  %932 = vmatpush1.msra.mxu0 0.0
  %933 = vmatprep.subr.mxu0 0.0
  %934 = vmatpush1.msra.mxu0 0.0
  %935 = vmatprep.subr.mxu0 0.0
  %936 = vmatpush1.msra.mxu0 0.0
  %937 = vmatprep.subr.mxu0 0.0
  %938 = vmatpush1.msra.mxu0 0.0
  %939 = vmatprep.subr.mxu0 0.0
  %940 = vmatpush1.msra.mxu0 0.0
  %941 = vmatprep.subr.mxu0 0.0
  %942 = vmatpush1.msra.mxu0 0.0
  %943 = vmatprep.subr.mxu0 0.0
  %944 = vmatpush1.msra.mxu0 0.0
  %945 = vmatprep.subr.mxu0 0.0
  %946 = vmatpush1.msra.mxu0 0.0
  %947 = vmatprep.subr.mxu0 0.0
  %948 = vmatpush1.msra.mxu0 0.0
  %949 = vmatprep.subr.mxu0 0.0
  %950 = vmatpush1.msra.mxu0 0.0
  %951 = vmatprep.subr.mxu0 0.0
  %952 = vmatpush1.msra.mxu0 0.0
  %953 = vmatprep.subr.mxu0 0.0
  %954 = vmatpush1.msra.mxu0 0.0
  %955 = vmatprep.subr.mxu0 0.0
  %956 = vmatpush1.msra.mxu0 0.0
  %957 = vmatprep.subr.mxu0 0.0
  %958 = vmatpush1.msra.mxu0 0.0
  %959 = vmatprep.subr.mxu0 0.0
  %960 = vmatpush1.msra.mxu0 0.0
  %961 = vmatprep.subr.mxu0 0.0
  %962 = vmatpush1.msra.mxu0 0.0
  %963 = vmatprep.subr.mxu0 0.0
  %964 = vmatpush1.msra.mxu0 0.0
  %965 = vmatprep.mubr.f32.mxu0 0.0
  %966 = vmatmul.mubr.f32.gmra.mrb[0].mxu0 %v206
  %v967 = vpop.f32.mrb[0].mxu0
  %v968 = vadd.f32 0.0, %v967
  %v969 = vpop.f32.mrb[0].mxu0
  %970 = vmatprep.mubr.f32.mxu0 0.0
  %971 = vmatmul.mubr.f32.gmra.mrb[0].mxu0 %v209
  %v972 = vpop.f32.mrb[0].mxu0
  %v973 = vadd.f32 0.0, %v972
  %v974 = vpop.f32.mrb[0].mxu0
  %975 = vmatprep.mubr.f32.mxu0 0.0
  %976 = vmatmul.mubr.f32.gmra.mrb[0].mxu0 %v212
  %v977 = vpop.f32.mrb[0].mxu0
  %v978 = vadd.f32 0.0, %v977
  %v979 = vpop.f32.mrb[0].mxu0
  %980 = vdwg.mxu0
  %v981 = vrcp.pop %v968
  %v982 = vrcp.pop %v973
  %v983 = vrcp.pop %v978
  %v984 = vmul.f32 %v820, %v981
  %v985 = vmul.f32 %v821, %v982
  %v986 = vmul.f32 %v822, %v983
  %v987 = vld [vmem:[%s8] sm:$0xff]
  %v988 = vld [vmem:[%s8 + $0x8] sm:$0xff]
  %v989 = vld [vmem:[%s8 + $0x10] sm:$0xf]
  %991 = vset.pattern.permute.xlu0 0
  %992 = vperm.xlu0 %991, %v987
  %v993 = vpop.permute.xlu0 %992
  %996 = vset.pattern.permute.xlu0 0
  %997 = vperm.xlu0 %996, %v988
  %v998 = vpop.permute.xlu0 %997
  %1001 = vset.pattern.permute.xlu0 0
  %1002 = vperm.xlu0 %1001, %v989
  %v1003 = vpop.permute.xlu0 %1002
  %v1005 = vmul.f32 %v984, %v993
  %v1006 = vmul.f32 %v985, %v998
  %v1007 = vmul.f32 %v986, %v1003
  %vm1008 = vcmask 31744
  %v1010 = vsel %vm1008, %v1005, 0
  %v1013 = vsel %vm1008, %v1006, 0
  %v1016 = vsel %vm1008, %v1007, 0
  %v1019 = vsel %vm827, %v417, 0
  %1021 = vmatprep.subr.mxu0 0.0
  %1022 = vmatpush1.msra.mxu0 %v1019
  %1023 = vmatprep.subr.mxu0 0.0
  %1024 = vmatpush1.msra.mxu0 0.0
  %1025 = vmatprep.subr.mxu0 0.0
  %1026 = vmatpush1.msra.mxu0 0.0
  %1027 = vmatprep.subr.mxu0 0.0
  %1028 = vmatpush1.msra.mxu0 0.0
  %1029 = vmatprep.subr.mxu0 0.0
  %1030 = vmatpush1.msra.mxu0 0.0
  %1031 = vmatprep.subr.mxu0 0.0
  %1032 = vmatpush1.msra.mxu0 0.0
  %1033 = vmatprep.subr.mxu0 0.0
  %1034 = vmatpush1.msra.mxu0 0.0
  %1035 = vmatprep.subr.mxu0 0.0
  %1036 = vmatpush1.msra.mxu0 0.0
  %1037 = vmatprep.subr.mxu0 0.0
  %1038 = vmatpush1.msra.mxu0 0.0
  %1039 = vmatprep.subr.mxu0 0.0
  %1040 = vmatpush1.msra.mxu0 0.0
  %1041 = vmatprep.subr.mxu0 0.0
  %1042 = vmatpush1.msra.mxu0 0.0
  %1043 = vmatprep.subr.mxu0 0.0
  %1044 = vmatpush1.msra.mxu0 0.0
  %1045 = vmatprep.subr.mxu0 0.0
  %1046 = vmatpush1.msra.mxu0 0.0
  %1047 = vmatprep.subr.mxu0 0.0
  %1048 = vmatpush1.msra.mxu0 0.0
  %1049 = vmatprep.subr.mxu0 0.0
  %1050 = vmatpush1.msra.mxu0 0.0
  %1051 = vmatprep.subr.mxu0 0.0
  %1052 = vmatpush1.msra.mxu0 0.0
  %1053 = vmatprep.subr.mxu0 0.0
  %1054 = vmatpush1.msra.mxu0 0.0
  %1055 = vmatprep.subr.mxu0 0.0
  %1056 = vmatpush1.msra.mxu0 0.0
  %1057 = vmatprep.subr.mxu0 0.0
  %1058 = vmatpush1.msra.mxu0 0.0
  %1059 = vmatprep.subr.mxu0 0.0
  %1060 = vmatpush1.msra.mxu0 0.0
  %1061 = vmatprep.subr.mxu0 0.0
  %1062 = vmatpush1.msra.mxu0 0.0
  %1063 = vmatprep.subr.mxu0 0.0
  %1064 = vmatpush1.msra.mxu0 0.0
  %1065 = vmatprep.subr.mxu0 0.0
  %1066 = vmatpush1.msra.mxu0 0.0
  %1067 = vmatprep.subr.mxu0 0.0
  %1068 = vmatpush1.msra.mxu0 0.0
  %1069 = vmatprep.subr.mxu0 0.0
  %1070 = vmatpush1.msra.mxu0 0.0
  %1071 = vmatprep.subr.mxu0 0.0
  %1072 = vmatpush1.msra.mxu0 0.0
  %1073 = vmatprep.subr.mxu0 0.0
  %1074 = vmatpush1.msra.mxu0 0.0
  %1075 = vmatprep.subr.mxu0 0.0
  %1076 = vmatpush1.msra.mxu0 0.0
  %1077 = vmatprep.subr.mxu0 0.0
  %1078 = vmatpush1.msra.mxu0 0.0
  %1079 = vmatprep.subr.mxu0 0.0
  %1080 = vmatpush1.msra.mxu0 0.0
  %1081 = vmatprep.subr.mxu0 0.0
  %1082 = vmatpush1.msra.mxu0 0.0
  %1083 = vmatprep.subr.mxu0 0.0
  %1084 = vmatpush1.msra.mxu0 0.0
  %1085 = vmatprep.mubr.f32.mxu0 0.0
  %1086 = vmatmul.mubr.f32.gmra.mrb[0].mxu0 %v1010
  %v1087 = vpop.f32.mrb[0].mxu0
  %v1088 = vadd.f32 0.0, %v1087
  %v1089 = vpop.f32.mrb[0].mxu0
  %1090 = vmatprep.mubr.f32.mxu0 0.0
  %1091 = vmatmul.mubr.f32.gmra.mrb[0].mxu0 %v1013
  %v1092 = vpop.f32.mrb[0].mxu0
  %v1093 = vadd.f32 0.0, %v1092
  %v1094 = vpop.f32.mrb[0].mxu0
  %1095 = vmatprep.mubr.f32.mxu0 0.0
  %1096 = vmatmul.mubr.f32.gmra.mrb[0].mxu0 %v1016
  %v1097 = vpop.f32.mrb[0].mxu0
  %v1098 = vadd.f32 0.0, %v1097
  %v1099 = vpop.f32.mrb[0].mxu0
  %1100 = vdwg.mxu0
  %1104 = vrot.lane.b32.xlu0 %v371, 96
  %v1105 = vpop.permute.xlu0 %1104
  %1106 = vrot.lane.b32.xlu0 %v376, 96
  %v1107 = vpop.permute.xlu0 %1106
  %1108 = vrot.lane.b32.xlu0 %v381, 96
  %v1109 = vpop.permute.xlu0 %1108
  %v1113 = vmul.f32 %v1088, %v1105
  %v1114 = vmul.f32 %v1093, %v1107
  %v1115 = vmul.f32 %v1098, %v1109
  %v1117 = vsel %vm827, %v1115, 0
  %1119 = vmatprep.subr.mxu0 0.0
  %1120 = vmatpush1.msra.mxu0 %v1113
  %1121 = vmatprep.subr.mxu0 0.0
  %1122 = vmatpush1.msra.mxu0 %v1114
  %1123 = vmatprep.subr.mxu0 0.0
  %1124 = vmatpush1.msra.mxu0 %v1117
  %1125 = vmatprep.subr.mxu0 0.0
  %1126 = vmatpush1.msra.mxu0 0.0
  %1127 = vmatprep.subr.mxu0 0.0
  %1128 = vmatpush1.msra.mxu0 0.0
  %1129 = vmatprep.subr.mxu0 0.0
  %1130 = vmatpush1.msra.mxu0 0.0
  %1131 = vmatprep.subr.mxu0 0.0
  %1132 = vmatpush1.msra.mxu0 0.0
  %1133 = vmatprep.subr.mxu0 0.0
  %1134 = vmatpush1.msra.mxu0 0.0
  %1135 = vmatprep.subr.mxu0 0.0
  %1136 = vmatpush1.msra.mxu0 0.0
  %1137 = vmatprep.subr.mxu0 0.0
  %1138 = vmatpush1.msra.mxu0 0.0
  %1139 = vmatprep.subr.mxu0 0.0
  %1140 = vmatpush1.msra.mxu0 0.0
  %1141 = vmatprep.subr.mxu0 0.0
  %1142 = vmatpush1.msra.mxu0 0.0
  %1143 = vmatprep.subr.mxu0 0.0
  %1144 = vmatpush1.msra.mxu0 0.0
  %1145 = vmatprep.subr.mxu0 0.0
  %1146 = vmatpush1.msra.mxu0 0.0
  %1147 = vmatprep.subr.mxu0 0.0
  %1148 = vmatpush1.msra.mxu0 0.0
  %1149 = vmatprep.subr.mxu0 0.0
  %1150 = vmatpush1.msra.mxu0 0.0
  %1151 = vmatprep.subr.mxu0 0.0
  %1152 = vmatpush1.msra.mxu0 0.0
  %1153 = vmatprep.subr.mxu0 0.0
  %1154 = vmatpush1.msra.mxu0 0.0
  %1155 = vmatprep.subr.mxu0 0.0
  %1156 = vmatpush1.msra.mxu0 0.0
  %1157 = vmatprep.subr.mxu0 0.0
  %1158 = vmatpush1.msra.mxu0 0.0
  %1159 = vmatprep.subr.mxu0 0.0
  %1160 = vmatpush1.msra.mxu0 0.0
  %1161 = vmatprep.subr.mxu0 0.0
  %1162 = vmatpush1.msra.mxu0 0.0
  %1163 = vmatprep.subr.mxu0 0.0
  %1164 = vmatpush1.msra.mxu0 0.0
  %1165 = vmatprep.subr.mxu0 0.0
  %1166 = vmatpush1.msra.mxu0 0.0
  %1167 = vmatprep.subr.mxu0 0.0
  %1168 = vmatpush1.msra.mxu0 0.0
  %1169 = vmatprep.subr.mxu0 0.0
  %1170 = vmatpush1.msra.mxu0 0.0
  %1171 = vmatprep.subr.mxu0 0.0
  %1172 = vmatpush1.msra.mxu0 0.0
  %1173 = vmatprep.subr.mxu0 0.0
  %1174 = vmatpush1.msra.mxu0 0.0
  %1175 = vmatprep.subr.mxu0 0.0
  %1176 = vmatpush1.msra.mxu0 0.0
  %1177 = vmatprep.subr.mxu0 0.0
  %1178 = vmatpush1.msra.mxu0 0.0
  %1179 = vmatprep.subr.mxu0 0.0
  %1180 = vmatpush1.msra.mxu0 0.0
  %1181 = vmatprep.subr.mxu0 0.0
  %1182 = vmatpush1.msra.mxu0 0.0
  %1183 = vmatprep.mubr.f32.mxu0 0.0
  %1184 = vmatmul.mubr.f32.gmra.mrb[0].mxu0 %v825
  %v1185 = vpop.f32.mrb[0].mxu0
  %v1186 = vadd.f32 0.0, %v1185
  %v1187 = vpop.f32.mrb[0].mxu0
  %1188 = vdwg.mxu0
  %1189 = vst.msk [vmem:[%s9] sm:$0xff] %vm44, %v1186
  // Predicated region
  $region38: #{legislative_graph_encoder.20} parent=0 // pred_check
    _
  $region39: #{legislative_graph_encoder.20} parent=0 // pred_check_branch
    %1191 = sbr.rel (0) target = $region41
  $region40: #{legislative_graph_encoder.20} parent=0 // pred_region
    _
  $region41: #{legislative_graph_encoder.20} parent=0 // pred_fallthru
    _
  // Predicated region
  $region42: #{legislative_graph_encoder.20} parent=0 // pred_check
    _
  $region43: #{legislative_graph_encoder.20} parent=0 // pred_check_branch
    %1193 = sbr.rel (0) target = $region45
  $region44: #{legislative_graph_encoder.20} parent=0 // pred_region
    _
  $region45: #{legislative_graph_encoder.20} parent=0 // pred_fallthru
    _

// kernel: legislative_graph_encoder.25
$region0: #{legislative_graph_encoder.25}
  #allocation0 [shape = 'u32[]', space=smem, size = 0x4, offset = 0x4, fixed_abs, tag = 'smem constant byte address 0x4 - core index']
  #allocation1 [shape = 'u32[144,128]{1,0:T(1,128)}', space=vmem, size = 0x12000, scoped, tag = 'internal scratch']
  %s0 = inlined_call_operand.vmem [shape: f32[8,32], index: 0, kind: input, shape index: {}]
  %s1 = inlined_call_operand.vmem [shape: f32[8,32], index: 1, kind: input, shape index: {}]
  %s2 = inlined_call_operand.vmem [shape: f32[1,32], index: 2, kind: input, shape index: {}]
  %s3 = inlined_call_operand.vmem [shape: f32[1,32], index: 3, kind: input, shape index: {}]
  %s4 = inlined_call_operand.vmem [shape: f32[32,128], index: 4, kind: input, shape index: {}]
  %s5 = inlined_call_operand.vmem [shape: f32[128,32], index: 5, kind: input, shape index: {}]
  %s6 = inlined_call_operand.vmem [shape: f32[8,32], index: 6, kind: output, shape index: {}]
  %s7 = sld [smem:[#allocation0]]
  $region34: #{legislative_graph_encoder.25} parent=0
    _
  %s9 = ssub.s32 1, %s7
  %s10 = scalar_select 0, %s9, %s7
  // Predicated region
  $region2: #{legislative_graph_encoder.25} parent=0 // pred_check
    _
  $region3: #{legislative_graph_encoder.25} parent=0 // pred_check_branch
    %12 = sbr.rel (0) target = $region5
  $region4: #{legislative_graph_encoder.25} parent=0 // pred_region
    _
  $region5: #{legislative_graph_encoder.25} parent=0 // pred_fallthru
    _
  // Predicated region
  $region6: #{legislative_graph_encoder.25} parent=0 // pred_check
    _
  $region7: #{legislative_graph_encoder.25} parent=0 // pred_check_branch
    %14 = sbr.rel (0) target = $region9
  $region8: #{legislative_graph_encoder.25} parent=0 // pred_region
    _
  $region9: #{legislative_graph_encoder.25} parent=0 // pred_fallthru
    _
  // Predicated region
  $region10: #{legislative_graph_encoder.25} parent=0 // pred_check
    _
  $region11: #{legislative_graph_encoder.25} parent=0 // pred_check_branch
    %16 = sbr.rel (0) target = $region13
  $region12: #{legislative_graph_encoder.25} parent=0 // pred_region
    _
  $region13: #{legislative_graph_encoder.25} parent=0 // pred_fallthru
    _
  // Predicated region
  $region14: #{legislative_graph_encoder.25} parent=0 // pred_check
    _
  $region15: #{legislative_graph_encoder.25} parent=0 // pred_check_branch
    %18 = sbr.rel (0) target = $region17
  $region16: #{legislative_graph_encoder.25} parent=0 // pred_region
    _
  $region17: #{legislative_graph_encoder.25} parent=0 // pred_fallthru
    _
  // Predicated region
  $region18: #{legislative_graph_encoder.25} parent=0 // pred_check
    _
  $region19: #{legislative_graph_encoder.25} parent=0 // pred_check_branch
    %20 = sbr.rel (0) target = $region21
  $region20: #{legislative_graph_encoder.25} parent=0 // pred_region
    _
  $region21: #{legislative_graph_encoder.25} parent=0 // pred_fallthru
    _
  // Predicated region
  $region22: #{legislative_graph_encoder.25} parent=0 // pred_check
    _
  $region23: #{legislative_graph_encoder.25} parent=0 // pred_check_branch
    %22 = sbr.rel (0) target = $region25
  $region24: #{legislative_graph_encoder.25} parent=0 // pred_region
    _
  $region25: #{legislative_graph_encoder.25} parent=0 // pred_fallthru
    _
  %v24 = vld [vmem:[%s0] sm:$0xff]
  %v25 = vld [vmem:[%s1] sm:$0xff]
  %v26 = vadd.f32 %v24, %v25
  %v27 = vld [vmem:[%s2] sm:$0x1]
  %v28 = vld [vmem:[%s3] sm:$0x1]
  %v29 = vld [vmem:[%s4] sm:$0xff]
  %v30 = vld [vmem:[%s4 + $0x8] sm:$0xff]
  %v31 = vld [vmem:[%s4 + $0x10] sm:$0xff]
  %v32 = vld [vmem:[%s4 + $0x18] sm:$0xff]
  %v33 = vld [vmem:[%s5] sm:$0xff]
  %v34 = vld [vmem:[%s5 + $0x8] sm:$0xff]
  %v35 = vld [vmem:[%s5 + $0x10] sm:$0xff]
  %v36 = vld [vmem:[%s5 + $0x18] sm:$0xff]
  %v37 = vld [vmem:[%s5 + $0x20] sm:$0xff]
  %v38 = vld [vmem:[%s5 + $0x28] sm:$0xff]
  %v39 = vld [vmem:[%s5 + $0x30] sm:$0xff]
  %v40 = vld [vmem:[%s5 + $0x38] sm:$0xff]
  %v41 = vld [vmem:[%s5 + $0x40] sm:$0xff]
  %v42 = vld [vmem:[%s5 + $0x48] sm:$0xff]
  %v43 = vld [vmem:[%s5 + $0x50] sm:$0xff]
  %v44 = vld [vmem:[%s5 + $0x58] sm:$0xff]
  %v45 = vld [vmem:[%s5 + $0x60] sm:$0xff]
  %v46 = vld [vmem:[%s5 + $0x68] sm:$0xff]
  %v47 = vld [vmem:[%s5 + $0x70] sm:$0xff]
  %v48 = vld [vmem:[%s5 + $0x78] sm:$0xff]
  %vm49 = vcmask 261120
  %v50 = vsel %vm49, %v26, 0.0
  %51 = vadd.xlane.f32.xlu0 %v50
  %v52 = vpop.xlane.xlu0 %51
  %v53 = vrcp.pop 32.0
  %v54 = vmul.f32 %v52, %v53
  %v55 = vsub.f32 %v26, %v54
  %v56 = vmul.f32 %v55, %v55
  %v57 = vsel %vm49, %v56, 0.0
  %58 = vadd.xlane.f32.xlu0 %v57
  %v59 = vpop.xlane.xlu0 %58
  %v60 = vmul.f32 %v59, %v53
  %v61 = vadd.f32 %v60, 1e-05
  %v62 = vrsqrt.pop %v61
  %v63 = vmul.f32 %v55, %v62
  %v64 = vsel %vm49, %v63, 0.0
  %65 = vadd.xlane.f32.xlu0 %v64
  %v66 = vpop.xlane.xlu0 %65
  %v67 = vmul.f32 %v66, %v53
  %v68 = vsub.f32 %v63, %v67
  %v69 = vmul.f32 %v68, %v68
  %v70 = vsel %vm49, %v69, 0.0
  %71 = vadd.xlane.f32.xlu0 %v70
  %v72 = vpop.xlane.xlu0 %71
  %v73 = vmul.f32 %v72, %v53
  %v74 = vadd.f32 %v73, 1e-05
  %v75 = vrsqrt.pop %v74
  %v76 = vmul.f32 %v68, %v75
  %v78 = vlaneseq
  %v79 = vshrl.u32 %v78, 7
  %v80 = vsub.s32 0, %v79
  %v81 = vrot.slane %v27, %v80
  %v83 = vmul.f32 %v76, %v81
  %v85 = vlaneseq
  %v86 = vshrl.u32 %v85, 7
  %v87 = vsub.s32 0, %v86
  %v88 = vrot.slane %v28, %v87
  %v90 = vadd.f32 %v83, %v88
  %v91 = vpack.c.bf16 %v90, %v90
  %v92 = vpack.c.bf16 %v30, %v29
  %v93 = vpack.c.bf16 %v32, %v31
  %v95 = vsel %vm49, %v91, 0
  %97 = vmatprep.subr.bf16.mxu0 0
  %98 = vmatpush1.bf16.msra.mxu0 %v92
  %99 = vmatprep.subr.bf16.mxu0 0
  %100 = vmatpush1.bf16.msra.mxu0 %v93
  %101 = vmatprep.subr.bf16.mxu0 0
  %102 = vmatpush1.bf16.msra.mxu0 0
  %103 = vmatprep.subr.bf16.mxu0 0
  %104 = vmatpush1.bf16.msra.mxu0 0
  %105 = vmatprep.subr.bf16.mxu0 0
  %106 = vmatpush1.bf16.msra.mxu0 0
  %107 = vmatprep.subr.bf16.mxu0 0
  %108 = vmatpush1.bf16.msra.mxu0 0
  %109 = vmatprep.subr.bf16.mxu0 0
  %110 = vmatpush1.bf16.msra.mxu0 0
  %111 = vmatprep.subr.bf16.mxu0 0
  %112 = vmatpush1.bf16.msra.mxu0 0
  %113 = vmatprep.subr.bf16.mxu0 0
  %114 = vmatpush1.bf16.msra.mxu0 0
  %115 = vmatprep.subr.bf16.mxu0 0
  %116 = vmatpush1.bf16.msra.mxu0 0
  %117 = vmatprep.subr.bf16.mxu0 0
  %118 = vmatpush1.bf16.msra.mxu0 0
  %119 = vmatprep.subr.bf16.mxu0 0
  %120 = vmatpush1.bf16.msra.mxu0 0
  %121 = vmatprep.subr.bf16.mxu0 0
  %122 = vmatpush1.bf16.msra.mxu0 0
  %123 = vmatprep.subr.bf16.mxu0 0
  %124 = vmatpush1.bf16.msra.mxu0 0
  %125 = vmatprep.subr.bf16.mxu0 0
  %126 = vmatpush1.bf16.msra.mxu0 0
  %127 = vmatprep.subr.bf16.mxu0 0
  %128 = vmatpush1.bf16.msra.mxu0 0
  %129 = vmatprep.mubr.bf16.mxu0 0
  %130 = vmatmul.mubr.bf16.gmra.mrb[0].mxu0 %v95
  %v131 = vpop.f32.mrb[0].mxu0
  %v132 = vadd.f32 0.0, %v131
  %v133 = vpop.f32.mrb[0].mxu0
  %v134 = vpop.f32.mrb[0].mxu0
  %v135 = vpop.f32.mrb[0].mxu0
  %136 = vdwg.mxu0
  %v137 = vmul.f32 %v132, 0.5
  %v138 = vmul.f32 %v132, 0.044715
  %v139 = vmul.f32 %v138, %v132
  %v140 = vmul.f32 %v139, %v132
  %v141 = vadd.f32 %v132, %v140
  %v142 = vmul.f32 %v141, 0.7978846
  %v143 = vtanh.pop %v142
  %v144 = vadd.f32 %v143, 1.0
  %v145 = vmul.f32 %v137, %v144
  %v146 = vpack.c.bf16 %v145, %v145
  %v147 = vpack.c.bf16 %v34, %v33
  %v148 = vpack.c.bf16 %v36, %v35
  %v149 = vpack.c.bf16 %v38, %v37
  %v150 = vpack.c.bf16 %v40, %v39
  %v151 = vpack.c.bf16 %v42, %v41
  %v152 = vpack.c.bf16 %v44, %v43
  %v153 = vpack.c.bf16 %v46, %v45
  %v154 = vpack.c.bf16 %v48, %v47
  %155 = vmatprep.subr.bf16.mxu0 0
  %156 = vmatpush1.bf16.msra.mxu0 %v147
  %157 = vmatprep.subr.bf16.mxu0 0
  %158 = vmatpush1.bf16.msra.mxu0 %v148
  %159 = vmatprep.subr.bf16.mxu0 0
  %160 = vmatpush1.bf16.msra.mxu0 %v149
  %161 = vmatprep.subr.bf16.mxu0 0
  %162 = vmatpush1.bf16.msra.mxu0 %v150
  %163 = vmatprep.subr.bf16.mxu0 0
  %164 = vmatpush1.bf16.msra.mxu0 %v151
  %165 = vmatprep.subr.bf16.mxu0 0
  %166 = vmatpush1.bf16.msra.mxu0 %v152
  %167 = vmatprep.subr.bf16.mxu0 0
  %168 = vmatpush1.bf16.msra.mxu0 %v153
  %169 = vmatprep.subr.bf16.mxu0 0
  %170 = vmatpush1.bf16.msra.mxu0 %v154
  %171 = vmatprep.subr.bf16.mxu0 0
  %172 = vmatpush1.bf16.msra.mxu0 0
  %173 = vmatprep.subr.bf16.mxu0 0
  %174 = vmatpush1.bf16.msra.mxu0 0
  %175 = vmatprep.subr.bf16.mxu0 0
  %176 = vmatpush1.bf16.msra.mxu0 0
  %177 = vmatprep.subr.bf16.mxu0 0
  %178 = vmatpush1.bf16.msra.mxu0 0
  %179 = vmatprep.subr.bf16.mxu0 0
  %180 = vmatpush1.bf16.msra.mxu0 0
  %181 = vmatprep.subr.bf16.mxu0 0
  %182 = vmatpush1.bf16.msra.mxu0 0
  %183 = vmatprep.subr.bf16.mxu0 0
  %184 = vmatpush1.bf16.msra.mxu0 0
  %185 = vmatprep.subr.bf16.mxu0 0
  %186 = vmatpush1.bf16.msra.mxu0 0
  %187 = vmatprep.mubr.bf16.mxu0 0
  %188 = vmatmul.mubr.bf16.gmra.mrb[0].mxu0 %v146
  %v189 = vpop.f32.mrb[0].mxu0
  %v190 = vadd.f32 0.0, %v189
  %v191 = vpop.f32.mrb[0].mxu0
  %v192 = vpop.f32.mrb[0].mxu0
  %v193 = vpop.f32.mrb[0].mxu0
  %194 = vdwg.mxu0
  %v195 = vadd.f32 %v26, %v190
  %196 = vst.msk [vmem:[%s6] sm:$0xff] %vm49, %v195
  // Predicated region
  $region26: #{legislative_graph_encoder.25} parent=0 // pred_check
    _
  $region27: #{legislative_graph_encoder.25} parent=0 // pred_check_branch
    %198 = sbr.rel (0) target = $region29
  $region28: #{legislative_graph_encoder.25} parent=0 // pred_region
    _
  $region29: #{legislative_graph_encoder.25} parent=0 // pred_fallthru
    _
  // Predicated region
  $region30: #{legislative_graph_encoder.25} parent=0 // pred_check
    _
  $region31: #{legislative_graph_encoder.25} parent=0 // pred_check_branch
    %200 = sbr.rel (0) target = $region33
  $region32: #{legislative_graph_encoder.25} parent=0 // pred_region
    _
  $region33: #{legislative_graph_encoder.25} parent=0 // pred_fallthru
    _

// kernel: legislative_graph_encoder.23
$region0: #{legislative_graph_encoder.23}
  #allocation0 [shape = 'u32[]', space=smem, size = 0x4, offset = 0x4, fixed_abs, tag = 'smem constant byte address 0x4 - core index']
  #allocation1 [shape = 'u32[144,128]{1,0:T(1,128)}', space=vmem, size = 0x12000, scoped, tag = 'internal scratch']
  %s0 = inlined_call_operand.vmem [shape: f32[16,32], index: 0, kind: input, shape index: {}]
  %s1 = inlined_call_operand.vmem [shape: f32[16,32], index: 1, kind: input, shape index: {}]
  %s2 = inlined_call_operand.vmem [shape: f32[1,32], index: 2, kind: input, shape index: {}]
  %s3 = inlined_call_operand.vmem [shape: f32[1,32], index: 3, kind: input, shape index: {}]
  %s4 = inlined_call_operand.vmem [shape: f32[32,128], index: 4, kind: input, shape index: {}]
  %s5 = inlined_call_operand.vmem [shape: f32[128,32], index: 5, kind: input, shape index: {}]
  %s6 = inlined_call_operand.vmem [shape: f32[16,32], index: 6, kind: output, shape index: {}]
  %s7 = sld [smem:[#allocation0]]
  $region34: #{legislative_graph_encoder.23} parent=0
    _
  %s9 = ssub.s32 1, %s7
  %s10 = scalar_select 0, %s9, %s7
  // Predicated region
  $region2: #{legislative_graph_encoder.23} parent=0 // pred_check
    _
  $region3: #{legislative_graph_encoder.23} parent=0 // pred_check_branch
    %12 = sbr.rel (0) target = $region5
  $region4: #{legislative_graph_encoder.23} parent=0 // pred_region
    _
  $region5: #{legislative_graph_encoder.23} parent=0 // pred_fallthru
    _
  // Predicated region
  $region6: #{legislative_graph_encoder.23} parent=0 // pred_check
    _
  $region7: #{legislative_graph_encoder.23} parent=0 // pred_check_branch
    %14 = sbr.rel (0) target = $region9
  $region8: #{legislative_graph_encoder.23} parent=0 // pred_region
    _
  $region9: #{legislative_graph_encoder.23} parent=0 // pred_fallthru
    _
  // Predicated region
  $region10: #{legislative_graph_encoder.23} parent=0 // pred_check
    _
  $region11: #{legislative_graph_encoder.23} parent=0 // pred_check_branch
    %16 = sbr.rel (0) target = $region13
  $region12: #{legislative_graph_encoder.23} parent=0 // pred_region
    _
  $region13: #{legislative_graph_encoder.23} parent=0 // pred_fallthru
    _
  // Predicated region
  $region14: #{legislative_graph_encoder.23} parent=0 // pred_check
    _
  $region15: #{legislative_graph_encoder.23} parent=0 // pred_check_branch
    %18 = sbr.rel (0) target = $region17
  $region16: #{legislative_graph_encoder.23} parent=0 // pred_region
    _
  $region17: #{legislative_graph_encoder.23} parent=0 // pred_fallthru
    _
  // Predicated region
  $region18: #{legislative_graph_encoder.23} parent=0 // pred_check
    _
  $region19: #{legislative_graph_encoder.23} parent=0 // pred_check_branch
    %20 = sbr.rel (0) target = $region21
  $region20: #{legislative_graph_encoder.23} parent=0 // pred_region
    _
  $region21: #{legislative_graph_encoder.23} parent=0 // pred_fallthru
    _
  // Predicated region
  $region22: #{legislative_graph_encoder.23} parent=0 // pred_check
    _
  $region23: #{legislative_graph_encoder.23} parent=0 // pred_check_branch
    %22 = sbr.rel (0) target = $region25
  $region24: #{legislative_graph_encoder.23} parent=0 // pred_region
    _
  $region25: #{legislative_graph_encoder.23} parent=0 // pred_fallthru
    _
  %v24 = vld [vmem:[%s0] sm:$0xff]
  %v25 = vld [vmem:[%s0 + $0x8] sm:$0xff]
  %v26 = vld [vmem:[%s1] sm:$0xff]
  %v27 = vld [vmem:[%s1 + $0x8] sm:$0xff]
  %v28 = vadd.f32 %v24, %v26
  %v29 = vadd.f32 %v25, %v27
  %v30 = vld [vmem:[%s2] sm:$0x1]
  %v31 = vld [vmem:[%s3] sm:$0x1]
  %v32 = vld [vmem:[%s4] sm:$0xff]
  %v33 = vld [vmem:[%s4 + $0x8] sm:$0xff]
  %v34 = vld [vmem:[%s4 + $0x10] sm:$0xff]
  %v35 = vld [vmem:[%s4 + $0x18] sm:$0xff]
  %v36 = vld [vmem:[%s5] sm:$0xff]
  %v37 = vld [vmem:[%s5 + $0x8] sm:$0xff]
  %v38 = vld [vmem:[%s5 + $0x10] sm:$0xff]
  %v39 = vld [vmem:[%s5 + $0x18] sm:$0xff]
  %v40 = vld [vmem:[%s5 + $0x20] sm:$0xff]
  %v41 = vld [vmem:[%s5 + $0x28] sm:$0xff]
  %v42 = vld [vmem:[%s5 + $0x30] sm:$0xff]
  %v43 = vld [vmem:[%s5 + $0x38] sm:$0xff]
  %v44 = vld [vmem:[%s5 + $0x40] sm:$0xff]
  %v45 = vld [vmem:[%s5 + $0x48] sm:$0xff]
  %v46 = vld [vmem:[%s5 + $0x50] sm:$0xff]
  %v47 = vld [vmem:[%s5 + $0x58] sm:$0xff]
  %v48 = vld [vmem:[%s5 + $0x60] sm:$0xff]
  %v49 = vld [vmem:[%s5 + $0x68] sm:$0xff]
  %v50 = vld [vmem:[%s5 + $0x70] sm:$0xff]
  %v51 = vld [vmem:[%s5 + $0x78] sm:$0xff]
  %vm52 = vcmask 261120
  %v53 = vsel %vm52, %v28, 0.0
  %54 = vadd.xlane.f32.xlu0 %v53
  %v55 = vpop.xlane.xlu0 %54
  %v56 = vsel %vm52, %v29, 0.0
  %57 = vadd.xlane.f32.xlu0 %v56
  %v58 = vpop.xlane.xlu0 %57
  %v59 = vrcp.pop 32.0
  %v60 = vmul.f32 %v55, %v59
  %v61 = vmul.f32 %v58, %v59
  %v62 = vsub.f32 %v28, %v60
  %v63 = vsub.f32 %v29, %v61
  %v64 = vmul.f32 %v62, %v62
  %v65 = vmul.f32 %v63, %v63
  %v66 = vsel %vm52, %v64, 0.0
  %67 = vadd.xlane.f32.xlu0 %v66
  %v68 = vpop.xlane.xlu0 %67
  %v69 = vsel %vm52, %v65, 0.0
  %70 = vadd.xlane.f32.xlu0 %v69
  %v71 = vpop.xlane.xlu0 %70
  %v72 = vmul.f32 %v68, %v59
  %v73 = vmul.f32 %v71, %v59
  %v74 = vadd.f32 %v72, 1e-05
  %v75 = vadd.f32 %v73, 1e-05
  %v76 = vrsqrt.pop %v74
  %v77 = vrsqrt.pop %v75
  %v78 = vmul.f32 %v62, %v76
  %v79 = vmul.f32 %v63, %v77
  %v80 = vsel %vm52, %v78, 0.0
  %81 = vadd.xlane.f32.xlu0 %v80
  %v82 = vpop.xlane.xlu0 %81
  %v83 = vsel %vm52, %v79, 0.0
  %84 = vadd.xlane.f32.xlu0 %v83
  %v85 = vpop.xlane.xlu0 %84
  %v86 = vmul.f32 %v82, %v59
  %v87 = vmul.f32 %v85, %v59
  %v88 = vsub.f32 %v78, %v86
  %v89 = vsub.f32 %v79, %v87
  %v90 = vmul.f32 %v88, %v88
  %v91 = vmul.f32 %v89, %v89
  %v92 = vsel %vm52, %v90, 0.0
  %93 = vadd.xlane.f32.xlu0 %v92
  %v94 = vpop.xlane.xlu0 %93
  %v95 = vsel %vm52, %v91, 0.0
  %96 = vadd.xlane.f32.xlu0 %v95
  %v97 = vpop.xlane.xlu0 %96
  %v98 = vmul.f32 %v94, %v59
  %v99 = vmul.f32 %v97, %v59
  %v100 = vadd.f32 %v98, 1e-05
  %v101 = vadd.f32 %v99, 1e-05
  %v102 = vrsqrt.pop %v100
  %v103 = vrsqrt.pop %v101
  %v104 = vmul.f32 %v88, %v102
  %v105 = vmul.f32 %v89, %v103
  %v107 = vlaneseq
  %v108 = vshrl.u32 %v107, 7
  %v109 = vsub.s32 0, %v108
  %v110 = vrot.slane %v30, %v109
  %v112 = vmul.f32 %v104, %v110
  %v113 = vmul.f32 %v105, %v110
  %v115 = vlaneseq
  %v116 = vshrl.u32 %v115, 7
  %v117 = vsub.s32 0, %v116
  %v118 = vrot.slane %v31, %v117
  %v120 = vadd.f32 %v112, %v118
  %v121 = vadd.f32 %v113, %v118
  %v122 = vpack.c.bf16 %v121, %v120
  %v123 = vpack.c.bf16 %v33, %v32
  %v124 = vpack.c.bf16 %v35, %v34
  %v126 = vsel %vm52, %v122, 0
  %128 = vmatprep.subr.bf16.mxu0 0
  %129 = vmatpush1.bf16.msra.mxu0 %v123
  %130 = vmatprep.subr.bf16.mxu0 0
  %131 = vmatpush1.bf16.msra.mxu0 %v124
  %132 = vmatprep.subr.bf16.mxu0 0
  %133 = vmatpush1.bf16.msra.mxu0 0
  %134 = vmatprep.subr.bf16.mxu0 0
  %135 = vmatpush1.bf16.msra.mxu0 0
  %136 = vmatprep.subr.bf16.mxu0 0
  %137 = vmatpush1.bf16.msra.mxu0 0
  %138 = vmatprep.subr.bf16.mxu0 0
  %139 = vmatpush1.bf16.msra.mxu0 0
  %140 = vmatprep.subr.bf16.mxu0 0
  %141 = vmatpush1.bf16.msra.mxu0 0
  %142 = vmatprep.subr.bf16.mxu0 0
  %143 = vmatpush1.bf16.msra.mxu0 0
  %144 = vmatprep.subr.bf16.mxu0 0
  %145 = vmatpush1.bf16.msra.mxu0 0
  %146 = vmatprep.subr.bf16.mxu0 0
  %147 = vmatpush1.bf16.msra.mxu0 0
  %148 = vmatprep.subr.bf16.mxu0 0
  %149 = vmatpush1.bf16.msra.mxu0 0
  %150 = vmatprep.subr.bf16.mxu0 0
  %151 = vmatpush1.bf16.msra.mxu0 0
  %152 = vmatprep.subr.bf16.mxu0 0
  %153 = vmatpush1.bf16.msra.mxu0 0
  %154 = vmatprep.subr.bf16.mxu0 0
  %155 = vmatpush1.bf16.msra.mxu0 0
  %156 = vmatprep.subr.bf16.mxu0 0
  %157 = vmatpush1.bf16.msra.mxu0 0
  %158 = vmatprep.subr.bf16.mxu0 0
  %159 = vmatpush1.bf16.msra.mxu0 0
  %160 = vmatprep.mubr.bf16.mxu0 0
  %161 = vmatmul.mubr.bf16.gmra.mrb[0].mxu0 %v126
  %v162 = vpop.f32.mrb[0].mxu0
  %v163 = vadd.f32 0.0, %v162
  %v164 = vpop.f32.mrb[0].mxu0
  %v165 = vpop.f32.mrb[0].mxu0
  %v166 = vadd.f32 0.0, %v165
  %v167 = vpop.f32.mrb[0].mxu0
  %168 = vdwg.mxu0
  %v169 = vmul.f32 %v163, 0.5
  %v170 = vmul.f32 %v166, 0.5
  %v171 = vmul.f32 %v163, 0.044715
  %v172 = vmul.f32 %v166, 0.044715
  %v173 = vmul.f32 %v171, %v163
  %v174 = vmul.f32 %v172, %v166
  %v175 = vmul.f32 %v173, %v163
  %v176 = vmul.f32 %v174, %v166
  %v177 = vadd.f32 %v163, %v175
  %v178 = vadd.f32 %v166, %v176
  %v179 = vmul.f32 %v177, 0.7978846
  %v180 = vmul.f32 %v178, 0.7978846
  %v181 = vtanh.pop %v179
  %v182 = vtanh.pop %v180
  %v183 = vadd.f32 %v181, 1.0
  %v184 = vadd.f32 %v182, 1.0
  %v185 = vmul.f32 %v169, %v183
  %v186 = vmul.f32 %v170, %v184
  %v187 = vpack.c.bf16 %v186, %v185
  %v188 = vpack.c.bf16 %v37, %v36
  %v189 = vpack.c.bf16 %v39, %v38
  %v190 = vpack.c.bf16 %v41, %v40
  %v191 = vpack.c.bf16 %v43, %v42
  %v192 = vpack.c.bf16 %v45, %v44
  %v193 = vpack.c.bf16 %v47, %v46
  %v194 = vpack.c.bf16 %v49, %v48
  %v195 = vpack.c.bf16 %v51, %v50
  %196 = vmatprep.subr.bf16.mxu0 0
  %197 = vmatpush1.bf16.msra.mxu0 %v188
  %198 = vmatprep.subr.bf16.mxu0 0
  %199 = vmatpush1.bf16.msra.mxu0 %v189
  %200 = vmatprep.subr.bf16.mxu0 0
  %201 = vmatpush1.bf16.msra.mxu0 %v190
  %202 = vmatprep.subr.bf16.mxu0 0
  %203 = vmatpush1.bf16.msra.mxu0 %v191
  %204 = vmatprep.subr.bf16.mxu0 0
  %205 = vmatpush1.bf16.msra.mxu0 %v192
  %206 = vmatprep.subr.bf16.mxu0 0
  %207 = vmatpush1.bf16.msra.mxu0 %v193
  %208 = vmatprep.subr.bf16.mxu0 0
  %209 = vmatpush1.bf16.msra.mxu0 %v194
  %210 = vmatprep.subr.bf16.mxu0 0
  %211 = vmatpush1.bf16.msra.mxu0 %v195
  %212 = vmatprep.subr.bf16.mxu0 0
  %213 = vmatpush1.bf16.msra.mxu0 0
  %214 = vmatprep.subr.bf16.mxu0 0
  %215 = vmatpush1.bf16.msra.mxu0 0
  %216 = vmatprep.subr.bf16.mxu0 0
  %217 = vmatpush1.bf16.msra.mxu0 0
  %218 = vmatprep.subr.bf16.mxu0 0
  %219 = vmatpush1.bf16.msra.mxu0 0
  %220 = vmatprep.subr.bf16.mxu0 0
  %221 = vmatpush1.bf16.msra.mxu0 0
  %222 = vmatprep.subr.bf16.mxu0 0
  %223 = vmatpush1.bf16.msra.mxu0 0
  %224 = vmatprep.subr.bf16.mxu0 0
  %225 = vmatpush1.bf16.msra.mxu0 0
  %226 = vmatprep.subr.bf16.mxu0 0
  %227 = vmatpush1.bf16.msra.mxu0 0
  %228 = vmatprep.mubr.bf16.mxu0 0
  %229 = vmatmul.mubr.bf16.gmra.mrb[0].mxu0 %v187
  %v230 = vpop.f32.mrb[0].mxu0
  %v231 = vadd.f32 0.0, %v230
  %v232 = vpop.f32.mrb[0].mxu0
  %v233 = vpop.f32.mrb[0].mxu0
  %v234 = vadd.f32 0.0, %v233
  %v235 = vpop.f32.mrb[0].mxu0
  %236 = vdwg.mxu0
  %v237 = vadd.f32 %v28, %v231
  %v238 = vadd.f32 %v29, %v234
  %239 = vst.msk [vmem:[%s6] sm:$0xff] %vm52, %v237
  %240 = vst.msk [vmem:[%s6 + $0x8] sm:$0xff] %vm52, %v238
  // Predicated region
  $region26: #{legislative_graph_encoder.23} parent=0 // pred_check
    _
  $region27: #{legislative_graph_encoder.23} parent=0 // pred_check_branch
    %242 = sbr.rel (0) target = $region29
  $region28: #{legislative_graph_encoder.23} parent=0 // pred_region
    _
  $region29: #{legislative_graph_encoder.23} parent=0 // pred_fallthru
    _
  // Predicated region
  $region30: #{legislative_graph_encoder.23} parent=0 // pred_check
    _
  $region31: #{legislative_graph_encoder.23} parent=0 // pred_check_branch
    %244 = sbr.rel (0) target = $region33
  $region32: #{legislative_graph_encoder.23} parent=0 // pred_region
    _
  $region33: #{legislative_graph_encoder.23} parent=0 // pred_fallthru
    _

// kernel: legislative_graph_encoder.33
$region0: #{legislative_graph_encoder.33}
  #allocation0 [shape = 'u32[]', space=smem, size = 0x4, offset = 0x4, fixed_abs, tag = 'smem constant byte address 0x4 - core index']
  #allocation1 [shape = 'u32[144,128]{1,0:T(1,128)}', space=vmem, size = 0x12000, scoped, tag = 'internal scratch']
  %s0 = inlined_call_operand.vmem [shape: f32[16,32], index: 0, kind: input, shape index: {}]
  %s1 = inlined_call_operand.vmem [shape: f32[1,32], index: 1, kind: input, shape index: {}]
  %s2 = inlined_call_operand.vmem [shape: f32[1,32], index: 2, kind: input, shape index: {}]
  %s3 = inlined_call_operand.hbm [shape: f32[16,32], index: 3, kind: output, shape index: {}]
  %s4 = sld [smem:[#allocation0]]
  $region22: #{legislative_graph_encoder.33} parent=0
    _
  %s6 = ssub.s32 1, %s4
  %s7 = scalar_select 0, %s6, %s4
  $region1: #{legislative_graph_encoder.33} parent=0
    #allocation2 [shape = 'u8[8192]{0}', space=vmem, size = 0x2000, scoped, tag = 'output window, operand 0, single buffered']
    #allocation3 [shape = 's32[1]{0}', space=sflag, size = 0x4, scoped, tag = 'scoped memory for legislative_graph_encoder.33']
    %8 = vsyncpa [#allocation3], 0
    // Predicated region
    $region2: #{legislative_graph_encoder.33} parent=1 // pred_check
      _
    $region3: #{legislative_graph_encoder.33} parent=1 // pred_check_branch
      %10 = sbr.rel (0) target = $region5
    $region4: #{legislative_graph_encoder.33} parent=1 // pred_region
      _
    $region5: #{legislative_graph_encoder.33} parent=1 // pred_fallthru
      _
    // Predicated region
    $region6: #{legislative_graph_encoder.33} parent=1 // pred_check
      _
    $region7: #{legislative_graph_encoder.33} parent=1 // pred_check_branch
      %12 = sbr.rel (0) target = $region9
    $region8: #{legislative_graph_encoder.33} parent=1 // pred_region
      _
    $region9: #{legislative_graph_encoder.33} parent=1 // pred_fallthru
      _
    // Predicated region
    $region10: #{legislative_graph_encoder.33} parent=1 // pred_check
      _
    $region11: #{legislative_graph_encoder.33} parent=1 // pred_check_branch
      %14 = sbr.rel (0) target = $region13
    $region12: #{legislative_graph_encoder.33} parent=1 // pred_region
      _
    $region13: #{legislative_graph_encoder.33} parent=1 // pred_fallthru
      _
    %v15 = vld [vmem:[%s0] sm:$0xff]
    %v16 = vld [vmem:[%s0 + $0x8] sm:$0xff]
    %vm17 = vcmask 261120
    %v18 = vsel %vm17, %v15, 0.0
    %19 = vadd.xlane.f32.xlu0 %v18
    %v20 = vpop.xlane.xlu0 %19
    %v21 = vsel %vm17, %v16, 0.0
    %22 = vadd.xlane.f32.xlu0 %v21
    %v23 = vpop.xlane.xlu0 %22
    %v24 = vrcp.pop 32.0
    %v25 = vmul.f32 %v20, %v24
    %v26 = vmul.f32 %v23, %v24
    %v27 = vsub.f32 %v15, %v25
    %v28 = vsub.f32 %v16, %v26
    %v29 = vmul.f32 %v27, %v27
    %v30 = vmul.f32 %v28, %v28
    %v31 = vsel %vm17, %v29, 0.0
    %32 = vadd.xlane.f32.xlu0 %v31
    %v33 = vpop.xlane.xlu0 %32
    %v34 = vsel %vm17, %v30, 0.0
    %35 = vadd.xlane.f32.xlu0 %v34
    %v36 = vpop.xlane.xlu0 %35
    %v37 = vmul.f32 %v33, %v24
    %v38 = vmul.f32 %v36, %v24
    %v39 = vadd.f32 %v37, 1e-05
    %v40 = vadd.f32 %v38, 1e-05
    %v41 = vrsqrt.pop %v39
    %v42 = vrsqrt.pop %v40
    %v43 = vmul.f32 %v27, %v41
    %v44 = vmul.f32 %v28, %v42
    %v45 = vld [vmem:[%s1] sm:$0x1]
    %v47 = vlaneseq
    %v48 = vshrl.u32 %v47, 7
    %v49 = vsub.s32 0, %v48
    %v50 = vrot.slane %v45, %v49
    %v52 = vmul.f32 %v43, %v50
    %v53 = vmul.f32 %v44, %v50
    %v54 = vld [vmem:[%s2] sm:$0x1]
    %v56 = vlaneseq
    %v57 = vshrl.u32 %v56, 7
    %v58 = vsub.s32 0, %v57
    %v59 = vrot.slane %v54, %v58
    %v61 = vadd.f32 %v52, %v59
    %v62 = vadd.f32 %v53, %v59
    %v63 = vmax.f32 %v61, 0.0
    %v64 = vmax.f32 %v62, 0.0
    %65 = vst.msk [vmem:[#allocation2] sm:$0xff] %vm17, %v63
    %66 = vst.msk [vmem:[#allocation2 + $0x8] sm:$0xff] %vm17, %v64
    // Predicated region
    $region14: #{legislative_graph_encoder.33} parent=1 // pred_check
      _
    $region15: #{legislative_graph_encoder.33} parent=1 // pred_check_branch
      %68 = sbr.rel (0) target = $region17
    $region16: #{legislative_graph_encoder.33} parent=1 // pred_region
      %s70 = ssub.s32 256, 256
      %71 = vsyncadd [#allocation3], %s70
      %s72 = sshll.u32 [#allocation2], 4
      %s73 = int_to_ptr.vmem [resolvable:$true] %s72
      %78 = dma.vmem_to_hbm [thread:$0]  %s73, 256, %s3, [#allocation3], 128, 128, 8
    $region17: #{legislative_graph_encoder.33} parent=1 // pred_fallthru
      _
    // Predicated region
    $region18: #{legislative_graph_encoder.33} parent=1 // pred_check
      _
    $region19: #{legislative_graph_encoder.33} parent=1 // pred_check_branch
      %80 = sbr.rel (0) target = $region21
    $region20: #{legislative_graph_encoder.33} parent=1 // pred_region
      %81 = dma.done [#allocation3], 256
    $region21: #{legislative_graph_encoder.33} parent=1 // pred_fallthru
      _
    %82 = vsyncpa [#allocation3], 1

// kernel: legislative_graph_encoder.31
$region0: #{legislative_graph_encoder.31}
  #allocation0 [shape = 'u32[]', space=smem, size = 0x4, offset = 0x4, fixed_abs, tag = 'smem constant byte address 0x4 - core index']
  #allocation1 [shape = 'u32[144,128]{1,0:T(1,128)}', space=vmem, size = 0x12000, scoped, tag = 'internal scratch']
  %s0 = inlined_call_operand.vmem [shape: f32[8,32], index: 0, kind: input, shape index: {}]
  %s1 = inlined_call_operand.vmem [shape: f32[8,32], index: 1, kind: input, shape index: {}]
  %s2 = inlined_call_operand.vmem [shape: f32[1,32], index: 2, kind: input, shape index: {}]
  %s3 = inlined_call_operand.vmem [shape: f32[1,32], index: 3, kind: input, shape index: {}]
  %s4 = inlined_call_operand.vmem [shape: f32[32,128], index: 4, kind: input, shape index: {}]
  %s5 = inlined_call_operand.vmem [shape: f32[128,32], index: 5, kind: input, shape index: {}]
  %s6 = inlined_call_operand.vmem [shape: f32[1,32], index: 6, kind: input, shape index: {}]
  %s7 = inlined_call_operand.vmem [shape: f32[1,32], index: 7, kind: input, shape index: {}]
  %s8 = inlined_call_operand.hbm [shape: f32[8,32], index: 8, kind: output, shape index: {}]
  %s9 = sld [smem:[#allocation0]]
  $region42: #{legislative_graph_encoder.31} parent=0
    _
  %s11 = ssub.s32 1, %s9
  %s12 = scalar_select 0, %s11, %s9
  $region1: #{legislative_graph_encoder.31} parent=0
    #allocation2 [shape = 'u8[4096]{0}', space=vmem, size = 0x1000, scoped, tag = 'output window, operand 0, single buffered']
    #allocation3 [shape = 's32[1]{0}', space=sflag, size = 0x4, scoped, tag = 'scoped memory for legislative_graph_encoder.31']
    %13 = vsyncpa [#allocation3], 0
    // Predicated region
    $region2: #{legislative_graph_encoder.31} parent=1 // pred_check
      _
    $region3: #{legislative_graph_encoder.31} parent=1 // pred_check_branch
      %15 = sbr.rel (0) target = $region5
    $region4: #{legislative_graph_encoder.31} parent=1 // pred_region
      _
    $region5: #{legislative_graph_encoder.31} parent=1 // pred_fallthru
      _
    // Predicated region
    $region6: #{legislative_graph_encoder.31} parent=1 // pred_check
      _
    $region7: #{legislative_graph_encoder.31} parent=1 // pred_check_branch
      %17 = sbr.rel (0) target = $region9
    $region8: #{legislative_graph_encoder.31} parent=1 // pred_region
      _
    $region9: #{legislative_graph_encoder.31} parent=1 // pred_fallthru
      _
    // Predicated region
    $region10: #{legislative_graph_encoder.31} parent=1 // pred_check
      _
    $region11: #{legislative_graph_encoder.31} parent=1 // pred_check_branch
      %19 = sbr.rel (0) target = $region13
    $region12: #{legislative_graph_encoder.31} parent=1 // pred_region
      _
    $region13: #{legislative_graph_encoder.31} parent=1 // pred_fallthru
      _
    // Predicated region
    $region14: #{legislative_graph_encoder.31} parent=1 // pred_check
      _
    $region15: #{legislative_graph_encoder.31} parent=1 // pred_check_branch
      %21 = sbr.rel (0) target = $region17
    $region16: #{legislative_graph_encoder.31} parent=1 // pred_region
      _
    $region17: #{legislative_graph_encoder.31} parent=1 // pred_fallthru
      _
    // Predicated region
    $region18: #{legislative_graph_encoder.31} parent=1 // pred_check
      _
    $region19: #{legislative_graph_encoder.31} parent=1 // pred_check_branch
      %23 = sbr.rel (0) target = $region21
    $region20: #{legislative_graph_encoder.31} parent=1 // pred_region
      _
    $region21: #{legislative_graph_encoder.31} parent=1 // pred_fallthru
      _
    // Predicated region
    $region22: #{legislative_graph_encoder.31} parent=1 // pred_check
      _
    $region23: #{legislative_graph_encoder.31} parent=1 // pred_check_branch
      %25 = sbr.rel (0) target = $region25
    $region24: #{legislative_graph_encoder.31} parent=1 // pred_region
      _
    $region25: #{legislative_graph_encoder.31} parent=1 // pred_fallthru
      _
    // Predicated region
    $region26: #{legislative_graph_encoder.31} parent=1 // pred_check
      _
    $region27: #{legislative_graph_encoder.31} parent=1 // pred_check_branch
      %27 = sbr.rel (0) target = $region29
    $region28: #{legislative_graph_encoder.31} parent=1 // pred_region
      _
    $region29: #{legislative_graph_encoder.31} parent=1 // pred_fallthru
      _
    // Predicated region
    $region30: #{legislative_graph_encoder.31} parent=1 // pred_check
      _
    $region31: #{legislative_graph_encoder.31} parent=1 // pred_check_branch
      %29 = sbr.rel (0) target = $region33
    $region32: #{legislative_graph_encoder.31} parent=1 // pred_region
      _
    $region33: #{legislative_graph_encoder.31} parent=1 // pred_fallthru
      _
    %v31 = vld [vmem:[%s0] sm:$0xff]
    %v32 = vld [vmem:[%s1] sm:$0xff]
    %v33 = vadd.f32 %v31, %v32
    %v34 = vld [vmem:[%s2] sm:$0x1]
    %v35 = vld [vmem:[%s3] sm:$0x1]
    %v36 = vld [vmem:[%s4] sm:$0xff]
    %v37 = vld [vmem:[%s4 + $0x8] sm:$0xff]
    %v38 = vld [vmem:[%s4 + $0x10] sm:$0xff]
    %v39 = vld [vmem:[%s4 + $0x18] sm:$0xff]
    %v40 = vld [vmem:[%s5] sm:$0xff]
    %v41 = vld [vmem:[%s5 + $0x8] sm:$0xff]
    %v42 = vld [vmem:[%s5 + $0x10] sm:$0xff]
    %v43 = vld [vmem:[%s5 + $0x18] sm:$0xff]
    %v44 = vld [vmem:[%s5 + $0x20] sm:$0xff]
    %v45 = vld [vmem:[%s5 + $0x28] sm:$0xff]
    %v46 = vld [vmem:[%s5 + $0x30] sm:$0xff]
    %v47 = vld [vmem:[%s5 + $0x38] sm:$0xff]
    %v48 = vld [vmem:[%s5 + $0x40] sm:$0xff]
    %v49 = vld [vmem:[%s5 + $0x48] sm:$0xff]
    %v50 = vld [vmem:[%s5 + $0x50] sm:$0xff]
    %v51 = vld [vmem:[%s5 + $0x58] sm:$0xff]
    %v52 = vld [vmem:[%s5 + $0x60] sm:$0xff]
    %v53 = vld [vmem:[%s5 + $0x68] sm:$0xff]
    %v54 = vld [vmem:[%s5 + $0x70] sm:$0xff]
    %v55 = vld [vmem:[%s5 + $0x78] sm:$0xff]
    %vm56 = vcmask 261120
    %v57 = vsel %vm56, %v33, 0.0
    %58 = vadd.xlane.f32.xlu0 %v57
    %v59 = vpop.xlane.xlu0 %58
    %v60 = vrcp.pop 32.0
    %v61 = vmul.f32 %v59, %v60
    %v62 = vsub.f32 %v33, %v61
    %v63 = vmul.f32 %v62, %v62
    %v64 = vsel %vm56, %v63, 0.0
    %65 = vadd.xlane.f32.xlu0 %v64
    %v66 = vpop.xlane.xlu0 %65
    %v67 = vmul.f32 %v66, %v60
    %v68 = vadd.f32 %v67, 1e-05
    %v69 = vrsqrt.pop %v68
    %v70 = vmul.f32 %v62, %v69
    %v71 = vsel %vm56, %v70, 0.0
    %72 = vadd.xlane.f32.xlu0 %v71
    %v73 = vpop.xlane.xlu0 %72
    %v74 = vmul.f32 %v73, %v60
    %v75 = vsub.f32 %v70, %v74
    %v76 = vmul.f32 %v75, %v75
    %v77 = vsel %vm56, %v76, 0.0
    %78 = vadd.xlane.f32.xlu0 %v77
    %v79 = vpop.xlane.xlu0 %78
    %v80 = vmul.f32 %v79, %v60
    %v81 = vadd.f32 %v80, 1e-05
    %v82 = vrsqrt.pop %v81
    %v83 = vmul.f32 %v75, %v82
    %v85 = vlaneseq
    %v86 = vshrl.u32 %v85, 7
    %v87 = vsub.s32 0, %v86
    %v88 = vrot.slane %v34, %v87
    %v90 = vmul.f32 %v83, %v88
    %v92 = vlaneseq
    %v93 = vshrl.u32 %v92, 7
    %v94 = vsub.s32 0, %v93
    %v95 = vrot.slane %v35, %v94
    %v97 = vadd.f32 %v90, %v95
    %v98 = vpack.c.bf16 %v97, %v97
    %v99 = vpack.c.bf16 %v37, %v36
    %v100 = vpack.c.bf16 %v39, %v38
    %v102 = vsel %vm56, %v98, 0
    %104 = vmatprep.subr.bf16.mxu0 0
    %105 = vmatpush1.bf16.msra.mxu0 %v99
    %106 = vmatprep.subr.bf16.mxu0 0
    %107 = vmatpush1.bf16.msra.mxu0 %v100
    %108 = vmatprep.subr.bf16.mxu0 0
    %109 = vmatpush1.bf16.msra.mxu0 0
    %110 = vmatprep.subr.bf16.mxu0 0
    %111 = vmatpush1.bf16.msra.mxu0 0
    %112 = vmatprep.subr.bf16.mxu0 0
    %113 = vmatpush1.bf16.msra.mxu0 0
    %114 = vmatprep.subr.bf16.mxu0 0
    %115 = vmatpush1.bf16.msra.mxu0 0
    %116 = vmatprep.subr.bf16.mxu0 0
    %117 = vmatpush1.bf16.msra.mxu0 0
    %118 = vmatprep.subr.bf16.mxu0 0
    %119 = vmatpush1.bf16.msra.mxu0 0
    %120 = vmatprep.subr.bf16.mxu0 0
    %121 = vmatpush1.bf16.msra.mxu0 0
    %122 = vmatprep.subr.bf16.mxu0 0
    %123 = vmatpush1.bf16.msra.mxu0 0
    %124 = vmatprep.subr.bf16.mxu0 0
    %125 = vmatpush1.bf16.msra.mxu0 0
    %126 = vmatprep.subr.bf16.mxu0 0
    %127 = vmatpush1.bf16.msra.mxu0 0
    %128 = vmatprep.subr.bf16.mxu0 0
    %129 = vmatpush1.bf16.msra.mxu0 0
    %130 = vmatprep.subr.bf16.mxu0 0
    %131 = vmatpush1.bf16.msra.mxu0 0
    %132 = vmatprep.subr.bf16.mxu0 0
    %133 = vmatpush1.bf16.msra.mxu0 0
    %134 = vmatprep.subr.bf16.mxu0 0
    %135 = vmatpush1.bf16.msra.mxu0 0
    %136 = vmatprep.mubr.bf16.mxu0 0
    %137 = vmatmul.mubr.bf16.gmra.mrb[0].mxu0 %v102
    %v138 = vpop.f32.mrb[0].mxu0
    %v139 = vadd.f32 0.0, %v138
    %v140 = vpop.f32.mrb[0].mxu0
    %v141 = vpop.f32.mrb[0].mxu0
    %v142 = vpop.f32.mrb[0].mxu0
    %143 = vdwg.mxu0
    %v144 = vmul.f32 %v139, 0.5
    %v145 = vmul.f32 %v139, 0.044715
    %v146 = vmul.f32 %v145, %v139
    %v147 = vmul.f32 %v146, %v139
    %v148 = vadd.f32 %v139, %v147
    %v149 = vmul.f32 %v148, 0.7978846
    %v150 = vtanh.pop %v149
    %v151 = vadd.f32 %v150, 1.0
    %v152 = vmul.f32 %v144, %v151
    %v153 = vpack.c.bf16 %v152, %v152
    %v154 = vpack.c.bf16 %v41, %v40
    %v155 = vpack.c.bf16 %v43, %v42
    %v156 = vpack.c.bf16 %v45, %v44
    %v157 = vpack.c.bf16 %v47, %v46
    %v158 = vpack.c.bf16 %v49, %v48
    %v159 = vpack.c.bf16 %v51, %v50
    %v160 = vpack.c.bf16 %v53, %v52
    %v161 = vpack.c.bf16 %v55, %v54
    %162 = vmatprep.subr.bf16.mxu0 0
    %163 = vmatpush1.bf16.msra.mxu0 %v154
    %164 = vmatprep.subr.bf16.mxu0 0
    %165 = vmatpush1.bf16.msra.mxu0 %v155
    %166 = vmatprep.subr.bf16.mxu0 0
    %167 = vmatpush1.bf16.msra.mxu0 %v156
    %168 = vmatprep.subr.bf16.mxu0 0
    %169 = vmatpush1.bf16.msra.mxu0 %v157
    %170 = vmatprep.subr.bf16.mxu0 0
    %171 = vmatpush1.bf16.msra.mxu0 %v158
    %172 = vmatprep.subr.bf16.mxu0 0
    %173 = vmatpush1.bf16.msra.mxu0 %v159
    %174 = vmatprep.subr.bf16.mxu0 0
    %175 = vmatpush1.bf16.msra.mxu0 %v160
    %176 = vmatprep.subr.bf16.mxu0 0
    %177 = vmatpush1.bf16.msra.mxu0 %v161
    %178 = vmatprep.subr.bf16.mxu0 0
    %179 = vmatpush1.bf16.msra.mxu0 0
    %180 = vmatprep.subr.bf16.mxu0 0
    %181 = vmatpush1.bf16.msra.mxu0 0
    %182 = vmatprep.subr.bf16.mxu0 0
    %183 = vmatpush1.bf16.msra.mxu0 0
    %184 = vmatprep.subr.bf16.mxu0 0
    %185 = vmatpush1.bf16.msra.mxu0 0
    %186 = vmatprep.subr.bf16.mxu0 0
    %187 = vmatpush1.bf16.msra.mxu0 0
    %188 = vmatprep.subr.bf16.mxu0 0
    %189 = vmatpush1.bf16.msra.mxu0 0
    %190 = vmatprep.subr.bf16.mxu0 0
    %191 = vmatpush1.bf16.msra.mxu0 0
    %192 = vmatprep.subr.bf16.mxu0 0
    %193 = vmatpush1.bf16.msra.mxu0 0
    %194 = vmatprep.mubr.bf16.mxu0 0
    %195 = vmatmul.mubr.bf16.gmra.mrb[0].mxu0 %v153
    %v196 = vpop.f32.mrb[0].mxu0
    %v197 = vadd.f32 0.0, %v196
    %v198 = vpop.f32.mrb[0].mxu0
    %v199 = vpop.f32.mrb[0].mxu0
    %v200 = vpop.f32.mrb[0].mxu0
    %201 = vdwg.mxu0
    %v202 = vadd.f32 %v33, %v197
    %v203 = vsel %vm56, %v202, 0.0
    %204 = vadd.xlane.f32.xlu0 %v203
    %v205 = vpop.xlane.xlu0 %204
    %v206 = vmul.f32 %v205, %v60
    %v207 = vsub.f32 %v202, %v206
    %v208 = vmul.f32 %v207, %v207
    %v209 = vsel %vm56, %v208, 0.0
    %210 = vadd.xlane.f32.xlu0 %v209
    %v211 = vpop.xlane.xlu0 %210
    %v212 = vmul.f32 %v211, %v60
    %v213 = vadd.f32 %v212, 1e-05
    %v214 = vrsqrt.pop %v213
    %v215 = vmul.f32 %v207, %v214
    %v216 = vld [vmem:[%s6] sm:$0x1]
    %v218 = vlaneseq
    %v219 = vshrl.u32 %v218, 7
    %v220 = vsub.s32 0, %v219
    %v221 = vrot.slane %v216, %v220
    %v223 = vmul.f32 %v215, %v221
    %v224 = vld [vmem:[%s7] sm:$0x1]
    %v226 = vlaneseq
    %v227 = vshrl.u32 %v226, 7
    %v228 = vsub.s32 0, %v227
    %v229 = vrot.slane %v224, %v228
    %v231 = vadd.f32 %v223, %v229
    %v232 = vmax.f32 %v231, 0.0
    %233 = vst.msk [vmem:[#allocation2] sm:$0xff] %vm56, %v232
    // Predicated region
    $region34: #{legislative_graph_encoder.31} parent=1 // pred_check
      _
    $region35: #{legislative_graph_encoder.31} parent=1 // pred_check_branch
      %235 = sbr.rel (0) target = $region37
    $region36: #{legislative_graph_encoder.31} parent=1 // pred_region
      %s237 = ssub.s32 128, 128
      %238 = vsyncadd [#allocation3], %s237
      %s240 = sshll.u32 [#allocation2], 4
      %s241 = int_to_ptr.vmem [resolvable:$true] %s240
      %243 = dma.vmem_to_hbm [thread:$0]  %s241, 128, %s8, [#allocation3]
    $region37: #{legislative_graph_encoder.31} parent=1 // pred_fallthru
      _
    // Predicated region
    $region38: #{legislative_graph_encoder.31} parent=1 // pred_check
      _
    $region39: #{legislative_graph_encoder.31} parent=1 // pred_check_branch
      %245 = sbr.rel (0) target = $region41
    $region40: #{legislative_graph_encoder.31} parent=1 // pred_region
      %246 = dma.done [#allocation3], 128
    $region41: #{legislative_graph_encoder.31} parent=1 // pred_fallthru
      _
    %247 = vsyncpa [#allocation3], 1

// kernel: legislative_graph_encoder.32
$region0: #{legislative_graph_encoder.32}
  #allocation0 [shape = 'u32[]', space=smem, size = 0x4, offset = 0x4, fixed_abs, tag = 'smem constant byte address 0x4 - core index']
  #allocation1 [shape = 'u32[144,128]{1,0:T(1,128)}', space=vmem, size = 0x12000, scoped, tag = 'internal scratch']
  %s0 = inlined_call_operand.vmem [shape: f32[48,384], index: 0, kind: input, shape index: {}]
  %s1 = inlined_call_operand.vmem [shape: f32[48,1], index: 1, kind: input, shape index: {}]
  %s2 = inlined_call_operand.vmem [shape: f32[16,32], index: 2, kind: input, shape index: {}]
  %s3 = inlined_call_operand.vmem [shape: f32[24,32], index: 3, kind: input, shape index: {}]
  %s4 = inlined_call_operand.vmem [shape: s32[48,1], index: 4, kind: input, shape index: {}]
  %s5 = inlined_call_operand.vmem [shape: s32[1,48], index: 5, kind: input, shape index: {}]
  %s6 = inlined_call_operand.vmem [shape: f32[384,32], index: 6, kind: input, shape index: {}]
  %s7 = inlined_call_operand.vmem [shape: f32[1,32], index: 7, kind: input, shape index: {}]
  %s8 = inlined_call_operand.vmem [shape: f32[32,32], index: 8, kind: input, shape index: {}]
  %s9 = inlined_call_operand.vmem [shape: f32[1,32], index: 9, kind: input, shape index: {}]
  %s10 = inlined_call_operand.vmem [shape: f32[1,32], index: 10, kind: input, shape index: {}]
  %s11 = inlined_call_operand.vmem [shape: f32[1,32], index: 11, kind: input, shape index: {}]
  %s12 = inlined_call_operand.hbm [shape: f32[24,32], index: 12, kind: output, shape index: {}]
  %s13 = sld [smem:[#allocation0]]
  $region58: #{legislative_graph_encoder.32} parent=0
    _
  %s15 = ssub.s32 1, %s13
  %s16 = scalar_select 0, %s15, %s13
  $region1: #{legislative_graph_encoder.32} parent=0
    #allocation2 [shape = 'u8[12288]{0}', space=vmem, size = 0x3000, scoped, tag = 'output window, operand 0, single buffered']
    #allocation3 [shape = 's32[1]{0}', space=sflag, size = 0x4, scoped, tag = 'scoped memory for legislative_graph_encoder.32']
    %17 = vsyncpa [#allocation3], 0
    // Predicated region
    $region2: #{legislative_graph_encoder.32} parent=1 // pred_check
      _
    $region3: #{legislative_graph_encoder.32} parent=1 // pred_check_branch
      %19 = sbr.rel (0) target = $region5
    $region4: #{legislative_graph_encoder.32} parent=1 // pred_region
      _
    $region5: #{legislative_graph_encoder.32} parent=1 // pred_fallthru
      _
    // Predicated region
    $region6: #{legislative_graph_encoder.32} parent=1 // pred_check
      _
    $region7: #{legislative_graph_encoder.32} parent=1 // pred_check_branch
      %21 = sbr.rel (0) target = $region9
    $region8: #{legislative_graph_encoder.32} parent=1 // pred_region
      _
    $region9: #{legislative_graph_encoder.32} parent=1 // pred_fallthru
      _
    // Predicated region
    $region10: #{legislative_graph_encoder.32} parent=1 // pred_check
      _
    $region11: #{legislative_graph_encoder.32} parent=1 // pred_check_branch
      %23 = sbr.rel (0) target = $region13
    $region12: #{legislative_graph_encoder.32} parent=1 // pred_region
      _
    $region13: #{legislative_graph_encoder.32} parent=1 // pred_fallthru
      _
    // Predicated region
    $region14: #{legislative_graph_encoder.32} parent=1 // pred_check
      _
    $region15: #{legislative_graph_encoder.32} parent=1 // pred_check_branch
      %25 = sbr.rel (0) target = $region17
    $region16: #{legislative_graph_encoder.32} parent=1 // pred_region
      _
    $region17: #{legislative_graph_encoder.32} parent=1 // pred_fallthru
      _
    // Predicated region
    $region18: #{legislative_graph_encoder.32} parent=1 // pred_check
      _
    $region19: #{legislative_graph_encoder.32} parent=1 // pred_check_branch
      %27 = sbr.rel (0) target = $region21
    $region20: #{legislative_graph_encoder.32} parent=1 // pred_region
      _
    $region21: #{legislative_graph_encoder.32} parent=1 // pred_fallthru
      _
    // Predicated region
    $region22: #{legislative_graph_encoder.32} parent=1 // pred_check
      _
    $region23: #{legislative_graph_encoder.32} parent=1 // pred_check_branch
      %29 = sbr.rel (0) target = $region25
    $region24: #{legislative_graph_encoder.32} parent=1 // pred_region
      _
    $region25: #{legislative_graph_encoder.32} parent=1 // pred_fallthru
      _
    // Predicated region
    $region26: #{legislative_graph_encoder.32} parent=1 // pred_check
      _
    $region27: #{legislative_graph_encoder.32} parent=1 // pred_check_branch
      %31 = sbr.rel (0) target = $region29
    $region28: #{legislative_graph_encoder.32} parent=1 // pred_region
      _
    $region29: #{legislative_graph_encoder.32} parent=1 // pred_fallthru
      _
    // Predicated region
    $region30: #{legislative_graph_encoder.32} parent=1 // pred_check
      _
    $region31: #{legislative_graph_encoder.32} parent=1 // pred_check_branch
      %33 = sbr.rel (0) target = $region33
    $region32: #{legislative_graph_encoder.32} parent=1 // pred_region
      _
    $region33: #{legislative_graph_encoder.32} parent=1 // pred_fallthru
      _
    // Predicated region
    $region34: #{legislative_graph_encoder.32} parent=1 // pred_check
      _
    $region35: #{legislative_graph_encoder.32} parent=1 // pred_check_branch
      %35 = sbr.rel (0) target = $region37
    $region36: #{legislative_graph_encoder.32} parent=1 // pred_region
      _
    $region37: #{legislative_graph_encoder.32} parent=1 // pred_fallthru
      _
    // Predicated region
    $region38: #{legislative_graph_encoder.32} parent=1 // pred_check
      _
    $region39: #{legislative_graph_encoder.32} parent=1 // pred_check_branch
      %37 = sbr.rel (0) target = $region41
    $region40: #{legislative_graph_encoder.32} parent=1 // pred_region
      _
    $region41: #{legislative_graph_encoder.32} parent=1 // pred_fallthru
      _
    // Predicated region
    $region42: #{legislative_graph_encoder.32} parent=1 // pred_check
      _
    $region43: #{legislative_graph_encoder.32} parent=1 // pred_check_branch
      %39 = sbr.rel (0) target = $region45
    $region44: #{legislative_graph_encoder.32} parent=1 // pred_region
      _
    $region45: #{legislative_graph_encoder.32} parent=1 // pred_fallthru
      _
    // Predicated region
    $region46: #{legislative_graph_encoder.32} parent=1 // pred_check
      _
    $region47: #{legislative_graph_encoder.32} parent=1 // pred_check_branch
      %41 = sbr.rel (0) target = $region49
    $region48: #{legislative_graph_encoder.32} parent=1 // pred_region
      _
    $region49: #{legislative_graph_encoder.32} parent=1 // pred_fallthru
      _
    %v43 = vld [vmem:[%s0] sm:$0xff]
    %v44 = vld [vmem:[%s0 + $0x8] sm:$0xff]
    %v45 = vld [vmem:[%s0 + $0x10] sm:$0xff]
    %v46 = vld [vmem:[%s0 + $0x18] sm:$0xff]
    %v47 = vld [vmem:[%s0 + $0x20] sm:$0xff]
    %v48 = vld [vmem:[%s0 + $0x28] sm:$0xff]
    %v49 = vld [vmem:[%s0 + $0x30] sm:$0xff]
    %v50 = vld [vmem:[%s0 + $0x38] sm:$0xff]
    %v51 = vld [vmem:[%s0 + $0x40] sm:$0xff]
    %v52 = vld [vmem:[%s0 + $0x48] sm:$0xff]
    %v53 = vld [vmem:[%s0 + $0x50] sm:$0xff]
    %v54 = vld [vmem:[%s0 + $0x58] sm:$0xff]
    %v55 = vld [vmem:[%s0 + $0x60] sm:$0xff]
    %v56 = vld [vmem:[%s0 + $0x68] sm:$0xff]
    %v57 = vld [vmem:[%s0 + $0x70] sm:$0xff]
    %v58 = vld [vmem:[%s0 + $0x78] sm:$0xff]
    %v59 = vld [vmem:[%s0 + $0x80] sm:$0xff]
    %v60 = vld [vmem:[%s0 + $0x88] sm:$0xff]
    %v61 = vld [vmem:[%s6] sm:$0xff]
    %v62 = vld [vmem:[%s6 + $0x8] sm:$0xff]
    %v63 = vld [vmem:[%s6 + $0x10] sm:$0xff]
    %v64 = vld [vmem:[%s6 + $0x18] sm:$0xff]
    %v65 = vld [vmem:[%s6 + $0x20] sm:$0xff]
    %v66 = vld [vmem:[%s6 + $0x28] sm:$0xff]
    %v67 = vld [vmem:[%s6 + $0x30] sm:$0xff]
    %v68 = vld [vmem:[%s6 + $0x38] sm:$0xff]
    %v69 = vld [vmem:[%s6 + $0x40] sm:$0xff]
    %v70 = vld [vmem:[%s6 + $0x48] sm:$0xff]
    %v71 = vld [vmem:[%s6 + $0x50] sm:$0xff]
    %v72 = vld [vmem:[%s6 + $0x58] sm:$0xff]
    %v73 = vld [vmem:[%s6 + $0x60] sm:$0xff]
    %v74 = vld [vmem:[%s6 + $0x68] sm:$0xff]
    %v75 = vld [vmem:[%s6 + $0x70] sm:$0xff]
    %v76 = vld [vmem:[%s6 + $0x78] sm:$0xff]
    %v77 = vld [vmem:[%s6 + $0x80] sm:$0xff]
    %v78 = vld [vmem:[%s6 + $0x88] sm:$0xff]
    %v79 = vld [vmem:[%s6 + $0x90] sm:$0xff]
    %v80 = vld [vmem:[%s6 + $0x98] sm:$0xff]
    %v81 = vld [vmem:[%s6 + $0xa0] sm:$0xff]
    %v82 = vld [vmem:[%s6 + $0xa8] sm:$0xff]
    %v83 = vld [vmem:[%s6 + $0xb0] sm:$0xff]
    %v84 = vld [vmem:[%s6 + $0xb8] sm:$0xff]
    %v85 = vld [vmem:[%s6 + $0xc0] sm:$0xff]
    %v86 = vld [vmem:[%s6 + $0xc8] sm:$0xff]
    %v87 = vld [vmem:[%s6 + $0xd0] sm:$0xff]
    %v88 = vld [vmem:[%s6 + $0xd8] sm:$0xff]
    %v89 = vld [vmem:[%s6 + $0xe0] sm:$0xff]
    %v90 = vld [vmem:[%s6 + $0xe8] sm:$0xff]
    %v91 = vld [vmem:[%s6 + $0xf0] sm:$0xff]
    %v92 = vld [vmem:[%s6 + $0xf8] sm:$0xff]
    %v93 = vld [vmem:[%s6 + $0x100] sm:$0xff]
    %v94 = vld [vmem:[%s6 + $0x108] sm:$0xff]
    %v95 = vld [vmem:[%s6 + $0x110] sm:$0xff]
    %v96 = vld [vmem:[%s6 + $0x118] sm:$0xff]
    %v97 = vld [vmem:[%s6 + $0x120] sm:$0xff]
    %v98 = vld [vmem:[%s6 + $0x128] sm:$0xff]
    %v99 = vld [vmem:[%s6 + $0x130] sm:$0xff]
    %v100 = vld [vmem:[%s6 + $0x138] sm:$0xff]
    %v101 = vld [vmem:[%s6 + $0x140] sm:$0xff]
    %v102 = vld [vmem:[%s6 + $0x148] sm:$0xff]
    %v103 = vld [vmem:[%s6 + $0x150] sm:$0xff]
    %v104 = vld [vmem:[%s6 + $0x158] sm:$0xff]
    %v105 = vld [vmem:[%s6 + $0x160] sm:$0xff]
    %v106 = vld [vmem:[%s6 + $0x168] sm:$0xff]
    %v107 = vld [vmem:[%s6 + $0x170] sm:$0xff]
    %v108 = vld [vmem:[%s6 + $0x178] sm:$0xff]
    %v109 = vpack.c.bf16 %v46, %v43
    %v110 = vpack.c.bf16 %v47, %v44
    %v111 = vpack.c.bf16 %v48, %v45
    %v112 = vpack.c.bf16 %v52, %v49
    %v113 = vpack.c.bf16 %v53, %v50
    %v114 = vpack.c.bf16 %v54, %v51
    %v115 = vpack.c.bf16 %v58, %v55
    %v116 = vpack.c.bf16 %v59, %v56
    %v117 = vpack.c.bf16 %v60, %v57
    %v118 = vpack.c.bf16 %v62, %v61
    %v119 = vpack.c.bf16 %v64, %v63
    %v120 = vpack.c.bf16 %v66, %v65
    %v121 = vpack.c.bf16 %v68, %v67
    %v122 = vpack.c.bf16 %v70, %v69
    %v123 = vpack.c.bf16 %v72, %v71
    %v124 = vpack.c.bf16 %v74, %v73
    %v125 = vpack.c.bf16 %v76, %v75
    %v126 = vpack.c.bf16 %v78, %v77
    %v127 = vpack.c.bf16 %v80, %v79
    %v128 = vpack.c.bf16 %v82, %v81
    %v129 = vpack.c.bf16 %v84, %v83
    %v130 = vpack.c.bf16 %v86, %v85
    %v131 = vpack.c.bf16 %v88, %v87
    %v132 = vpack.c.bf16 %v90, %v89
    %v133 = vpack.c.bf16 %v92, %v91
    %v134 = vpack.c.bf16 %v94, %v93
    %v135 = vpack.c.bf16 %v96, %v95
    %v136 = vpack.c.bf16 %v98, %v97
    %v137 = vpack.c.bf16 %v100, %v99
    %v138 = vpack.c.bf16 %v102, %v101
    %v139 = vpack.c.bf16 %v104, %v103
    %v140 = vpack.c.bf16 %v106, %v105
    %v141 = vpack.c.bf16 %v108, %v107
    %v142 = vld [vmem:[%s7] sm:$0x1]
    %v144 = vlaneseq
    %v145 = vshrl.u32 %v144, 7
    %v146 = vsub.s32 0, %v145
    %v147 = vrot.slane %v142, %v146
    %149 = vmatprep.subr.bf16.mxu0 0
    %150 = vmatpush1.bf16.msra.mxu0 %v118
    %151 = vmatprep.subr.bf16.mxu0 0
    %152 = vmatpush1.bf16.msra.mxu0 %v119
    %153 = vmatprep.subr.bf16.mxu0 0
    %154 = vmatpush1.bf16.msra.mxu0 %v120
    %155 = vmatprep.subr.bf16.mxu0 0
    %156 = vmatpush1.bf16.msra.mxu0 %v121
    %157 = vmatprep.subr.bf16.mxu0 0
    %158 = vmatpush1.bf16.msra.mxu0 %v122
    %159 = vmatprep.subr.bf16.mxu0 0
    %160 = vmatpush1.bf16.msra.mxu0 %v123
    %161 = vmatprep.subr.bf16.mxu0 0
    %162 = vmatpush1.bf16.msra.mxu0 %v124
    %163 = vmatprep.subr.bf16.mxu0 0
    %164 = vmatpush1.bf16.msra.mxu0 %v125
    %165 = vmatprep.subr.bf16.mxu0 0
    %166 = vmatpush1.bf16.msra.mxu0 %v126
    %167 = vmatprep.subr.bf16.mxu0 0
    %168 = vmatpush1.bf16.msra.mxu0 %v127
    %169 = vmatprep.subr.bf16.mxu0 0
    %170 = vmatpush1.bf16.msra.mxu0 %v128
    %171 = vmatprep.subr.bf16.mxu0 0
    %172 = vmatpush1.bf16.msra.mxu0 %v129
    %173 = vmatprep.subr.bf16.mxu0 0
    %174 = vmatpush1.bf16.msra.mxu0 %v130
    %175 = vmatprep.subr.bf16.mxu0 0
    %176 = vmatpush1.bf16.msra.mxu0 %v131
    %177 = vmatprep.subr.bf16.mxu0 0
    %178 = vmatpush1.bf16.msra.mxu0 %v132
    %179 = vmatprep.subr.bf16.mxu0 0
    %180 = vmatpush1.bf16.msra.mxu0 %v133
    %181 = vmatprep.mubr.bf16.mxu0 %v110
    %182 = vmatmul.mubr.bf16.gmra.mrb[0].mxu0 %v109
    %v183 = vpop.f32.mrb[0].mxu0
    %v184 = vadd.f32 %v147, %v183
    %v185 = vpop.f32.mrb[0].mxu0
    %v186 = vpop.f32.mrb[0].mxu0
    %v187 = vadd.f32 %v147, %v186
    %v188 = vpop.f32.mrb[0].mxu0
    %189 = vmatprep.mubr.bf16.mxu0 %v113
    %190 = vmatmul.mubr.bf16.gmra.mrb[0].mxu0 %v112
    %v191 = vpop.f32.mrb[0].mxu0
    %v192 = vadd.f32 %v147, %v191
    %v193 = vpop.f32.mrb[0].mxu0
    %v194 = vpop.f32.mrb[0].mxu0
    %v195 = vadd.f32 %v147, %v194
    %v196 = vpop.f32.mrb[0].mxu0
    %197 = vmatprep.mubr.bf16.mxu0 %v116
    %198 = vmatmul.mubr.bf16.gmra.mrb[0].mxu0 %v115
    %v199 = vpop.f32.mrb[0].mxu0
    %v200 = vadd.f32 %v147, %v199
    %v201 = vpop.f32.mrb[0].mxu0
    %v202 = vpop.f32.mrb[0].mxu0
    %v203 = vadd.f32 %v147, %v202
    %v204 = vpop.f32.mrb[0].mxu0
    %205 = vdwg.mxu0
    %206 = vmatprep.subr.bf16.mxu0 0
    %207 = vmatpush1.bf16.msra.mxu0 %v134
    %208 = vmatprep.subr.bf16.mxu0 0
    %209 = vmatpush1.bf16.msra.mxu0 %v135
    %210 = vmatprep.subr.bf16.mxu0 0
    %211 = vmatpush1.bf16.msra.mxu0 %v136
    %212 = vmatprep.subr.bf16.mxu0 0
    %213 = vmatpush1.bf16.msra.mxu0 %v137
    %214 = vmatprep.subr.bf16.mxu0 0
    %215 = vmatpush1.bf16.msra.mxu0 %v138
    %216 = vmatprep.subr.bf16.mxu0 0
    %217 = vmatpush1.bf16.msra.mxu0 %v139
    %218 = vmatprep.subr.bf16.mxu0 0
    %219 = vmatpush1.bf16.msra.mxu0 %v140
    %220 = vmatprep.subr.bf16.mxu0 0
    %221 = vmatpush1.bf16.msra.mxu0 %v141
    %222 = vmatprep.subr.bf16.mxu0 0
    %223 = vmatpush1.bf16.msra.mxu0 0
    %224 = vmatprep.subr.bf16.mxu0 0
    %225 = vmatpush1.bf16.msra.mxu0 0
    %226 = vmatprep.subr.bf16.mxu0 0
    %227 = vmatpush1.bf16.msra.mxu0 0
    %228 = vmatprep.subr.bf16.mxu0 0
    %229 = vmatpush1.bf16.msra.mxu0 0
    %230 = vmatprep.subr.bf16.mxu0 0
    %231 = vmatpush1.bf16.msra.mxu0 0
    %232 = vmatprep.subr.bf16.mxu0 0
    %233 = vmatpush1.bf16.msra.mxu0 0
    %234 = vmatprep.subr.bf16.mxu0 0
    %235 = vmatpush1.bf16.msra.mxu0 0
    %236 = vmatprep.subr.bf16.mxu0 0
    %237 = vmatpush1.bf16.msra.mxu0 0
    %238 = vmatprep.mubr.bf16.mxu0 0
    %239 = vmatmul.mubr.bf16.gmra.mrb[0].mxu0 %v111
    %v240 = vpop.f32.mrb[0].mxu0
    %v241 = vadd.f32 %v184, %v240
    %v242 = vpop.f32.mrb[0].mxu0
    %v243 = vpop.f32.mrb[0].mxu0
    %v244 = vadd.f32 %v187, %v243
    %v245 = vpop.f32.mrb[0].mxu0
    %246 = vmatprep.mubr.bf16.mxu0 0
    %247 = vmatmul.mubr.bf16.gmra.mrb[0].mxu0 %v114
    %v248 = vpop.f32.mrb[0].mxu0
    %v249 = vadd.f32 %v192, %v248
    %v250 = vpop.f32.mrb[0].mxu0
    %v251 = vpop.f32.mrb[0].mxu0
    %v252 = vadd.f32 %v195, %v251
    %v253 = vpop.f32.mrb[0].mxu0
    %254 = vmatprep.mubr.bf16.mxu0 0
    %255 = vmatmul.mubr.bf16.gmra.mrb[0].mxu0 %v117
    %v256 = vpop.f32.mrb[0].mxu0
    %v257 = vadd.f32 %v200, %v256
    %v258 = vpop.f32.mrb[0].mxu0
    %v259 = vpop.f32.mrb[0].mxu0
    %v260 = vadd.f32 %v203, %v259
    %v261 = vpop.f32.mrb[0].mxu0
    %262 = vdwg.mxu0
    %v263 = vmax.f32 %v241, 0.0
    %v264 = vmax.f32 %v244, 0.0
    %v265 = vmax.f32 %v249, 0.0
    %v266 = vmax.f32 %v252, 0.0
    %v267 = vmax.f32 %v257, 0.0
    %v268 = vmax.f32 %v260, 0.0
    %v269 = vld [vmem:[%s8] sm:$0xff]
    %v270 = vld [vmem:[%s8 + $0x8] sm:$0xff]
    %v271 = vld [vmem:[%s8 + $0x10] sm:$0xff]
    %v272 = vld [vmem:[%s8 + $0x18] sm:$0xff]
    %v273 = vpack.c.bf16 %v264, %v263
    %v274 = vpack.c.bf16 %v266, %v265
    %v275 = vpack.c.bf16 %v268, %v267
    %v276 = vpack.c.bf16 %v270, %v269
    %v277 = vpack.c.bf16 %v272, %v271
    %v278 = vld [vmem:[%s9] sm:$0x1]
    %v280 = vlaneseq
    %v281 = vshrl.u32 %v280, 7
    %v282 = vsub.s32 0, %v281
    %v283 = vrot.slane %v278, %v282
    %vm285 = vcmask 261120
    %v287 = vsel %vm285, %v273, 0
    %v290 = vsel %vm285, %v274, 0
    %v293 = vsel %vm285, %v275, 0
    %295 = vmatprep.subr.bf16.mxu0 0
    %296 = vmatpush1.bf16.msra.mxu0 %v276
    %297 = vmatprep.subr.bf16.mxu0 0
    %298 = vmatpush1.bf16.msra.mxu0 %v277
    %299 = vmatprep.subr.bf16.mxu0 0
    %300 = vmatpush1.bf16.msra.mxu0 0
    %301 = vmatprep.subr.bf16.mxu0 0
    %302 = vmatpush1.bf16.msra.mxu0 0
    %303 = vmatprep.subr.bf16.mxu0 0
    %304 = vmatpush1.bf16.msra.mxu0 0
    %305 = vmatprep.subr.bf16.mxu0 0
    %306 = vmatpush1.bf16.msra.mxu0 0
    %307 = vmatprep.subr.bf16.mxu0 0
    %308 = vmatpush1.bf16.msra.mxu0 0
    %309 = vmatprep.subr.bf16.mxu0 0
    %310 = vmatpush1.bf16.msra.mxu0 0
    %311 = vmatprep.subr.bf16.mxu0 0
    %312 = vmatpush1.bf16.msra.mxu0 0
    %313 = vmatprep.subr.bf16.mxu0 0
    %314 = vmatpush1.bf16.msra.mxu0 0
    %315 = vmatprep.subr.bf16.mxu0 0
    %316 = vmatpush1.bf16.msra.mxu0 0
    %317 = vmatprep.subr.bf16.mxu0 0
    %318 = vmatpush1.bf16.msra.mxu0 0
    %319 = vmatprep.subr.bf16.mxu0 0
    %320 = vmatpush1.bf16.msra.mxu0 0
    %321 = vmatprep.subr.bf16.mxu0 0
    %322 = vmatpush1.bf16.msra.mxu0 0
    %323 = vmatprep.subr.bf16.mxu0 0
    %324 = vmatpush1.bf16.msra.mxu0 0
    %325 = vmatprep.subr.bf16.mxu0 0
    %326 = vmatpush1.bf16.msra.mxu0 0
    %327 = vmatprep.mubr.bf16.mxu0 0
    %328 = vmatmul.mubr.bf16.gmra.mrb[0].mxu0 %v287
    %v329 = vpop.f32.mrb[0].mxu0
    %v330 = vadd.f32 %v283, %v329
    %v331 = vpop.f32.mrb[0].mxu0
    %v332 = vpop.f32.mrb[0].mxu0
    %v333 = vadd.f32 %v283, %v332
    %v334 = vpop.f32.mrb[0].mxu0
    %335 = vmatprep.mubr.bf16.mxu0 0
    %336 = vmatmul.mubr.bf16.gmra.mrb[0].mxu0 %v290
    %v337 = vpop.f32.mrb[0].mxu0
    %v338 = vadd.f32 %v283, %v337
    %v339 = vpop.f32.mrb[0].mxu0
    %v340 = vpop.f32.mrb[0].mxu0
    %v341 = vadd.f32 %v283, %v340
    %v342 = vpop.f32.mrb[0].mxu0
    %343 = vmatprep.mubr.bf16.mxu0 0
    %344 = vmatmul.mubr.bf16.gmra.mrb[0].mxu0 %v293
    %v345 = vpop.f32.mrb[0].mxu0
    %v346 = vadd.f32 %v283, %v345
    %v347 = vpop.f32.mrb[0].mxu0
    %v348 = vpop.f32.mrb[0].mxu0
    %v349 = vadd.f32 %v283, %v348
    %v350 = vpop.f32.mrb[0].mxu0
    %351 = vdwg.mxu0
    %v352 = vld [vmem:[%s1] sm:$0xff]
    %v353 = vld [vmem:[%s1 + $0x8] sm:$0xff]
    %v354 = vld [vmem:[%s1 + $0x10] sm:$0xff]
    %v355 = vld [vmem:[%s1 + $0x18] sm:$0xff]
    %v356 = vld [vmem:[%s1 + $0x20] sm:$0xff]
    %v357 = vld [vmem:[%s1 + $0x28] sm:$0xff]
    %v358 = vmax.f32 %v352, 0.0
    %v359 = vmax.f32 %v353, 0.0
    %v360 = vmax.f32 %v354, 0.0
    %v361 = vmax.f32 %v355, 0.0
    %v362 = vmax.f32 %v356, 0.0
    %v363 = vmax.f32 %v357, 0.0
    %v364 = vmin.f32 %v358, 1.0
    %v365 = vmin.f32 %v359, 1.0
    %v366 = vmin.f32 %v360, 1.0
    %v367 = vmin.f32 %v361, 1.0
    %v368 = vmin.f32 %v362, 1.0
    %v369 = vmin.f32 %v363, 1.0
    %v370 = vlaneseq
    %v371 = vand.u32 %v370, 127
    %v372 = vld [vmem:[%s4] sm:$0xff]
    %v373 = vld [vmem:[%s4 + $0x8] sm:$0xff]
    %v374 = vld [vmem:[%s4 + $0x10] sm:$0xff]
    %v375 = vld [vmem:[%s4 + $0x18] sm:$0xff]
    %v376 = vld [vmem:[%s4 + $0x20] sm:$0xff]
    %v377 = vld [vmem:[%s4 + $0x28] sm:$0xff]
    %378 = vset.pattern.permute.xlu0 0
    %379 = vperm.xlu0 %378, %v372
    %v380 = vpop.permute.xlu0 %379
    %381 = vset.pattern.permute.xlu0 0
    %382 = vperm.xlu0 %381, %v373
    %v383 = vpop.permute.xlu0 %382
    %384 = vset.pattern.permute.xlu0 0
    %385 = vperm.xlu0 %384, %v374
    %v386 = vpop.permute.xlu0 %385
    %387 = vset.pattern.permute.xlu0 0
    %388 = vperm.xlu0 %387, %v375
    %v389 = vpop.permute.xlu0 %388
    %390 = vset.pattern.permute.xlu0 0
    %391 = vperm.xlu0 %390, %v376
    %v392 = vpop.permute.xlu0 %391
    %393 = vset.pattern.permute.xlu0 0
    %394 = vperm.xlu0 %393, %v377
    %v395 = vpop.permute.xlu0 %394
    %vm396 = vcmp.eq.s32.totalorder %v371, %v380
    %vm397 = vcmp.eq.s32.totalorder %v371, %v383
    %vm398 = vcmp.eq.s32.totalorder %v371, %v386
    %vm399 = vcmp.eq.s32.totalorder %v371, %v389
    %vm400 = vcmp.eq.s32.totalorder %v371, %v392
    %vm401 = vcmp.eq.s32.totalorder %v371, %v395
    %v402 = vsel %vm396, 1, 0
    %v403 = vsel %vm397, 1, 0
    %v404 = vsel %vm398, 1, 0
    %v405 = vsel %vm399, 1, 0
    %v406 = vsel %vm400, 1, 0
    %v407 = vsel %vm401, 1, 0
    %v408 = vcvt.s32.f32 %v402
    %v409 = vcvt.s32.f32 %v403
    %v410 = vcvt.s32.f32 %v404
    %v411 = vcvt.s32.f32 %v405
    %v412 = vcvt.s32.f32 %v406
    %v413 = vcvt.s32.f32 %v407
    %v414 = vld [vmem:[%s2] sm:$0xff]
    %v415 = vld [vmem:[%s2 + $0x8] sm:$0xff]
    %vm416 = vcmask 130048
    %v418 = vsel %vm416, %v408, 0
    %v421 = vsel %vm416, %v409, 0
    %v424 = vsel %vm416, %v410, 0
    %v427 = vsel %vm416, %v411, 0
    %v430 = vsel %vm416, %v412, 0
    %v433 = vsel %vm416, %v413, 0
    %435 = vmatprep.subr.mxu0 0.0
    %436 = vmatpush1.msra.mxu0 %v414
    %437 = vmatprep.subr.mxu0 0.0
    %438 = vmatpush1.msra.mxu0 %v415
    %439 = vmatprep.subr.mxu0 0.0
    %440 = vmatpush1.msra.mxu0 0.0
    %441 = vmatprep.subr.mxu0 0.0
    %442 = vmatpush1.msra.mxu0 0.0
    %443 = vmatprep.subr.mxu0 0.0
    %444 = vmatpush1.msra.mxu0 0.0
    %445 = vmatprep.subr.mxu0 0.0
    %446 = vmatpush1.msra.mxu0 0.0
    %447 = vmatprep.subr.mxu0 0.0
    %448 = vmatpush1.msra.mxu0 0.0
    %449 = vmatprep.subr.mxu0 0.0
    %450 = vmatpush1.msra.mxu0 0.0
    %451 = vmatprep.subr.mxu0 0.0
    %452 = vmatpush1.msra.mxu0 0.0
    %453 = vmatprep.subr.mxu0 0.0
    %454 = vmatpush1.msra.mxu0 0.0
    %455 = vmatprep.subr.mxu0 0.0
    %456 = vmatpush1.msra.mxu0 0.0
    %457 = vmatprep.subr.mxu0 0.0
    %458 = vmatpush1.msra.mxu0 0.0
    %459 = vmatprep.subr.mxu0 0.0
    %460 = vmatpush1.msra.mxu0 0.0
    %461 = vmatprep.subr.mxu0 0.0
    %462 = vmatpush1.msra.mxu0 0.0
    %463 = vmatprep.subr.mxu0 0.0
    %464 = vmatpush1.msra.mxu0 0.0
    %465 = vmatprep.subr.mxu0 0.0
    %466 = vmatpush1.msra.mxu0 0.0
    %467 = vmatprep.subr.mxu0 0.0
    %468 = vmatpush1.msra.mxu0 0.0
    %469 = vmatprep.subr.mxu0 0.0
    %470 = vmatpush1.msra.mxu0 0.0
    %471 = vmatprep.subr.mxu0 0.0
    %472 = vmatpush1.msra.mxu0 0.0
    %473 = vmatprep.subr.mxu0 0.0
    %474 = vmatpush1.msra.mxu0 0.0
    %475 = vmatprep.subr.mxu0 0.0
    %476 = vmatpush1.msra.mxu0 0.0
    %477 = vmatprep.subr.mxu0 0.0
    %478 = vmatpush1.msra.mxu0 0.0
    %479 = vmatprep.subr.mxu0 0.0
    %480 = vmatpush1.msra.mxu0 0.0
    %481 = vmatprep.subr.mxu0 0.0
    %482 = vmatpush1.msra.mxu0 0.0
    %483 = vmatprep.subr.mxu0 0.0
    %484 = vmatpush1.msra.mxu0 0.0
    %485 = vmatprep.subr.mxu0 0.0
    %486 = vmatpush1.msra.mxu0 0.0
    %487 = vmatprep.subr.mxu0 0.0
    %488 = vmatpush1.msra.mxu0 0.0
    %489 = vmatprep.subr.mxu0 0.0
    %490 = vmatpush1.msra.mxu0 0.0
    %491 = vmatprep.subr.mxu0 0.0
    %492 = vmatpush1.msra.mxu0 0.0
    %493 = vmatprep.subr.mxu0 0.0
    %494 = vmatpush1.msra.mxu0 0.0
    %495 = vmatprep.subr.mxu0 0.0
    %496 = vmatpush1.msra.mxu0 0.0
    %497 = vmatprep.subr.mxu0 0.0
    %498 = vmatpush1.msra.mxu0 0.0
    %499 = vmatprep.mubr.f32.mxu0 0.0
    %500 = vmatmul.mubr.f32.gmra.mrb[0].mxu0 %v418
    %v501 = vpop.f32.mrb[0].mxu0
    %v502 = vadd.f32 0.0, %v501
    %v503 = vpop.f32.mrb[0].mxu0
    %504 = vmatprep.mubr.f32.mxu0 0.0
    %505 = vmatmul.mubr.f32.gmra.mrb[0].mxu0 %v421
    %v506 = vpop.f32.mrb[0].mxu0
    %v507 = vadd.f32 0.0, %v506
    %v508 = vpop.f32.mrb[0].mxu0
    %509 = vmatprep.mubr.f32.mxu0 0.0
    %510 = vmatmul.mubr.f32.gmra.mrb[0].mxu0 %v424
    %v511 = vpop.f32.mrb[0].mxu0
    %v512 = vadd.f32 0.0, %v511
    %v513 = vpop.f32.mrb[0].mxu0
    %514 = vmatprep.mubr.f32.mxu0 0.0
    %515 = vmatmul.mubr.f32.gmra.mrb[0].mxu0 %v427
    %v516 = vpop.f32.mrb[0].mxu0
    %v517 = vadd.f32 0.0, %v516
    %v518 = vpop.f32.mrb[0].mxu0
    %519 = vmatprep.mubr.f32.mxu0 0.0
    %520 = vmatmul.mubr.f32.gmra.mrb[0].mxu0 %v430
    %v521 = vpop.f32.mrb[0].mxu0
    %v522 = vadd.f32 0.0, %v521
    %v523 = vpop.f32.mrb[0].mxu0
    %524 = vmatprep.mubr.f32.mxu0 0.0
    %525 = vmatmul.mubr.f32.gmra.mrb[0].mxu0 %v433
    %v526 = vpop.f32.mrb[0].mxu0
    %v527 = vadd.f32 0.0, %v526
    %v528 = vpop.f32.mrb[0].mxu0
    %529 = vdwg.mxu0
    %v530 = vadd.f32 %v364, 0.01
    %v531 = vadd.f32 %v365, 0.01
    %v532 = vadd.f32 %v366, 0.01
    %v533 = vadd.f32 %v367, 0.01
    %v534 = vadd.f32 %v368, 0.01
    %v535 = vadd.f32 %v369, 0.01
    %537 = vset.pattern.permute.xlu0 0
    %538 = vperm.xlu0 %537, %v530
    %v539 = vpop.permute.xlu0 %538
    %542 = vset.pattern.permute.xlu0 0
    %543 = vperm.xlu0 %542, %v531
    %v544 = vpop.permute.xlu0 %543
    %547 = vset.pattern.permute.xlu0 0
    %548 = vperm.xlu0 %547, %v532
    %v549 = vpop.permute.xlu0 %548
    %552 = vset.pattern.permute.xlu0 0
    %553 = vperm.xlu0 %552, %v533
    %v554 = vpop.permute.xlu0 %553
    %557 = vset.pattern.permute.xlu0 0
    %558 = vperm.xlu0 %557, %v534
    %v559 = vpop.permute.xlu0 %558
    %562 = vset.pattern.permute.xlu0 0
    %563 = vperm.xlu0 %562, %v535
    %v564 = vpop.permute.xlu0 %563
    %v566 = vmul.f32 %v330, %v539
    %v567 = vmul.f32 %v333, %v544
    %v568 = vmul.f32 %v338, %v549
    %v569 = vmul.f32 %v341, %v554
    %v570 = vmul.f32 %v346, %v559
    %v571 = vmul.f32 %v349, %v564
    %v572 = vmul.f32 %v502, %v566
    %v573 = vmul.f32 %v507, %v567
    %v574 = vmul.f32 %v512, %v568
    %v575 = vmul.f32 %v517, %v569
    %v576 = vmul.f32 %v522, %v570
    %v577 = vmul.f32 %v527, %v571
    %v578 = vlaneseq
    %v579 = vshrl.u32 %v578, 7
    %v580 = vadd.s32 %v579, 8
    %v581 = vadd.s32 %v579, 16
    %v582 = vld [vmem:[%s5] sm:$0x1]
    %v583 = vlaneseq
    %v584 = vshrl.u32 %v583, 7
    %v585 = vsub.s32 0, %v584
    %v586 = vrot.slane %v582, %v585
    %vm587 = vcmp.eq.s32.totalorder %v579, %v586
    %vm588 = vcmp.eq.s32.totalorder %v580, %v586
    %vm589 = vcmp.eq.s32.totalorder %v581, %v586
    %v590 = vsel %vm587, 1, 0
    %v591 = vsel %vm588, 1, 0
    %v592 = vsel %vm589, 1, 0
    %v593 = vcvt.s32.f32 %v590
    %v594 = vcvt.s32.f32 %v591
    %v595 = vcvt.s32.f32 %v592
    %v596 = vld [vmem:[%s3] sm:$0xff]
    %v597 = vld [vmem:[%s3 + $0x8] sm:$0xff]
    %v598 = vld [vmem:[%s3 + $0x10] sm:$0xff]
    %vm599 = vcmask 392192
    %v601 = vsel %vm599, %v593, 0
    %v604 = vsel %vm599, %v594, 0
    %v607 = vsel %vm599, %v595, 0
    %609 = vmatprep.subr.mxu0 0.0
    %610 = vmatpush1.msra.mxu0 %v572
    %611 = vmatprep.subr.mxu0 0.0
    %612 = vmatpush1.msra.mxu0 %v573
    %613 = vmatprep.subr.mxu0 0.0
    %614 = vmatpush1.msra.mxu0 %v574
    %615 = vmatprep.subr.mxu0 0.0
    %616 = vmatpush1.msra.mxu0 %v575
    %617 = vmatprep.subr.mxu0 0.0
    %618 = vmatpush1.msra.mxu0 %v576
    %619 = vmatprep.subr.mxu0 0.0
    %620 = vmatpush1.msra.mxu0 %v577
    %621 = vmatprep.subr.mxu0 0.0
    %622 = vmatpush1.msra.mxu0 0.0
    %623 = vmatprep.subr.mxu0 0.0
    %624 = vmatpush1.msra.mxu0 0.0
    %625 = vmatprep.subr.mxu0 0.0
    %626 = vmatpush1.msra.mxu0 0.0
    %627 = vmatprep.subr.mxu0 0.0
    %628 = vmatpush1.msra.mxu0 0.0
    %629 = vmatprep.subr.mxu0 0.0
    %630 = vmatpush1.msra.mxu0 0.0
    %631 = vmatprep.subr.mxu0 0.0
    %632 = vmatpush1.msra.mxu0 0.0
    %633 = vmatprep.subr.mxu0 0.0
    %634 = vmatpush1.msra.mxu0 0.0
    %635 = vmatprep.subr.mxu0 0.0
    %636 = vmatpush1.msra.mxu0 0.0
    %637 = vmatprep.subr.mxu0 0.0
    %638 = vmatpush1.msra.mxu0 0.0
    %639 = vmatprep.subr.mxu0 0.0
    %640 = vmatpush1.msra.mxu0 0.0
    %641 = vmatprep.subr.mxu0 0.0
    %642 = vmatpush1.msra.mxu0 0.0
    %643 = vmatprep.subr.mxu0 0.0
    %644 = vmatpush1.msra.mxu0 0.0
    %645 = vmatprep.subr.mxu0 0.0
    %646 = vmatpush1.msra.mxu0 0.0
    %647 = vmatprep.subr.mxu0 0.0
    %648 = vmatpush1.msra.mxu0 0.0
    %649 = vmatprep.subr.mxu0 0.0
    %650 = vmatpush1.msra.mxu0 0.0
    %651 = vmatprep.subr.mxu0 0.0
    %652 = vmatpush1.msra.mxu0 0.0
    %653 = vmatprep.subr.mxu0 0.0
    %654 = vmatpush1.msra.mxu0 0.0
    %655 = vmatprep.subr.mxu0 0.0
    %656 = vmatpush1.msra.mxu0 0.0
    %657 = vmatprep.subr.mxu0 0.0
    %658 = vmatpush1.msra.mxu0 0.0
    %659 = vmatprep.subr.mxu0 0.0
    %660 = vmatpush1.msra.mxu0 0.0
    %661 = vmatprep.subr.mxu0 0.0
    %662 = vmatpush1.msra.mxu0 0.0
    %663 = vmatprep.subr.mxu0 0.0
    %664 = vmatpush1.msra.mxu0 0.0
    %665 = vmatprep.subr.mxu0 0.0
    %666 = vmatpush1.msra.mxu0 0.0
    %667 = vmatprep.subr.mxu0 0.0
    %668 = vmatpush1.msra.mxu0 0.0
    %669 = vmatprep.subr.mxu0 0.0
    %670 = vmatpush1.msra.mxu0 0.0
    %671 = vmatprep.subr.mxu0 0.0
    %672 = vmatpush1.msra.mxu0 0.0
    %673 = vmatprep.mubr.f32.mxu0 0.0
    %674 = vmatmul.mubr.f32.gmra.mrb[0].mxu0 %v601
    %v675 = vpop.f32.mrb[0].mxu0
    %v676 = vadd.f32 0.0, %v675
    %v677 = vpop.f32.mrb[0].mxu0
    %678 = vmatprep.mubr.f32.mxu0 0.0
    %679 = vmatmul.mubr.f32.gmra.mrb[0].mxu0 %v604
    %v680 = vpop.f32.mrb[0].mxu0
    %v681 = vadd.f32 0.0, %v680
    %v682 = vpop.f32.mrb[0].mxu0
    %683 = vmatprep.mubr.f32.mxu0 0.0
    %684 = vmatmul.mubr.f32.gmra.mrb[0].mxu0 %v607
    %v685 = vpop.f32.mrb[0].mxu0
    %v686 = vadd.f32 0.0, %v685
    %v687 = vpop.f32.mrb[0].mxu0
    %688 = vdwg.mxu0
    %v689 = vadd.f32 %v596, %v676
    %v690 = vadd.f32 %v597, %v681
    %v691 = vadd.f32 %v598, %v686
    %v692 = vsel %vm285, %v689, 0.0
    %693 = vadd.xlane.f32.xlu0 %v692
    %v694 = vpop.xlane.xlu0 %693
    %v695 = vsel %vm285, %v690, 0.0
    %696 = vadd.xlane.f32.xlu0 %v695
    %v697 = vpop.xlane.xlu0 %696
    %v698 = vsel %vm285, %v691, 0.0
    %699 = vadd.xlane.f32.xlu0 %v698
    %v700 = vpop.xlane.xlu0 %699
    %v701 = vrcp.pop 32.0
    %v702 = vmul.f32 %v694, %v701
    %v703 = vmul.f32 %v697, %v701
    %v704 = vmul.f32 %v700, %v701
    %v705 = vsub.f32 %v689, %v702
    %v706 = vsub.f32 %v690, %v703
    %v707 = vsub.f32 %v691, %v704
    %v708 = vmul.f32 %v705, %v705
    %v709 = vmul.f32 %v706, %v706
    %v710 = vmul.f32 %v707, %v707
    %v711 = vsel %vm285, %v708, 0.0
    %712 = vadd.xlane.f32.xlu0 %v711
    %v713 = vpop.xlane.xlu0 %712
    %v714 = vsel %vm285, %v709, 0.0
    %715 = vadd.xlane.f32.xlu0 %v714
    %v716 = vpop.xlane.xlu0 %715
    %v717 = vsel %vm285, %v710, 0.0
    %718 = vadd.xlane.f32.xlu0 %v717
    %v719 = vpop.xlane.xlu0 %718
    %v720 = vmul.f32 %v713, %v701
    %v721 = vmul.f32 %v716, %v701
    %v722 = vmul.f32 %v719, %v701
    %v723 = vadd.f32 %v720, 1e-05
    %v724 = vadd.f32 %v721, 1e-05
    %v725 = vadd.f32 %v722, 1e-05
    %v726 = vrsqrt.pop %v723
    %v727 = vrsqrt.pop %v724
    %v728 = vrsqrt.pop %v725
    %v729 = vmul.f32 %v705, %v726
    %v730 = vmul.f32 %v706, %v727
    %v731 = vmul.f32 %v707, %v728
    %v732 = vld [vmem:[%s10] sm:$0x1]
    %v734 = vlaneseq
    %v735 = vshrl.u32 %v734, 7
    %v736 = vsub.s32 0, %v735
    %v737 = vrot.slane %v732, %v736
    %v739 = vmul.f32 %v729, %v737
    %v740 = vmul.f32 %v730, %v737
    %v741 = vmul.f32 %v731, %v737
    %v742 = vld [vmem:[%s11] sm:$0x1]
    %v744 = vlaneseq
    %v745 = vshrl.u32 %v744, 7
    %v746 = vsub.s32 0, %v745
    %v747 = vrot.slane %v742, %v746
    %v749 = vadd.f32 %v739, %v747
    %v750 = vadd.f32 %v740, %v747
    %v751 = vadd.f32 %v741, %v747
    %v752 = vmax.f32 %v749, 0.0
    %v753 = vmax.f32 %v750, 0.0
    %v754 = vmax.f32 %v751, 0.0
    %755 = vst.msk [vmem:[#allocation2] sm:$0xff] %vm285, %v752
    %756 = vst.msk [vmem:[#allocation2 + $0x8] sm:$0xff] %vm285, %v753
    %757 = vst.msk [vmem:[#allocation2 + $0x10] sm:$0xff] %vm285, %v754
    // Predicated region
    $region50: #{legislative_graph_encoder.32} parent=1 // pred_check
      _
    $region51: #{legislative_graph_encoder.32} parent=1 // pred_check_branch
      %759 = sbr.rel (0) target = $region53
    $region52: #{legislative_graph_encoder.32} parent=1 // pred_region
      %s761 = ssub.s32 384, 384
      %762 = vsyncadd [#allocation3], %s761
      %s763 = sshll.u32 [#allocation2], 4
      %s764 = int_to_ptr.vmem [resolvable:$true] %s763
      %769 = dma.vmem_to_hbm [thread:$0]  %s764, 384, %s12, [#allocation3], 128, 128, 8
    $region53: #{legislative_graph_encoder.32} parent=1 // pred_fallthru
      _
    // Predicated region
    $region54: #{legislative_graph_encoder.32} parent=1 // pred_check
      _
    $region55: #{legislative_graph_encoder.32} parent=1 // pred_check_branch
      %771 = sbr.rel (0) target = $region57
    $region56: #{legislative_graph_encoder.32} parent=1 // pred_region
      %772 = dma.done [#allocation3], 384
    $region57: #{legislative_graph_encoder.32} parent=1 // pred_fallthru
      _
    %773 = vsyncpa [#allocation3], 1

</llo_original>
